<compile_context>
chip_gen: v7x
topology: tpu7x:2x2x1
jax: 0.10.0
libtpu: 0.0.40
codegen_flags: <defaults>
</compile_context>

<pallas_src>
import functools

import jax
import jax.numpy as jnp
from jax import lax
from jax.experimental import pallas as pl
from jax.experimental.pallas import tpu as pltpu


def _round_up(x, m):
    return (x + m - 1) // m * m


def _pick_tile(n, cap):
    for c in (1024, 512, 256, 128, 64, 32, 16, 8):
        if c <= cap and n % c == 0:
            return c
    return n                       # full dim (always a legal block dim)


def _choose_tm(mp, cap=512):
    # Big tiles amortize the ~0.35 us/step pipeline overhead, but keep >= 2
    # grid steps when possible so work shards across both v7x TensorCores.
    return _pick_tile(mp, min(cap, max(8, mp // 2)))


# ============================= Pallas kernels =============================

def _mm_bias_kernel(a_ref, b_ref, bias_ref, o_ref):
    """o = a @ b + bias.  Full-K block (single shot, no accumulator scratch),
    bf16 MXU inputs cast in-kernel, f32 accumulation, bias fused."""
    a = a_ref[...].astype(jnp.bfloat16)
    b = b_ref[...].astype(jnp.bfloat16)
    acc = jnp.dot(a, b, preferred_element_type=jnp.float32)
    o_ref[...] = (acc + bias_ref[...]).astype(o_ref.dtype)


def pallas_matmul_bias(a, b, bias, out_dtype=jnp.float32):
    """(M, K) @ (K, N) + bias on the MXU.  K and N are full (unpadded) block
    dims; only M is padded to a multiple of 8, and only when needed."""
    M, K = a.shape
    K2, N = b.shape
    assert K == K2
    Mp = _round_up(M, 8)
    if Mp != M:
        a = jnp.pad(a, ((0, Mp - M), (0, 0)))
    tm = _choose_tm(Mp)
    tn = N if N <= 512 else _pick_tile(N, 512)

    out = pl.pallas_call(
        _mm_bias_kernel,
        out_shape=jax.ShapeDtypeStruct((Mp, N), out_dtype),
        grid_spec=pltpu.PrefetchScalarGridSpec(
            num_scalar_prefetch=0,
            grid=(Mp // tm, N // tn),
            in_specs=[pl.BlockSpec((tm, K), lambda i, j: (i, 0)),
                      pl.BlockSpec((K, tn), lambda i, j: (0, j)),
                      pl.BlockSpec((1, tn), lambda i, j: (0, j))],
            out_specs=pl.BlockSpec((tm, tn), lambda i, j: (i, j))),
        compiler_params=pltpu.CompilerParams(
            dimension_semantics=("parallel", "parallel")),
    )(a, b, bias)
    return out[:M] if Mp != M else out


def _ln_mm_kernel(x_ref, w_ref, bias_ref, o_ref, *, eps):
    """Row LayerNorm (over the full last dim, gamma/beta pre-folded into
    w/bias) fused with the kv projection matmul."""
    x = x_ref[...].astype(jnp.float32)
    mu = jnp.mean(x, axis=-1, keepdims=True)
    var = jnp.mean(jnp.square(x - mu), axis=-1, keepdims=True)
    xh = (x - mu) * lax.rsqrt(var + eps)
    acc = jnp.dot(xh.astype(jnp.bfloat16), w_ref[...].astype(jnp.bfloat16),
                  preferred_element_type=jnp.float32)
    o_ref[...] = (acc + bias_ref[...]).astype(o_ref.dtype)


def pallas_ln_matmul(x, w, bias, out_dtype=jnp.bfloat16, eps=1e-5):
    """LayerNorm(x) @ w + bias where gamma/beta were folded into (w, bias)."""
    M, C = x.shape
    C2, N = w.shape
    assert C == C2
    Mp = _round_up(M, 8)
    if Mp != M:
        x = jnp.pad(x, ((0, Mp - M), (0, 0)))
    tm = _choose_tm(Mp)
    out = pl.pallas_call(
        functools.partial(_ln_mm_kernel, eps=eps),
        out_shape=jax.ShapeDtypeStruct((Mp, N), out_dtype),
        grid_spec=pltpu.PrefetchScalarGridSpec(
            num_scalar_prefetch=0,
            grid=(Mp // tm,),
            in_specs=[pl.BlockSpec((tm, C), lambda i: (i, 0)),
                      pl.BlockSpec((C, N), lambda i: (0, 0)),
                      pl.BlockSpec((1, N), lambda i: (0, 0))],
            out_specs=pl.BlockSpec((tm, N), lambda i: (i, 0))),
        compiler_params=pltpu.CompilerParams(
            dimension_semantics=("parallel",)),
    )(x, w, bias)
    return out[:M] if Mp != M else out


def _attn_proj_kernel(q_ref, kv_ref, pw_ref, pb_ref, o_ref, *, scale, heads, hd):
    """Fused (all heads batched) QK^T -> softmax -> AV -> proj for one
    (batch, query-tile) block.

    q block is (tq, C) in token-major layout; kv block is (M, 2C) with the
    first C columns = K(all heads), last C = V(all heads), so per-head slices
    are static lane slices and the K/V DMA is shared across heads.  Softmax
    math stays f32 (v5e has no bf16 VPU/EUP); the denominator uses the EUP
    approx reciprocal (~2^-12 rel err -- fine for inference).  The proj matmul
    is accumulated per head (o_cat @ W == sum_h o_h @ W[h-block]), so the final
    lane-dense (tq, C) tile is written once, already in (B, N, C) layout."""
    C = heads * hd
    q = q_ref[0]                                   # (tq, C)  bf16
    kvt = kv_ref[0]                                # (M, 2C)  bf16
    pw = pw_ref[...].astype(jnp.bfloat16)          # (C, C)
    tq = q.shape[0]
    acc = jnp.zeros((tq, C), jnp.float32)
    for h in range(heads):                         # static, small
        lo, hi = h * hd, (h + 1) * hd
        qh = q[:, lo:hi]                           # (tq, hd)
        kh = kvt[:, lo:hi]                         # (M, hd)
        vh = kvt[:, C + lo:C + hi]                 # (M, hd)
        s = lax.dot_general(qh, kh, (((1,), (1,)), ((), ())),
                            preferred_element_type=jnp.float32) * scale
        m = jnp.max(s, axis=-1, keepdims=True)
        p = jnp.exp(s - m)                         # EUP, f32
        l = jnp.sum(p, axis=-1, keepdims=True)
        pv = jnp.dot(p.astype(jnp.bfloat16), vh,
                     preferred_element_type=jnp.float32)          # (tq, hd)
        oh = (pv * pl.reciprocal(l, approx=True)).astype(jnp.bfloat16)
        acc = acc + jnp.dot(oh, pw[lo:hi, :],
                            preferred_element_type=jnp.float32)   # proj slice
    o_ref[0] = (acc + pb_ref[...]).astype(o_ref.dtype)


def pallas_attention_proj(q, kv, proj_w, proj_b, scale, heads):
    """q: (B, N, C) bf16, kv: (B, M, 2C) bf16 -> (B, N, C) f32 (proj fused)."""
    B, N, C = q.shape
    M = kv.shape[1]
    hd = C // heads
    tq = _pick_tile(N, 256)
    kernel = functools.partial(_attn_proj_kernel, scale=scale, heads=heads, hd=hd)
    return pl.pallas_call(
        kernel,
        out_shape=jax.ShapeDtypeStruct((B, N, C), jnp.float32),
        grid_spec=pltpu.PrefetchScalarGridSpec(
            num_scalar_prefetch=0,
            grid=(B, N // tq),
            in_specs=[pl.BlockSpec((1, tq, C), lambda b, i: (b, i, 0)),
                      pl.BlockSpec((1, M, 2 * C), lambda b, i: (b, 0, 0)),
                      pl.BlockSpec((C, C), lambda b, i: (0, 0)),
                      pl.BlockSpec((1, C), lambda b, i: (0, 0))],
            out_specs=pl.BlockSpec((1, tq, C), lambda b, i: (b, i, 0))),
        compiler_params=pltpu.CompilerParams(
            dimension_semantics=("parallel", "parallel")),
    )(q, kv, proj_w, proj_b)


# ============================= module forward =============================

def attention_forward(p, x, H, W, L, num_heads, sr_ratio):
    """Faithful port of Attention.forward (attn_drop = proj_drop = 0)."""
    B, N, C = x.shape
    hd = C // num_heads
    scale = hd ** -0.5

    # q projection (bias=False, qkv_bias default) -> bf16 in (B, N, C) layout
    q = pallas_matmul_bias(x.reshape(B * N, C), p['q_w'],
                           jnp.zeros((1, C), jnp.float32),
                           out_dtype=jnp.bfloat16).reshape(B, N, C)

    if sr_ratio > 1:
        sr = sr_ratio
        assert H % sr == 0 and W % sr == 0 and L % sr == 0
        oH, oW, oL = H // sr, W // sr, L // sr
        Mkv = oH * oW * oL
        # nn.Conv3d(C, C, kernel=sr, stride=sr): exact non-overlapping patch
        # matmul.  Patches built directly from the token layout (no NCDHW
        # transpose); weight reordered to match (kd, kh, kw, ci) patch order.
        xp = x.reshape(B, oH, sr, oW, sr, oL, sr, C)
        xp = xp.transpose(0, 1, 3, 5, 2, 4, 6, 7).reshape(B * Mkv, sr ** 3 * C)
        wm = p['sr_w'].transpose(2, 3, 4, 1, 0).reshape(sr ** 3 * C, C)
        x_tok = pallas_matmul_bias(xp, wm, p['sr_b'].reshape(1, C),
                                   out_dtype=jnp.float32)          # (B*Mkv, C)
        # LayerNorm folded into the kv projection: LN(x)@W = x_hat@(diag(g)W) + b@W
        kv_w = p['norm_g'][:, None] * p['kv_w']
        kv_b = (p['norm_b'] @ p['kv_w']).reshape(1, 2 * C)
        kv = pallas_ln_matmul(x_tok, kv_w, kv_b, out_dtype=jnp.bfloat16)
    else:
        Mkv = N
        kv = pallas_matmul_bias(x.reshape(B * N, C), p['kv_w'],
                                jnp.zeros((1, 2 * C), jnp.float32),
                                out_dtype=jnp.bfloat16)
    kv = kv.reshape(B, Mkv, 2 * C)      # [:, :, :C] = K(all heads), [:, :, C:] = V

    # fused QK^T -> softmax -> AV -> proj (+bias), written directly as (B, N, C)
    # TODO(synk): nn.Dropout(attn_drop)/Dropout(proj_drop) are identity at p=0.0.
    return pallas_attention_proj(q, kv, p['proj_w'], p['proj_b'].reshape(1, C),
                                 scale, num_heads)


# ---------------------------- pure-JAX reference ----------------------------

def attention_reference(p, x, H, W, L, num_heads, sr_ratio):
    B, N, C = x.shape
    hd = C // num_heads
    scale = hd ** -0.5
    q = (x @ p['q_w']).reshape(B, N, num_heads, hd).transpose(0, 2, 1, 3)
    if sr_ratio > 1:
        sr = sr_ratio
        x_ = x.transpose(0, 2, 1).reshape(B, C, H, W, L)
        y = lax.conv_general_dilated(
            x_, p['sr_w'], window_strides=(sr, sr, sr), padding='VALID',
            dimension_numbers=('NCDHW', 'OIDHW', 'NCDHW'))
        y = y + p['sr_b'].reshape(1, C, 1, 1, 1)
        x_tok = y.reshape(B, C, -1).transpose(0, 2, 1)
        mu = x_tok.mean(-1, keepdims=True)
        var = ((x_tok - mu) ** 2).mean(-1, keepdims=True)
        kv_src = (x_tok - mu) / jnp.sqrt(var + 1e-5) * p['norm_g'] + p['norm_b']
    else:
        kv_src = x
    Mkv = kv_src.shape[1]
    kv = (kv_src @ p['kv_w']).reshape(B, Mkv, 2, num_heads, hd).transpose(2, 0, 3, 1, 4)
    k, v = kv[0], kv[1]
    attn = jnp.einsum('bhnd,bhmd->bhnm', q, k) * scale
    attn = jax.nn.softmax(attn, axis=-1)
    o = jnp.einsum('bhnm,bhmd->bhnd', attn, v).transpose(0, 2, 1, 3).reshape(B, N, C)
    return o @ p['proj_w'] + p['proj_b']


# =================================== main ===================================

if __name__ == "__main__":
    B, C, heads, sr = 2, 64, 4, 2          # dim=64, num_heads=4 (head_dim=16), sr_ratio=2
    H = W = L = 8                          # N = 512 tokens, M = 64 kv tokens after sr
    N = H * W * L

    key = jax.random.PRNGKey(0)
    ks = jax.random.split(key, 8)

    def randn(k, shape, std=0.02):
        return std * jax.random.normal(k, shape, jnp.float32)

    params = {
        'q_w':    randn(ks[0], (C, C)),            # stored as (in, out)
        'kv_w':   randn(ks[1], (C, 2 * C)),
        'proj_w': randn(ks[2], (C, C)),
        'proj_b': randn(ks[3], (C,)),
        'sr_w':   randn(ks[4], (C, C, sr, sr, sr)),
        'sr_b':   randn(ks[5], (C,)),
        'norm_g': jnp.ones((C,), jnp.float32),
        'norm_b': jnp.zeros((C,), jnp.float32),
    }
    x = jax.random.normal(ks[6], (B, N, C), jnp.float32)

    @jax.jit
    def run(p, xin):
        return attention_forward(p, xin, H, W, L, heads, sr)

    out = run(params, x)
    jax.block_until_ready(out)
    assert out.shape == (B, N, C)

    ref = attention_reference(params, x, H, W, L, heads, sr)
    if not bool(jnp.allclose(out, ref, atol=1e-2, rtol=5e-2)):
        raise AssertionError(
            f"mismatch vs reference: max abs err {float(jnp.max(jnp.abs(out - ref)))}")

    print("KERNEL_OK")
</pallas_src>

<mosaic_0001>
module attributes {stable_mosaic.version = 11 : i64} {
  func.func @_mm_bias_kernel(%arg0: i32, %arg1: i32, %arg2: memref<64x512xf32, #tpu.memory_space<vmem>>, %arg3: memref<512x64xf32, #tpu.memory_space<vmem>>, %arg4: memref<1x64xf32, #tpu.memory_space<vmem>>, %arg5: memref<64x64xf32, #tpu.memory_space<vmem>>) attributes {dimension_semantics = [#tpu.dimension_semantics<parallel>, #tpu.dimension_semantics<parallel>], iteration_bounds = array<i64: 2, 1>, scalar_prefetch = 0 : i64, scratch_operands = 0 : i64, tpu.core_type = #tpu.core_type<tc>, window_params = [{transform_indices = @transform_0, window_bounds = array<i64: 64, 512>}, {transform_indices = @transform_1, window_bounds = array<i64: 512, 64>}, {transform_indices = @transform_2, window_bounds = array<i64: 1, 64>}, {transform_indices = @transform_3, window_bounds = array<i64: 64, 64>}]} {
    %c0 = arith.constant 0 : index
    %c0_0 = arith.constant 0 : index
    %0 = vector.load %arg2[%c0, %c0_0] : memref<64x512xf32, #tpu.memory_space<vmem>>, vector<64x512xf32>
    %1 = arith.truncf %0 : vector<64x512xf32> to vector<64x512xbf16>
    %c0_1 = arith.constant 0 : index
    %c0_2 = arith.constant 0 : index
    %2 = vector.load %arg3[%c0_1, %c0_2] : memref<512x64xf32, #tpu.memory_space<vmem>>, vector<512x64xf32>
    %3 = arith.truncf %2 : vector<512x64xf32> to vector<512x64xbf16>
    %cst = arith.constant dense<0.000000e+00> : vector<64x64xf32>
    %4 = tpu.matmul %1, %3, %cst {dimension_numbers = #tpu.dot_dimension_numbers<[1], [0], [0], [1], [0, 0, 1, 1], [], []>} : vector<64x512xbf16>, vector<512x64xbf16>, vector<64x64xf32> -> vector<64x64xf32>
    %c0_3 = arith.constant 0 : index
    %c0_4 = arith.constant 0 : index
    %5 = vector.load %arg4[%c0_3, %c0_4] : memref<1x64xf32, #tpu.memory_space<vmem>>, vector<1x64xf32>
    %6 = vector.broadcast %5 : vector<1x64xf32> to vector<64x64xf32>
    %7 = arith.addf %4, %6 : vector<64x64xf32>
    %c0_5 = arith.constant 0 : index
    %c0_6 = arith.constant 0 : index
    %8 = vector.load %arg5[%c0_5, %c0_6] : memref<64x64xf32, #tpu.memory_space<vmem>>, vector<64x64xf32>
    tpu.vector_store %arg5[%c0_5, %c0_6], %7 {strides = array<i32>} : memref<64x64xf32, #tpu.memory_space<vmem>>, vector<64x64xf32>,
    return
  }
  func.func @transform_0(%arg0: i32, %arg1: i32) -> (i32, i32) {
    %c0_i32 = arith.constant 0 : i32
    %c0_i32_0 = arith.constant 0 : i32
    return %arg0, %c0_i32 : i32, i32
  }
  func.func @transform_1(%arg0: i32, %arg1: i32) -> (i32, i32) {
    %c0_i32 = arith.constant 0 : i32
    %c0_i32_0 = arith.constant 0 : i32
    return %c0_i32, %arg1 : i32, i32
  }
  func.func @transform_2(%arg0: i32, %arg1: i32) -> (i32, i32) {
    %c0_i32 = arith.constant 0 : i32
    %c0_i32_0 = arith.constant 0 : i32
    return %c0_i32, %arg1 : i32, i32
  }
  func.func @transform_3(%arg0: i32, %arg1: i32) -> (i32, i32) {
    %c0_i32 = arith.constant 0 : i32
    return %arg0, %arg1 : i32, i32
  }
}

module attributes {stable_mosaic.version = 11 : i64} {
  func.func @_ln_mm_kernel(%arg0: i32, %arg1: memref<64x64xf32, #tpu.memory_space<vmem>>, %arg2: memref<64x128xf32, #tpu.memory_space<vmem>>, %arg3: memref<1x128xf32, #tpu.memory_space<vmem>>, %arg4: memref<64x128xbf16, #tpu.memory_space<vmem>>) attributes {dimension_semantics = [#tpu.dimension_semantics<parallel>], iteration_bounds = array<i64: 2>, scalar_prefetch = 0 : i64, scratch_operands = 0 : i64, tpu.core_type = #tpu.core_type<tc>, window_params = [{transform_indices = @transform_0, window_bounds = array<i64: 64, 64>}, {pipeline_mode = #tpu.pipeline_mode<synchronous>, transform_indices = @transform_1, window_bounds = array<i64: 64, 128>}, {pipeline_mode = #tpu.pipeline_mode<synchronous>, transform_indices = @transform_2, window_bounds = array<i64: 1, 128>}, {transform_indices = @transform_3, window_bounds = array<i64: 64, 128>}]} {
    %c0 = arith.constant 0 : index
    %c0_0 = arith.constant 0 : index
    %0 = vector.load %arg1[%c0, %c0_0] : memref<64x64xf32, #tpu.memory_space<vmem>>, vector<64x64xf32>
    %cst = arith.constant dense<0.000000e+00> : vector<64xf32>
    %1 = vector.multi_reduction <add>, %0, %cst [1] : vector<64x64xf32> to vector<64xf32>
    %2 = vector.shape_cast %1 : vector<64xf32> to vector<64x1xf32>
    %cst_1 = arith.constant 6.400000e+01 : f32
    %3 = vector.broadcast %cst_1 : f32 to vector<64x1xf32>
    %4 = arith.divf %2, %3 : vector<64x1xf32>
    %5 = vector.broadcast %4 : vector<64x1xf32> to vector<64x64xf32>
    %6 = arith.subf %0, %5 : vector<64x64xf32>
    %7 = arith.mulf %6, %6 : vector<64x64xf32>
    %cst_2 = arith.constant dense<0.000000e+00> : vector<64xf32>
    %8 = vector.multi_reduction <add>, %7, %cst_2 [1] : vector<64x64xf32> to vector<64xf32>
    %9 = vector.shape_cast %8 : vector<64xf32> to vector<64x1xf32>
    %cst_3 = arith.constant 6.400000e+01 : f32
    %10 = vector.broadcast %cst_3 : f32 to vector<64x1xf32>
    %11 = arith.divf %9, %10 : vector<64x1xf32>
    %12 = vector.broadcast %4 : vector<64x1xf32> to vector<64x64xf32>
    %13 = arith.subf %0, %12 : vector<64x64xf32>
    %cst_4 = arith.constant 9.99999974E-6 : f32
    %14 = vector.broadcast %cst_4 : f32 to vector<64x1xf32>
    %15 = arith.addf %11, %14 : vector<64x1xf32>
    %16 = math.rsqrt %15 : vector<64x1xf32>
    %17 = vector.broadcast %16 : vector<64x1xf32> to vector<64x64xf32>
    %18 = arith.mulf %13, %17 : vector<64x64xf32>
    %19 = arith.truncf %18 : vector<64x64xf32> to vector<64x64xbf16>
    %c0_5 = arith.constant 0 : index
    %c0_6 = arith.constant 0 : index
    %20 = vector.load %arg2[%c0_5, %c0_6] : memref<64x128xf32, #tpu.memory_space<vmem>>, vector<64x128xf32>
    %21 = arith.truncf %20 : vector<64x128xf32> to vector<64x128xbf16>
    %cst_7 = arith.constant dense<0.000000e+00> : vector<64x128xf32>
    %22 = tpu.matmul %19, %21, %cst_7 {dimension_numbers = #tpu.dot_dimension_numbers<[1], [0], [0], [1], [0, 0, 1, 1], [], []>} : vector<64x64xbf16>, vector<64x128xbf16>, vector<64x128xf32> -> vector<64x128xf32>
    %c0_8 = arith.constant 0 : index
    %c0_9 = arith.constant 0 : index
    %23 = vector.load %arg3[%c0_8, %c0_9] : memref<1x128xf32, #tpu.memory_space<vmem>>, vector<1x128xf32>
    %24 = vector.broadcast %23 : vector<1x128xf32> to vector<64x128xf32>
    %25 = arith.addf %22, %24 : vector<64x128xf32>
    %26 = arith.truncf %25 : vector<64x128xf32> to vector<64x128xbf16>
    %c0_10 = arith.constant 0 : index
    %c0_11 = arith.constant 0 : index
    %27 = vector.load %arg4[%c0_10, %c0_11] : memref<64x128xbf16, #tpu.memory_space<vmem>>, vector<64x128xbf16>
    tpu.vector_store %arg4[%c0_10, %c0_11], %26 {strides = array<i32>} : memref<64x128xbf16, #tpu.memory_space<vmem>>, vector<64x128xbf16>,
    return
  }
  func.func @transform_0(%arg0: i32) -> (i32, i32) {
    %c0_i32 = arith.constant 0 : i32
    %c0_i32_0 = arith.constant 0 : i32
    return %arg0, %c0_i32 : i32, i32
  }
  func.func @transform_1(%arg0: i32) -> (i32, i32) {
    %c0_i32 = arith.constant 0 : i32
    %c0_i32_0 = arith.constant 0 : i32
    %c0_i32_1 = arith.constant 0 : i32
    return %c0_i32, %c0_i32_0 : i32, i32
  }
  func.func @transform_2(%arg0: i32) -> (i32, i32) {
    %c0_i32 = arith.constant 0 : i32
    %c0_i32_0 = arith.constant 0 : i32
    %c0_i32_1 = arith.constant 0 : i32
    return %c0_i32, %c0_i32_0 : i32, i32
  }
  func.func @transform_3(%arg0: i32) -> (i32, i32) {
    %c0_i32 = arith.constant 0 : i32
    %c0_i32_0 = arith.constant 0 : i32
    return %arg0, %c0_i32 : i32, i32
  }
}

module attributes {stable_mosaic.version = 11 : i64} {
  func.func @_mm_bias_kernel(%arg0: i32, %arg1: i32, %arg2: memref<512x64xf32, #tpu.memory_space<vmem>>, %arg3: memref<64x64xf32, #tpu.memory_space<vmem>>, %arg4: memref<1x64xf32, #tpu.memory_space<vmem>>, %arg5: memref<512x64xbf16, #tpu.memory_space<vmem>>) attributes {dimension_semantics = [#tpu.dimension_semantics<parallel>, #tpu.dimension_semantics<parallel>], iteration_bounds = array<i64: 2, 1>, scalar_prefetch = 0 : i64, scratch_operands = 0 : i64, tpu.core_type = #tpu.core_type<tc>, window_params = [{transform_indices = @transform_0, window_bounds = array<i64: 512, 64>}, {transform_indices = @transform_1, window_bounds = array<i64: 64, 64>}, {transform_indices = @transform_2, window_bounds = array<i64: 1, 64>}, {transform_indices = @transform_3, window_bounds = array<i64: 512, 64>}]} {
    %c0 = arith.constant 0 : index
    %c0_0 = arith.constant 0 : index
    %0 = vector.load %arg2[%c0, %c0_0] : memref<512x64xf32, #tpu.memory_space<vmem>>, vector<512x64xf32>
    %1 = arith.truncf %0 : vector<512x64xf32> to vector<512x64xbf16>
    %c0_1 = arith.constant 0 : index
    %c0_2 = arith.constant 0 : index
    %2 = vector.load %arg3[%c0_1, %c0_2] : memref<64x64xf32, #tpu.memory_space<vmem>>, vector<64x64xf32>
    %3 = arith.truncf %2 : vector<64x64xf32> to vector<64x64xbf16>
    %cst = arith.constant dense<0.000000e+00> : vector<512x64xf32>
    %4 = tpu.matmul %1, %3, %cst {dimension_numbers = #tpu.dot_dimension_numbers<[1], [0], [0], [1], [0, 0, 1, 1], [], []>} : vector<512x64xbf16>, vector<64x64xbf16>, vector<512x64xf32> -> vector<512x64xf32>
    %c0_3 = arith.constant 0 : index
    %c0_4 = arith.constant 0 : index
    %5 = vector.load %arg4[%c0_3, %c0_4] : memref<1x64xf32, #tpu.memory_space<vmem>>, vector<1x64xf32>
    %6 = vector.broadcast %5 : vector<1x64xf32> to vector<512x64xf32>
    %7 = arith.addf %4, %6 : vector<512x64xf32>
    %8 = arith.truncf %7 : vector<512x64xf32> to vector<512x64xbf16>
    %c0_5 = arith.constant 0 : index
    %c0_6 = arith.constant 0 : index
    %9 = vector.load %arg5[%c0_5, %c0_6] : memref<512x64xbf16, #tpu.memory_space<vmem>>, vector<512x64xbf16>
    tpu.vector_store %arg5[%c0_5, %c0_6], %8 {strides = array<i32>} : memref<512x64xbf16, #tpu.memory_space<vmem>>, vector<512x64xbf16>,
    return
  }
  func.func @transform_0(%arg0: i32, %arg1: i32) -> (i32, i32) {
    %c0_i32 = arith.constant 0 : i32
    %c0_i32_0 = arith.constant 0 : i32
    return %arg0, %c0_i32 : i32, i32
  }
  func.func @transform_1(%arg0: i32, %arg1: i32) -> (i32, i32) {
    %c0_i32 = arith.constant 0 : i32
    %c0_i32_0 = arith.constant 0 : i32
    return %c0_i32, %arg1 : i32, i32
  }
  func.func @transform_2(%arg0: i32, %arg1: i32) -> (i32, i32) {
    %c0_i32 = arith.constant 0 : i32
    %c0_i32_0 = arith.constant 0 : i32
    return %c0_i32, %arg1 : i32, i32
  }
  func.func @transform_3(%arg0: i32, %arg1: i32) -> (i32, i32) {
    %c0_i32 = arith.constant 0 : i32
    return %arg0, %arg1 : i32, i32
  }
}

module attributes {stable_mosaic.version = 11 : i64} {
  func.func @_attn_proj_kernel(%arg0: i32, %arg1: i32, %arg2: memref<1x256x64xbf16, #tpu.memory_space<vmem>>, %arg3: memref<1x64x128xbf16, #tpu.memory_space<vmem>>, %arg4: memref<64x64xf32, #tpu.memory_space<vmem>>, %arg5: memref<1x64xf32, #tpu.memory_space<vmem>>, %arg6: memref<1x256x64xf32, #tpu.memory_space<vmem>>) attributes {dimension_semantics = [#tpu.dimension_semantics<parallel>, #tpu.dimension_semantics<parallel>], iteration_bounds = array<i64: 2, 2>, scalar_prefetch = 0 : i64, scratch_operands = 0 : i64, tpu.core_type = #tpu.core_type<tc>, window_params = [{transform_indices = @transform_0, window_bounds = array<i64: 1, 256, 64>}, {transform_indices = @transform_1, window_bounds = array<i64: 1, 64, 128>}, {pipeline_mode = #tpu.pipeline_mode<synchronous>, transform_indices = @transform_2, window_bounds = array<i64: 64, 64>}, {pipeline_mode = #tpu.pipeline_mode<synchronous>, transform_indices = @transform_3, window_bounds = array<i64: 1, 64>}, {transform_indices = @transform_4, window_bounds = array<i64: 1, 256, 64>}]} {
    %c0 = arith.constant 0 : index
    %c0_0 = arith.constant 0 : index
    %c0_1 = arith.constant 0 : index
    %0 = vector.load %arg2[%c0, %c0_0, %c0_1] : memref<1x256x64xbf16, #tpu.memory_space<vmem>>, vector<1x256x64xbf16>
    %1 = vector.shape_cast %0 : vector<1x256x64xbf16> to vector<256x64xbf16>
    %c0_2 = arith.constant 0 : index
    %c0_3 = arith.constant 0 : index
    %c0_4 = arith.constant 0 : index
    %2 = vector.load %arg3[%c0_2, %c0_3, %c0_4] : memref<1x64x128xbf16, #tpu.memory_space<vmem>>, vector<1x64x128xbf16>
    %3 = vector.shape_cast %2 : vector<1x64x128xbf16> to vector<64x128xbf16>
    %c0_5 = arith.constant 0 : index
    %c0_6 = arith.constant 0 : index
    %4 = vector.load %arg4[%c0_5, %c0_6] : memref<64x64xf32, #tpu.memory_space<vmem>>, vector<64x64xf32>
    %5 = arith.truncf %4 : vector<64x64xf32> to vector<64x64xbf16>
    %cst = arith.constant 0.000000e+00 : f32
    %6 = vector.broadcast %cst : f32 to vector<256x64xf32>
    %7 = vector.extract_strided_slice %1 {offsets = [0, 0], sizes = [256, 16], strides = [1, 1]} : vector<256x64xbf16> to vector<256x16xbf16>
    %8 = vector.extract_strided_slice %3 {offsets = [0, 0], sizes = [64, 16], strides = [1, 1]} : vector<64x128xbf16> to vector<64x16xbf16>
    %9 = vector.extract_strided_slice %3 {offsets = [0, 64], sizes = [64, 16], strides = [1, 1]} : vector<64x128xbf16> to vector<64x16xbf16>
    %cst_7 = arith.constant dense<0.000000e+00> : vector<256x64xf32>
    %10 = tpu.matmul %7, %8, %cst_7 {dimension_numbers = #tpu.dot_dimension_numbers<[1], [1], [0], [0], [0, 0, 1, 0], [], []>} : vector<256x16xbf16>, vector<64x16xbf16>, vector<256x64xf32> -> vector<256x64xf32>
    %cst_8 = arith.constant 2.500000e-01 : f32
    %11 = vector.broadcast %cst_8 : f32 to vector<256x64xf32>
    %12 = arith.mulf %10, %11 : vector<256x64xf32>
    %cst_9 = arith.constant dense<0xFF800000> : vector<256xf32>
    %13 = vector.multi_reduction <maximumf>, %12, %cst_9 [1] : vector<256x64xf32> to vector<256xf32>
    %14 = vector.shape_cast %13 : vector<256xf32> to vector<256x1xf32>
    %15 = vector.broadcast %14 : vector<256x1xf32> to vector<256x64xf32>
    %16 = arith.subf %12, %15 : vector<256x64xf32>
    %17 = math.exp %16 : vector<256x64xf32>
    %cst_10 = arith.constant dense<0.000000e+00> : vector<256xf32>
    %18 = vector.multi_reduction <add>, %17, %cst_10 [1] : vector<256x64xf32> to vector<256xf32>
    %19 = vector.shape_cast %18 : vector<256xf32> to vector<256x1xf32>
    %20 = arith.truncf %17 : vector<256x64xf32> to vector<256x64xbf16>
    %cst_11 = arith.constant dense<0.000000e+00> : vector<256x16xf32>
    %21 = tpu.matmul %20, %9, %cst_11 {dimension_numbers = #tpu.dot_dimension_numbers<[1], [0], [0], [1], [0, 0, 1, 1], [], []>} : vector<256x64xbf16>, vector<64x16xbf16>, vector<256x16xf32> -> vector<256x16xf32>
    %22 = tpu.reciprocal %19 {approx = true} : vector<256x1xf32> -> vector<256x1xf32>
    %23 = vector.broadcast %22 : vector<256x1xf32> to vector<256x16xf32>
    %24 = arith.mulf %21, %23 : vector<256x16xf32>
    %25 = arith.truncf %24 : vector<256x16xf32> to vector<256x16xbf16>
    %26 = vector.extract_strided_slice %5 {offsets = [0, 0], sizes = [16, 64], strides = [1, 1]} : vector<64x64xbf16> to vector<16x64xbf16>
    %cst_12 = arith.constant dense<0.000000e+00> : vector<256x64xf32>
    %27 = tpu.matmul %25, %26, %cst_12 {dimension_numbers = #tpu.dot_dimension_numbers<[1], [0], [0], [1], [0, 0, 1, 1], [], []>} : vector<256x16xbf16>, vector<16x64xbf16>, vector<256x64xf32> -> vector<256x64xf32>
    %28 = arith.addf %6, %27 : vector<256x64xf32>
    %29 = vector.extract_strided_slice %1 {offsets = [0, 16], sizes = [256, 16], strides = [1, 1]} : vector<256x64xbf16> to vector<256x16xbf16>
    %30 = vector.extract_strided_slice %3 {offsets = [0, 16], sizes = [64, 16], strides = [1, 1]} : vector<64x128xbf16> to vector<64x16xbf16>
    %31 = vector.extract_strided_slice %3 {offsets = [0, 80], sizes = [64, 16], strides = [1, 1]} : vector<64x128xbf16> to vector<64x16xbf16>
    %cst_13 = arith.constant dense<0.000000e+00> : vector<256x64xf32>
    %32 = tpu.matmul %29, %30, %cst_13 {dimension_numbers = #tpu.dot_dimension_numbers<[1], [1], [0], [0], [0, 0, 1, 0], [], []>} : vector<256x16xbf16>, vector<64x16xbf16>, vector<256x64xf32> -> vector<256x64xf32>
    %cst_14 = arith.constant 2.500000e-01 : f32
    %33 = vector.broadcast %cst_14 : f32 to vector<256x64xf32>
    %34 = arith.mulf %32, %33 : vector<256x64xf32>
    %cst_15 = arith.constant dense<0xFF800000> : vector<256xf32>
    %35 = vector.multi_reduction <maximumf>, %34, %cst_15 [1] : vector<256x64xf32> to vector<256xf32>
    %36 = vector.shape_cast %35 : vector<256xf32> to vector<256x1xf32>
    %37 = vector.broadcast %36 : vector<256x1xf32> to vector<256x64xf32>
    %38 = arith.subf %34, %37 : vector<256x64xf32>
    %39 = math.exp %38 : vector<256x64xf32>
    %cst_16 = arith.constant dense<0.000000e+00> : vector<256xf32>
    %40 = vector.multi_reduction <add>, %39, %cst_16 [1] : vector<256x64xf32> to vector<256xf32>
    %41 = vector.shape_cast %40 : vector<256xf32> to vector<256x1xf32>
    %42 = arith.truncf %39 : vector<256x64xf32> to vector<256x64xbf16>
    %cst_17 = arith.constant dense<0.000000e+00> : vector<256x16xf32>
    %43 = tpu.matmul %42, %31, %cst_17 {dimension_numbers = #tpu.dot_dimension_numbers<[1], [0], [0], [1], [0, 0, 1, 1], [], []>} : vector<256x64xbf16>, vector<64x16xbf16>, vector<256x16xf32> -> vector<256x16xf32>
    %44 = tpu.reciprocal %41 {approx = true} : vector<256x1xf32> -> vector<256x1xf32>
    %45 = vector.broadcast %44 : vector<256x1xf32> to vector<256x16xf32>
    %46 = arith.mulf %43, %45 : vector<256x16xf32>
    %47 = arith.truncf %46 : vector<256x16xf32> to vector<256x16xbf16>
    %48 = vector.extract_strided_slice %5 {offsets = [16, 0], sizes = [16, 64], strides = [1, 1]} : vector<64x64xbf16> to vector<16x64xbf16>
    %cst_18 = arith.constant dense<0.000000e+00> : vector<256x64xf32>
    %49 = tpu.matmul %47, %48, %cst_18 {dimension_numbers = #tpu.dot_dimension_numbers<[1], [0], [0], [1], [0, 0, 1, 1], [], []>} : vector<256x16xbf16>, vector<16x64xbf16>, vector<256x64xf32> -> vector<256x64xf32>
    %50 = arith.addf %28, %49 : vector<256x64xf32>
    %51 = vector.extract_strided_slice %1 {offsets = [0, 32], sizes = [256, 16], strides = [1, 1]} : vector<256x64xbf16> to vector<256x16xbf16>
    %52 = vector.extract_strided_slice %3 {offsets = [0, 32], sizes = [64, 16], strides = [1, 1]} : vector<64x128xbf16> to vector<64x16xbf16>
    %53 = vector.extract_strided_slice %3 {offsets = [0, 96], sizes = [64, 16], strides = [1, 1]} : vector<64x128xbf16> to vector<64x16xbf16>
    %cst_19 = arith.constant dense<0.000000e+00> : vector<256x64xf32>
    %54 = tpu.matmul %51, %52, %cst_19 {dimension_numbers = #tpu.dot_dimension_numbers<[1], [1], [0], [0], [0, 0, 1, 0], [], []>} : vector<256x16xbf16>, vector<64x16xbf16>, vector<256x64xf32> -> vector<256x64xf32>
    %cst_20 = arith.constant 2.500000e-01 : f32
    %55 = vector.broadcast %cst_20 : f32 to vector<256x64xf32>
    %56 = arith.mulf %54, %55 : vector<256x64xf32>
    %cst_21 = arith.constant dense<0xFF800000> : vector<256xf32>
    %57 = vector.multi_reduction <maximumf>, %56, %cst_21 [1] : vector<256x64xf32> to vector<256xf32>
    %58 = vector.shape_cast %57 : vector<256xf32> to vector<256x1xf32>
    %59 = vector.broadcast %58 : vector<256x1xf32> to vector<256x64xf32>
    %60 = arith.subf %56, %59 : vector<256x64xf32>
    %61 = math.exp %60 : vector<256x64xf32>
    %cst_22 = arith.constant dense<0.000000e+00> : vector<256xf32>
    %62 = vector.multi_reduction <add>, %61, %cst_22 [1] : vector<256x64xf32> to vector<256xf32>
    %63 = vector.shape_cast %62 : vector<256xf32> to vector<256x1xf32>
    %64 = arith.truncf %61 : vector<256x64xf32> to vector<256x64xbf16>
    %cst_23 = arith.constant dense<0.000000e+00> : vector<256x16xf32>
    %65 = tpu.matmul %64, %53, %cst_23 {dimension_numbers = #tpu.dot_dimension_numbers<[1], [0], [0], [1], [0, 0, 1, 1], [], []>} : vector<256x64xbf16>, vector<64x16xbf16>, vector<256x16xf32> -> vector<256x16xf32>
    %66 = tpu.reciprocal %63 {approx = true} : vector<256x1xf32> -> vector<256x1xf32>
    %67 = vector.broadcast %66 : vector<256x1xf32> to vector<256x16xf32>
    %68 = arith.mulf %65, %67 : vector<256x16xf32>
    %69 = arith.truncf %68 : vector<256x16xf32> to vector<256x16xbf16>
    %70 = vector.extract_strided_slice %5 {offsets = [32, 0], sizes = [16, 64], strides = [1, 1]} : vector<64x64xbf16> to vector<16x64xbf16>
    %cst_24 = arith.constant dense<0.000000e+00> : vector<256x64xf32>
    %71 = tpu.matmul %69, %70, %cst_24 {dimension_numbers = #tpu.dot_dimension_numbers<[1], [0], [0], [1], [0, 0, 1, 1], [], []>} : vector<256x16xbf16>, vector<16x64xbf16>, vector<256x64xf32> -> vector<256x64xf32>
    %72 = arith.addf %50, %71 : vector<256x64xf32>
    %73 = vector.extract_strided_slice %1 {offsets = [0, 48], sizes = [256, 16], strides = [1, 1]} : vector<256x64xbf16> to vector<256x16xbf16>
    %74 = vector.extract_strided_slice %3 {offsets = [0, 48], sizes = [64, 16], strides = [1, 1]} : vector<64x128xbf16> to vector<64x16xbf16>
    %75 = vector.extract_strided_slice %3 {offsets = [0, 112], sizes = [64, 16], strides = [1, 1]} : vector<64x128xbf16> to vector<64x16xbf16>
    %cst_25 = arith.constant dense<0.000000e+00> : vector<256x64xf32>
    %76 = tpu.matmul %73, %74, %cst_25 {dimension_numbers = #tpu.dot_dimension_numbers<[1], [1], [0], [0], [0, 0, 1, 0], [], []>} : vector<256x16xbf16>, vector<64x16xbf16>, vector<256x64xf32> -> vector<256x64xf32>
    %cst_26 = arith.constant 2.500000e-01 : f32
    %77 = vector.broadcast %cst_26 : f32 to vector<256x64xf32>
    %78 = arith.mulf %76, %77 : vector<256x64xf32>
    %cst_27 = arith.constant dense<0xFF800000> : vector<256xf32>
    %79 = vector.multi_reduction <maximumf>, %78, %cst_27 [1] : vector<256x64xf32> to vector<256xf32>
    %80 = vector.shape_cast %79 : vector<256xf32> to vector<256x1xf32>
    %81 = vector.broadcast %80 : vector<256x1xf32> to vector<256x64xf32>
    %82 = arith.subf %78, %81 : vector<256x64xf32>
    %83 = math.exp %82 : vector<256x64xf32>
    %cst_28 = arith.constant dense<0.000000e+00> : vector<256xf32>
    %84 = vector.multi_reduction <add>, %83, %cst_28 [1] : vector<256x64xf32> to vector<256xf32>
    %85 = vector.shape_cast %84 : vector<256xf32> to vector<256x1xf32>
    %86 = arith.truncf %83 : vector<256x64xf32> to vector<256x64xbf16>
    %cst_29 = arith.constant dense<0.000000e+00> : vector<256x16xf32>
    %87 = tpu.matmul %86, %75, %cst_29 {dimension_numbers = #tpu.dot_dimension_numbers<[1], [0], [0], [1], [0, 0, 1, 1], [], []>} : vector<256x64xbf16>, vector<64x16xbf16>, vector<256x16xf32> -> vector<256x16xf32>
    %88 = tpu.reciprocal %85 {approx = true} : vector<256x1xf32> -> vector<256x1xf32>
    %89 = vector.broadcast %88 : vector<256x1xf32> to vector<256x16xf32>
    %90 = arith.mulf %87, %89 : vector<256x16xf32>
    %91 = arith.truncf %90 : vector<256x16xf32> to vector<256x16xbf16>
    %92 = vector.extract_strided_slice %5 {offsets = [48, 0], sizes = [16, 64], strides = [1, 1]} : vector<64x64xbf16> to vector<16x64xbf16>
    %cst_30 = arith.constant dense<0.000000e+00> : vector<256x64xf32>
    %93 = tpu.matmul %91, %92, %cst_30 {dimension_numbers = #tpu.dot_dimension_numbers<[1], [0], [0], [1], [0, 0, 1, 1], [], []>} : vector<256x16xbf16>, vector<16x64xbf16>, vector<256x64xf32> -> vector<256x64xf32>
    %94 = arith.addf %72, %93 : vector<256x64xf32>
    %c0_31 = arith.constant 0 : index
    %c0_32 = arith.constant 0 : index
    %95 = vector.load %arg5[%c0_31, %c0_32] : memref<1x64xf32, #tpu.memory_space<vmem>>, vector<1x64xf32>
    %96 = vector.broadcast %95 : vector<1x64xf32> to vector<256x64xf32>
    %97 = arith.addf %94, %96 : vector<256x64xf32>
    %c0_33 = arith.constant 0 : index
    %c0_34 = arith.constant 0 : index
    %c0_35 = arith.constant 0 : index
    %98 = vector.load %arg6[%c0_33, %c0_34, %c0_35] : memref<1x256x64xf32, #tpu.memory_space<vmem>>, vector<1x256x64xf32>
    %99 = vector.shape_cast %98 : vector<1x256x64xf32> to vector<256x64xf32>
    %100 = vector.shape_cast %97 : vector<256x64xf32> to vector<1x256x64xf32>
    tpu.vector_store %arg6[%c0_33, %c0_34, %c0_35], %100 {strides = array<i32>} : memref<1x256x64xf32, #tpu.memory_space<vmem>>, vector<1x256x64xf32>,
    return
  }
  func.func @transform_0(%arg0: i32, %arg1: i32) -> (i32, i32, i32) {
    %c0_i32 = arith.constant 0 : i32
    %c0_i32_0 = arith.constant 0 : i32
    return %arg0, %arg1, %c0_i32 : i32, i32, i32
  }
  func.func @transform_1(%arg0: i32, %arg1: i32) -> (i32, i32, i32) {
    %c0_i32 = arith.constant 0 : i32
    %c0_i32_0 = arith.constant 0 : i32
    %c0_i32_1 = arith.constant 0 : i32
    return %arg0, %c0_i32, %c0_i32_0 : i32, i32, i32
  }
  func.func @transform_2(%arg0: i32, %arg1: i32) -> (i32, i32) {
    %c0_i32 = arith.constant 0 : i32
    %c0_i32_0 = arith.constant 0 : i32
    %c0_i32_1 = arith.constant 0 : i32
    return %c0_i32, %c0_i32_0 : i32, i32
  }
  func.func @transform_3(%arg0: i32, %arg1: i32) -> (i32, i32) {
    %c0_i32 = arith.constant 0 : i32
    %c0_i32_0 = arith.constant 0 : i32
    %c0_i32_1 = arith.constant 0 : i32
    return %c0_i32, %c0_i32_0 : i32, i32
  }
  func.func @transform_4(%arg0: i32, %arg1: i32) -> (i32, i32, i32) {
    %c0_i32 = arith.constant 0 : i32
    %c0_i32_0 = arith.constant 0 : i32
    return %arg0, %arg1, %c0_i32 : i32, i32, i32
  }
}

</mosaic_0001>

<llo_original>
// kernel: run.5
$region0: #{run.5}
  #allocation0 [shape = 'u32[]', space=smem, size = 0x4, offset = 0x4, fixed_abs, tag = 'smem constant byte address 0x4 - core index']
  #allocation1 [shape = 'u32[144,128]{1,0:T(1,128)}', space=vmem, size = 0x12000, scoped, tag = 'internal scratch']
  %s0 = inlined_call_operand.vmem [shape: f32[128,512], index: 0, kind: input, shape index: {}]
  %s1 = inlined_call_operand.vmem [shape: f32[512,64], index: 1, kind: input, shape index: {}]
  %s2 = inlined_call_operand.vmem [shape: f32[1,64], index: 2, kind: input, shape index: {}]
  %s3 = inlined_call_operand.vmem [shape: f32[128,64], index: 3, kind: output, shape index: {}]
  %s4 = sld [smem:[#allocation0]]
  $region45: #{run.5} parent=0
    _
  %s6 = ssub.s32 1, %s4
  %s7 = scalar_select 0, %s6, %s4
  loop: start=0, step=1, limit=4
  $region2: #{run.5} parent=0 // loop_pre_header
    _
  $region3: #{run.5} parent=0 // loop_header
    %s9 = sphi 0, %s13
    %p10 = scmp.ge.s32.totalorder %s9, 4
    %s16 = sphi 0, %s28
    %s17 = sphi 0, %s24
    %s18 = sphi 0, %s16
    %s19 = sphi 0, %s17
    %s20 = sphi 0, %s18
    %s21 = sphi 0, %s19
    %s31 = sphi 0, %s33
    %s34 = sphi 0, %s31
    %s35 = sphi 0, %s34
    %s51 = sphi 0, %s35
    %s57 = sphi 0, %s59
    %s60 = sphi 0, %s57
    %s61 = sphi 0, %s60
    %s77 = sphi 0, %s61
    %s83 = sphi 0, %s85
    %s86 = sphi 0, %s83
    %s87 = sphi 0, %s86
    %s103 = sphi 0, %s87
    %s111 = sphi 0, %s113
    %s114 = sphi 0, %s111
    %s115 = sphi 0, %s114
    %s131 = sphi 0, %s115
  $region4: #{run.5} parent=0 // loop_header_branch
    %12 = sbr.rel (%p10) target = $region8
  $region5: #{run.5} parent=0 // loop_body
    %s14 = ssub.s32 %s9, 1
    %s15 = ssub.s32 %s9, 2
    %s22 = sadd.s32 1, %s17
    %p23 = scmp.ge.s32.totalorder %s22, 1
    %s24 = scalar_select %p23, 0, %s22
    %s25 = sadd.s32 1, %s16
    %s26 = scalar_select %p23, %s25, %s16
    %p27 = scmp.ge.s32.totalorder %s26, 2
    %s28 = scalar_select %p27, 0, %s26
    %s29 = ssub.s32 %s16, %s28
    %p30 = scmp.eq.s32.totalorder %s29, 0
    %s32 = sadd.s32 %s31, 1
    %s33 = scalar_select %p30, %s31, %s32
    %p36 = pneg %p30
    %p37 = scmp.eq.s32.totalorder %s9, 1
    %p38 = por %p36, %p37
    %p39 = scmp.ne.s32.totalorder %s31, %s34
    %p40 = scmp.eq.s32.totalorder %s9, 0
    %p41 = por %p39, %p40
    %p42 = scmp.ne.s32.totalorder %s31, %s34
    %p43 = scmp.eq.s32.totalorder %s14, 1
    %p44 = por %p42, %p43
    %p45 = scmp.ne.s32.totalorder %s34, %s35
    %p46 = scmp.eq.s32.totalorder %s14, 0
    %p47 = por %p45, %p46
    %p48 = scmp.ne.s32.totalorder %s34, %s35
    %p49 = scmp.eq.s32.totalorder %s15, 1
    %p50 = por %p48, %p49
    %p52 = scmp.ne.s32.totalorder %s35, %s51
    %p53 = scmp.eq.s32.totalorder %s15, 0
    %p54 = por %p52, %p53
    %s55 = ssub.s32 %s17, %s24
    %p56 = scmp.eq.s32.totalorder %s55, 0
    %s58 = sadd.s32 %s57, 1
    %s59 = scalar_select %p56, %s57, %s58
    %p62 = pneg %p56
    %p63 = scmp.eq.s32.totalorder %s9, 1
    %p64 = por %p62, %p63
    %p65 = scmp.ne.s32.totalorder %s57, %s60
    %p66 = scmp.eq.s32.totalorder %s9, 0
    %p67 = por %p65, %p66
    %p68 = scmp.ne.s32.totalorder %s57, %s60
    %p69 = scmp.eq.s32.totalorder %s14, 1
    %p70 = por %p68, %p69
    %p71 = scmp.ne.s32.totalorder %s60, %s61
    %p72 = scmp.eq.s32.totalorder %s14, 0
    %p73 = por %p71, %p72
    %p74 = scmp.ne.s32.totalorder %s60, %s61
    %p75 = scmp.eq.s32.totalorder %s15, 1
    %p76 = por %p74, %p75
    %p78 = scmp.ne.s32.totalorder %s61, %s77
    %p79 = scmp.eq.s32.totalorder %s15, 0
    %p80 = por %p78, %p79
    %s81 = ssub.s32 %s17, %s24
    %p82 = scmp.eq.s32.totalorder %s81, 0
    %s84 = sadd.s32 %s83, 1
    %s85 = scalar_select %p82, %s83, %s84
    %p88 = pneg %p82
    %p89 = scmp.eq.s32.totalorder %s9, 1
    %p90 = por %p88, %p89
    %p91 = scmp.ne.s32.totalorder %s83, %s86
    %p92 = scmp.eq.s32.totalorder %s9, 0
    %p93 = por %p91, %p92
    %p94 = scmp.ne.s32.totalorder %s83, %s86
    %p95 = scmp.eq.s32.totalorder %s14, 1
    %p96 = por %p94, %p95
    %p97 = scmp.ne.s32.totalorder %s86, %s87
    %p98 = scmp.eq.s32.totalorder %s14, 0
    %p99 = por %p97, %p98
    %p100 = scmp.ne.s32.totalorder %s86, %s87
    %p101 = scmp.eq.s32.totalorder %s15, 1
    %p102 = por %p100, %p101
    %p104 = scmp.ne.s32.totalorder %s87, %s103
    %p105 = scmp.eq.s32.totalorder %s15, 0
    %p106 = por %p104, %p105
    %s107 = ssub.s32 %s16, %s28
    %s108 = ssub.s32 %s17, %s24
    %s109 = sor.u32 %s107, %s108
    %p110 = scmp.eq.s32.totalorder %s109, 0
    %s112 = sadd.s32 %s111, 1
    %s113 = scalar_select %p110, %s111, %s112
    %p116 = pneg %p110
    %p117 = scmp.eq.s32.totalorder %s9, 1
    %p118 = por %p116, %p117
    %p119 = scmp.ne.s32.totalorder %s111, %s114
    %p120 = scmp.eq.s32.totalorder %s9, 0
    %p121 = por %p119, %p120
    %p122 = scmp.ne.s32.totalorder %s111, %s114
    %p123 = scmp.eq.s32.totalorder %s14, 1
    %p124 = por %p122, %p123
    %p125 = scmp.ne.s32.totalorder %s114, %s115
    %p126 = scmp.eq.s32.totalorder %s14, 0
    %p127 = por %p125, %p126
    %p128 = scmp.ne.s32.totalorder %s114, %s115
    %p129 = scmp.eq.s32.totalorder %s15, 1
    %p130 = por %p128, %p129
    %p132 = scmp.ne.s32.totalorder %s115, %s131
    %p133 = scmp.eq.s32.totalorder %s15, 0
    %p134 = por %p132, %p133
    %p135 = scmp.le.s32.totalorder 1, %s9
    %p136 = scmp.lt.s32.totalorder %s9, 3
    %p137 = pnand %p135, %p136
    %p138 = pneg %p137
    // Predicated region
    $region9: #{run.5} parent=5 // pred_check
      _
    $region10: #{run.5} parent=5 // pred_check_branch
      %140 = sbr.rel (%p137) target = $region12
    $region11: #{run.5} parent=5 // pred_region
      %s141 = ssub.s32 %s9, 1
      // Predicated region
      $region13: #{run.5} parent=11 // pred_check
        %p142 = pneg %p73
      $region14: #{run.5} parent=11 // pred_check_branch
        %144 = sbr.rel (%p142) target = $region16
      $region15: #{run.5} parent=11 // pred_region
        %p145 = scmp.lt.s32.totalorder %s19, 0
        %s146 = scalar_select %p145, %s19, 0
        %s147 = smul.addr %s146, 8
        %s148 = scalar_lea.vmem %s1, %s147
      $region16: #{run.5} parent=11 // pred_fallthru
        _
      // Predicated region
      $region17: #{run.5} parent=11 // pred_check
        %p149 = pneg %p99
      $region18: #{run.5} parent=11 // pred_check_branch
        %151 = sbr.rel (%p149) target = $region20
      $region19: #{run.5} parent=11 // pred_region
        %p152 = scmp.lt.s32.totalorder %s19, 0
        %s153 = scalar_select %p152, %s19, 0
        %s154 = scalar_lea.vmem %s2, %s153
      $region20: #{run.5} parent=11 // pred_fallthru
        _
    $region12: #{run.5} parent=5 // pred_fallthru
      _
    %p155 = scmp.lt.s32.totalorder %s9, 2
    // Predicated region
    $region21: #{run.5} parent=5 // pred_check
      %p156 = pneg %p155
    $region22: #{run.5} parent=5 // pred_check_branch
      %158 = sbr.rel (%p156) target = $region24
    $region23: #{run.5} parent=5 // pred_region
      // Predicated region
      $region25: #{run.5} parent=23 // pred_check
        %p159 = pneg %p41
      $region26: #{run.5} parent=23 // pred_check_branch
        %161 = sbr.rel (%p159) target = $region28
      $region27: #{run.5} parent=23 // pred_region
        %s162 = smul.u32 8, %s16
        %p163 = scmp.lt.s32.totalorder %s162, 15
        %s164 = scalar_select %p163, %s162, 15
        %s165 = smul.addr %s164, 4
        %s166 = smul.addr %s165, 8
        %s167 = scalar_lea.vmem %s0, %s166
        %s168 = smul.u32 8, %s16
      $region28: #{run.5} parent=23 // pred_fallthru
        _
    $region24: #{run.5} parent=5 // pred_fallthru
      _
    %p169 = scmp.le.s32.totalorder 1, %s9
    %p170 = scmp.lt.s32.totalorder %s9, 3
    %p171 = pnand %p169, %p170
    %p172 = pneg %p171
    // Predicated region
    $region29: #{run.5} parent=5 // pred_check
      _
    $region30: #{run.5} parent=5 // pred_check_branch
      %174 = sbr.rel (%p171) target = $region32
    $region31: #{run.5} parent=5 // pred_region
      %s175 = ssub.s32 %s9, 1
      %s176 = smul.u32 8, %s18
      %p177 = scmp.lt.s32.totalorder %s176, 15
      %s178 = scalar_select %p177, %s176, 15
      %s179 = smul.addr %s178, 4
      %s180 = smul.addr %s179, 8
      %s181 = scalar_lea.vmem %s0, %s180
      %p182 = pneg %p47
      %p183 = pneg %p44
      %p184 = scmp.lt.s32.totalorder %s19, 0
      %s185 = scalar_select %p184, %s19, 0
      %s186 = smul.addr %s185, 8
      %s187 = scalar_lea.vmem %s1, %s186
      %p188 = pneg %p73
      %p189 = pneg %p70
      %p190 = scmp.lt.s32.totalorder %s19, 0
      %s191 = scalar_select %p190, %s19, 0
      %s192 = scalar_lea.vmem %s2, %s191
      %p193 = pneg %p99
      %p194 = pneg %p96
      %p195 = pneg %p127
      %p196 = pneg %p124
      %s197 = smul.u32 8, %s18
      %p198 = scmp.lt.s32.totalorder %s197, 15
      %s199 = scalar_select %p198, %s197, 15
      %p200 = scmp.lt.s32.totalorder %s19, 0
      %s201 = scalar_select %p200, %s19, 0
      %s202 = sadd.s32 %s201, %s199
      %s203 = smul.addr %s202, 8
      %s204 = scalar_lea.vmem %s3, %s203
      %s205 = smul.u32 8, %s18
      %p206 = scmp.lt.s32.totalorder %s205, 15
      %s207 = scalar_select %p206, %s205, 15
      %s208 = smul.addr %s207, 4
      %s209 = smul.addr %s208, 8
      %s210 = scalar_lea.vmem %s0, %s209
      %s211 = smul.u32 8, %s18
      %p212 = scmp.lt.s32.totalorder %s19, 0
      %s213 = scalar_select %p212, %s19, 0
      %s214 = smul.addr %s213, 8
      %s215 = scalar_lea.vmem %s1, %s214
      %p216 = scmp.lt.s32.totalorder %s19, 0
      %s217 = scalar_select %p216, %s19, 0
      %s218 = scalar_lea.vmem %s2, %s217
      %s219 = smul.u32 8, %s18
      %p220 = scmp.lt.s32.totalorder %s219, 15
      %s221 = scalar_select %p220, %s219, 15
      %p222 = scmp.lt.s32.totalorder %s19, 0
      %s223 = scalar_select %p222, %s19, 0
      %s224 = sadd.s32 %s223, %s221
      %s225 = smul.addr %s224, 8
      %s226 = scalar_lea.vmem %s3, %s225
      %s227 = smul.u32 8, %s18
      %v229 = vld [vmem:[%s210] sm:$0xff]
      %v230 = vld [vmem:[%s210 + $0x8] sm:$0xff]
      %v231 = vld [vmem:[%s210 + $0x10] sm:$0xff]
      %v232 = vld [vmem:[%s210 + $0x18] sm:$0xff]
      %v233 = vld [vmem:[%s210 + $0x20] sm:$0xff]
      %v234 = vld [vmem:[%s210 + $0x28] sm:$0xff]
      %v235 = vld [vmem:[%s210 + $0x30] sm:$0xff]
      %v236 = vld [vmem:[%s210 + $0x38] sm:$0xff]
      %v237 = vld [vmem:[%s210 + $0x40] sm:$0xff]
      %v238 = vld [vmem:[%s210 + $0x48] sm:$0xff]
      %v239 = vld [vmem:[%s210 + $0x50] sm:$0xff]
      %v240 = vld [vmem:[%s210 + $0x58] sm:$0xff]
      %v241 = vld [vmem:[%s210 + $0x60] sm:$0xff]
      %v242 = vld [vmem:[%s210 + $0x68] sm:$0xff]
      %v243 = vld [vmem:[%s210 + $0x70] sm:$0xff]
      %v244 = vld [vmem:[%s210 + $0x78] sm:$0xff]
      %v245 = vld [vmem:[%s210 + $0x80] sm:$0xff]
      %v246 = vld [vmem:[%s210 + $0x88] sm:$0xff]
      %v247 = vld [vmem:[%s210 + $0x90] sm:$0xff]
      %v248 = vld [vmem:[%s210 + $0x98] sm:$0xff]
      %v249 = vld [vmem:[%s210 + $0xa0] sm:$0xff]
      %v250 = vld [vmem:[%s210 + $0xa8] sm:$0xff]
      %v251 = vld [vmem:[%s210 + $0xb0] sm:$0xff]
      %v252 = vld [vmem:[%s210 + $0xb8] sm:$0xff]
      %v253 = vld [vmem:[%s210 + $0xc0] sm:$0xff]
      %v254 = vld [vmem:[%s210 + $0xc8] sm:$0xff]
      %v255 = vld [vmem:[%s210 + $0xd0] sm:$0xff]
      %v256 = vld [vmem:[%s210 + $0xd8] sm:$0xff]
      %v257 = vld [vmem:[%s210 + $0xe0] sm:$0xff]
      %v258 = vld [vmem:[%s210 + $0xe8] sm:$0xff]
      %v259 = vld [vmem:[%s210 + $0xf0] sm:$0xff]
      %v260 = vld [vmem:[%s210 + $0xf8] sm:$0xff]
      %v261 = vpack.c.bf16 %v233, %v229
      %v262 = vpack.c.bf16 %v234, %v230
      %v263 = vpack.c.bf16 %v235, %v231
      %v264 = vpack.c.bf16 %v236, %v232
      %v265 = vpack.c.bf16 %v241, %v237
      %v266 = vpack.c.bf16 %v242, %v238
      %v267 = vpack.c.bf16 %v243, %v239
      %v268 = vpack.c.bf16 %v244, %v240
      %v269 = vpack.c.bf16 %v249, %v245
      %v270 = vpack.c.bf16 %v250, %v246
      %v271 = vpack.c.bf16 %v251, %v247
      %v272 = vpack.c.bf16 %v252, %v248
      %v273 = vpack.c.bf16 %v257, %v253
      %v274 = vpack.c.bf16 %v258, %v254
      %v275 = vpack.c.bf16 %v259, %v255
      %v276 = vpack.c.bf16 %v260, %v256
      %v277 = vld [vmem:[%s215] sm:$0xff]
      %v278 = vld [vmem:[%s215 + $0x8] sm:$0xff]
      %v279 = vld [vmem:[%s215 + $0x10] sm:$0xff]
      %v280 = vld [vmem:[%s215 + $0x18] sm:$0xff]
      %v281 = vld [vmem:[%s215 + $0x20] sm:$0xff]
      %v282 = vld [vmem:[%s215 + $0x28] sm:$0xff]
      %v283 = vld [vmem:[%s215 + $0x30] sm:$0xff]
      %v284 = vld [vmem:[%s215 + $0x38] sm:$0xff]
      %v285 = vld [vmem:[%s215 + $0x40] sm:$0xff]
      %v286 = vld [vmem:[%s215 + $0x48] sm:$0xff]
      %v287 = vld [vmem:[%s215 + $0x50] sm:$0xff]
      %v288 = vld [vmem:[%s215 + $0x58] sm:$0xff]
      %v289 = vld [vmem:[%s215 + $0x60] sm:$0xff]
      %v290 = vld [vmem:[%s215 + $0x68] sm:$0xff]
      %v291 = vld [vmem:[%s215 + $0x70] sm:$0xff]
      %v292 = vld [vmem:[%s215 + $0x78] sm:$0xff]
      %v293 = vld [vmem:[%s215 + $0x80] sm:$0xff]
      %v294 = vld [vmem:[%s215 + $0x88] sm:$0xff]
      %v295 = vld [vmem:[%s215 + $0x90] sm:$0xff]
      %v296 = vld [vmem:[%s215 + $0x98] sm:$0xff]
      %v297 = vld [vmem:[%s215 + $0xa0] sm:$0xff]
      %v298 = vld [vmem:[%s215 + $0xa8] sm:$0xff]
      %v299 = vld [vmem:[%s215 + $0xb0] sm:$0xff]
      %v300 = vld [vmem:[%s215 + $0xb8] sm:$0xff]
      %v301 = vld [vmem:[%s215 + $0xc0] sm:$0xff]
      %v302 = vld [vmem:[%s215 + $0xc8] sm:$0xff]
      %v303 = vld [vmem:[%s215 + $0xd0] sm:$0xff]
      %v304 = vld [vmem:[%s215 + $0xd8] sm:$0xff]
      %v305 = vld [vmem:[%s215 + $0xe0] sm:$0xff]
      %v306 = vld [vmem:[%s215 + $0xe8] sm:$0xff]
      %v307 = vld [vmem:[%s215 + $0xf0] sm:$0xff]
      %v308 = vld [vmem:[%s215 + $0xf8] sm:$0xff]
      %v309 = vld [vmem:[%s215 + $0x100] sm:$0xff]
      %v310 = vld [vmem:[%s215 + $0x108] sm:$0xff]
      %v311 = vld [vmem:[%s215 + $0x110] sm:$0xff]
      %v312 = vld [vmem:[%s215 + $0x118] sm:$0xff]
      %v313 = vld [vmem:[%s215 + $0x120] sm:$0xff]
      %v314 = vld [vmem:[%s215 + $0x128] sm:$0xff]
      %v315 = vld [vmem:[%s215 + $0x130] sm:$0xff]
      %v316 = vld [vmem:[%s215 + $0x138] sm:$0xff]
      %v317 = vld [vmem:[%s215 + $0x140] sm:$0xff]
      %v318 = vld [vmem:[%s215 + $0x148] sm:$0xff]
      %v319 = vld [vmem:[%s215 + $0x150] sm:$0xff]
      %v320 = vld [vmem:[%s215 + $0x158] sm:$0xff]
      %v321 = vld [vmem:[%s215 + $0x160] sm:$0xff]
      %v322 = vld [vmem:[%s215 + $0x168] sm:$0xff]
      %v323 = vld [vmem:[%s215 + $0x170] sm:$0xff]
      %v324 = vld [vmem:[%s215 + $0x178] sm:$0xff]
      %v325 = vld [vmem:[%s215 + $0x180] sm:$0xff]
      %v326 = vld [vmem:[%s215 + $0x188] sm:$0xff]
      %v327 = vld [vmem:[%s215 + $0x190] sm:$0xff]
      %v328 = vld [vmem:[%s215 + $0x198] sm:$0xff]
      %v329 = vld [vmem:[%s215 + $0x1a0] sm:$0xff]
      %v330 = vld [vmem:[%s215 + $0x1a8] sm:$0xff]
      %v331 = vld [vmem:[%s215 + $0x1b0] sm:$0xff]
      %v332 = vld [vmem:[%s215 + $0x1b8] sm:$0xff]
      %v333 = vld [vmem:[%s215 + $0x1c0] sm:$0xff]
      %v334 = vld [vmem:[%s215 + $0x1c8] sm:$0xff]
      %v335 = vld [vmem:[%s215 + $0x1d0] sm:$0xff]
      %v336 = vld [vmem:[%s215 + $0x1d8] sm:$0xff]
      %v337 = vld [vmem:[%s215 + $0x1e0] sm:$0xff]
      %v338 = vld [vmem:[%s215 + $0x1e8] sm:$0xff]
      %v339 = vld [vmem:[%s215 + $0x1f0] sm:$0xff]
      %v340 = vld [vmem:[%s215 + $0x1f8] sm:$0xff]
      %v341 = vpack.c.bf16 %v278, %v277
      %v342 = vpack.c.bf16 %v280, %v279
      %v343 = vpack.c.bf16 %v282, %v281
      %v344 = vpack.c.bf16 %v284, %v283
      %v345 = vpack.c.bf16 %v286, %v285
      %v346 = vpack.c.bf16 %v288, %v287
      %v347 = vpack.c.bf16 %v290, %v289
      %v348 = vpack.c.bf16 %v292, %v291
      %v349 = vpack.c.bf16 %v294, %v293
      %v350 = vpack.c.bf16 %v296, %v295
      %v351 = vpack.c.bf16 %v298, %v297
      %v352 = vpack.c.bf16 %v300, %v299
      %v353 = vpack.c.bf16 %v302, %v301
      %v354 = vpack.c.bf16 %v304, %v303
      %v355 = vpack.c.bf16 %v306, %v305
      %v356 = vpack.c.bf16 %v308, %v307
      %v357 = vpack.c.bf16 %v310, %v309
      %v358 = vpack.c.bf16 %v312, %v311
      %v359 = vpack.c.bf16 %v314, %v313
      %v360 = vpack.c.bf16 %v316, %v315
      %v361 = vpack.c.bf16 %v318, %v317
      %v362 = vpack.c.bf16 %v320, %v319
      %v363 = vpack.c.bf16 %v322, %v321
      %v364 = vpack.c.bf16 %v324, %v323
      %v365 = vpack.c.bf16 %v326, %v325
      %v366 = vpack.c.bf16 %v328, %v327
      %v367 = vpack.c.bf16 %v330, %v329
      %v368 = vpack.c.bf16 %v332, %v331
      %v369 = vpack.c.bf16 %v334, %v333
      %v370 = vpack.c.bf16 %v336, %v335
      %v371 = vpack.c.bf16 %v338, %v337
      %v372 = vpack.c.bf16 %v340, %v339
      %v373 = vld [vmem:[%s218] sm:$0x1]
      %v375 = vlaneseq
      %v376 = vshrl.u32 %v375, 7
      %v377 = vsub.s32 0, %v376
      %v378 = vrot.slane %v373, %v377
      %380 = vmatprep.subr.bf16.mxu0 0
      %381 = vmatpush1.bf16.msra.mxu0 %v341
      %382 = vmatprep.subr.bf16.mxu0 0
      %383 = vmatpush1.bf16.msra.mxu0 %v342
      %384 = vmatprep.subr.bf16.mxu0 0
      %385 = vmatpush1.bf16.msra.mxu0 %v343
      %386 = vmatprep.subr.bf16.mxu0 0
      %387 = vmatpush1.bf16.msra.mxu0 %v344
      %388 = vmatprep.subr.bf16.mxu0 0
      %389 = vmatpush1.bf16.msra.mxu0 %v345
      %390 = vmatprep.subr.bf16.mxu0 0
      %391 = vmatpush1.bf16.msra.mxu0 %v346
      %392 = vmatprep.subr.bf16.mxu0 0
      %393 = vmatpush1.bf16.msra.mxu0 %v347
      %394 = vmatprep.subr.bf16.mxu0 0
      %395 = vmatpush1.bf16.msra.mxu0 %v348
      %396 = vmatprep.subr.bf16.mxu0 0
      %397 = vmatpush1.bf16.msra.mxu0 %v349
      %398 = vmatprep.subr.bf16.mxu0 0
      %399 = vmatpush1.bf16.msra.mxu0 %v350
      %400 = vmatprep.subr.bf16.mxu0 0
      %401 = vmatpush1.bf16.msra.mxu0 %v351
      %402 = vmatprep.subr.bf16.mxu0 0
      %403 = vmatpush1.bf16.msra.mxu0 %v352
      %404 = vmatprep.subr.bf16.mxu0 0
      %405 = vmatpush1.bf16.msra.mxu0 %v353
      %406 = vmatprep.subr.bf16.mxu0 0
      %407 = vmatpush1.bf16.msra.mxu0 %v354
      %408 = vmatprep.subr.bf16.mxu0 0
      %409 = vmatpush1.bf16.msra.mxu0 %v355
      %410 = vmatprep.subr.bf16.mxu0 0
      %411 = vmatpush1.bf16.msra.mxu0 %v356
      %412 = vmatprep.mubr.bf16.mxu0 %v262
      %413 = vmatmul.mubr.bf16.gmra.mrb[0].mxu0 %v261
      %v414 = vpop.f32.mrb[0].mxu0
      %v415 = vadd.f32 %v378, %v414
      %v416 = vpop.f32.mrb[0].mxu0
      %v417 = vpop.f32.mrb[0].mxu0
      %v418 = vadd.f32 %v378, %v417
      %v419 = vpop.f32.mrb[0].mxu0
      %420 = vmatprep.mubr.bf16.mxu0 %v266
      %421 = vmatmul.mubr.bf16.gmra.mrb[0].mxu0 %v265
      %v422 = vpop.f32.mrb[0].mxu0
      %v423 = vadd.f32 %v378, %v422
      %v424 = vpop.f32.mrb[0].mxu0
      %v425 = vpop.f32.mrb[0].mxu0
      %v426 = vadd.f32 %v378, %v425
      %v427 = vpop.f32.mrb[0].mxu0
      %428 = vmatprep.mubr.bf16.mxu0 %v270
      %429 = vmatmul.mubr.bf16.gmra.mrb[0].mxu0 %v269
      %v430 = vpop.f32.mrb[0].mxu0
      %v431 = vadd.f32 %v378, %v430
      %v432 = vpop.f32.mrb[0].mxu0
      %v433 = vpop.f32.mrb[0].mxu0
      %v434 = vadd.f32 %v378, %v433
      %v435 = vpop.f32.mrb[0].mxu0
      %436 = vmatprep.mubr.bf16.mxu0 %v274
      %437 = vmatmul.mubr.bf16.gmra.mrb[0].mxu0 %v273
      %v438 = vpop.f32.mrb[0].mxu0
      %v439 = vadd.f32 %v378, %v438
      %v440 = vpop.f32.mrb[0].mxu0
      %v441 = vpop.f32.mrb[0].mxu0
      %v442 = vadd.f32 %v378, %v441
      %v443 = vpop.f32.mrb[0].mxu0
      %444 = vdwg.mxu0
      %445 = vmatprep.subr.bf16.mxu0 0
      %446 = vmatpush1.bf16.msra.mxu0 %v357
      %447 = vmatprep.subr.bf16.mxu0 0
      %448 = vmatpush1.bf16.msra.mxu0 %v358
      %449 = vmatprep.subr.bf16.mxu0 0
      %450 = vmatpush1.bf16.msra.mxu0 %v359
      %451 = vmatprep.subr.bf16.mxu0 0
      %452 = vmatpush1.bf16.msra.mxu0 %v360
      %453 = vmatprep.subr.bf16.mxu0 0
      %454 = vmatpush1.bf16.msra.mxu0 %v361
      %455 = vmatprep.subr.bf16.mxu0 0
      %456 = vmatpush1.bf16.msra.mxu0 %v362
      %457 = vmatprep.subr.bf16.mxu0 0
      %458 = vmatpush1.bf16.msra.mxu0 %v363
      %459 = vmatprep.subr.bf16.mxu0 0
      %460 = vmatpush1.bf16.msra.mxu0 %v364
      %461 = vmatprep.subr.bf16.mxu0 0
      %462 = vmatpush1.bf16.msra.mxu0 %v365
      %463 = vmatprep.subr.bf16.mxu0 0
      %464 = vmatpush1.bf16.msra.mxu0 %v366
      %465 = vmatprep.subr.bf16.mxu0 0
      %466 = vmatpush1.bf16.msra.mxu0 %v367
      %467 = vmatprep.subr.bf16.mxu0 0
      %468 = vmatpush1.bf16.msra.mxu0 %v368
      %469 = vmatprep.subr.bf16.mxu0 0
      %470 = vmatpush1.bf16.msra.mxu0 %v369
      %471 = vmatprep.subr.bf16.mxu0 0
      %472 = vmatpush1.bf16.msra.mxu0 %v370
      %473 = vmatprep.subr.bf16.mxu0 0
      %474 = vmatpush1.bf16.msra.mxu0 %v371
      %475 = vmatprep.subr.bf16.mxu0 0
      %476 = vmatpush1.bf16.msra.mxu0 %v372
      %477 = vmatprep.mubr.bf16.mxu0 %v264
      %478 = vmatmul.mubr.bf16.gmra.mrb[0].mxu0 %v263
      %v479 = vpop.f32.mrb[0].mxu0
      %v480 = vadd.f32 %v415, %v479
      %v481 = vpop.f32.mrb[0].mxu0
      %v482 = vpop.f32.mrb[0].mxu0
      %v483 = vadd.f32 %v418, %v482
      %v484 = vpop.f32.mrb[0].mxu0
      %485 = vmatprep.mubr.bf16.mxu0 %v268
      %486 = vmatmul.mubr.bf16.gmra.mrb[0].mxu0 %v267
      %v487 = vpop.f32.mrb[0].mxu0
      %v488 = vadd.f32 %v423, %v487
      %v489 = vpop.f32.mrb[0].mxu0
      %v490 = vpop.f32.mrb[0].mxu0
      %v491 = vadd.f32 %v426, %v490
      %v492 = vpop.f32.mrb[0].mxu0
      %493 = vmatprep.mubr.bf16.mxu0 %v272
      %494 = vmatmul.mubr.bf16.gmra.mrb[0].mxu0 %v271
      %v495 = vpop.f32.mrb[0].mxu0
      %v496 = vadd.f32 %v431, %v495
      %v497 = vpop.f32.mrb[0].mxu0
      %v498 = vpop.f32.mrb[0].mxu0
      %v499 = vadd.f32 %v434, %v498
      %v500 = vpop.f32.mrb[0].mxu0
      %501 = vmatprep.mubr.bf16.mxu0 %v276
      %502 = vmatmul.mubr.bf16.gmra.mrb[0].mxu0 %v275
      %v503 = vpop.f32.mrb[0].mxu0
      %v504 = vadd.f32 %v439, %v503
      %v505 = vpop.f32.mrb[0].mxu0
      %v506 = vpop.f32.mrb[0].mxu0
      %v507 = vadd.f32 %v442, %v506
      %v508 = vpop.f32.mrb[0].mxu0
      %509 = vdwg.mxu0
      %vm510 = vcmask 523264
      %511 = vst.msk [vmem:[%s226] sm:$0xff] %vm510, %v480
      %512 = vst.msk [vmem:[%s226 + $0x8] sm:$0xff] %vm510, %v483
      %513 = vst.msk [vmem:[%s226 + $0x10] sm:$0xff] %vm510, %v488
      %514 = vst.msk [vmem:[%s226 + $0x18] sm:$0xff] %vm510, %v491
      %515 = vst.msk [vmem:[%s226 + $0x20] sm:$0xff] %vm510, %v496
      %516 = vst.msk [vmem:[%s226 + $0x28] sm:$0xff] %vm510, %v499
      %517 = vst.msk [vmem:[%s226 + $0x30] sm:$0xff] %vm510, %v504
      %518 = vst.msk [vmem:[%s226 + $0x38] sm:$0xff] %vm510, %v507
      %s519 = smul.u32 8, %s18
      %p520 = scmp.lt.s32.totalorder %s519, 15
      %s521 = scalar_select %p520, %s519, 15
      %p522 = scmp.lt.s32.totalorder %s19, 0
      %s523 = scalar_select %p522, %s19, 0
      %s524 = sadd.s32 %s523, %s521
      %s525 = smul.addr %s524, 8
      %s526 = scalar_lea.vmem %s3, %s525
      // Predicated region
      $region33: #{run.5} parent=31 // pred_check
        %p527 = pneg %p124
      $region34: #{run.5} parent=31 // pred_check_branch
        %529 = sbr.rel (%p527) target = $region36
      $region35: #{run.5} parent=31 // pred_region
        %s530 = smul.u32 8, %s18
      $region36: #{run.5} parent=31 // pred_fallthru
        _
    $region32: #{run.5} parent=5 // pred_fallthru
      _
    %p531 = scmp.le.s32.totalorder 2, %s9
    // Predicated region
    $region37: #{run.5} parent=5 // pred_check
      %p532 = pneg %p531
    $region38: #{run.5} parent=5 // pred_check_branch
      %534 = sbr.rel (%p532) target = $region40
    $region39: #{run.5} parent=5 // pred_region
      %s535 = ssub.s32 %s9, 2
      // Predicated region
      $region41: #{run.5} parent=39 // pred_check
        %p536 = pneg %p130
      $region42: #{run.5} parent=39 // pred_check_branch
        %538 = sbr.rel (%p536) target = $region44
      $region43: #{run.5} parent=39 // pred_region
        %s539 = smul.u32 8, %s20
        %p540 = scmp.lt.s32.totalorder %s539, 15
        %s541 = scalar_select %p540, %s539, 15
        %p542 = scmp.lt.s32.totalorder %s21, 0
        %s543 = scalar_select %p542, %s21, 0
        %s544 = sadd.s32 %s543, %s541
        %s545 = smul.addr %s544, 8
        %s546 = scalar_lea.vmem %s3, %s545
      $region44: #{run.5} parent=39 // pred_fallthru
        _
    $region40: #{run.5} parent=5 // pred_fallthru
      _
  $region6: #{run.5} parent=0 // loop_footer
    %s13 = sadd.s32 1, %s9
  $region7: #{run.5} parent=0 // loop_footer_branch
    %8 = sbr.rel target = $region3
  $region8: #{run.5} parent=0 // loop_exit
    _

// kernel: run.6
$region0: #{run.6}
  #allocation0 [shape = 'u32[]', space=smem, size = 0x4, offset = 0x4, fixed_abs, tag = 'smem constant byte address 0x4 - core index']
  #allocation1 [shape = 'u32[144,128]{1,0:T(1,128)}', space=vmem, size = 0x12000, scoped, tag = 'internal scratch']
  %s0 = inlined_call_operand.vmem [shape: f32[128,64], index: 0, kind: input, shape index: {}]
  %s1 = inlined_call_operand.vmem [shape: f32[64,128], index: 1, kind: input, shape index: {}]
  %s2 = inlined_call_operand.vmem [shape: f32[1,128], index: 2, kind: input, shape index: {}]
  %s3 = inlined_call_operand.vmem [shape: bf16[128,128], index: 3, kind: output, shape index: {}]
  %s4 = sld [smem:[#allocation0]]
  $region45: #{run.6} parent=0
    _
  %s6 = ssub.s32 1, %s4
  %s7 = scalar_select 0, %s6, %s4
  loop: start=0, step=1, limit=4
  $region2: #{run.6} parent=0 // loop_pre_header
    _
  $region3: #{run.6} parent=0 // loop_header
    %s9 = sphi 0, %s13
    %p10 = scmp.ge.s32.totalorder %s9, 4
    %s19 = sphi 0, %s21
    %s22 = sphi 0, %s19
    %s23 = sphi 0, %s22
    %s39 = sphi 0, %s23
    %s43 = sphi 0, %s43
    %s45 = sphi 0, %s43
    %s46 = sphi 0, %s45
    %s60 = sphi 0, %s46
    %s64 = sphi 0, %s64
    %s66 = sphi 0, %s64
    %s67 = sphi 0, %s66
    %s81 = sphi 0, %s67
    %s87 = sphi 0, %s89
    %s90 = sphi 0, %s87
    %s91 = sphi 0, %s90
    %s107 = sphi 0, %s91
  $region4: #{run.6} parent=0 // loop_header_branch
    %12 = sbr.rel (%p10) target = $region8
  $region5: #{run.6} parent=0 // loop_body
    %s14 = ssub.s32 %s9, 1
    %s15 = ssub.s32 %s9, 2
    %s16 = sadd.s32 %s9, 1
    %s17 = ssub.s32 %s9, %s16
    %p18 = scmp.eq.s32.totalorder %s17, 0
    %s20 = sadd.s32 %s19, 1
    %s21 = scalar_select %p18, %s19, %s20
    %p24 = pneg %p18
    %p25 = scmp.eq.s32.totalorder %s9, 1
    %p26 = por %p24, %p25
    %p27 = scmp.ne.s32.totalorder %s19, %s22
    %p28 = scmp.eq.s32.totalorder %s9, 0
    %p29 = por %p27, %p28
    %p30 = scmp.ne.s32.totalorder %s19, %s22
    %p31 = scmp.eq.s32.totalorder %s14, 1
    %p32 = por %p30, %p31
    %p33 = scmp.ne.s32.totalorder %s22, %s23
    %p34 = scmp.eq.s32.totalorder %s14, 0
    %p35 = por %p33, %p34
    %p36 = scmp.ne.s32.totalorder %s22, %s23
    %p37 = scmp.eq.s32.totalorder %s15, 1
    %p38 = por %p36, %p37
    %p40 = scmp.ne.s32.totalorder %s23, %s39
    %p41 = scmp.eq.s32.totalorder %s15, 0
    %p42 = por %p40, %p41
    %s44 = sadd.s32 %s43, 1
    %p47 = scmp.eq.s32.totalorder %s9, 1
    %p48 = scmp.ne.s32.totalorder %s43, %s45
    %p49 = scmp.eq.s32.totalorder %s9, 0
    %p50 = por %p48, %p49
    %p51 = scmp.ne.s32.totalorder %s43, %s45
    %p52 = scmp.eq.s32.totalorder %s14, 1
    %p53 = por %p51, %p52
    %p54 = scmp.ne.s32.totalorder %s45, %s46
    %p55 = scmp.eq.s32.totalorder %s14, 0
    %p56 = por %p54, %p55
    %p57 = scmp.ne.s32.totalorder %s45, %s46
    %p58 = scmp.eq.s32.totalorder %s15, 1
    %p59 = por %p57, %p58
    %p61 = scmp.ne.s32.totalorder %s46, %s60
    %p62 = scmp.eq.s32.totalorder %s15, 0
    %p63 = por %p61, %p62
    %s65 = sadd.s32 %s64, 1
    %p68 = scmp.eq.s32.totalorder %s9, 1
    %p69 = scmp.ne.s32.totalorder %s64, %s66
    %p70 = scmp.eq.s32.totalorder %s9, 0
    %p71 = por %p69, %p70
    %p72 = scmp.ne.s32.totalorder %s64, %s66
    %p73 = scmp.eq.s32.totalorder %s14, 1
    %p74 = por %p72, %p73
    %p75 = scmp.ne.s32.totalorder %s66, %s67
    %p76 = scmp.eq.s32.totalorder %s14, 0
    %p77 = por %p75, %p76
    %p78 = scmp.ne.s32.totalorder %s66, %s67
    %p79 = scmp.eq.s32.totalorder %s15, 1
    %p80 = por %p78, %p79
    %p82 = scmp.ne.s32.totalorder %s67, %s81
    %p83 = scmp.eq.s32.totalorder %s15, 0
    %p84 = por %p82, %p83
    %s85 = ssub.s32 %s9, %s16
    %p86 = scmp.eq.s32.totalorder %s85, 0
    %s88 = sadd.s32 %s87, 1
    %s89 = scalar_select %p86, %s87, %s88
    %p92 = pneg %p86
    %p93 = scmp.eq.s32.totalorder %s9, 1
    %p94 = por %p92, %p93
    %p95 = scmp.ne.s32.totalorder %s87, %s90
    %p96 = scmp.eq.s32.totalorder %s9, 0
    %p97 = por %p95, %p96
    %p98 = scmp.ne.s32.totalorder %s87, %s90
    %p99 = scmp.eq.s32.totalorder %s14, 1
    %p100 = por %p98, %p99
    %p101 = scmp.ne.s32.totalorder %s90, %s91
    %p102 = scmp.eq.s32.totalorder %s14, 0
    %p103 = por %p101, %p102
    %p104 = scmp.ne.s32.totalorder %s90, %s91
    %p105 = scmp.eq.s32.totalorder %s15, 1
    %p106 = por %p104, %p105
    %p108 = scmp.ne.s32.totalorder %s91, %s107
    %p109 = scmp.eq.s32.totalorder %s15, 0
    %p110 = por %p108, %p109
    %p111 = scmp.le.s32.totalorder 1, %s9
    %p112 = scmp.lt.s32.totalorder %s9, 3
    %p113 = pnand %p111, %p112
    %p114 = pneg %p113
    // Predicated region
    $region9: #{run.6} parent=5 // pred_check
      _
    $region10: #{run.6} parent=5 // pred_check_branch
      %116 = sbr.rel (%p113) target = $region12
    $region11: #{run.6} parent=5 // pred_region
      %s117 = ssub.s32 %s9, 1
      // Predicated region
      $region13: #{run.6} parent=11 // pred_check
        %p118 = pneg %p56
      $region14: #{run.6} parent=11 // pred_check_branch
        %120 = sbr.rel (%p118) target = $region16
      $region15: #{run.6} parent=11 // pred_region
        _
      $region16: #{run.6} parent=11 // pred_fallthru
        _
      // Predicated region
      $region17: #{run.6} parent=11 // pred_check
        %p121 = pneg %p77
      $region18: #{run.6} parent=11 // pred_check_branch
        %123 = sbr.rel (%p121) target = $region20
      $region19: #{run.6} parent=11 // pred_region
        _
      $region20: #{run.6} parent=11 // pred_fallthru
        _
    $region12: #{run.6} parent=5 // pred_fallthru
      _
    %p124 = scmp.lt.s32.totalorder %s9, 2
    // Predicated region
    $region21: #{run.6} parent=5 // pred_check
      %p125 = pneg %p124
    $region22: #{run.6} parent=5 // pred_check_branch
      %127 = sbr.rel (%p125) target = $region24
    $region23: #{run.6} parent=5 // pred_region
      // Predicated region
      $region25: #{run.6} parent=23 // pred_check
        %p128 = pneg %p29
      $region26: #{run.6} parent=23 // pred_check_branch
        %130 = sbr.rel (%p128) target = $region28
      $region27: #{run.6} parent=23 // pred_region
        %s131 = smul.u32 8, %s9
        %p132 = scmp.lt.s32.totalorder %s131, 15
        %s133 = scalar_select %p132, %s131, 15
        %s134 = smul.addr %s133, 8
        %s135 = scalar_lea.vmem %s0, %s134
        %s136 = smul.u32 8, %s9
      $region28: #{run.6} parent=23 // pred_fallthru
        _
    $region24: #{run.6} parent=5 // pred_fallthru
      _
    %p137 = scmp.le.s32.totalorder 1, %s9
    %p138 = scmp.lt.s32.totalorder %s9, 3
    %p139 = pnand %p137, %p138
    %p140 = pneg %p139
    // Predicated region
    $region29: #{run.6} parent=5 // pred_check
      _
    $region30: #{run.6} parent=5 // pred_check_branch
      %142 = sbr.rel (%p139) target = $region32
    $region31: #{run.6} parent=5 // pred_region
      %s143 = ssub.s32 %s9, 1
      %s144 = smul.u32 8, %s14
      %p145 = scmp.lt.s32.totalorder %s144, 15
      %s146 = scalar_select %p145, %s144, 15
      %s147 = smul.addr %s146, 8
      %s148 = scalar_lea.vmem %s0, %s147
      %p149 = pneg %p35
      %p150 = pneg %p32
      %p151 = pneg %p56
      %p152 = pneg %p53
      %p153 = pneg %p77
      %p154 = pneg %p74
      %p155 = pneg %p103
      %p156 = pneg %p100
      %s157 = smul.u32 8, %s14
      %p158 = scmp.lt.s32.totalorder %s157, 15
      %s159 = scalar_select %p158, %s157, 15
      %s160 = smul.addr %s159, 4
      %s161 = scalar_lea.vmem %s3, %s160
      %s162 = smul.u32 8, %s14
      %p163 = scmp.lt.s32.totalorder %s162, 15
      %s164 = scalar_select %p163, %s162, 15
      %s165 = smul.addr %s164, 8
      %s166 = scalar_lea.vmem %s0, %s165
      %s167 = smul.u32 8, %s14
      %s168 = smul.u32 8, %s14
      %p169 = scmp.lt.s32.totalorder %s168, 15
      %s170 = scalar_select %p169, %s168, 15
      %s171 = smul.addr %s170, 4
      %s172 = scalar_lea.vmem %s3, %s171
      %s173 = smul.u32 8, %s14
      %v175 = vld [vmem:[%s166] sm:$0xff]
      %v176 = vld [vmem:[%s166 + $0x8] sm:$0xff]
      %v177 = vld [vmem:[%s166 + $0x10] sm:$0xff]
      %v178 = vld [vmem:[%s166 + $0x18] sm:$0xff]
      %v179 = vld [vmem:[%s166 + $0x20] sm:$0xff]
      %v180 = vld [vmem:[%s166 + $0x28] sm:$0xff]
      %v181 = vld [vmem:[%s166 + $0x30] sm:$0xff]
      %v182 = vld [vmem:[%s166 + $0x38] sm:$0xff]
      %vm183 = vcmask 523264
      %v184 = vsel %vm183, %v175, 0.0
      %185 = vadd.xlane.f32.xlu0 %v184
      %v186 = vpop.xlane.xlu0 %185
      %v187 = vsel %vm183, %v176, 0.0
      %188 = vadd.xlane.f32.xlu0 %v187
      %v189 = vpop.xlane.xlu0 %188
      %v190 = vsel %vm183, %v177, 0.0
      %191 = vadd.xlane.f32.xlu0 %v190
      %v192 = vpop.xlane.xlu0 %191
      %v193 = vsel %vm183, %v178, 0.0
      %194 = vadd.xlane.f32.xlu0 %v193
      %v195 = vpop.xlane.xlu0 %194
      %v196 = vsel %vm183, %v179, 0.0
      %197 = vadd.xlane.f32.xlu0 %v196
      %v198 = vpop.xlane.xlu0 %197
      %v199 = vsel %vm183, %v180, 0.0
      %200 = vadd.xlane.f32.xlu0 %v199
      %v201 = vpop.xlane.xlu0 %200
      %v202 = vsel %vm183, %v181, 0.0
      %203 = vadd.xlane.f32.xlu0 %v202
      %v204 = vpop.xlane.xlu0 %203
      %v205 = vsel %vm183, %v182, 0.0
      %206 = vadd.xlane.f32.xlu0 %v205
      %v207 = vpop.xlane.xlu0 %206
      %v208 = vrcp.pop 64.0
      %v209 = vmul.f32 %v186, %v208
      %v210 = vmul.f32 %v189, %v208
      %v211 = vmul.f32 %v192, %v208
      %v212 = vmul.f32 %v195, %v208
      %v213 = vmul.f32 %v198, %v208
      %v214 = vmul.f32 %v201, %v208
      %v215 = vmul.f32 %v204, %v208
      %v216 = vmul.f32 %v207, %v208
      %v217 = vsub.f32 %v175, %v209
      %v218 = vsub.f32 %v176, %v210
      %v219 = vsub.f32 %v177, %v211
      %v220 = vsub.f32 %v178, %v212
      %v221 = vsub.f32 %v179, %v213
      %v222 = vsub.f32 %v180, %v214
      %v223 = vsub.f32 %v181, %v215
      %v224 = vsub.f32 %v182, %v216
      %v225 = vmul.f32 %v217, %v217
      %v226 = vmul.f32 %v218, %v218
      %v227 = vmul.f32 %v219, %v219
      %v228 = vmul.f32 %v220, %v220
      %v229 = vmul.f32 %v221, %v221
      %v230 = vmul.f32 %v222, %v222
      %v231 = vmul.f32 %v223, %v223
      %v232 = vmul.f32 %v224, %v224
      %v233 = vsel %vm183, %v225, 0.0
      %234 = vadd.xlane.f32.xlu0 %v233
      %v235 = vpop.xlane.xlu0 %234
      %v236 = vsel %vm183, %v226, 0.0
      %237 = vadd.xlane.f32.xlu0 %v236
      %v238 = vpop.xlane.xlu0 %237
      %v239 = vsel %vm183, %v227, 0.0
      %240 = vadd.xlane.f32.xlu0 %v239
      %v241 = vpop.xlane.xlu0 %240
      %v242 = vsel %vm183, %v228, 0.0
      %243 = vadd.xlane.f32.xlu0 %v242
      %v244 = vpop.xlane.xlu0 %243
      %v245 = vsel %vm183, %v229, 0.0
      %246 = vadd.xlane.f32.xlu0 %v245
      %v247 = vpop.xlane.xlu0 %246
      %v248 = vsel %vm183, %v230, 0.0
      %249 = vadd.xlane.f32.xlu0 %v248
      %v250 = vpop.xlane.xlu0 %249
      %v251 = vsel %vm183, %v231, 0.0
      %252 = vadd.xlane.f32.xlu0 %v251
      %v253 = vpop.xlane.xlu0 %252
      %v254 = vsel %vm183, %v232, 0.0
      %255 = vadd.xlane.f32.xlu0 %v254
      %v256 = vpop.xlane.xlu0 %255
      %v257 = vmul.f32 %v235, %v208
      %v258 = vmul.f32 %v238, %v208
      %v259 = vmul.f32 %v241, %v208
      %v260 = vmul.f32 %v244, %v208
      %v261 = vmul.f32 %v247, %v208
      %v262 = vmul.f32 %v250, %v208
      %v263 = vmul.f32 %v253, %v208
      %v264 = vmul.f32 %v256, %v208
      %v265 = vadd.f32 %v257, 1e-05
      %v266 = vadd.f32 %v258, 1e-05
      %v267 = vadd.f32 %v259, 1e-05
      %v268 = vadd.f32 %v260, 1e-05
      %v269 = vadd.f32 %v261, 1e-05
      %v270 = vadd.f32 %v262, 1e-05
      %v271 = vadd.f32 %v263, 1e-05
      %v272 = vadd.f32 %v264, 1e-05
      %v273 = vrsqrt.pop %v265
      %v274 = vrsqrt.pop %v266
      %v275 = vrsqrt.pop %v267
      %v276 = vrsqrt.pop %v268
      %v277 = vrsqrt.pop %v269
      %v278 = vrsqrt.pop %v270
      %v279 = vrsqrt.pop %v271
      %v280 = vrsqrt.pop %v272
      %v281 = vmul.f32 %v217, %v273
      %v282 = vmul.f32 %v218, %v274
      %v283 = vmul.f32 %v219, %v275
      %v284 = vmul.f32 %v220, %v276
      %v285 = vmul.f32 %v221, %v277
      %v286 = vmul.f32 %v222, %v278
      %v287 = vmul.f32 %v223, %v279
      %v288 = vmul.f32 %v224, %v280
      %v289 = vpack.c.bf16 %v282, %v281
      %v290 = vpack.c.bf16 %v284, %v283
      %v291 = vpack.c.bf16 %v286, %v285
      %v292 = vpack.c.bf16 %v288, %v287
      %v293 = vld [vmem:[%s1] sm:$0xff]
      %v294 = vld [vmem:[%s1 + $0x8] sm:$0xff]
      %v295 = vld [vmem:[%s1 + $0x10] sm:$0xff]
      %v296 = vld [vmem:[%s1 + $0x18] sm:$0xff]
      %v297 = vld [vmem:[%s1 + $0x20] sm:$0xff]
      %v298 = vld [vmem:[%s1 + $0x28] sm:$0xff]
      %v299 = vld [vmem:[%s1 + $0x30] sm:$0xff]
      %v300 = vld [vmem:[%s1 + $0x38] sm:$0xff]
      %v301 = vpack.c.bf16 %v294, %v293
      %v302 = vpack.c.bf16 %v296, %v295
      %v303 = vpack.c.bf16 %v298, %v297
      %v304 = vpack.c.bf16 %v300, %v299
      %v305 = vld [vmem:[%s2] sm:$0x1]
      %v307 = vlaneseq
      %v308 = vshrl.u32 %v307, 7
      %v309 = vsub.s32 0, %v308
      %v310 = vrot.slane %v305, %v309
      %v313 = vsel %vm183, %v289, 0
      %v316 = vsel %vm183, %v290, 0
      %v319 = vsel %vm183, %v291, 0
      %v322 = vsel %vm183, %v292, 0
      %324 = vmatprep.subr.bf16.mxu0 0
      %325 = vmatpush1.bf16.msra.mxu0 %v301
      %326 = vmatprep.subr.bf16.mxu0 0
      %327 = vmatpush1.bf16.msra.mxu0 %v302
      %328 = vmatprep.subr.bf16.mxu0 0
      %329 = vmatpush1.bf16.msra.mxu0 %v303
      %330 = vmatprep.subr.bf16.mxu0 0
      %331 = vmatpush1.bf16.msra.mxu0 %v304
      %332 = vmatprep.subr.bf16.mxu0 0
      %333 = vmatpush1.bf16.msra.mxu0 0
      %334 = vmatprep.subr.bf16.mxu0 0
      %335 = vmatpush1.bf16.msra.mxu0 0
      %336 = vmatprep.subr.bf16.mxu0 0
      %337 = vmatpush1.bf16.msra.mxu0 0
      %338 = vmatprep.subr.bf16.mxu0 0
      %339 = vmatpush1.bf16.msra.mxu0 0
      %340 = vmatprep.subr.bf16.mxu0 0
      %341 = vmatpush1.bf16.msra.mxu0 0
      %342 = vmatprep.subr.bf16.mxu0 0
      %343 = vmatpush1.bf16.msra.mxu0 0
      %344 = vmatprep.subr.bf16.mxu0 0
      %345 = vmatpush1.bf16.msra.mxu0 0
      %346 = vmatprep.subr.bf16.mxu0 0
      %347 = vmatpush1.bf16.msra.mxu0 0
      %348 = vmatprep.subr.bf16.mxu0 0
      %349 = vmatpush1.bf16.msra.mxu0 0
      %350 = vmatprep.subr.bf16.mxu0 0
      %351 = vmatpush1.bf16.msra.mxu0 0
      %352 = vmatprep.subr.bf16.mxu0 0
      %353 = vmatpush1.bf16.msra.mxu0 0
      %354 = vmatprep.subr.bf16.mxu0 0
      %355 = vmatpush1.bf16.msra.mxu0 0
      %356 = vmatprep.mubr.bf16.mxu0 0
      %357 = vmatmul.mubr.bf16.gmra.mrb[0].mxu0 %v313
      %v358 = vpop.f32.mrb[0].mxu0
      %v359 = vadd.f32 %v310, %v358
      %v360 = vpop.f32.mrb[0].mxu0
      %v361 = vpop.f32.mrb[0].mxu0
      %v362 = vadd.f32 %v310, %v361
      %v363 = vpop.f32.mrb[0].mxu0
      %364 = vmatprep.mubr.bf16.mxu0 0
      %365 = vmatmul.mubr.bf16.gmra.mrb[0].mxu0 %v316
      %v366 = vpop.f32.mrb[0].mxu0
      %v367 = vadd.f32 %v310, %v366
      %v368 = vpop.f32.mrb[0].mxu0
      %v369 = vpop.f32.mrb[0].mxu0
      %v370 = vadd.f32 %v310, %v369
      %v371 = vpop.f32.mrb[0].mxu0
      %372 = vmatprep.mubr.bf16.mxu0 0
      %373 = vmatmul.mubr.bf16.gmra.mrb[0].mxu0 %v319
      %v374 = vpop.f32.mrb[0].mxu0
      %v375 = vadd.f32 %v310, %v374
      %v376 = vpop.f32.mrb[0].mxu0
      %v377 = vpop.f32.mrb[0].mxu0
      %v378 = vadd.f32 %v310, %v377
      %v379 = vpop.f32.mrb[0].mxu0
      %380 = vmatprep.mubr.bf16.mxu0 0
      %381 = vmatmul.mubr.bf16.gmra.mrb[0].mxu0 %v322
      %v382 = vpop.f32.mrb[0].mxu0
      %v383 = vadd.f32 %v310, %v382
      %v384 = vpop.f32.mrb[0].mxu0
      %v385 = vpop.f32.mrb[0].mxu0
      %v386 = vadd.f32 %v310, %v385
      %v387 = vpop.f32.mrb[0].mxu0
      %388 = vdwg.mxu0
      %v389 = vpack.c.bf16 %v362, %v359
      %v390 = vpack.c.bf16 %v370, %v367
      %v391 = vpack.c.bf16 %v378, %v375
      %v392 = vpack.c.bf16 %v386, %v383
      %v397 = vunpack.c.l.b16 %v389
      %v398 = vunpack.c.h.b16 %v389
      %v399 = vunpack.c.l.b16 %v390
      %v400 = vunpack.c.h.b16 %v390
      %v401 = vunpack.c.l.b16 %v391
      %v402 = vunpack.c.h.b16 %v391
      %v403 = vunpack.c.l.b16 %v392
      %v404 = vunpack.c.h.b16 %v392
      %v405 = vpack.c.b16 %v397, %v397
      %v406 = vpack.c.b16 %v398, %v398
      %v407 = vpack.c.b16 %v399, %v399
      %v408 = vpack.c.b16 %v400, %v400
      %v409 = vpack.c.b16 %v401, %v401
      %v410 = vpack.c.b16 %v402, %v402
      %v411 = vpack.c.b16 %v403, %v403
      %v412 = vpack.c.b16 %v404, %v404
      %421 = vst [vmem:[%s172] sm:$0xf] %v405
      %422 = vst [vmem:[%s172 + $0x4] sm:$0xf] %v406
      %423 = vst [vmem:[%s172 + $0x8] sm:$0xf] %v407
      %424 = vst [vmem:[%s172 + $0xc] sm:$0xf] %v408
      %425 = vst [vmem:[%s172 + $0x10] sm:$0xf] %v409
      %426 = vst [vmem:[%s172 + $0x14] sm:$0xf] %v410
      %427 = vst [vmem:[%s172 + $0x18] sm:$0xf] %v411
      %428 = vst [vmem:[%s172 + $0x1c] sm:$0xf] %v412
      %s429 = smul.u32 8, %s14
      %p430 = scmp.lt.s32.totalorder %s429, 15
      %s431 = scalar_select %p430, %s429, 15
      %s432 = smul.addr %s431, 4
      %s433 = scalar_lea.vmem %s3, %s432
      // Predicated region
      $region33: #{run.6} parent=31 // pred_check
        %p434 = pneg %p100
      $region34: #{run.6} parent=31 // pred_check_branch
        %436 = sbr.rel (%p434) target = $region36
      $region35: #{run.6} parent=31 // pred_region
        %s437 = smul.u32 8, %s14
      $region36: #{run.6} parent=31 // pred_fallthru
        _
    $region32: #{run.6} parent=5 // pred_fallthru
      _
    %p438 = scmp.le.s32.totalorder 2, %s9
    // Predicated region
    $region37: #{run.6} parent=5 // pred_check
      %p439 = pneg %p438
    $region38: #{run.6} parent=5 // pred_check_branch
      %441 = sbr.rel (%p439) target = $region40
    $region39: #{run.6} parent=5 // pred_region
      %s442 = ssub.s32 %s9, 2
      // Predicated region
      $region41: #{run.6} parent=39 // pred_check
        %p443 = pneg %p106
      $region42: #{run.6} parent=39 // pred_check_branch
        %445 = sbr.rel (%p443) target = $region44
      $region43: #{run.6} parent=39 // pred_region
        %s446 = smul.u32 8, %s15
        %p447 = scmp.lt.s32.totalorder %s446, 15
        %s448 = scalar_select %p447, %s446, 15
        %s449 = smul.addr %s448, 4
        %s450 = scalar_lea.vmem %s3, %s449
      $region44: #{run.6} parent=39 // pred_fallthru
        _
    $region40: #{run.6} parent=5 // pred_fallthru
      _
  $region6: #{run.6} parent=0 // loop_footer
    %s13 = sadd.s32 1, %s9
  $region7: #{run.6} parent=0 // loop_footer_branch
    %8 = sbr.rel target = $region3
  $region8: #{run.6} parent=0 // loop_exit
    _

// kernel: run.4
$region0: #{run.4}
  #allocation0 [shape = 'u32[]', space=smem, size = 0x4, offset = 0x4, fixed_abs, tag = 'smem constant byte address 0x4 - core index']
  #allocation1 [shape = 'u32[144,128]{1,0:T(1,128)}', space=vmem, size = 0x12000, scoped, tag = 'internal scratch']
  %s0 = inlined_call_operand.vmem [shape: f32[1024,64], index: 0, kind: input, shape index: {}]
  %s1 = inlined_call_operand.vmem [shape: f32[64,64], index: 1, kind: input, shape index: {}]
  %s2 = inlined_call_operand.vmem [shape: f32[1,64], index: 2, kind: input, shape index: {}]
  %s3 = inlined_call_operand.vmem [shape: bf16[1024,64], index: 3, kind: output, shape index: {}]
  %s4 = sld [smem:[#allocation0]]
  $region45: #{run.4} parent=0
    _
  %s6 = ssub.s32 1, %s4
  %s7 = scalar_select 0, %s6, %s4
  loop: start=0, step=1, limit=4
  $region2: #{run.4} parent=0 // loop_pre_header
    _
  $region3: #{run.4} parent=0 // loop_header
    %s9 = sphi 0, %s13
    %p10 = scmp.ge.s32.totalorder %s9, 4
    %s16 = sphi 0, %s28
    %s17 = sphi 0, %s24
    %s18 = sphi 0, %s16
    %s19 = sphi 0, %s17
    %s20 = sphi 0, %s18
    %s21 = sphi 0, %s19
    %s31 = sphi 0, %s33
    %s34 = sphi 0, %s31
    %s35 = sphi 0, %s34
    %s51 = sphi 0, %s35
    %s57 = sphi 0, %s59
    %s60 = sphi 0, %s57
    %s61 = sphi 0, %s60
    %s77 = sphi 0, %s61
    %s83 = sphi 0, %s85
    %s86 = sphi 0, %s83
    %s87 = sphi 0, %s86
    %s103 = sphi 0, %s87
    %s111 = sphi 0, %s113
    %s114 = sphi 0, %s111
    %s115 = sphi 0, %s114
    %s131 = sphi 0, %s115
  $region4: #{run.4} parent=0 // loop_header_branch
    %12 = sbr.rel (%p10) target = $region8
  $region5: #{run.4} parent=0 // loop_body
    %s14 = ssub.s32 %s9, 1
    %s15 = ssub.s32 %s9, 2
    %s22 = sadd.s32 1, %s17
    %p23 = scmp.ge.s32.totalorder %s22, 1
    %s24 = scalar_select %p23, 0, %s22
    %s25 = sadd.s32 1, %s16
    %s26 = scalar_select %p23, %s25, %s16
    %p27 = scmp.ge.s32.totalorder %s26, 2
    %s28 = scalar_select %p27, 0, %s26
    %s29 = ssub.s32 %s16, %s28
    %p30 = scmp.eq.s32.totalorder %s29, 0
    %s32 = sadd.s32 %s31, 1
    %s33 = scalar_select %p30, %s31, %s32
    %p36 = pneg %p30
    %p37 = scmp.eq.s32.totalorder %s9, 1
    %p38 = por %p36, %p37
    %p39 = scmp.ne.s32.totalorder %s31, %s34
    %p40 = scmp.eq.s32.totalorder %s9, 0
    %p41 = por %p39, %p40
    %p42 = scmp.ne.s32.totalorder %s31, %s34
    %p43 = scmp.eq.s32.totalorder %s14, 1
    %p44 = por %p42, %p43
    %p45 = scmp.ne.s32.totalorder %s34, %s35
    %p46 = scmp.eq.s32.totalorder %s14, 0
    %p47 = por %p45, %p46
    %p48 = scmp.ne.s32.totalorder %s34, %s35
    %p49 = scmp.eq.s32.totalorder %s15, 1
    %p50 = por %p48, %p49
    %p52 = scmp.ne.s32.totalorder %s35, %s51
    %p53 = scmp.eq.s32.totalorder %s15, 0
    %p54 = por %p52, %p53
    %s55 = ssub.s32 %s17, %s24
    %p56 = scmp.eq.s32.totalorder %s55, 0
    %s58 = sadd.s32 %s57, 1
    %s59 = scalar_select %p56, %s57, %s58
    %p62 = pneg %p56
    %p63 = scmp.eq.s32.totalorder %s9, 1
    %p64 = por %p62, %p63
    %p65 = scmp.ne.s32.totalorder %s57, %s60
    %p66 = scmp.eq.s32.totalorder %s9, 0
    %p67 = por %p65, %p66
    %p68 = scmp.ne.s32.totalorder %s57, %s60
    %p69 = scmp.eq.s32.totalorder %s14, 1
    %p70 = por %p68, %p69
    %p71 = scmp.ne.s32.totalorder %s60, %s61
    %p72 = scmp.eq.s32.totalorder %s14, 0
    %p73 = por %p71, %p72
    %p74 = scmp.ne.s32.totalorder %s60, %s61
    %p75 = scmp.eq.s32.totalorder %s15, 1
    %p76 = por %p74, %p75
    %p78 = scmp.ne.s32.totalorder %s61, %s77
    %p79 = scmp.eq.s32.totalorder %s15, 0
    %p80 = por %p78, %p79
    %s81 = ssub.s32 %s17, %s24
    %p82 = scmp.eq.s32.totalorder %s81, 0
    %s84 = sadd.s32 %s83, 1
    %s85 = scalar_select %p82, %s83, %s84
    %p88 = pneg %p82
    %p89 = scmp.eq.s32.totalorder %s9, 1
    %p90 = por %p88, %p89
    %p91 = scmp.ne.s32.totalorder %s83, %s86
    %p92 = scmp.eq.s32.totalorder %s9, 0
    %p93 = por %p91, %p92
    %p94 = scmp.ne.s32.totalorder %s83, %s86
    %p95 = scmp.eq.s32.totalorder %s14, 1
    %p96 = por %p94, %p95
    %p97 = scmp.ne.s32.totalorder %s86, %s87
    %p98 = scmp.eq.s32.totalorder %s14, 0
    %p99 = por %p97, %p98
    %p100 = scmp.ne.s32.totalorder %s86, %s87
    %p101 = scmp.eq.s32.totalorder %s15, 1
    %p102 = por %p100, %p101
    %p104 = scmp.ne.s32.totalorder %s87, %s103
    %p105 = scmp.eq.s32.totalorder %s15, 0
    %p106 = por %p104, %p105
    %s107 = ssub.s32 %s16, %s28
    %s108 = ssub.s32 %s17, %s24
    %s109 = sor.u32 %s107, %s108
    %p110 = scmp.eq.s32.totalorder %s109, 0
    %s112 = sadd.s32 %s111, 1
    %s113 = scalar_select %p110, %s111, %s112
    %p116 = pneg %p110
    %p117 = scmp.eq.s32.totalorder %s9, 1
    %p118 = por %p116, %p117
    %p119 = scmp.ne.s32.totalorder %s111, %s114
    %p120 = scmp.eq.s32.totalorder %s9, 0
    %p121 = por %p119, %p120
    %p122 = scmp.ne.s32.totalorder %s111, %s114
    %p123 = scmp.eq.s32.totalorder %s14, 1
    %p124 = por %p122, %p123
    %p125 = scmp.ne.s32.totalorder %s114, %s115
    %p126 = scmp.eq.s32.totalorder %s14, 0
    %p127 = por %p125, %p126
    %p128 = scmp.ne.s32.totalorder %s114, %s115
    %p129 = scmp.eq.s32.totalorder %s15, 1
    %p130 = por %p128, %p129
    %p132 = scmp.ne.s32.totalorder %s115, %s131
    %p133 = scmp.eq.s32.totalorder %s15, 0
    %p134 = por %p132, %p133
    %p135 = scmp.le.s32.totalorder 1, %s9
    %p136 = scmp.lt.s32.totalorder %s9, 3
    %p137 = pnand %p135, %p136
    %p138 = pneg %p137
    // Predicated region
    $region9: #{run.4} parent=5 // pred_check
      _
    $region10: #{run.4} parent=5 // pred_check_branch
      %140 = sbr.rel (%p137) target = $region12
    $region11: #{run.4} parent=5 // pred_region
      %s141 = ssub.s32 %s9, 1
      // Predicated region
      $region13: #{run.4} parent=11 // pred_check
        %p142 = pneg %p73
      $region14: #{run.4} parent=11 // pred_check_branch
        %144 = sbr.rel (%p142) target = $region16
      $region15: #{run.4} parent=11 // pred_region
        %p145 = scmp.lt.s32.totalorder %s19, 0
        %s146 = scalar_select %p145, %s19, 0
        %s147 = smul.addr %s146, 8
        %s148 = scalar_lea.vmem %s1, %s147
      $region16: #{run.4} parent=11 // pred_fallthru
        _
      // Predicated region
      $region17: #{run.4} parent=11 // pred_check
        %p149 = pneg %p99
      $region18: #{run.4} parent=11 // pred_check_branch
        %151 = sbr.rel (%p149) target = $region20
      $region19: #{run.4} parent=11 // pred_region
        %p152 = scmp.lt.s32.totalorder %s19, 0
        %s153 = scalar_select %p152, %s19, 0
        %s154 = scalar_lea.vmem %s2, %s153
      $region20: #{run.4} parent=11 // pred_fallthru
        _
    $region12: #{run.4} parent=5 // pred_fallthru
      _
    %p155 = scmp.lt.s32.totalorder %s9, 2
    // Predicated region
    $region21: #{run.4} parent=5 // pred_check
      %p156 = pneg %p155
    $region22: #{run.4} parent=5 // pred_check_branch
      %158 = sbr.rel (%p156) target = $region24
    $region23: #{run.4} parent=5 // pred_region
      // Predicated region
      $region25: #{run.4} parent=23 // pred_check
        %p159 = pneg %p41
      $region26: #{run.4} parent=23 // pred_check_branch
        %161 = sbr.rel (%p159) target = $region28
      $region27: #{run.4} parent=23 // pred_region
        %s162 = smul.u32 64, %s16
        %p163 = scmp.lt.s32.totalorder %s162, 127
        %s164 = scalar_select %p163, %s162, 127
        %s165 = smul.addr %s164, 8
        %s166 = scalar_lea.vmem %s0, %s165
        %s167 = smul.u32 64, %s16
      $region28: #{run.4} parent=23 // pred_fallthru
        _
    $region24: #{run.4} parent=5 // pred_fallthru
      _
    %p168 = scmp.le.s32.totalorder 1, %s9
    %p169 = scmp.lt.s32.totalorder %s9, 3
    %p170 = pnand %p168, %p169
    %p171 = pneg %p170
    // Predicated region
    $region29: #{run.4} parent=5 // pred_check
      _
    $region30: #{run.4} parent=5 // pred_check_branch
      %173 = sbr.rel (%p170) target = $region32
    $region31: #{run.4} parent=5 // pred_region
      %s174 = ssub.s32 %s9, 1
      %s175 = smul.u32 64, %s18
      %p176 = scmp.lt.s32.totalorder %s175, 127
      %s177 = scalar_select %p176, %s175, 127
      %s178 = smul.addr %s177, 8
      %s179 = scalar_lea.vmem %s0, %s178
      %p180 = pneg %p47
      %p181 = pneg %p44
      %p182 = scmp.lt.s32.totalorder %s19, 0
      %s183 = scalar_select %p182, %s19, 0
      %s184 = smul.addr %s183, 8
      %s185 = scalar_lea.vmem %s1, %s184
      %p186 = pneg %p73
      %p187 = pneg %p70
      %p188 = scmp.lt.s32.totalorder %s19, 0
      %s189 = scalar_select %p188, %s19, 0
      %s190 = scalar_lea.vmem %s2, %s189
      %p191 = pneg %p99
      %p192 = pneg %p96
      %p193 = pneg %p127
      %p194 = pneg %p124
      %s195 = smul.u32 64, %s18
      %p196 = scmp.lt.s32.totalorder %s195, 127
      %s197 = scalar_select %p196, %s195, 127
      %p198 = scmp.lt.s32.totalorder %s19, 0
      %s199 = scalar_select %p198, %s19, 0
      %s200 = sadd.s32 %s199, %s197
      %s201 = smul.addr %s200, 4
      %s202 = scalar_lea.vmem %s3, %s201
      %s203 = smul.u32 64, %s18
      %p204 = scmp.lt.s32.totalorder %s203, 127
      %s205 = scalar_select %p204, %s203, 127
      %s206 = smul.addr %s205, 8
      %s207 = scalar_lea.vmem %s0, %s206
      %s208 = smul.u32 64, %s18
      %p209 = scmp.lt.s32.totalorder %s19, 0
      %s210 = scalar_select %p209, %s19, 0
      %s211 = smul.addr %s210, 8
      %s212 = scalar_lea.vmem %s1, %s211
      %p213 = scmp.lt.s32.totalorder %s19, 0
      %s214 = scalar_select %p213, %s19, 0
      %s215 = scalar_lea.vmem %s2, %s214
      %s216 = smul.u32 64, %s18
      %p217 = scmp.lt.s32.totalorder %s216, 127
      %s218 = scalar_select %p217, %s216, 127
      %p219 = scmp.lt.s32.totalorder %s19, 0
      %s220 = scalar_select %p219, %s19, 0
      %s221 = sadd.s32 %s220, %s218
      %s222 = smul.addr %s221, 4
      %s223 = scalar_lea.vmem %s3, %s222
      %s224 = smul.u32 64, %s18
      %v226 = vld [vmem:[%s207] sm:$0xff]
      %v227 = vld [vmem:[%s207 + $0x8] sm:$0xff]
      %v228 = vld [vmem:[%s207 + $0x10] sm:$0xff]
      %v229 = vld [vmem:[%s207 + $0x18] sm:$0xff]
      %v230 = vld [vmem:[%s207 + $0x20] sm:$0xff]
      %v231 = vld [vmem:[%s207 + $0x28] sm:$0xff]
      %v232 = vld [vmem:[%s207 + $0x30] sm:$0xff]
      %v233 = vld [vmem:[%s207 + $0x38] sm:$0xff]
      %v234 = vld [vmem:[%s207 + $0x40] sm:$0xff]
      %v235 = vld [vmem:[%s207 + $0x48] sm:$0xff]
      %v236 = vld [vmem:[%s207 + $0x50] sm:$0xff]
      %v237 = vld [vmem:[%s207 + $0x58] sm:$0xff]
      %v238 = vld [vmem:[%s207 + $0x60] sm:$0xff]
      %v239 = vld [vmem:[%s207 + $0x68] sm:$0xff]
      %v240 = vld [vmem:[%s207 + $0x70] sm:$0xff]
      %v241 = vld [vmem:[%s207 + $0x78] sm:$0xff]
      %v242 = vld [vmem:[%s207 + $0x80] sm:$0xff]
      %v243 = vld [vmem:[%s207 + $0x88] sm:$0xff]
      %v244 = vld [vmem:[%s207 + $0x90] sm:$0xff]
      %v245 = vld [vmem:[%s207 + $0x98] sm:$0xff]
      %v246 = vld [vmem:[%s207 + $0xa0] sm:$0xff]
      %v247 = vld [vmem:[%s207 + $0xa8] sm:$0xff]
      %v248 = vld [vmem:[%s207 + $0xb0] sm:$0xff]
      %v249 = vld [vmem:[%s207 + $0xb8] sm:$0xff]
      %v250 = vld [vmem:[%s207 + $0xc0] sm:$0xff]
      %v251 = vld [vmem:[%s207 + $0xc8] sm:$0xff]
      %v252 = vld [vmem:[%s207 + $0xd0] sm:$0xff]
      %v253 = vld [vmem:[%s207 + $0xd8] sm:$0xff]
      %v254 = vld [vmem:[%s207 + $0xe0] sm:$0xff]
      %v255 = vld [vmem:[%s207 + $0xe8] sm:$0xff]
      %v256 = vld [vmem:[%s207 + $0xf0] sm:$0xff]
      %v257 = vld [vmem:[%s207 + $0xf8] sm:$0xff]
      %v258 = vld [vmem:[%s207 + $0x100] sm:$0xff]
      %v259 = vld [vmem:[%s207 + $0x108] sm:$0xff]
      %v260 = vld [vmem:[%s207 + $0x110] sm:$0xff]
      %v261 = vld [vmem:[%s207 + $0x118] sm:$0xff]
      %v262 = vld [vmem:[%s207 + $0x120] sm:$0xff]
      %v263 = vld [vmem:[%s207 + $0x128] sm:$0xff]
      %v264 = vld [vmem:[%s207 + $0x130] sm:$0xff]
      %v265 = vld [vmem:[%s207 + $0x138] sm:$0xff]
      %v266 = vld [vmem:[%s207 + $0x140] sm:$0xff]
      %v267 = vld [vmem:[%s207 + $0x148] sm:$0xff]
      %v268 = vld [vmem:[%s207 + $0x150] sm:$0xff]
      %v269 = vld [vmem:[%s207 + $0x158] sm:$0xff]
      %v270 = vld [vmem:[%s207 + $0x160] sm:$0xff]
      %v271 = vld [vmem:[%s207 + $0x168] sm:$0xff]
      %v272 = vld [vmem:[%s207 + $0x170] sm:$0xff]
      %v273 = vld [vmem:[%s207 + $0x178] sm:$0xff]
      %v274 = vld [vmem:[%s207 + $0x180] sm:$0xff]
      %v275 = vld [vmem:[%s207 + $0x188] sm:$0xff]
      %v276 = vld [vmem:[%s207 + $0x190] sm:$0xff]
      %v277 = vld [vmem:[%s207 + $0x198] sm:$0xff]
      %v278 = vld [vmem:[%s207 + $0x1a0] sm:$0xff]
      %v279 = vld [vmem:[%s207 + $0x1a8] sm:$0xff]
      %v280 = vld [vmem:[%s207 + $0x1b0] sm:$0xff]
      %v281 = vld [vmem:[%s207 + $0x1b8] sm:$0xff]
      %v282 = vld [vmem:[%s207 + $0x1c0] sm:$0xff]
      %v283 = vld [vmem:[%s207 + $0x1c8] sm:$0xff]
      %v284 = vld [vmem:[%s207 + $0x1d0] sm:$0xff]
      %v285 = vld [vmem:[%s207 + $0x1d8] sm:$0xff]
      %v286 = vld [vmem:[%s207 + $0x1e0] sm:$0xff]
      %v287 = vld [vmem:[%s207 + $0x1e8] sm:$0xff]
      %v288 = vld [vmem:[%s207 + $0x1f0] sm:$0xff]
      %v289 = vld [vmem:[%s207 + $0x1f8] sm:$0xff]
      %v290 = vpack.c.bf16 %v227, %v226
      %v291 = vpack.c.bf16 %v229, %v228
      %v292 = vpack.c.bf16 %v231, %v230
      %v293 = vpack.c.bf16 %v233, %v232
      %v294 = vpack.c.bf16 %v235, %v234
      %v295 = vpack.c.bf16 %v237, %v236
      %v296 = vpack.c.bf16 %v239, %v238
      %v297 = vpack.c.bf16 %v241, %v240
      %v298 = vpack.c.bf16 %v243, %v242
      %v299 = vpack.c.bf16 %v245, %v244
      %v300 = vpack.c.bf16 %v247, %v246
      %v301 = vpack.c.bf16 %v249, %v248
      %v302 = vpack.c.bf16 %v251, %v250
      %v303 = vpack.c.bf16 %v253, %v252
      %v304 = vpack.c.bf16 %v255, %v254
      %v305 = vpack.c.bf16 %v257, %v256
      %v306 = vpack.c.bf16 %v259, %v258
      %v307 = vpack.c.bf16 %v261, %v260
      %v308 = vpack.c.bf16 %v263, %v262
      %v309 = vpack.c.bf16 %v265, %v264
      %v310 = vpack.c.bf16 %v267, %v266
      %v311 = vpack.c.bf16 %v269, %v268
      %v312 = vpack.c.bf16 %v271, %v270
      %v313 = vpack.c.bf16 %v273, %v272
      %v314 = vpack.c.bf16 %v275, %v274
      %v315 = vpack.c.bf16 %v277, %v276
      %v316 = vpack.c.bf16 %v279, %v278
      %v317 = vpack.c.bf16 %v281, %v280
      %v318 = vpack.c.bf16 %v283, %v282
      %v319 = vpack.c.bf16 %v285, %v284
      %v320 = vpack.c.bf16 %v287, %v286
      %v321 = vpack.c.bf16 %v289, %v288
      %v322 = vld [vmem:[%s212] sm:$0xff]
      %v323 = vld [vmem:[%s212 + $0x8] sm:$0xff]
      %v324 = vld [vmem:[%s212 + $0x10] sm:$0xff]
      %v325 = vld [vmem:[%s212 + $0x18] sm:$0xff]
      %v326 = vld [vmem:[%s212 + $0x20] sm:$0xff]
      %v327 = vld [vmem:[%s212 + $0x28] sm:$0xff]
      %v328 = vld [vmem:[%s212 + $0x30] sm:$0xff]
      %v329 = vld [vmem:[%s212 + $0x38] sm:$0xff]
      %v330 = vpack.c.bf16 %v323, %v322
      %v331 = vpack.c.bf16 %v325, %v324
      %v332 = vpack.c.bf16 %v327, %v326
      %v333 = vpack.c.bf16 %v329, %v328
      %v334 = vld [vmem:[%s215] sm:$0x1]
      %v336 = vlaneseq
      %v337 = vshrl.u32 %v336, 7
      %v338 = vsub.s32 0, %v337
      %v339 = vrot.slane %v334, %v338
      %vm341 = vcmask 523264
      %v343 = vsel %vm341, %v290, 0
      %v346 = vsel %vm341, %v291, 0
      %v349 = vsel %vm341, %v292, 0
      %v352 = vsel %vm341, %v293, 0
      %v355 = vsel %vm341, %v294, 0
      %v358 = vsel %vm341, %v295, 0
      %v361 = vsel %vm341, %v296, 0
      %v364 = vsel %vm341, %v297, 0
      %v367 = vsel %vm341, %v298, 0
      %v370 = vsel %vm341, %v299, 0
      %v373 = vsel %vm341, %v300, 0
      %v376 = vsel %vm341, %v301, 0
      %v379 = vsel %vm341, %v302, 0
      %v382 = vsel %vm341, %v303, 0
      %v385 = vsel %vm341, %v304, 0
      %v388 = vsel %vm341, %v305, 0
      %v391 = vsel %vm341, %v306, 0
      %v394 = vsel %vm341, %v307, 0
      %v397 = vsel %vm341, %v308, 0
      %v400 = vsel %vm341, %v309, 0
      %v403 = vsel %vm341, %v310, 0
      %v406 = vsel %vm341, %v311, 0
      %v409 = vsel %vm341, %v312, 0
      %v412 = vsel %vm341, %v313, 0
      %v415 = vsel %vm341, %v314, 0
      %v418 = vsel %vm341, %v315, 0
      %v421 = vsel %vm341, %v316, 0
      %v424 = vsel %vm341, %v317, 0
      %v427 = vsel %vm341, %v318, 0
      %v430 = vsel %vm341, %v319, 0
      %v433 = vsel %vm341, %v320, 0
      %v436 = vsel %vm341, %v321, 0
      %438 = vmatprep.subr.bf16.mxu0 0
      %439 = vmatpush1.bf16.msra.mxu0 %v330
      %440 = vmatprep.subr.bf16.mxu0 0
      %441 = vmatpush1.bf16.msra.mxu0 %v331
      %442 = vmatprep.subr.bf16.mxu0 0
      %443 = vmatpush1.bf16.msra.mxu0 %v332
      %444 = vmatprep.subr.bf16.mxu0 0
      %445 = vmatpush1.bf16.msra.mxu0 %v333
      %446 = vmatprep.subr.bf16.mxu0 0
      %447 = vmatpush1.bf16.msra.mxu0 0
      %448 = vmatprep.subr.bf16.mxu0 0
      %449 = vmatpush1.bf16.msra.mxu0 0
      %450 = vmatprep.subr.bf16.mxu0 0
      %451 = vmatpush1.bf16.msra.mxu0 0
      %452 = vmatprep.subr.bf16.mxu0 0
      %453 = vmatpush1.bf16.msra.mxu0 0
      %454 = vmatprep.subr.bf16.mxu0 0
      %455 = vmatpush1.bf16.msra.mxu0 0
      %456 = vmatprep.subr.bf16.mxu0 0
      %457 = vmatpush1.bf16.msra.mxu0 0
      %458 = vmatprep.subr.bf16.mxu0 0
      %459 = vmatpush1.bf16.msra.mxu0 0
      %460 = vmatprep.subr.bf16.mxu0 0
      %461 = vmatpush1.bf16.msra.mxu0 0
      %462 = vmatprep.subr.bf16.mxu0 0
      %463 = vmatpush1.bf16.msra.mxu0 0
      %464 = vmatprep.subr.bf16.mxu0 0
      %465 = vmatpush1.bf16.msra.mxu0 0
      %466 = vmatprep.subr.bf16.mxu0 0
      %467 = vmatpush1.bf16.msra.mxu0 0
      %468 = vmatprep.subr.bf16.mxu0 0
      %469 = vmatpush1.bf16.msra.mxu0 0
      %470 = vmatprep.mubr.bf16.mxu0 0
      %471 = vmatmul.mubr.bf16.gmra.mrb[0].mxu0 %v343
      %v472 = vpop.f32.mrb[0].mxu0
      %v473 = vadd.f32 %v339, %v472
      %v474 = vpop.f32.mrb[0].mxu0
      %v475 = vpop.f32.mrb[0].mxu0
      %v476 = vadd.f32 %v339, %v475
      %v477 = vpop.f32.mrb[0].mxu0
      %478 = vmatprep.mubr.bf16.mxu0 0
      %479 = vmatmul.mubr.bf16.gmra.mrb[0].mxu0 %v346
      %v480 = vpop.f32.mrb[0].mxu0
      %v481 = vadd.f32 %v339, %v480
      %v482 = vpop.f32.mrb[0].mxu0
      %v483 = vpop.f32.mrb[0].mxu0
      %v484 = vadd.f32 %v339, %v483
      %v485 = vpop.f32.mrb[0].mxu0
      %486 = vmatprep.mubr.bf16.mxu0 0
      %487 = vmatmul.mubr.bf16.gmra.mrb[0].mxu0 %v349
      %v488 = vpop.f32.mrb[0].mxu0
      %v489 = vadd.f32 %v339, %v488
      %v490 = vpop.f32.mrb[0].mxu0
      %v491 = vpop.f32.mrb[0].mxu0
      %v492 = vadd.f32 %v339, %v491
      %v493 = vpop.f32.mrb[0].mxu0
      %494 = vmatprep.mubr.bf16.mxu0 0
      %495 = vmatmul.mubr.bf16.gmra.mrb[0].mxu0 %v352
      %v496 = vpop.f32.mrb[0].mxu0
      %v497 = vadd.f32 %v339, %v496
      %v498 = vpop.f32.mrb[0].mxu0
      %v499 = vpop.f32.mrb[0].mxu0
      %v500 = vadd.f32 %v339, %v499
      %v501 = vpop.f32.mrb[0].mxu0
      %502 = vmatprep.mubr.bf16.mxu0 0
      %503 = vmatmul.mubr.bf16.gmra.mrb[0].mxu0 %v355
      %v504 = vpop.f32.mrb[0].mxu0
      %v505 = vadd.f32 %v339, %v504
      %v506 = vpop.f32.mrb[0].mxu0
      %v507 = vpop.f32.mrb[0].mxu0
      %v508 = vadd.f32 %v339, %v507
      %v509 = vpop.f32.mrb[0].mxu0
      %510 = vmatprep.mubr.bf16.mxu0 0
      %511 = vmatmul.mubr.bf16.gmra.mrb[0].mxu0 %v358
      %v512 = vpop.f32.mrb[0].mxu0
      %v513 = vadd.f32 %v339, %v512
      %v514 = vpop.f32.mrb[0].mxu0
      %v515 = vpop.f32.mrb[0].mxu0
      %v516 = vadd.f32 %v339, %v515
      %v517 = vpop.f32.mrb[0].mxu0
      %518 = vmatprep.mubr.bf16.mxu0 0
      %519 = vmatmul.mubr.bf16.gmra.mrb[0].mxu0 %v361
      %v520 = vpop.f32.mrb[0].mxu0
      %v521 = vadd.f32 %v339, %v520
      %v522 = vpop.f32.mrb[0].mxu0
      %v523 = vpop.f32.mrb[0].mxu0
      %v524 = vadd.f32 %v339, %v523
      %v525 = vpop.f32.mrb[0].mxu0
      %526 = vmatprep.mubr.bf16.mxu0 0
      %527 = vmatmul.mubr.bf16.gmra.mrb[0].mxu0 %v364
      %v528 = vpop.f32.mrb[0].mxu0
      %v529 = vadd.f32 %v339, %v528
      %v530 = vpop.f32.mrb[0].mxu0
      %v531 = vpop.f32.mrb[0].mxu0
      %v532 = vadd.f32 %v339, %v531
      %v533 = vpop.f32.mrb[0].mxu0
      %534 = vmatprep.mubr.bf16.mxu0 0
      %535 = vmatmul.mubr.bf16.gmra.mrb[0].mxu0 %v367
      %v536 = vpop.f32.mrb[0].mxu0
      %v537 = vadd.f32 %v339, %v536
      %v538 = vpop.f32.mrb[0].mxu0
      %v539 = vpop.f32.mrb[0].mxu0
      %v540 = vadd.f32 %v339, %v539
      %v541 = vpop.f32.mrb[0].mxu0
      %542 = vmatprep.mubr.bf16.mxu0 0
      %543 = vmatmul.mubr.bf16.gmra.mrb[0].mxu0 %v370
      %v544 = vpop.f32.mrb[0].mxu0
      %v545 = vadd.f32 %v339, %v544
      %v546 = vpop.f32.mrb[0].mxu0
      %v547 = vpop.f32.mrb[0].mxu0
      %v548 = vadd.f32 %v339, %v547
      %v549 = vpop.f32.mrb[0].mxu0
      %550 = vmatprep.mubr.bf16.mxu0 0
      %551 = vmatmul.mubr.bf16.gmra.mrb[0].mxu0 %v373
      %v552 = vpop.f32.mrb[0].mxu0
      %v553 = vadd.f32 %v339, %v552
      %v554 = vpop.f32.mrb[0].mxu0
      %v555 = vpop.f32.mrb[0].mxu0
      %v556 = vadd.f32 %v339, %v555
      %v557 = vpop.f32.mrb[0].mxu0
      %558 = vmatprep.mubr.bf16.mxu0 0
      %559 = vmatmul.mubr.bf16.gmra.mrb[0].mxu0 %v376
      %v560 = vpop.f32.mrb[0].mxu0
      %v561 = vadd.f32 %v339, %v560
      %v562 = vpop.f32.mrb[0].mxu0
      %v563 = vpop.f32.mrb[0].mxu0
      %v564 = vadd.f32 %v339, %v563
      %v565 = vpop.f32.mrb[0].mxu0
      %566 = vmatprep.mubr.bf16.mxu0 0
      %567 = vmatmul.mubr.bf16.gmra.mrb[0].mxu0 %v379
      %v568 = vpop.f32.mrb[0].mxu0
      %v569 = vadd.f32 %v339, %v568
      %v570 = vpop.f32.mrb[0].mxu0
      %v571 = vpop.f32.mrb[0].mxu0
      %v572 = vadd.f32 %v339, %v571
      %v573 = vpop.f32.mrb[0].mxu0
      %574 = vmatprep.mubr.bf16.mxu0 0
      %575 = vmatmul.mubr.bf16.gmra.mrb[0].mxu0 %v382
      %v576 = vpop.f32.mrb[0].mxu0
      %v577 = vadd.f32 %v339, %v576
      %v578 = vpop.f32.mrb[0].mxu0
      %v579 = vpop.f32.mrb[0].mxu0
      %v580 = vadd.f32 %v339, %v579
      %v581 = vpop.f32.mrb[0].mxu0
      %582 = vmatprep.mubr.bf16.mxu0 0
      %583 = vmatmul.mubr.bf16.gmra.mrb[0].mxu0 %v385
      %v584 = vpop.f32.mrb[0].mxu0
      %v585 = vadd.f32 %v339, %v584
      %v586 = vpop.f32.mrb[0].mxu0
      %v587 = vpop.f32.mrb[0].mxu0
      %v588 = vadd.f32 %v339, %v587
      %v589 = vpop.f32.mrb[0].mxu0
      %590 = vmatprep.mubr.bf16.mxu0 0
      %591 = vmatmul.mubr.bf16.gmra.mrb[0].mxu0 %v388
      %v592 = vpop.f32.mrb[0].mxu0
      %v593 = vadd.f32 %v339, %v592
      %v594 = vpop.f32.mrb[0].mxu0
      %v595 = vpop.f32.mrb[0].mxu0
      %v596 = vadd.f32 %v339, %v595
      %v597 = vpop.f32.mrb[0].mxu0
      %598 = vmatprep.mubr.bf16.mxu0 0
      %599 = vmatmul.mubr.bf16.gmra.mrb[0].mxu0 %v391
      %v600 = vpop.f32.mrb[0].mxu0
      %v601 = vadd.f32 %v339, %v600
      %v602 = vpop.f32.mrb[0].mxu0
      %v603 = vpop.f32.mrb[0].mxu0
      %v604 = vadd.f32 %v339, %v603
      %v605 = vpop.f32.mrb[0].mxu0
      %606 = vmatprep.mubr.bf16.mxu0 0
      %607 = vmatmul.mubr.bf16.gmra.mrb[0].mxu0 %v394
      %v608 = vpop.f32.mrb[0].mxu0
      %v609 = vadd.f32 %v339, %v608
      %v610 = vpop.f32.mrb[0].mxu0
      %v611 = vpop.f32.mrb[0].mxu0
      %v612 = vadd.f32 %v339, %v611
      %v613 = vpop.f32.mrb[0].mxu0
      %614 = vmatprep.mubr.bf16.mxu0 0
      %615 = vmatmul.mubr.bf16.gmra.mrb[0].mxu0 %v397
      %v616 = vpop.f32.mrb[0].mxu0
      %v617 = vadd.f32 %v339, %v616
      %v618 = vpop.f32.mrb[0].mxu0
      %v619 = vpop.f32.mrb[0].mxu0
      %v620 = vadd.f32 %v339, %v619
      %v621 = vpop.f32.mrb[0].mxu0
      %622 = vmatprep.mubr.bf16.mxu0 0
      %623 = vmatmul.mubr.bf16.gmra.mrb[0].mxu0 %v400
      %v624 = vpop.f32.mrb[0].mxu0
      %v625 = vadd.f32 %v339, %v624
      %v626 = vpop.f32.mrb[0].mxu0
      %v627 = vpop.f32.mrb[0].mxu0
      %v628 = vadd.f32 %v339, %v627
      %v629 = vpop.f32.mrb[0].mxu0
      %630 = vmatprep.mubr.bf16.mxu0 0
      %631 = vmatmul.mubr.bf16.gmra.mrb[0].mxu0 %v403
      %v632 = vpop.f32.mrb[0].mxu0
      %v633 = vadd.f32 %v339, %v632
      %v634 = vpop.f32.mrb[0].mxu0
      %v635 = vpop.f32.mrb[0].mxu0
      %v636 = vadd.f32 %v339, %v635
      %v637 = vpop.f32.mrb[0].mxu0
      %638 = vmatprep.mubr.bf16.mxu0 0
      %639 = vmatmul.mubr.bf16.gmra.mrb[0].mxu0 %v406
      %v640 = vpop.f32.mrb[0].mxu0
      %v641 = vadd.f32 %v339, %v640
      %v642 = vpop.f32.mrb[0].mxu0
      %v643 = vpop.f32.mrb[0].mxu0
      %v644 = vadd.f32 %v339, %v643
      %v645 = vpop.f32.mrb[0].mxu0
      %646 = vmatprep.mubr.bf16.mxu0 0
      %647 = vmatmul.mubr.bf16.gmra.mrb[0].mxu0 %v409
      %v648 = vpop.f32.mrb[0].mxu0
      %v649 = vadd.f32 %v339, %v648
      %v650 = vpop.f32.mrb[0].mxu0
      %v651 = vpop.f32.mrb[0].mxu0
      %v652 = vadd.f32 %v339, %v651
      %v653 = vpop.f32.mrb[0].mxu0
      %654 = vmatprep.mubr.bf16.mxu0 0
      %655 = vmatmul.mubr.bf16.gmra.mrb[0].mxu0 %v412
      %v656 = vpop.f32.mrb[0].mxu0
      %v657 = vadd.f32 %v339, %v656
      %v658 = vpop.f32.mrb[0].mxu0
      %v659 = vpop.f32.mrb[0].mxu0
      %v660 = vadd.f32 %v339, %v659
      %v661 = vpop.f32.mrb[0].mxu0
      %662 = vmatprep.mubr.bf16.mxu0 0
      %663 = vmatmul.mubr.bf16.gmra.mrb[0].mxu0 %v415
      %v664 = vpop.f32.mrb[0].mxu0
      %v665 = vadd.f32 %v339, %v664
      %v666 = vpop.f32.mrb[0].mxu0
      %v667 = vpop.f32.mrb[0].mxu0
      %v668 = vadd.f32 %v339, %v667
      %v669 = vpop.f32.mrb[0].mxu0
      %670 = vmatprep.mubr.bf16.mxu0 0
      %671 = vmatmul.mubr.bf16.gmra.mrb[0].mxu0 %v418
      %v672 = vpop.f32.mrb[0].mxu0
      %v673 = vadd.f32 %v339, %v672
      %v674 = vpop.f32.mrb[0].mxu0
      %v675 = vpop.f32.mrb[0].mxu0
      %v676 = vadd.f32 %v339, %v675
      %v677 = vpop.f32.mrb[0].mxu0
      %678 = vmatprep.mubr.bf16.mxu0 0
      %679 = vmatmul.mubr.bf16.gmra.mrb[0].mxu0 %v421
      %v680 = vpop.f32.mrb[0].mxu0
      %v681 = vadd.f32 %v339, %v680
      %v682 = vpop.f32.mrb[0].mxu0
      %v683 = vpop.f32.mrb[0].mxu0
      %v684 = vadd.f32 %v339, %v683
      %v685 = vpop.f32.mrb[0].mxu0
      %686 = vmatprep.mubr.bf16.mxu0 0
      %687 = vmatmul.mubr.bf16.gmra.mrb[0].mxu0 %v424
      %v688 = vpop.f32.mrb[0].mxu0
      %v689 = vadd.f32 %v339, %v688
      %v690 = vpop.f32.mrb[0].mxu0
      %v691 = vpop.f32.mrb[0].mxu0
      %v692 = vadd.f32 %v339, %v691
      %v693 = vpop.f32.mrb[0].mxu0
      %694 = vmatprep.mubr.bf16.mxu0 0
      %695 = vmatmul.mubr.bf16.gmra.mrb[0].mxu0 %v427
      %v696 = vpop.f32.mrb[0].mxu0
      %v697 = vadd.f32 %v339, %v696
      %v698 = vpop.f32.mrb[0].mxu0
      %v699 = vpop.f32.mrb[0].mxu0
      %v700 = vadd.f32 %v339, %v699
      %v701 = vpop.f32.mrb[0].mxu0
      %702 = vmatprep.mubr.bf16.mxu0 0
      %703 = vmatmul.mubr.bf16.gmra.mrb[0].mxu0 %v430
      %v704 = vpop.f32.mrb[0].mxu0
      %v705 = vadd.f32 %v339, %v704
      %v706 = vpop.f32.mrb[0].mxu0
      %v707 = vpop.f32.mrb[0].mxu0
      %v708 = vadd.f32 %v339, %v707
      %v709 = vpop.f32.mrb[0].mxu0
      %710 = vmatprep.mubr.bf16.mxu0 0
      %711 = vmatmul.mubr.bf16.gmra.mrb[0].mxu0 %v433
      %v712 = vpop.f32.mrb[0].mxu0
      %v713 = vadd.f32 %v339, %v712
      %v714 = vpop.f32.mrb[0].mxu0
      %v715 = vpop.f32.mrb[0].mxu0
      %v716 = vadd.f32 %v339, %v715
      %v717 = vpop.f32.mrb[0].mxu0
      %718 = vmatprep.mubr.bf16.mxu0 0
      %719 = vmatmul.mubr.bf16.gmra.mrb[0].mxu0 %v436
      %v720 = vpop.f32.mrb[0].mxu0
      %v721 = vadd.f32 %v339, %v720
      %v722 = vpop.f32.mrb[0].mxu0
      %v723 = vpop.f32.mrb[0].mxu0
      %v724 = vadd.f32 %v339, %v723
      %v725 = vpop.f32.mrb[0].mxu0
      %726 = vdwg.mxu0
      %v727 = vpack.c.bf16 %v476, %v473
      %v728 = vpack.c.bf16 %v484, %v481
      %v729 = vpack.c.bf16 %v492, %v489
      %v730 = vpack.c.bf16 %v500, %v497
      %v731 = vpack.c.bf16 %v508, %v505
      %v732 = vpack.c.bf16 %v516, %v513
      %v733 = vpack.c.bf16 %v524, %v521
      %v734 = vpack.c.bf16 %v532, %v529
      %v735 = vpack.c.bf16 %v540, %v537
      %v736 = vpack.c.bf16 %v548, %v545
      %v737 = vpack.c.bf16 %v556, %v553
      %v738 = vpack.c.bf16 %v564, %v561
      %v739 = vpack.c.bf16 %v572, %v569
      %v740 = vpack.c.bf16 %v580, %v577
      %v741 = vpack.c.bf16 %v588, %v585
      %v742 = vpack.c.bf16 %v596, %v593
      %v743 = vpack.c.bf16 %v604, %v601
      %v744 = vpack.c.bf16 %v612, %v609
      %v745 = vpack.c.bf16 %v620, %v617
      %v746 = vpack.c.bf16 %v628, %v625
      %v747 = vpack.c.bf16 %v636, %v633
      %v748 = vpack.c.bf16 %v644, %v641
      %v749 = vpack.c.bf16 %v652, %v649
      %v750 = vpack.c.bf16 %v660, %v657
      %v751 = vpack.c.bf16 %v668, %v665
      %v752 = vpack.c.bf16 %v676, %v673
      %v753 = vpack.c.bf16 %v684, %v681
      %v754 = vpack.c.bf16 %v692, %v689
      %v755 = vpack.c.bf16 %v700, %v697
      %v756 = vpack.c.bf16 %v708, %v705
      %v757 = vpack.c.bf16 %v716, %v713
      %v758 = vpack.c.bf16 %v724, %v721
      %v791 = vunpack.c.l.b16 %v727
      %v792 = vunpack.c.h.b16 %v727
      %v793 = vunpack.c.l.b16 %v728
      %v794 = vunpack.c.h.b16 %v728
      %v795 = vunpack.c.l.b16 %v729
      %v796 = vunpack.c.h.b16 %v729
      %v797 = vunpack.c.l.b16 %v730
      %v798 = vunpack.c.h.b16 %v730
      %v799 = vunpack.c.l.b16 %v731
      %v800 = vunpack.c.h.b16 %v731
      %v801 = vunpack.c.l.b16 %v732
      %v802 = vunpack.c.h.b16 %v732
      %v803 = vunpack.c.l.b16 %v733
      %v804 = vunpack.c.h.b16 %v733
      %v805 = vunpack.c.l.b16 %v734
      %v806 = vunpack.c.h.b16 %v734
      %v807 = vunpack.c.l.b16 %v735
      %v808 = vunpack.c.h.b16 %v735
      %v809 = vunpack.c.l.b16 %v736
      %v810 = vunpack.c.h.b16 %v736
      %v811 = vunpack.c.l.b16 %v737
      %v812 = vunpack.c.h.b16 %v737
      %v813 = vunpack.c.l.b16 %v738
      %v814 = vunpack.c.h.b16 %v738
      %v815 = vunpack.c.l.b16 %v739
      %v816 = vunpack.c.h.b16 %v739
      %v817 = vunpack.c.l.b16 %v740
      %v818 = vunpack.c.h.b16 %v740
      %v819 = vunpack.c.l.b16 %v741
      %v820 = vunpack.c.h.b16 %v741
      %v821 = vunpack.c.l.b16 %v742
      %v822 = vunpack.c.h.b16 %v742
      %v823 = vunpack.c.l.b16 %v743
      %v824 = vunpack.c.h.b16 %v743
      %v825 = vunpack.c.l.b16 %v744
      %v826 = vunpack.c.h.b16 %v744
      %v827 = vunpack.c.l.b16 %v745
      %v828 = vunpack.c.h.b16 %v745
      %v829 = vunpack.c.l.b16 %v746
      %v830 = vunpack.c.h.b16 %v746
      %v831 = vunpack.c.l.b16 %v747
      %v832 = vunpack.c.h.b16 %v747
      %v833 = vunpack.c.l.b16 %v748
      %v834 = vunpack.c.h.b16 %v748
      %v835 = vunpack.c.l.b16 %v749
      %v836 = vunpack.c.h.b16 %v749
      %v837 = vunpack.c.l.b16 %v750
      %v838 = vunpack.c.h.b16 %v750
      %v839 = vunpack.c.l.b16 %v751
      %v840 = vunpack.c.h.b16 %v751
      %v841 = vunpack.c.l.b16 %v752
      %v842 = vunpack.c.h.b16 %v752
      %v843 = vunpack.c.l.b16 %v753
      %v844 = vunpack.c.h.b16 %v753
      %v845 = vunpack.c.l.b16 %v754
      %v846 = vunpack.c.h.b16 %v754
      %v847 = vunpack.c.l.b16 %v755
      %v848 = vunpack.c.h.b16 %v755
      %v849 = vunpack.c.l.b16 %v756
      %v850 = vunpack.c.h.b16 %v756
      %v851 = vunpack.c.l.b16 %v757
      %v852 = vunpack.c.h.b16 %v757
      %v853 = vunpack.c.l.b16 %v758
      %v854 = vunpack.c.h.b16 %v758
      %v855 = vpack.c.b16 %v791, %v791
      %v856 = vpack.c.b16 %v792, %v792
      %v857 = vpack.c.b16 %v793, %v793
      %v858 = vpack.c.b16 %v794, %v794
      %v859 = vpack.c.b16 %v795, %v795
      %v860 = vpack.c.b16 %v796, %v796
      %v861 = vpack.c.b16 %v797, %v797
      %v862 = vpack.c.b16 %v798, %v798
      %v863 = vpack.c.b16 %v799, %v799
      %v864 = vpack.c.b16 %v800, %v800
      %v865 = vpack.c.b16 %v801, %v801
      %v866 = vpack.c.b16 %v802, %v802
      %v867 = vpack.c.b16 %v803, %v803
      %v868 = vpack.c.b16 %v804, %v804
      %v869 = vpack.c.b16 %v805, %v805
      %v870 = vpack.c.b16 %v806, %v806
      %v871 = vpack.c.b16 %v807, %v807
      %v872 = vpack.c.b16 %v808, %v808
      %v873 = vpack.c.b16 %v809, %v809
      %v874 = vpack.c.b16 %v810, %v810
      %v875 = vpack.c.b16 %v811, %v811
      %v876 = vpack.c.b16 %v812, %v812
      %v877 = vpack.c.b16 %v813, %v813
      %v878 = vpack.c.b16 %v814, %v814
      %v879 = vpack.c.b16 %v815, %v815
      %v880 = vpack.c.b16 %v816, %v816
      %v881 = vpack.c.b16 %v817, %v817
      %v882 = vpack.c.b16 %v818, %v818
      %v883 = vpack.c.b16 %v819, %v819
      %v884 = vpack.c.b16 %v820, %v820
      %v885 = vpack.c.b16 %v821, %v821
      %v886 = vpack.c.b16 %v822, %v822
      %v887 = vpack.c.b16 %v823, %v823
      %v888 = vpack.c.b16 %v824, %v824
      %v889 = vpack.c.b16 %v825, %v825
      %v890 = vpack.c.b16 %v826, %v826
      %v891 = vpack.c.b16 %v827, %v827
      %v892 = vpack.c.b16 %v828, %v828
      %v893 = vpack.c.b16 %v829, %v829
      %v894 = vpack.c.b16 %v830, %v830
      %v895 = vpack.c.b16 %v831, %v831
      %v896 = vpack.c.b16 %v832, %v832
      %v897 = vpack.c.b16 %v833, %v833
      %v898 = vpack.c.b16 %v834, %v834
      %v899 = vpack.c.b16 %v835, %v835
      %v900 = vpack.c.b16 %v836, %v836
      %v901 = vpack.c.b16 %v837, %v837
      %v902 = vpack.c.b16 %v838, %v838
      %v903 = vpack.c.b16 %v839, %v839
      %v904 = vpack.c.b16 %v840, %v840
      %v905 = vpack.c.b16 %v841, %v841
      %v906 = vpack.c.b16 %v842, %v842
      %v907 = vpack.c.b16 %v843, %v843
      %v908 = vpack.c.b16 %v844, %v844
      %v909 = vpack.c.b16 %v845, %v845
      %v910 = vpack.c.b16 %v846, %v846
      %v911 = vpack.c.b16 %v847, %v847
      %v912 = vpack.c.b16 %v848, %v848
      %v913 = vpack.c.b16 %v849, %v849
      %v914 = vpack.c.b16 %v850, %v850
      %v915 = vpack.c.b16 %v851, %v851
      %v916 = vpack.c.b16 %v852, %v852
      %v917 = vpack.c.b16 %v853, %v853
      %v918 = vpack.c.b16 %v854, %v854
      %vm983 = vcmask 519168
      %984 = vst.msk [vmem:[%s223] sm:$0xf] %vm983, %v855
      %985 = vst.msk [vmem:[%s223 + $0x4] sm:$0xf] %vm983, %v856
      %986 = vst.msk [vmem:[%s223 + $0x8] sm:$0xf] %vm983, %v857
      %987 = vst.msk [vmem:[%s223 + $0xc] sm:$0xf] %vm983, %v858
      %988 = vst.msk [vmem:[%s223 + $0x10] sm:$0xf] %vm983, %v859
      %989 = vst.msk [vmem:[%s223 + $0x14] sm:$0xf] %vm983, %v860
      %990 = vst.msk [vmem:[%s223 + $0x18] sm:$0xf] %vm983, %v861
      %991 = vst.msk [vmem:[%s223 + $0x1c] sm:$0xf] %vm983, %v862
      %992 = vst.msk [vmem:[%s223 + $0x20] sm:$0xf] %vm983, %v863
      %993 = vst.msk [vmem:[%s223 + $0x24] sm:$0xf] %vm983, %v864
      %994 = vst.msk [vmem:[%s223 + $0x28] sm:$0xf] %vm983, %v865
      %995 = vst.msk [vmem:[%s223 + $0x2c] sm:$0xf] %vm983, %v866
      %996 = vst.msk [vmem:[%s223 + $0x30] sm:$0xf] %vm983, %v867
      %997 = vst.msk [vmem:[%s223 + $0x34] sm:$0xf] %vm983, %v868
      %998 = vst.msk [vmem:[%s223 + $0x38] sm:$0xf] %vm983, %v869
      %999 = vst.msk [vmem:[%s223 + $0x3c] sm:$0xf] %vm983, %v870
      %1000 = vst.msk [vmem:[%s223 + $0x40] sm:$0xf] %vm983, %v871
      %1001 = vst.msk [vmem:[%s223 + $0x44] sm:$0xf] %vm983, %v872
      %1002 = vst.msk [vmem:[%s223 + $0x48] sm:$0xf] %vm983, %v873
      %1003 = vst.msk [vmem:[%s223 + $0x4c] sm:$0xf] %vm983, %v874
      %1004 = vst.msk [vmem:[%s223 + $0x50] sm:$0xf] %vm983, %v875
      %1005 = vst.msk [vmem:[%s223 + $0x54] sm:$0xf] %vm983, %v876
      %1006 = vst.msk [vmem:[%s223 + $0x58] sm:$0xf] %vm983, %v877
      %1007 = vst.msk [vmem:[%s223 + $0x5c] sm:$0xf] %vm983, %v878
      %1008 = vst.msk [vmem:[%s223 + $0x60] sm:$0xf] %vm983, %v879
      %1009 = vst.msk [vmem:[%s223 + $0x64] sm:$0xf] %vm983, %v880
      %1010 = vst.msk [vmem:[%s223 + $0x68] sm:$0xf] %vm983, %v881
      %1011 = vst.msk [vmem:[%s223 + $0x6c] sm:$0xf] %vm983, %v882
      %1012 = vst.msk [vmem:[%s223 + $0x70] sm:$0xf] %vm983, %v883
      %1013 = vst.msk [vmem:[%s223 + $0x74] sm:$0xf] %vm983, %v884
      %1014 = vst.msk [vmem:[%s223 + $0x78] sm:$0xf] %vm983, %v885
      %1015 = vst.msk [vmem:[%s223 + $0x7c] sm:$0xf] %vm983, %v886
      %1016 = vst.msk [vmem:[%s223 + $0x80] sm:$0xf] %vm983, %v887
      %1017 = vst.msk [vmem:[%s223 + $0x84] sm:$0xf] %vm983, %v888
      %1018 = vst.msk [vmem:[%s223 + $0x88] sm:$0xf] %vm983, %v889
      %1019 = vst.msk [vmem:[%s223 + $0x8c] sm:$0xf] %vm983, %v890
      %1020 = vst.msk [vmem:[%s223 + $0x90] sm:$0xf] %vm983, %v891
      %1021 = vst.msk [vmem:[%s223 + $0x94] sm:$0xf] %vm983, %v892
      %1022 = vst.msk [vmem:[%s223 + $0x98] sm:$0xf] %vm983, %v893
      %1023 = vst.msk [vmem:[%s223 + $0x9c] sm:$0xf] %vm983, %v894
      %1024 = vst.msk [vmem:[%s223 + $0xa0] sm:$0xf] %vm983, %v895
      %1025 = vst.msk [vmem:[%s223 + $0xa4] sm:$0xf] %vm983, %v896
      %1026 = vst.msk [vmem:[%s223 + $0xa8] sm:$0xf] %vm983, %v897
      %1027 = vst.msk [vmem:[%s223 + $0xac] sm:$0xf] %vm983, %v898
      %1028 = vst.msk [vmem:[%s223 + $0xb0] sm:$0xf] %vm983, %v899
      %1029 = vst.msk [vmem:[%s223 + $0xb4] sm:$0xf] %vm983, %v900
      %1030 = vst.msk [vmem:[%s223 + $0xb8] sm:$0xf] %vm983, %v901
      %1031 = vst.msk [vmem:[%s223 + $0xbc] sm:$0xf] %vm983, %v902
      %1032 = vst.msk [vmem:[%s223 + $0xc0] sm:$0xf] %vm983, %v903
      %1033 = vst.msk [vmem:[%s223 + $0xc4] sm:$0xf] %vm983, %v904
      %1034 = vst.msk [vmem:[%s223 + $0xc8] sm:$0xf] %vm983, %v905
      %1035 = vst.msk [vmem:[%s223 + $0xcc] sm:$0xf] %vm983, %v906
      %1036 = vst.msk [vmem:[%s223 + $0xd0] sm:$0xf] %vm983, %v907
      %1037 = vst.msk [vmem:[%s223 + $0xd4] sm:$0xf] %vm983, %v908
      %1038 = vst.msk [vmem:[%s223 + $0xd8] sm:$0xf] %vm983, %v909
      %1039 = vst.msk [vmem:[%s223 + $0xdc] sm:$0xf] %vm983, %v910
      %1040 = vst.msk [vmem:[%s223 + $0xe0] sm:$0xf] %vm983, %v911
      %1041 = vst.msk [vmem:[%s223 + $0xe4] sm:$0xf] %vm983, %v912
      %1042 = vst.msk [vmem:[%s223 + $0xe8] sm:$0xf] %vm983, %v913
      %1043 = vst.msk [vmem:[%s223 + $0xec] sm:$0xf] %vm983, %v914
      %1044 = vst.msk [vmem:[%s223 + $0xf0] sm:$0xf] %vm983, %v915
      %1045 = vst.msk [vmem:[%s223 + $0xf4] sm:$0xf] %vm983, %v916
      %1046 = vst.msk [vmem:[%s223 + $0xf8] sm:$0xf] %vm983, %v917
      %1047 = vst.msk [vmem:[%s223 + $0xfc] sm:$0xf] %vm983, %v918
      %s1048 = smul.u32 64, %s18
      %p1049 = scmp.lt.s32.totalorder %s1048, 127
      %s1050 = scalar_select %p1049, %s1048, 127
      %p1051 = scmp.lt.s32.totalorder %s19, 0
      %s1052 = scalar_select %p1051, %s19, 0
      %s1053 = sadd.s32 %s1052, %s1050
      %s1054 = smul.addr %s1053, 4
      %s1055 = scalar_lea.vmem %s3, %s1054
      // Predicated region
      $region33: #{run.4} parent=31 // pred_check
        %p1056 = pneg %p124
      $region34: #{run.4} parent=31 // pred_check_branch
        %1058 = sbr.rel (%p1056) target = $region36
      $region35: #{run.4} parent=31 // pred_region
        %s1059 = smul.u32 64, %s18
      $region36: #{run.4} parent=31 // pred_fallthru
        _
    $region32: #{run.4} parent=5 // pred_fallthru
      _
    %p1060 = scmp.le.s32.totalorder 2, %s9
    // Predicated region
    $region37: #{run.4} parent=5 // pred_check
      %p1061 = pneg %p1060
    $region38: #{run.4} parent=5 // pred_check_branch
      %1063 = sbr.rel (%p1061) target = $region40
    $region39: #{run.4} parent=5 // pred_region
      %s1064 = ssub.s32 %s9, 2
      // Predicated region
      $region41: #{run.4} parent=39 // pred_check
        %p1065 = pneg %p130
      $region42: #{run.4} parent=39 // pred_check_branch
        %1067 = sbr.rel (%p1065) target = $region44
      $region43: #{run.4} parent=39 // pred_region
        %s1068 = smul.u32 64, %s20
        %p1069 = scmp.lt.s32.totalorder %s1068, 127
        %s1070 = scalar_select %p1069, %s1068, 127
        %p1071 = scmp.lt.s32.totalorder %s21, 0
        %s1072 = scalar_select %p1071, %s21, 0
        %s1073 = sadd.s32 %s1072, %s1070
        %s1074 = smul.addr %s1073, 4
        %s1075 = scalar_lea.vmem %s3, %s1074
      $region44: #{run.4} parent=39 // pred_fallthru
        _
    $region40: #{run.4} parent=5 // pred_fallthru
      _
  $region6: #{run.4} parent=0 // loop_footer
    %s13 = sadd.s32 1, %s9
  $region7: #{run.4} parent=0 // loop_footer_branch
    %8 = sbr.rel target = $region3
  $region8: #{run.4} parent=0 // loop_exit
    _

// kernel: run.7
$region0: #{run.7}
  #allocation0 [shape = 'u32[]', space=smem, size = 0x4, offset = 0x4, fixed_abs, tag = 'smem constant byte address 0x4 - core index']
  #allocation1 [shape = 'u32[144,128]{1,0:T(1,128)}', space=vmem, size = 0x12000, scoped, tag = 'internal scratch']
  %s0 = inlined_call_operand.vmem [shape: bf16[2,512,64], index: 0, kind: input, shape index: {}]
  %s1 = inlined_call_operand.vmem [shape: bf16[2,64,128], index: 1, kind: input, shape index: {}]
  %s2 = inlined_call_operand.vmem [shape: f32[64,64], index: 2, kind: input, shape index: {}]
  %s3 = inlined_call_operand.vmem [shape: f32[1,64], index: 3, kind: input, shape index: {}]
  %s4 = inlined_call_operand.vmem [shape: f32[2,512,64], index: 4, kind: output, shape index: {}]
  %s5 = sld [smem:[#allocation0]]
  $region49: #{run.7} parent=0
    _
  %s7 = ssub.s32 1, %s5
  %s8 = scalar_select 0, %s7, %s5
  loop: start=0, step=1, limit=6
  $region2: #{run.7} parent=0 // loop_pre_header
    _
  $region3: #{run.7} parent=0 // loop_header
    %s10 = sphi 0, %s14
    %p11 = scmp.ge.s32.totalorder %s10, 6
    %s17 = sphi 0, %s29
    %s18 = sphi 0, %s25
    %s19 = sphi 0, %s17
    %s20 = sphi 0, %s18
    %s21 = sphi 0, %s19
    %s22 = sphi 0, %s20
    %s34 = sphi 0, %s36
    %s37 = sphi 0, %s34
    %s38 = sphi 0, %s37
    %s54 = sphi 0, %s38
    %s60 = sphi 0, %s62
    %s63 = sphi 0, %s60
    %s64 = sphi 0, %s63
    %s80 = sphi 0, %s64
    %s84 = sphi 0, %s84
    %s86 = sphi 0, %s84
    %s87 = sphi 0, %s86
    %s101 = sphi 0, %s87
    %s105 = sphi 0, %s105
    %s107 = sphi 0, %s105
    %s108 = sphi 0, %s107
    %s122 = sphi 0, %s108
    %s130 = sphi 0, %s132
    %s133 = sphi 0, %s130
    %s134 = sphi 0, %s133
    %s150 = sphi 0, %s134
  $region4: #{run.7} parent=0 // loop_header_branch
    %13 = sbr.rel (%p11) target = $region8
  $region5: #{run.7} parent=0 // loop_body
    %s15 = ssub.s32 %s10, 1
    %s16 = ssub.s32 %s10, 2
    %s23 = sadd.s32 1, %s18
    %p24 = scmp.ge.s32.totalorder %s23, 2
    %s25 = scalar_select %p24, 0, %s23
    %s26 = sadd.s32 1, %s17
    %s27 = scalar_select %p24, %s26, %s17
    %p28 = scmp.ge.s32.totalorder %s27, 2
    %s29 = scalar_select %p28, 0, %s27
    %s30 = ssub.s32 %s17, %s29
    %s31 = ssub.s32 %s18, %s25
    %s32 = sor.u32 %s30, %s31
    %p33 = scmp.eq.s32.totalorder %s32, 0
    %s35 = sadd.s32 %s34, 1
    %s36 = scalar_select %p33, %s34, %s35
    %p39 = pneg %p33
    %p40 = scmp.eq.s32.totalorder %s10, 3
    %p41 = por %p39, %p40
    %p42 = scmp.ne.s32.totalorder %s34, %s37
    %p43 = scmp.eq.s32.totalorder %s10, 0
    %p44 = por %p42, %p43
    %p45 = scmp.ne.s32.totalorder %s34, %s37
    %p46 = scmp.eq.s32.totalorder %s15, 3
    %p47 = por %p45, %p46
    %p48 = scmp.ne.s32.totalorder %s37, %s38
    %p49 = scmp.eq.s32.totalorder %s15, 0
    %p50 = por %p48, %p49
    %p51 = scmp.ne.s32.totalorder %s37, %s38
    %p52 = scmp.eq.s32.totalorder %s16, 3
    %p53 = por %p51, %p52
    %p55 = scmp.ne.s32.totalorder %s38, %s54
    %p56 = scmp.eq.s32.totalorder %s16, 0
    %p57 = por %p55, %p56
    %s58 = ssub.s32 %s17, %s29
    %p59 = scmp.eq.s32.totalorder %s58, 0
    %s61 = sadd.s32 %s60, 1
    %s62 = scalar_select %p59, %s60, %s61
    %p65 = pneg %p59
    %p66 = scmp.eq.s32.totalorder %s10, 3
    %p67 = por %p65, %p66
    %p68 = scmp.ne.s32.totalorder %s60, %s63
    %p69 = scmp.eq.s32.totalorder %s10, 0
    %p70 = por %p68, %p69
    %p71 = scmp.ne.s32.totalorder %s60, %s63
    %p72 = scmp.eq.s32.totalorder %s15, 3
    %p73 = por %p71, %p72
    %p74 = scmp.ne.s32.totalorder %s63, %s64
    %p75 = scmp.eq.s32.totalorder %s15, 0
    %p76 = por %p74, %p75
    %p77 = scmp.ne.s32.totalorder %s63, %s64
    %p78 = scmp.eq.s32.totalorder %s16, 3
    %p79 = por %p77, %p78
    %p81 = scmp.ne.s32.totalorder %s64, %s80
    %p82 = scmp.eq.s32.totalorder %s16, 0
    %p83 = por %p81, %p82
    %s85 = sadd.s32 %s84, 1
    %p88 = scmp.eq.s32.totalorder %s10, 3
    %p89 = scmp.ne.s32.totalorder %s84, %s86
    %p90 = scmp.eq.s32.totalorder %s10, 0
    %p91 = por %p89, %p90
    %p92 = scmp.ne.s32.totalorder %s84, %s86
    %p93 = scmp.eq.s32.totalorder %s15, 3
    %p94 = por %p92, %p93
    %p95 = scmp.ne.s32.totalorder %s86, %s87
    %p96 = scmp.eq.s32.totalorder %s15, 0
    %p97 = por %p95, %p96
    %p98 = scmp.ne.s32.totalorder %s86, %s87
    %p99 = scmp.eq.s32.totalorder %s16, 3
    %p100 = por %p98, %p99
    %p102 = scmp.ne.s32.totalorder %s87, %s101
    %p103 = scmp.eq.s32.totalorder %s16, 0
    %p104 = por %p102, %p103
    %s106 = sadd.s32 %s105, 1
    %p109 = scmp.eq.s32.totalorder %s10, 3
    %p110 = scmp.ne.s32.totalorder %s105, %s107
    %p111 = scmp.eq.s32.totalorder %s10, 0
    %p112 = por %p110, %p111
    %p113 = scmp.ne.s32.totalorder %s105, %s107
    %p114 = scmp.eq.s32.totalorder %s15, 3
    %p115 = por %p113, %p114
    %p116 = scmp.ne.s32.totalorder %s107, %s108
    %p117 = scmp.eq.s32.totalorder %s15, 0
    %p118 = por %p116, %p117
    %p119 = scmp.ne.s32.totalorder %s107, %s108
    %p120 = scmp.eq.s32.totalorder %s16, 3
    %p121 = por %p119, %p120
    %p123 = scmp.ne.s32.totalorder %s108, %s122
    %p124 = scmp.eq.s32.totalorder %s16, 0
    %p125 = por %p123, %p124
    %s126 = ssub.s32 %s17, %s29
    %s127 = ssub.s32 %s18, %s25
    %s128 = sor.u32 %s126, %s127
    %p129 = scmp.eq.s32.totalorder %s128, 0
    %s131 = sadd.s32 %s130, 1
    %s132 = scalar_select %p129, %s130, %s131
    %p135 = pneg %p129
    %p136 = scmp.eq.s32.totalorder %s10, 3
    %p137 = por %p135, %p136
    %p138 = scmp.ne.s32.totalorder %s130, %s133
    %p139 = scmp.eq.s32.totalorder %s10, 0
    %p140 = por %p138, %p139
    %p141 = scmp.ne.s32.totalorder %s130, %s133
    %p142 = scmp.eq.s32.totalorder %s15, 3
    %p143 = por %p141, %p142
    %p144 = scmp.ne.s32.totalorder %s133, %s134
    %p145 = scmp.eq.s32.totalorder %s15, 0
    %p146 = por %p144, %p145
    %p147 = scmp.ne.s32.totalorder %s133, %s134
    %p148 = scmp.eq.s32.totalorder %s16, 3
    %p149 = por %p147, %p148
    %p151 = scmp.ne.s32.totalorder %s134, %s150
    %p152 = scmp.eq.s32.totalorder %s16, 0
    %p153 = por %p151, %p152
    %p154 = scmp.le.s32.totalorder 1, %s10
    %p155 = scmp.lt.s32.totalorder %s10, 5
    %p156 = pnand %p154, %p155
    %p157 = pneg %p156
    // Predicated region
    $region9: #{run.7} parent=5 // pred_check
      _
    $region10: #{run.7} parent=5 // pred_check_branch
      %159 = sbr.rel (%p156) target = $region12
    $region11: #{run.7} parent=5 // pred_region
      %s160 = ssub.s32 %s10, 1
      // Predicated region
      $region13: #{run.7} parent=11 // pred_check
        %p161 = pneg %p97
      $region14: #{run.7} parent=11 // pred_check_branch
        %163 = sbr.rel (%p161) target = $region16
      $region15: #{run.7} parent=11 // pred_region
        _
      $region16: #{run.7} parent=11 // pred_fallthru
        _
      // Predicated region
      $region17: #{run.7} parent=11 // pred_check
        %p164 = pneg %p118
      $region18: #{run.7} parent=11 // pred_check_branch
        %166 = sbr.rel (%p164) target = $region20
      $region19: #{run.7} parent=11 // pred_region
        _
      $region20: #{run.7} parent=11 // pred_fallthru
        _
    $region12: #{run.7} parent=5 // pred_fallthru
      _
    %p167 = scmp.lt.s32.totalorder %s10, 4
    // Predicated region
    $region21: #{run.7} parent=5 // pred_check
      %p168 = pneg %p167
    $region22: #{run.7} parent=5 // pred_check_branch
      %170 = sbr.rel (%p168) target = $region24
    $region23: #{run.7} parent=5 // pred_region
      // Predicated region
      $region25: #{run.7} parent=23 // pred_check
        %p171 = pneg %p44
      $region26: #{run.7} parent=23 // pred_check_branch
        %173 = sbr.rel (%p171) target = $region28
      $region27: #{run.7} parent=23 // pred_region
        %s174 = smul.u32 32, %s18
        %p175 = scmp.lt.s32.totalorder %s17, 1
        %s176 = scalar_select %p175, %s17, 1
        %p177 = scmp.lt.s32.totalorder %s174, 63
        %s178 = scalar_select %p177, %s174, 63
        %s179 = smul.addr %s176, 64
        %s180 = sadd.s32 %s178, %s179
        %s181 = smul.addr %s180, 4
        %s182 = scalar_lea.vmem %s0, %s181
        %s183 = smul.u32 32, %s18
      $region28: #{run.7} parent=23 // pred_fallthru
        _
      // Predicated region
      $region29: #{run.7} parent=23 // pred_check
        %p184 = pneg %p70
      $region30: #{run.7} parent=23 // pred_check_branch
        %186 = sbr.rel (%p184) target = $region32
      $region31: #{run.7} parent=23 // pred_region
        %p187 = scmp.lt.s32.totalorder %s17, 1
        %s188 = scalar_select %p187, %s17, 1
        %s189 = smul.addr %s188, 8
        %s190 = smul.addr %s189, 4
        %s191 = scalar_lea.vmem %s1, %s190
      $region32: #{run.7} parent=23 // pred_fallthru
        _
    $region24: #{run.7} parent=5 // pred_fallthru
      _
    %p192 = scmp.le.s32.totalorder 1, %s10
    %p193 = scmp.lt.s32.totalorder %s10, 5
    %p194 = pnand %p192, %p193
    %p195 = pneg %p194
    // Predicated region
    $region33: #{run.7} parent=5 // pred_check
      _
    $region34: #{run.7} parent=5 // pred_check_branch
      %197 = sbr.rel (%p194) target = $region36
    $region35: #{run.7} parent=5 // pred_region
      %s198 = ssub.s32 %s10, 1
      %s199 = smul.u32 32, %s20
      %p200 = scmp.lt.s32.totalorder %s19, 1
      %s201 = scalar_select %p200, %s19, 1
      %p202 = scmp.lt.s32.totalorder %s199, 63
      %s203 = scalar_select %p202, %s199, 63
      %s204 = smul.addr %s201, 64
      %s205 = sadd.s32 %s203, %s204
      %s206 = smul.addr %s205, 4
      %s207 = scalar_lea.vmem %s0, %s206
      %p208 = pneg %p50
      %p209 = pneg %p47
      %p210 = scmp.lt.s32.totalorder %s19, 1
      %s211 = scalar_select %p210, %s19, 1
      %s212 = smul.addr %s211, 8
      %s213 = smul.addr %s212, 4
      %s214 = scalar_lea.vmem %s1, %s213
      %p215 = pneg %p76
      %p216 = pneg %p73
      %p217 = pneg %p97
      %p218 = pneg %p94
      %p219 = pneg %p118
      %p220 = pneg %p115
      %p221 = pneg %p146
      %p222 = pneg %p143
      %s223 = smul.u32 32, %s20
      %p224 = scmp.lt.s32.totalorder %s19, 1
      %s225 = scalar_select %p224, %s19, 1
      %p226 = scmp.lt.s32.totalorder %s223, 63
      %s227 = scalar_select %p226, %s223, 63
      %s228 = smul.addr %s225, 64
      %s229 = sadd.s32 %s227, %s228
      %s230 = smul.addr %s229, 8
      %s231 = scalar_lea.vmem %s4, %s230
      %s232 = smul.u32 32, %s20
      %p233 = scmp.lt.s32.totalorder %s19, 1
      %s234 = scalar_select %p233, %s19, 1
      %p235 = scmp.lt.s32.totalorder %s232, 63
      %s236 = scalar_select %p235, %s232, 63
      %s237 = smul.addr %s234, 64
      %s238 = sadd.s32 %s236, %s237
      %s239 = smul.addr %s238, 4
      %s240 = scalar_lea.vmem %s0, %s239
      %s241 = smul.u32 32, %s20
      %p242 = scmp.lt.s32.totalorder %s19, 1
      %s243 = scalar_select %p242, %s19, 1
      %s244 = smul.addr %s243, 8
      %s245 = smul.addr %s244, 4
      %s246 = scalar_lea.vmem %s1, %s245
      %s247 = smul.u32 32, %s20
      %p248 = scmp.lt.s32.totalorder %s19, 1
      %s249 = scalar_select %p248, %s19, 1
      %p250 = scmp.lt.s32.totalorder %s247, 63
      %s251 = scalar_select %p250, %s247, 63
      %s252 = smul.addr %s249, 64
      %s253 = sadd.s32 %s251, %s252
      %s254 = smul.addr %s253, 8
      %s255 = scalar_lea.vmem %s4, %s254
      %s256 = smul.u32 32, %s20
      %v258 = vld [vmem:[%s240] sm:$0xf]
      %v259 = vld [vmem:[%s240 + $0x4] sm:$0xf]
      %v260 = vld [vmem:[%s240 + $0x8] sm:$0xf]
      %v261 = vld [vmem:[%s240 + $0xc] sm:$0xf]
      %v262 = vld [vmem:[%s240 + $0x10] sm:$0xf]
      %v263 = vld [vmem:[%s240 + $0x14] sm:$0xf]
      %v264 = vld [vmem:[%s240 + $0x18] sm:$0xf]
      %v265 = vld [vmem:[%s240 + $0x1c] sm:$0xf]
      %v266 = vld [vmem:[%s240 + $0x20] sm:$0xf]
      %v267 = vld [vmem:[%s240 + $0x24] sm:$0xf]
      %v268 = vld [vmem:[%s240 + $0x28] sm:$0xf]
      %v269 = vld [vmem:[%s240 + $0x2c] sm:$0xf]
      %v270 = vld [vmem:[%s240 + $0x30] sm:$0xf]
      %v271 = vld [vmem:[%s240 + $0x34] sm:$0xf]
      %v272 = vld [vmem:[%s240 + $0x38] sm:$0xf]
      %v273 = vld [vmem:[%s240 + $0x3c] sm:$0xf]
      %v274 = vld [vmem:[%s240 + $0x40] sm:$0xf]
      %v275 = vld [vmem:[%s240 + $0x44] sm:$0xf]
      %v276 = vld [vmem:[%s240 + $0x48] sm:$0xf]
      %v277 = vld [vmem:[%s240 + $0x4c] sm:$0xf]
      %v278 = vld [vmem:[%s240 + $0x50] sm:$0xf]
      %v279 = vld [vmem:[%s240 + $0x54] sm:$0xf]
      %v280 = vld [vmem:[%s240 + $0x58] sm:$0xf]
      %v281 = vld [vmem:[%s240 + $0x5c] sm:$0xf]
      %v282 = vld [vmem:[%s240 + $0x60] sm:$0xf]
      %v283 = vld [vmem:[%s240 + $0x64] sm:$0xf]
      %v284 = vld [vmem:[%s240 + $0x68] sm:$0xf]
      %v285 = vld [vmem:[%s240 + $0x6c] sm:$0xf]
      %v286 = vld [vmem:[%s240 + $0x70] sm:$0xf]
      %v287 = vld [vmem:[%s240 + $0x74] sm:$0xf]
      %v288 = vld [vmem:[%s240 + $0x78] sm:$0xf]
      %v289 = vld [vmem:[%s240 + $0x7c] sm:$0xf]
      %v290 = vld [vmem:[%s246] sm:$0xf]
      %v291 = vld [vmem:[%s246 + $0x4] sm:$0xf]
      %v292 = vld [vmem:[%s246 + $0x8] sm:$0xf]
      %v293 = vld [vmem:[%s246 + $0xc] sm:$0xf]
      %v294 = vld [vmem:[%s246 + $0x10] sm:$0xf]
      %v295 = vld [vmem:[%s246 + $0x14] sm:$0xf]
      %v296 = vld [vmem:[%s246 + $0x18] sm:$0xf]
      %v297 = vld [vmem:[%s246 + $0x1c] sm:$0xf]
      %v298 = vld [vmem:[%s2] sm:$0xff]
      %v299 = vld [vmem:[%s2 + $0x8] sm:$0xff]
      %v300 = vld [vmem:[%s2 + $0x10] sm:$0xff]
      %v301 = vld [vmem:[%s2 + $0x18] sm:$0xff]
      %v302 = vld [vmem:[%s2 + $0x20] sm:$0xff]
      %v303 = vld [vmem:[%s2 + $0x28] sm:$0xff]
      %v304 = vld [vmem:[%s2 + $0x30] sm:$0xff]
      %v305 = vld [vmem:[%s2 + $0x38] sm:$0xff]
      %v306 = vpack.c.bf16 %v299, %v298
      %v307 = vpack.c.bf16 %v301, %v300
      %v308 = vpack.c.bf16 %v303, %v302
      %v309 = vpack.c.bf16 %v305, %v304
      %v342 = vunpack.c.l.b16 %v258
      %v343 = vunpack.c.l.b16 %v259
      %v344 = vunpack.c.l.b16 %v260
      %v345 = vunpack.c.l.b16 %v261
      %v346 = vunpack.c.l.b16 %v262
      %v347 = vunpack.c.l.b16 %v263
      %v348 = vunpack.c.l.b16 %v264
      %v349 = vunpack.c.l.b16 %v265
      %v350 = vunpack.c.l.b16 %v266
      %v351 = vunpack.c.l.b16 %v267
      %v352 = vunpack.c.l.b16 %v268
      %v353 = vunpack.c.l.b16 %v269
      %v354 = vunpack.c.l.b16 %v270
      %v355 = vunpack.c.l.b16 %v271
      %v356 = vunpack.c.l.b16 %v272
      %v357 = vunpack.c.l.b16 %v273
      %v358 = vunpack.c.l.b16 %v274
      %v359 = vunpack.c.l.b16 %v275
      %v360 = vunpack.c.l.b16 %v276
      %v361 = vunpack.c.l.b16 %v277
      %v362 = vunpack.c.l.b16 %v278
      %v363 = vunpack.c.l.b16 %v279
      %v364 = vunpack.c.l.b16 %v280
      %v365 = vunpack.c.l.b16 %v281
      %v366 = vunpack.c.l.b16 %v282
      %v367 = vunpack.c.l.b16 %v283
      %v368 = vunpack.c.l.b16 %v284
      %v369 = vunpack.c.l.b16 %v285
      %v370 = vunpack.c.l.b16 %v286
      %v371 = vunpack.c.l.b16 %v287
      %v372 = vunpack.c.l.b16 %v288
      %v373 = vunpack.c.l.b16 %v289
      %v374 = vpack.c.b16 %v343, %v342
      %v375 = vpack.c.b16 %v345, %v344
      %v376 = vpack.c.b16 %v347, %v346
      %v377 = vpack.c.b16 %v349, %v348
      %v378 = vpack.c.b16 %v351, %v350
      %v379 = vpack.c.b16 %v353, %v352
      %v380 = vpack.c.b16 %v355, %v354
      %v381 = vpack.c.b16 %v357, %v356
      %v382 = vpack.c.b16 %v359, %v358
      %v383 = vpack.c.b16 %v361, %v360
      %v384 = vpack.c.b16 %v363, %v362
      %v385 = vpack.c.b16 %v365, %v364
      %v386 = vpack.c.b16 %v367, %v366
      %v387 = vpack.c.b16 %v369, %v368
      %v388 = vpack.c.b16 %v371, %v370
      %v389 = vpack.c.b16 %v373, %v372
      %v398 = vunpack.c.l.b16 %v290
      %v399 = vunpack.c.l.b16 %v291
      %v400 = vunpack.c.l.b16 %v292
      %v401 = vunpack.c.l.b16 %v293
      %v402 = vunpack.c.l.b16 %v294
      %v403 = vunpack.c.l.b16 %v295
      %v404 = vunpack.c.l.b16 %v296
      %v405 = vunpack.c.l.b16 %v297
      %v406 = vpack.c.b16 %v399, %v398
      %v407 = vpack.c.b16 %v401, %v400
      %v408 = vpack.c.b16 %v403, %v402
      %v409 = vpack.c.b16 %v405, %v404
      %vm410 = vcmask 130048
      %v412 = vsel %vm410, %v374, 0
      %v415 = vsel %vm410, %v375, 0
      %v418 = vsel %vm410, %v376, 0
      %v421 = vsel %vm410, %v377, 0
      %v424 = vsel %vm410, %v378, 0
      %v427 = vsel %vm410, %v379, 0
      %v430 = vsel %vm410, %v380, 0
      %v433 = vsel %vm410, %v381, 0
      %v436 = vsel %vm410, %v382, 0
      %v439 = vsel %vm410, %v383, 0
      %v442 = vsel %vm410, %v384, 0
      %v445 = vsel %vm410, %v385, 0
      %v448 = vsel %vm410, %v386, 0
      %v451 = vsel %vm410, %v387, 0
      %v454 = vsel %vm410, %v388, 0
      %v457 = vsel %vm410, %v389, 0
      %v460 = vsel %vm410, %v406, 0
      %v463 = vsel %vm410, %v407, 0
      %v466 = vsel %vm410, %v408, 0
      %v469 = vsel %vm410, %v409, 0
      %471 = vmatprep.subr.bf16.mxu0 0
      %472 = vmatpush1.bf16.xpose.msra.mxu0 %v460
      %473 = vmatprep.subr.bf16.mxu0 0
      %474 = vmatpush1.bf16.xpose.msra.mxu0 %v463
      %475 = vmatprep.subr.bf16.mxu0 0
      %476 = vmatpush1.bf16.xpose.msra.mxu0 %v466
      %477 = vmatprep.subr.bf16.mxu0 0
      %478 = vmatpush1.bf16.xpose.msra.mxu0 %v469
      %479 = vmatprep.subr.bf16.mxu0 0
      %480 = vmatpush1.bf16.xpose.msra.mxu0 0
      %481 = vmatprep.subr.bf16.mxu0 0
      %482 = vmatpush1.bf16.xpose.msra.mxu0 0
      %483 = vmatprep.subr.bf16.mxu0 0
      %484 = vmatpush1.bf16.xpose.msra.mxu0 0
      %485 = vmatprep.subr.bf16.mxu0 0
      %486 = vmatpush1.bf16.xpose.msra.mxu0 0
      %487 = vmatprep.subr.bf16.mxu0 0
      %488 = vmatpush1.bf16.xpose.msra.mxu0 0
      %489 = vmatprep.subr.bf16.mxu0 0
      %490 = vmatpush1.bf16.xpose.msra.mxu0 0
      %491 = vmatprep.subr.bf16.mxu0 0
      %492 = vmatpush1.bf16.xpose.msra.mxu0 0
      %493 = vmatprep.subr.bf16.mxu0 0
      %494 = vmatpush1.bf16.xpose.msra.mxu0 0
      %495 = vmatprep.subr.bf16.mxu0 0
      %496 = vmatpush1.bf16.xpose.msra.mxu0 0
      %497 = vmatprep.subr.bf16.mxu0 0
      %498 = vmatpush1.bf16.xpose.msra.mxu0 0
      %499 = vmatprep.subr.bf16.mxu0 0
      %500 = vmatpush1.bf16.xpose.msra.mxu0 0
      %501 = vmatprep.subr.bf16.mxu0 0
      %502 = vmatpush1.bf16.xpose.msra.mxu0 0
      %503 = vmatprep.mubr.bf16.mxu0 0
      %504 = vmatmul.mubr.bf16.gmra.mrb[0].mxu0 %v412
      %v505 = vpop.f32.mrb[0].mxu0
      %v506 = vadd.f32 0.0, %v505
      %v507 = vpop.f32.mrb[0].mxu0
      %v508 = vpop.f32.mrb[0].mxu0
      %v509 = vadd.f32 0.0, %v508
      %v510 = vpop.f32.mrb[0].mxu0
      %511 = vmatprep.mubr.bf16.mxu0 0
      %512 = vmatmul.mubr.bf16.gmra.mrb[0].mxu0 %v415
      %v513 = vpop.f32.mrb[0].mxu0
      %v514 = vadd.f32 0.0, %v513
      %v515 = vpop.f32.mrb[0].mxu0
      %v516 = vpop.f32.mrb[0].mxu0
      %v517 = vadd.f32 0.0, %v516
      %v518 = vpop.f32.mrb[0].mxu0
      %519 = vmatprep.mubr.bf16.mxu0 0
      %520 = vmatmul.mubr.bf16.gmra.mrb[0].mxu0 %v418
      %v521 = vpop.f32.mrb[0].mxu0
      %v522 = vadd.f32 0.0, %v521
      %v523 = vpop.f32.mrb[0].mxu0
      %v524 = vpop.f32.mrb[0].mxu0
      %v525 = vadd.f32 0.0, %v524
      %v526 = vpop.f32.mrb[0].mxu0
      %527 = vmatprep.mubr.bf16.mxu0 0
      %528 = vmatmul.mubr.bf16.gmra.mrb[0].mxu0 %v421
      %v529 = vpop.f32.mrb[0].mxu0
      %v530 = vadd.f32 0.0, %v529
      %v531 = vpop.f32.mrb[0].mxu0
      %v532 = vpop.f32.mrb[0].mxu0
      %v533 = vadd.f32 0.0, %v532
      %v534 = vpop.f32.mrb[0].mxu0
      %535 = vmatprep.mubr.bf16.mxu0 0
      %536 = vmatmul.mubr.bf16.gmra.mrb[0].mxu0 %v424
      %v537 = vpop.f32.mrb[0].mxu0
      %v538 = vadd.f32 0.0, %v537
      %v539 = vpop.f32.mrb[0].mxu0
      %v540 = vpop.f32.mrb[0].mxu0
      %v541 = vadd.f32 0.0, %v540
      %v542 = vpop.f32.mrb[0].mxu0
      %543 = vmatprep.mubr.bf16.mxu0 0
      %544 = vmatmul.mubr.bf16.gmra.mrb[0].mxu0 %v427
      %v545 = vpop.f32.mrb[0].mxu0
      %v546 = vadd.f32 0.0, %v545
      %v547 = vpop.f32.mrb[0].mxu0
      %v548 = vpop.f32.mrb[0].mxu0
      %v549 = vadd.f32 0.0, %v548
      %v550 = vpop.f32.mrb[0].mxu0
      %551 = vmatprep.mubr.bf16.mxu0 0
      %552 = vmatmul.mubr.bf16.gmra.mrb[0].mxu0 %v430
      %v553 = vpop.f32.mrb[0].mxu0
      %v554 = vadd.f32 0.0, %v553
      %v555 = vpop.f32.mrb[0].mxu0
      %v556 = vpop.f32.mrb[0].mxu0
      %v557 = vadd.f32 0.0, %v556
      %v558 = vpop.f32.mrb[0].mxu0
      %559 = vmatprep.mubr.bf16.mxu0 0
      %560 = vmatmul.mubr.bf16.gmra.mrb[0].mxu0 %v433
      %v561 = vpop.f32.mrb[0].mxu0
      %v562 = vadd.f32 0.0, %v561
      %v563 = vpop.f32.mrb[0].mxu0
      %v564 = vpop.f32.mrb[0].mxu0
      %v565 = vadd.f32 0.0, %v564
      %v566 = vpop.f32.mrb[0].mxu0
      %567 = vmatprep.mubr.bf16.mxu0 0
      %568 = vmatmul.mubr.bf16.gmra.mrb[0].mxu0 %v436
      %v569 = vpop.f32.mrb[0].mxu0
      %v570 = vadd.f32 0.0, %v569
      %v571 = vpop.f32.mrb[0].mxu0
      %v572 = vpop.f32.mrb[0].mxu0
      %v573 = vadd.f32 0.0, %v572
      %v574 = vpop.f32.mrb[0].mxu0
      %575 = vmatprep.mubr.bf16.mxu0 0
      %576 = vmatmul.mubr.bf16.gmra.mrb[0].mxu0 %v439
      %v577 = vpop.f32.mrb[0].mxu0
      %v578 = vadd.f32 0.0, %v577
      %v579 = vpop.f32.mrb[0].mxu0
      %v580 = vpop.f32.mrb[0].mxu0
      %v581 = vadd.f32 0.0, %v580
      %v582 = vpop.f32.mrb[0].mxu0
      %583 = vmatprep.mubr.bf16.mxu0 0
      %584 = vmatmul.mubr.bf16.gmra.mrb[0].mxu0 %v442
      %v585 = vpop.f32.mrb[0].mxu0
      %v586 = vadd.f32 0.0, %v585
      %v587 = vpop.f32.mrb[0].mxu0
      %v588 = vpop.f32.mrb[0].mxu0
      %v589 = vadd.f32 0.0, %v588
      %v590 = vpop.f32.mrb[0].mxu0
      %591 = vmatprep.mubr.bf16.mxu0 0
      %592 = vmatmul.mubr.bf16.gmra.mrb[0].mxu0 %v445
      %v593 = vpop.f32.mrb[0].mxu0
      %v594 = vadd.f32 0.0, %v593
      %v595 = vpop.f32.mrb[0].mxu0
      %v596 = vpop.f32.mrb[0].mxu0
      %v597 = vadd.f32 0.0, %v596
      %v598 = vpop.f32.mrb[0].mxu0
      %599 = vmatprep.mubr.bf16.mxu0 0
      %600 = vmatmul.mubr.bf16.gmra.mrb[0].mxu0 %v448
      %v601 = vpop.f32.mrb[0].mxu0
      %v602 = vadd.f32 0.0, %v601
      %v603 = vpop.f32.mrb[0].mxu0
      %v604 = vpop.f32.mrb[0].mxu0
      %v605 = vadd.f32 0.0, %v604
      %v606 = vpop.f32.mrb[0].mxu0
      %607 = vmatprep.mubr.bf16.mxu0 0
      %608 = vmatmul.mubr.bf16.gmra.mrb[0].mxu0 %v451
      %v609 = vpop.f32.mrb[0].mxu0
      %v610 = vadd.f32 0.0, %v609
      %v611 = vpop.f32.mrb[0].mxu0
      %v612 = vpop.f32.mrb[0].mxu0
      %v613 = vadd.f32 0.0, %v612
      %v614 = vpop.f32.mrb[0].mxu0
      %615 = vmatprep.mubr.bf16.mxu0 0
      %616 = vmatmul.mubr.bf16.gmra.mrb[0].mxu0 %v454
      %v617 = vpop.f32.mrb[0].mxu0
      %v618 = vadd.f32 0.0, %v617
      %v619 = vpop.f32.mrb[0].mxu0
      %v620 = vpop.f32.mrb[0].mxu0
      %v621 = vadd.f32 0.0, %v620
      %v622 = vpop.f32.mrb[0].mxu0
      %623 = vmatprep.mubr.bf16.mxu0 0
      %624 = vmatmul.mubr.bf16.gmra.mrb[0].mxu0 %v457
      %v625 = vpop.f32.mrb[0].mxu0
      %v626 = vadd.f32 0.0, %v625
      %v627 = vpop.f32.mrb[0].mxu0
      %v628 = vpop.f32.mrb[0].mxu0
      %v629 = vadd.f32 0.0, %v628
      %v630 = vpop.f32.mrb[0].mxu0
      %631 = vdwg.mxu0
      %v632 = vmul.f32 %v506, 0.25
      %v633 = vmul.f32 %v509, 0.25
      %v634 = vmul.f32 %v514, 0.25
      %v635 = vmul.f32 %v517, 0.25
      %v636 = vmul.f32 %v522, 0.25
      %v637 = vmul.f32 %v525, 0.25
      %v638 = vmul.f32 %v530, 0.25
      %v639 = vmul.f32 %v533, 0.25
      %v640 = vmul.f32 %v538, 0.25
      %v641 = vmul.f32 %v541, 0.25
      %v642 = vmul.f32 %v546, 0.25
      %v643 = vmul.f32 %v549, 0.25
      %v644 = vmul.f32 %v554, 0.25
      %v645 = vmul.f32 %v557, 0.25
      %v646 = vmul.f32 %v562, 0.25
      %v647 = vmul.f32 %v565, 0.25
      %v648 = vmul.f32 %v570, 0.25
      %v649 = vmul.f32 %v573, 0.25
      %v650 = vmul.f32 %v578, 0.25
      %v651 = vmul.f32 %v581, 0.25
      %v652 = vmul.f32 %v586, 0.25
      %v653 = vmul.f32 %v589, 0.25
      %v654 = vmul.f32 %v594, 0.25
      %v655 = vmul.f32 %v597, 0.25
      %v656 = vmul.f32 %v602, 0.25
      %v657 = vmul.f32 %v605, 0.25
      %v658 = vmul.f32 %v610, 0.25
      %v659 = vmul.f32 %v613, 0.25
      %v660 = vmul.f32 %v618, 0.25
      %v661 = vmul.f32 %v621, 0.25
      %v662 = vmul.f32 %v626, 0.25
      %v663 = vmul.f32 %v629, 0.25
      %vm664 = vcmask 523264
      %v665 = vsel %vm664, %v632, -inf
      %666 = vmax.xlane.f32.xlu0 %v665
      %v667 = vpop.xlane.xlu0 %666
      %v668 = vsel %vm664, %v633, -inf
      %669 = vmax.xlane.f32.xlu0 %v668
      %v670 = vpop.xlane.xlu0 %669
      %v671 = vsel %vm664, %v634, -inf
      %672 = vmax.xlane.f32.xlu0 %v671
      %v673 = vpop.xlane.xlu0 %672
      %v674 = vsel %vm664, %v635, -inf
      %675 = vmax.xlane.f32.xlu0 %v674
      %v676 = vpop.xlane.xlu0 %675
      %v677 = vsel %vm664, %v636, -inf
      %678 = vmax.xlane.f32.xlu0 %v677
      %v679 = vpop.xlane.xlu0 %678
      %v680 = vsel %vm664, %v637, -inf
      %681 = vmax.xlane.f32.xlu0 %v680
      %v682 = vpop.xlane.xlu0 %681
      %v683 = vsel %vm664, %v638, -inf
      %684 = vmax.xlane.f32.xlu0 %v683
      %v685 = vpop.xlane.xlu0 %684
      %v686 = vsel %vm664, %v639, -inf
      %687 = vmax.xlane.f32.xlu0 %v686
      %v688 = vpop.xlane.xlu0 %687
      %v689 = vsel %vm664, %v640, -inf
      %690 = vmax.xlane.f32.xlu0 %v689
      %v691 = vpop.xlane.xlu0 %690
      %v692 = vsel %vm664, %v641, -inf
      %693 = vmax.xlane.f32.xlu0 %v692
      %v694 = vpop.xlane.xlu0 %693
      %v695 = vsel %vm664, %v642, -inf
      %696 = vmax.xlane.f32.xlu0 %v695
      %v697 = vpop.xlane.xlu0 %696
      %v698 = vsel %vm664, %v643, -inf
      %699 = vmax.xlane.f32.xlu0 %v698
      %v700 = vpop.xlane.xlu0 %699
      %v701 = vsel %vm664, %v644, -inf
      %702 = vmax.xlane.f32.xlu0 %v701
      %v703 = vpop.xlane.xlu0 %702
      %v704 = vsel %vm664, %v645, -inf
      %705 = vmax.xlane.f32.xlu0 %v704
      %v706 = vpop.xlane.xlu0 %705
      %v707 = vsel %vm664, %v646, -inf
      %708 = vmax.xlane.f32.xlu0 %v707
      %v709 = vpop.xlane.xlu0 %708
      %v710 = vsel %vm664, %v647, -inf
      %711 = vmax.xlane.f32.xlu0 %v710
      %v712 = vpop.xlane.xlu0 %711
      %v713 = vsel %vm664, %v648, -inf
      %714 = vmax.xlane.f32.xlu0 %v713
      %v715 = vpop.xlane.xlu0 %714
      %v716 = vsel %vm664, %v649, -inf
      %717 = vmax.xlane.f32.xlu0 %v716
      %v718 = vpop.xlane.xlu0 %717
      %v719 = vsel %vm664, %v650, -inf
      %720 = vmax.xlane.f32.xlu0 %v719
      %v721 = vpop.xlane.xlu0 %720
      %v722 = vsel %vm664, %v651, -inf
      %723 = vmax.xlane.f32.xlu0 %v722
      %v724 = vpop.xlane.xlu0 %723
      %v725 = vsel %vm664, %v652, -inf
      %726 = vmax.xlane.f32.xlu0 %v725
      %v727 = vpop.xlane.xlu0 %726
      %v728 = vsel %vm664, %v653, -inf
      %729 = vmax.xlane.f32.xlu0 %v728
      %v730 = vpop.xlane.xlu0 %729
      %v731 = vsel %vm664, %v654, -inf
      %732 = vmax.xlane.f32.xlu0 %v731
      %v733 = vpop.xlane.xlu0 %732
      %v734 = vsel %vm664, %v655, -inf
      %735 = vmax.xlane.f32.xlu0 %v734
      %v736 = vpop.xlane.xlu0 %735
      %v737 = vsel %vm664, %v656, -inf
      %738 = vmax.xlane.f32.xlu0 %v737
      %v739 = vpop.xlane.xlu0 %738
      %v740 = vsel %vm664, %v657, -inf
      %741 = vmax.xlane.f32.xlu0 %v740
      %v742 = vpop.xlane.xlu0 %741
      %v743 = vsel %vm664, %v658, -inf
      %744 = vmax.xlane.f32.xlu0 %v743
      %v745 = vpop.xlane.xlu0 %744
      %v746 = vsel %vm664, %v659, -inf
      %747 = vmax.xlane.f32.xlu0 %v746
      %v748 = vpop.xlane.xlu0 %747
      %v749 = vsel %vm664, %v660, -inf
      %750 = vmax.xlane.f32.xlu0 %v749
      %v751 = vpop.xlane.xlu0 %750
      %v752 = vsel %vm664, %v661, -inf
      %753 = vmax.xlane.f32.xlu0 %v752
      %v754 = vpop.xlane.xlu0 %753
      %v755 = vsel %vm664, %v662, -inf
      %756 = vmax.xlane.f32.xlu0 %v755
      %v757 = vpop.xlane.xlu0 %756
      %v758 = vsel %vm664, %v663, -inf
      %759 = vmax.xlane.f32.xlu0 %v758
      %v760 = vpop.xlane.xlu0 %759
      %v761 = vsub.f32 %v632, %v667
      %v762 = vsub.f32 %v633, %v670
      %v763 = vsub.f32 %v634, %v673
      %v764 = vsub.f32 %v635, %v676
      %v765 = vsub.f32 %v636, %v679
      %v766 = vsub.f32 %v637, %v682
      %v767 = vsub.f32 %v638, %v685
      %v768 = vsub.f32 %v639, %v688
      %v769 = vsub.f32 %v640, %v691
      %v770 = vsub.f32 %v641, %v694
      %v771 = vsub.f32 %v642, %v697
      %v772 = vsub.f32 %v643, %v700
      %v773 = vsub.f32 %v644, %v703
      %v774 = vsub.f32 %v645, %v706
      %v775 = vsub.f32 %v646, %v709
      %v776 = vsub.f32 %v647, %v712
      %v777 = vsub.f32 %v648, %v715
      %v778 = vsub.f32 %v649, %v718
      %v779 = vsub.f32 %v650, %v721
      %v780 = vsub.f32 %v651, %v724
      %v781 = vsub.f32 %v652, %v727
      %v782 = vsub.f32 %v653, %v730
      %v783 = vsub.f32 %v654, %v733
      %v784 = vsub.f32 %v655, %v736
      %v785 = vsub.f32 %v656, %v739
      %v786 = vsub.f32 %v657, %v742
      %v787 = vsub.f32 %v658, %v745
      %v788 = vsub.f32 %v659, %v748
      %v789 = vsub.f32 %v660, %v751
      %v790 = vsub.f32 %v661, %v754
      %v791 = vsub.f32 %v662, %v757
      %v792 = vsub.f32 %v663, %v760
      %v793 = vmul.f32 %v761, 1.442695
      %v794 = vpow.pop %v793
      %v795 = vmul.f32 %v762, 1.442695
      %v796 = vpow.pop %v795
      %v797 = vmul.f32 %v763, 1.442695
      %v798 = vpow.pop %v797
      %v799 = vmul.f32 %v764, 1.442695
      %v800 = vpow.pop %v799
      %v801 = vmul.f32 %v765, 1.442695
      %v802 = vpow.pop %v801
      %v803 = vmul.f32 %v766, 1.442695
      %v804 = vpow.pop %v803
      %v805 = vmul.f32 %v767, 1.442695
      %v806 = vpow.pop %v805
      %v807 = vmul.f32 %v768, 1.442695
      %v808 = vpow.pop %v807
      %v809 = vmul.f32 %v769, 1.442695
      %v810 = vpow.pop %v809
      %v811 = vmul.f32 %v770, 1.442695
      %v812 = vpow.pop %v811
      %v813 = vmul.f32 %v771, 1.442695
      %v814 = vpow.pop %v813
      %v815 = vmul.f32 %v772, 1.442695
      %v816 = vpow.pop %v815
      %v817 = vmul.f32 %v773, 1.442695
      %v818 = vpow.pop %v817
      %v819 = vmul.f32 %v774, 1.442695
      %v820 = vpow.pop %v819
      %v821 = vmul.f32 %v775, 1.442695
      %v822 = vpow.pop %v821
      %v823 = vmul.f32 %v776, 1.442695
      %v824 = vpow.pop %v823
      %v825 = vmul.f32 %v777, 1.442695
      %v826 = vpow.pop %v825
      %v827 = vmul.f32 %v778, 1.442695
      %v828 = vpow.pop %v827
      %v829 = vmul.f32 %v779, 1.442695
      %v830 = vpow.pop %v829
      %v831 = vmul.f32 %v780, 1.442695
      %v832 = vpow.pop %v831
      %v833 = vmul.f32 %v781, 1.442695
      %v834 = vpow.pop %v833
      %v835 = vmul.f32 %v782, 1.442695
      %v836 = vpow.pop %v835
      %v837 = vmul.f32 %v783, 1.442695
      %v838 = vpow.pop %v837
      %v839 = vmul.f32 %v784, 1.442695
      %v840 = vpow.pop %v839
      %v841 = vmul.f32 %v785, 1.442695
      %v842 = vpow.pop %v841
      %v843 = vmul.f32 %v786, 1.442695
      %v844 = vpow.pop %v843
      %v845 = vmul.f32 %v787, 1.442695
      %v846 = vpow.pop %v845
      %v847 = vmul.f32 %v788, 1.442695
      %v848 = vpow.pop %v847
      %v849 = vmul.f32 %v789, 1.442695
      %v850 = vpow.pop %v849
      %v851 = vmul.f32 %v790, 1.442695
      %v852 = vpow.pop %v851
      %v853 = vmul.f32 %v791, 1.442695
      %v854 = vpow.pop %v853
      %v855 = vmul.f32 %v792, 1.442695
      %v856 = vpow.pop %v855
      %v857 = vsel %vm664, %v794, 0.0
      %858 = vadd.xlane.f32.xlu0 %v857
      %v859 = vpop.xlane.xlu0 %858
      %v860 = vsel %vm664, %v796, 0.0
      %861 = vadd.xlane.f32.xlu0 %v860
      %v862 = vpop.xlane.xlu0 %861
      %v863 = vsel %vm664, %v798, 0.0
      %864 = vadd.xlane.f32.xlu0 %v863
      %v865 = vpop.xlane.xlu0 %864
      %v866 = vsel %vm664, %v800, 0.0
      %867 = vadd.xlane.f32.xlu0 %v866
      %v868 = vpop.xlane.xlu0 %867
      %v869 = vsel %vm664, %v802, 0.0
      %870 = vadd.xlane.f32.xlu0 %v869
      %v871 = vpop.xlane.xlu0 %870
      %v872 = vsel %vm664, %v804, 0.0
      %873 = vadd.xlane.f32.xlu0 %v872
      %v874 = vpop.xlane.xlu0 %873
      %v875 = vsel %vm664, %v806, 0.0
      %876 = vadd.xlane.f32.xlu0 %v875
      %v877 = vpop.xlane.xlu0 %876
      %v878 = vsel %vm664, %v808, 0.0
      %879 = vadd.xlane.f32.xlu0 %v878
      %v880 = vpop.xlane.xlu0 %879
      %v881 = vsel %vm664, %v810, 0.0
      %882 = vadd.xlane.f32.xlu0 %v881
      %v883 = vpop.xlane.xlu0 %882
      %v884 = vsel %vm664, %v812, 0.0
      %885 = vadd.xlane.f32.xlu0 %v884
      %v886 = vpop.xlane.xlu0 %885
      %v887 = vsel %vm664, %v814, 0.0
      %888 = vadd.xlane.f32.xlu0 %v887
      %v889 = vpop.xlane.xlu0 %888
      %v890 = vsel %vm664, %v816, 0.0
      %891 = vadd.xlane.f32.xlu0 %v890
      %v892 = vpop.xlane.xlu0 %891
      %v893 = vsel %vm664, %v818, 0.0
      %894 = vadd.xlane.f32.xlu0 %v893
      %v895 = vpop.xlane.xlu0 %894
      %v896 = vsel %vm664, %v820, 0.0
      %897 = vadd.xlane.f32.xlu0 %v896
      %v898 = vpop.xlane.xlu0 %897
      %v899 = vsel %vm664, %v822, 0.0
      %900 = vadd.xlane.f32.xlu0 %v899
      %v901 = vpop.xlane.xlu0 %900
      %v902 = vsel %vm664, %v824, 0.0
      %903 = vadd.xlane.f32.xlu0 %v902
      %v904 = vpop.xlane.xlu0 %903
      %v905 = vsel %vm664, %v826, 0.0
      %906 = vadd.xlane.f32.xlu0 %v905
      %v907 = vpop.xlane.xlu0 %906
      %v908 = vsel %vm664, %v828, 0.0
      %909 = vadd.xlane.f32.xlu0 %v908
      %v910 = vpop.xlane.xlu0 %909
      %v911 = vsel %vm664, %v830, 0.0
      %912 = vadd.xlane.f32.xlu0 %v911
      %v913 = vpop.xlane.xlu0 %912
      %v914 = vsel %vm664, %v832, 0.0
      %915 = vadd.xlane.f32.xlu0 %v914
      %v916 = vpop.xlane.xlu0 %915
      %v917 = vsel %vm664, %v834, 0.0
      %918 = vadd.xlane.f32.xlu0 %v917
      %v919 = vpop.xlane.xlu0 %918
      %v920 = vsel %vm664, %v836, 0.0
      %921 = vadd.xlane.f32.xlu0 %v920
      %v922 = vpop.xlane.xlu0 %921
      %v923 = vsel %vm664, %v838, 0.0
      %924 = vadd.xlane.f32.xlu0 %v923
      %v925 = vpop.xlane.xlu0 %924
      %v926 = vsel %vm664, %v840, 0.0
      %927 = vadd.xlane.f32.xlu0 %v926
      %v928 = vpop.xlane.xlu0 %927
      %v929 = vsel %vm664, %v842, 0.0
      %930 = vadd.xlane.f32.xlu0 %v929
      %v931 = vpop.xlane.xlu0 %930
      %v932 = vsel %vm664, %v844, 0.0
      %933 = vadd.xlane.f32.xlu0 %v932
      %v934 = vpop.xlane.xlu0 %933
      %v935 = vsel %vm664, %v846, 0.0
      %936 = vadd.xlane.f32.xlu0 %v935
      %v937 = vpop.xlane.xlu0 %936
      %v938 = vsel %vm664, %v848, 0.0
      %939 = vadd.xlane.f32.xlu0 %v938
      %v940 = vpop.xlane.xlu0 %939
      %v941 = vsel %vm664, %v850, 0.0
      %942 = vadd.xlane.f32.xlu0 %v941
      %v943 = vpop.xlane.xlu0 %942
      %v944 = vsel %vm664, %v852, 0.0
      %945 = vadd.xlane.f32.xlu0 %v944
      %v946 = vpop.xlane.xlu0 %945
      %v947 = vsel %vm664, %v854, 0.0
      %948 = vadd.xlane.f32.xlu0 %v947
      %v949 = vpop.xlane.xlu0 %948
      %v950 = vsel %vm664, %v856, 0.0
      %951 = vadd.xlane.f32.xlu0 %v950
      %v952 = vpop.xlane.xlu0 %951
      %v953 = vpack.c.bf16 %v796, %v794
      %v954 = vpack.c.bf16 %v800, %v798
      %v955 = vpack.c.bf16 %v804, %v802
      %v956 = vpack.c.bf16 %v808, %v806
      %v957 = vpack.c.bf16 %v812, %v810
      %v958 = vpack.c.bf16 %v816, %v814
      %v959 = vpack.c.bf16 %v820, %v818
      %v960 = vpack.c.bf16 %v824, %v822
      %v961 = vpack.c.bf16 %v828, %v826
      %v962 = vpack.c.bf16 %v832, %v830
      %v963 = vpack.c.bf16 %v836, %v834
      %v964 = vpack.c.bf16 %v840, %v838
      %v965 = vpack.c.bf16 %v844, %v842
      %v966 = vpack.c.bf16 %v848, %v846
      %v967 = vpack.c.bf16 %v852, %v850
      %v968 = vpack.c.bf16 %v856, %v854
      %969 = vrot.lane.b32.xlu0 %v406, 64
      %v970 = vpop.permute.xlu0 %969
      %971 = vrot.lane.b32.xlu0 %v407, 64
      %v972 = vpop.permute.xlu0 %971
      %973 = vrot.lane.b32.xlu0 %v408, 64
      %v974 = vpop.permute.xlu0 %973
      %975 = vrot.lane.b32.xlu0 %v409, 64
      %v976 = vpop.permute.xlu0 %975
      %v982 = vsel %vm664, %v953, 0
      %v985 = vsel %vm664, %v954, 0
      %v988 = vsel %vm664, %v955, 0
      %v991 = vsel %vm664, %v956, 0
      %v994 = vsel %vm664, %v957, 0
      %v997 = vsel %vm664, %v958, 0
      %v1000 = vsel %vm664, %v959, 0
      %v1003 = vsel %vm664, %v960, 0
      %v1006 = vsel %vm664, %v961, 0
      %v1009 = vsel %vm664, %v962, 0
      %v1012 = vsel %vm664, %v963, 0
      %v1015 = vsel %vm664, %v964, 0
      %v1018 = vsel %vm664, %v965, 0
      %v1021 = vsel %vm664, %v966, 0
      %v1024 = vsel %vm664, %v967, 0
      %v1027 = vsel %vm664, %v968, 0
      %1029 = vmatprep.subr.bf16.mxu0 0
      %1030 = vmatpush1.bf16.msra.mxu0 %v970
      %1031 = vmatprep.subr.bf16.mxu0 0
      %1032 = vmatpush1.bf16.msra.mxu0 %v972
      %1033 = vmatprep.subr.bf16.mxu0 0
      %1034 = vmatpush1.bf16.msra.mxu0 %v974
      %1035 = vmatprep.subr.bf16.mxu0 0
      %1036 = vmatpush1.bf16.msra.mxu0 %v976
      %1037 = vmatprep.subr.bf16.mxu0 0
      %1038 = vmatpush1.bf16.msra.mxu0 0
      %1039 = vmatprep.subr.bf16.mxu0 0
      %1040 = vmatpush1.bf16.msra.mxu0 0
      %1041 = vmatprep.subr.bf16.mxu0 0
      %1042 = vmatpush1.bf16.msra.mxu0 0
      %1043 = vmatprep.subr.bf16.mxu0 0
      %1044 = vmatpush1.bf16.msra.mxu0 0
      %1045 = vmatprep.subr.bf16.mxu0 0
      %1046 = vmatpush1.bf16.msra.mxu0 0
      %1047 = vmatprep.subr.bf16.mxu0 0
      %1048 = vmatpush1.bf16.msra.mxu0 0
      %1049 = vmatprep.subr.bf16.mxu0 0
      %1050 = vmatpush1.bf16.msra.mxu0 0
      %1051 = vmatprep.subr.bf16.mxu0 0
      %1052 = vmatpush1.bf16.msra.mxu0 0
      %1053 = vmatprep.subr.bf16.mxu0 0
      %1054 = vmatpush1.bf16.msra.mxu0 0
      %1055 = vmatprep.subr.bf16.mxu0 0
      %1056 = vmatpush1.bf16.msra.mxu0 0
      %1057 = vmatprep.subr.bf16.mxu0 0
      %1058 = vmatpush1.bf16.msra.mxu0 0
      %1059 = vmatprep.subr.bf16.mxu0 0
      %1060 = vmatpush1.bf16.msra.mxu0 0
      %1061 = vmatprep.mubr.bf16.mxu0 0
      %1062 = vmatmul.mubr.bf16.gmra.mrb[0].mxu0 %v982
      %v1063 = vpop.f32.mrb[0].mxu0
      %v1064 = vadd.f32 0.0, %v1063
      %v1065 = vpop.f32.mrb[0].mxu0
      %v1066 = vpop.f32.mrb[0].mxu0
      %v1067 = vadd.f32 0.0, %v1066
      %v1068 = vpop.f32.mrb[0].mxu0
      %1069 = vmatprep.mubr.bf16.mxu0 0
      %1070 = vmatmul.mubr.bf16.gmra.mrb[0].mxu0 %v985
      %v1071 = vpop.f32.mrb[0].mxu0
      %v1072 = vadd.f32 0.0, %v1071
      %v1073 = vpop.f32.mrb[0].mxu0
      %v1074 = vpop.f32.mrb[0].mxu0
      %v1075 = vadd.f32 0.0, %v1074
      %v1076 = vpop.f32.mrb[0].mxu0
      %1077 = vmatprep.mubr.bf16.mxu0 0
      %1078 = vmatmul.mubr.bf16.gmra.mrb[0].mxu0 %v988
      %v1079 = vpop.f32.mrb[0].mxu0
      %v1080 = vadd.f32 0.0, %v1079
      %v1081 = vpop.f32.mrb[0].mxu0
      %v1082 = vpop.f32.mrb[0].mxu0
      %v1083 = vadd.f32 0.0, %v1082
      %v1084 = vpop.f32.mrb[0].mxu0
      %1085 = vmatprep.mubr.bf16.mxu0 0
      %1086 = vmatmul.mubr.bf16.gmra.mrb[0].mxu0 %v991
      %v1087 = vpop.f32.mrb[0].mxu0
      %v1088 = vadd.f32 0.0, %v1087
      %v1089 = vpop.f32.mrb[0].mxu0
      %v1090 = vpop.f32.mrb[0].mxu0
      %v1091 = vadd.f32 0.0, %v1090
      %v1092 = vpop.f32.mrb[0].mxu0
      %1093 = vmatprep.mubr.bf16.mxu0 0
      %1094 = vmatmul.mubr.bf16.gmra.mrb[0].mxu0 %v994
      %v1095 = vpop.f32.mrb[0].mxu0
      %v1096 = vadd.f32 0.0, %v1095
      %v1097 = vpop.f32.mrb[0].mxu0
      %v1098 = vpop.f32.mrb[0].mxu0
      %v1099 = vadd.f32 0.0, %v1098
      %v1100 = vpop.f32.mrb[0].mxu0
      %1101 = vmatprep.mubr.bf16.mxu0 0
      %1102 = vmatmul.mubr.bf16.gmra.mrb[0].mxu0 %v997
      %v1103 = vpop.f32.mrb[0].mxu0
      %v1104 = vadd.f32 0.0, %v1103
      %v1105 = vpop.f32.mrb[0].mxu0
      %v1106 = vpop.f32.mrb[0].mxu0
      %v1107 = vadd.f32 0.0, %v1106
      %v1108 = vpop.f32.mrb[0].mxu0
      %1109 = vmatprep.mubr.bf16.mxu0 0
      %1110 = vmatmul.mubr.bf16.gmra.mrb[0].mxu0 %v1000
      %v1111 = vpop.f32.mrb[0].mxu0
      %v1112 = vadd.f32 0.0, %v1111
      %v1113 = vpop.f32.mrb[0].mxu0
      %v1114 = vpop.f32.mrb[0].mxu0
      %v1115 = vadd.f32 0.0, %v1114
      %v1116 = vpop.f32.mrb[0].mxu0
      %1117 = vmatprep.mubr.bf16.mxu0 0
      %1118 = vmatmul.mubr.bf16.gmra.mrb[0].mxu0 %v1003
      %v1119 = vpop.f32.mrb[0].mxu0
      %v1120 = vadd.f32 0.0, %v1119
      %v1121 = vpop.f32.mrb[0].mxu0
      %v1122 = vpop.f32.mrb[0].mxu0
      %v1123 = vadd.f32 0.0, %v1122
      %v1124 = vpop.f32.mrb[0].mxu0
      %1125 = vmatprep.mubr.bf16.mxu0 0
      %1126 = vmatmul.mubr.bf16.gmra.mrb[0].mxu0 %v1006
      %v1127 = vpop.f32.mrb[0].mxu0
      %v1128 = vadd.f32 0.0, %v1127
      %v1129 = vpop.f32.mrb[0].mxu0
      %v1130 = vpop.f32.mrb[0].mxu0
      %v1131 = vadd.f32 0.0, %v1130
      %v1132 = vpop.f32.mrb[0].mxu0
      %1133 = vmatprep.mubr.bf16.mxu0 0
      %1134 = vmatmul.mubr.bf16.gmra.mrb[0].mxu0 %v1009
      %v1135 = vpop.f32.mrb[0].mxu0
      %v1136 = vadd.f32 0.0, %v1135
      %v1137 = vpop.f32.mrb[0].mxu0
      %v1138 = vpop.f32.mrb[0].mxu0
      %v1139 = vadd.f32 0.0, %v1138
      %v1140 = vpop.f32.mrb[0].mxu0
      %1141 = vmatprep.mubr.bf16.mxu0 0
      %1142 = vmatmul.mubr.bf16.gmra.mrb[0].mxu0 %v1012
      %v1143 = vpop.f32.mrb[0].mxu0
      %v1144 = vadd.f32 0.0, %v1143
      %v1145 = vpop.f32.mrb[0].mxu0
      %v1146 = vpop.f32.mrb[0].mxu0
      %v1147 = vadd.f32 0.0, %v1146
      %v1148 = vpop.f32.mrb[0].mxu0
      %1149 = vmatprep.mubr.bf16.mxu0 0
      %1150 = vmatmul.mubr.bf16.gmra.mrb[0].mxu0 %v1015
      %v1151 = vpop.f32.mrb[0].mxu0
      %v1152 = vadd.f32 0.0, %v1151
      %v1153 = vpop.f32.mrb[0].mxu0
      %v1154 = vpop.f32.mrb[0].mxu0
      %v1155 = vadd.f32 0.0, %v1154
      %v1156 = vpop.f32.mrb[0].mxu0
      %1157 = vmatprep.mubr.bf16.mxu0 0
      %1158 = vmatmul.mubr.bf16.gmra.mrb[0].mxu0 %v1018
      %v1159 = vpop.f32.mrb[0].mxu0
      %v1160 = vadd.f32 0.0, %v1159
      %v1161 = vpop.f32.mrb[0].mxu0
      %v1162 = vpop.f32.mrb[0].mxu0
      %v1163 = vadd.f32 0.0, %v1162
      %v1164 = vpop.f32.mrb[0].mxu0
      %1165 = vmatprep.mubr.bf16.mxu0 0
      %1166 = vmatmul.mubr.bf16.gmra.mrb[0].mxu0 %v1021
      %v1167 = vpop.f32.mrb[0].mxu0
      %v1168 = vadd.f32 0.0, %v1167
      %v1169 = vpop.f32.mrb[0].mxu0
      %v1170 = vpop.f32.mrb[0].mxu0
      %v1171 = vadd.f32 0.0, %v1170
      %v1172 = vpop.f32.mrb[0].mxu0
      %1173 = vmatprep.mubr.bf16.mxu0 0
      %1174 = vmatmul.mubr.bf16.gmra.mrb[0].mxu0 %v1024
      %v1175 = vpop.f32.mrb[0].mxu0
      %v1176 = vadd.f32 0.0, %v1175
      %v1177 = vpop.f32.mrb[0].mxu0
      %v1178 = vpop.f32.mrb[0].mxu0
      %v1179 = vadd.f32 0.0, %v1178
      %v1180 = vpop.f32.mrb[0].mxu0
      %1181 = vmatprep.mubr.bf16.mxu0 0
      %1182 = vmatmul.mubr.bf16.gmra.mrb[0].mxu0 %v1027
      %v1183 = vpop.f32.mrb[0].mxu0
      %v1184 = vadd.f32 0.0, %v1183
      %v1185 = vpop.f32.mrb[0].mxu0
      %v1186 = vpop.f32.mrb[0].mxu0
      %v1187 = vadd.f32 0.0, %v1186
      %v1188 = vpop.f32.mrb[0].mxu0
      %1189 = vdwg.mxu0
      %v1190 = vrcp.pop %v859
      %v1191 = vrcp.pop %v862
      %v1192 = vrcp.pop %v865
      %v1193 = vrcp.pop %v868
      %v1194 = vrcp.pop %v871
      %v1195 = vrcp.pop %v874
      %v1196 = vrcp.pop %v877
      %v1197 = vrcp.pop %v880
      %v1198 = vrcp.pop %v883
      %v1199 = vrcp.pop %v886
      %v1200 = vrcp.pop %v889
      %v1201 = vrcp.pop %v892
      %v1202 = vrcp.pop %v895
      %v1203 = vrcp.pop %v898
      %v1204 = vrcp.pop %v901
      %v1205 = vrcp.pop %v904
      %v1206 = vrcp.pop %v907
      %v1207 = vrcp.pop %v910
      %v1208 = vrcp.pop %v913
      %v1209 = vrcp.pop %v916
      %v1210 = vrcp.pop %v919
      %v1211 = vrcp.pop %v922
      %v1212 = vrcp.pop %v925
      %v1213 = vrcp.pop %v928
      %v1214 = vrcp.pop %v931
      %v1215 = vrcp.pop %v934
      %v1216 = vrcp.pop %v937
      %v1217 = vrcp.pop %v940
      %v1218 = vrcp.pop %v943
      %v1219 = vrcp.pop %v946
      %v1220 = vrcp.pop %v949
      %v1221 = vrcp.pop %v952
      %v1222 = vmul.f32 %v1064, %v1190
      %v1223 = vmul.f32 %v1067, %v1191
      %v1224 = vmul.f32 %v1072, %v1192
      %v1225 = vmul.f32 %v1075, %v1193
      %v1226 = vmul.f32 %v1080, %v1194
      %v1227 = vmul.f32 %v1083, %v1195
      %v1228 = vmul.f32 %v1088, %v1196
      %v1229 = vmul.f32 %v1091, %v1197
      %v1230 = vmul.f32 %v1096, %v1198
      %v1231 = vmul.f32 %v1099, %v1199
      %v1232 = vmul.f32 %v1104, %v1200
      %v1233 = vmul.f32 %v1107, %v1201
      %v1234 = vmul.f32 %v1112, %v1202
      %v1235 = vmul.f32 %v1115, %v1203
      %v1236 = vmul.f32 %v1120, %v1204
      %v1237 = vmul.f32 %v1123, %v1205
      %v1238 = vmul.f32 %v1128, %v1206
      %v1239 = vmul.f32 %v1131, %v1207
      %v1240 = vmul.f32 %v1136, %v1208
      %v1241 = vmul.f32 %v1139, %v1209
      %v1242 = vmul.f32 %v1144, %v1210
      %v1243 = vmul.f32 %v1147, %v1211
      %v1244 = vmul.f32 %v1152, %v1212
      %v1245 = vmul.f32 %v1155, %v1213
      %v1246 = vmul.f32 %v1160, %v1214
      %v1247 = vmul.f32 %v1163, %v1215
      %v1248 = vmul.f32 %v1168, %v1216
      %v1249 = vmul.f32 %v1171, %v1217
      %v1250 = vmul.f32 %v1176, %v1218
      %v1251 = vmul.f32 %v1179, %v1219
      %v1252 = vmul.f32 %v1184, %v1220
      %v1253 = vmul.f32 %v1187, %v1221
      %v1254 = vpack.c.bf16 %v1223, %v1222
      %v1255 = vpack.c.bf16 %v1225, %v1224
      %v1256 = vpack.c.bf16 %v1227, %v1226
      %v1257 = vpack.c.bf16 %v1229, %v1228
      %v1258 = vpack.c.bf16 %v1231, %v1230
      %v1259 = vpack.c.bf16 %v1233, %v1232
      %v1260 = vpack.c.bf16 %v1235, %v1234
      %v1261 = vpack.c.bf16 %v1237, %v1236
      %v1262 = vpack.c.bf16 %v1239, %v1238
      %v1263 = vpack.c.bf16 %v1241, %v1240
      %v1264 = vpack.c.bf16 %v1243, %v1242
      %v1265 = vpack.c.bf16 %v1245, %v1244
      %v1266 = vpack.c.bf16 %v1247, %v1246
      %v1267 = vpack.c.bf16 %v1249, %v1248
      %v1268 = vpack.c.bf16 %v1251, %v1250
      %v1269 = vpack.c.bf16 %v1253, %v1252
      %1270 = vrot.lane.b32.xlu0 %v374, 112
      %v1271 = vpop.permute.xlu0 %1270
      %1272 = vrot.lane.b32.xlu0 %v375, 112
      %v1273 = vpop.permute.xlu0 %1272
      %1274 = vrot.lane.b32.xlu0 %v376, 112
      %v1275 = vpop.permute.xlu0 %1274
      %1276 = vrot.lane.b32.xlu0 %v377, 112
      %v1277 = vpop.permute.xlu0 %1276
      %1278 = vrot.lane.b32.xlu0 %v378, 112
      %v1279 = vpop.permute.xlu0 %1278
      %1280 = vrot.lane.b32.xlu0 %v379, 112
      %v1281 = vpop.permute.xlu0 %1280
      %1282 = vrot.lane.b32.xlu0 %v380, 112
      %v1283 = vpop.permute.xlu0 %1282
      %1284 = vrot.lane.b32.xlu0 %v381, 112
      %v1285 = vpop.permute.xlu0 %1284
      %1286 = vrot.lane.b32.xlu0 %v382, 112
      %v1287 = vpop.permute.xlu0 %1286
      %1288 = vrot.lane.b32.xlu0 %v383, 112
      %v1289 = vpop.permute.xlu0 %1288
      %1290 = vrot.lane.b32.xlu0 %v384, 112
      %v1291 = vpop.permute.xlu0 %1290
      %1292 = vrot.lane.b32.xlu0 %v385, 112
      %v1293 = vpop.permute.xlu0 %1292
      %1294 = vrot.lane.b32.xlu0 %v386, 112
      %v1295 = vpop.permute.xlu0 %1294
      %1296 = vrot.lane.b32.xlu0 %v387, 112
      %v1297 = vpop.permute.xlu0 %1296
      %1298 = vrot.lane.b32.xlu0 %v388, 112
      %v1299 = vpop.permute.xlu0 %1298
      %1300 = vrot.lane.b32.xlu0 %v389, 112
      %v1301 = vpop.permute.xlu0 %1300
      %1302 = vrot.lane.b32.xlu0 %v406, 112
      %v1303 = vpop.permute.xlu0 %1302
      %1304 = vrot.lane.b32.xlu0 %v407, 112
      %v1305 = vpop.permute.xlu0 %1304
      %1306 = vrot.lane.b32.xlu0 %v408, 112
      %v1307 = vpop.permute.xlu0 %1306
      %1308 = vrot.lane.b32.xlu0 %v409, 112
      %v1309 = vpop.permute.xlu0 %1308
      %v1311 = vsel %vm410, %v1271, 0
      %v1314 = vsel %vm410, %v1273, 0
      %v1317 = vsel %vm410, %v1275, 0
      %v1320 = vsel %vm410, %v1277, 0
      %v1323 = vsel %vm410, %v1279, 0
      %v1326 = vsel %vm410, %v1281, 0
      %v1329 = vsel %vm410, %v1283, 0
      %v1332 = vsel %vm410, %v1285, 0
      %v1335 = vsel %vm410, %v1287, 0
      %v1338 = vsel %vm410, %v1289, 0
      %v1341 = vsel %vm410, %v1291, 0
      %v1344 = vsel %vm410, %v1293, 0
      %v1347 = vsel %vm410, %v1295, 0
      %v1350 = vsel %vm410, %v1297, 0
      %v1353 = vsel %vm410, %v1299, 0
      %v1356 = vsel %vm410, %v1301, 0
      %v1359 = vsel %vm410, %v1303, 0
      %v1362 = vsel %vm410, %v1305, 0
      %v1365 = vsel %vm410, %v1307, 0
      %v1368 = vsel %vm410, %v1309, 0
      %1370 = vmatprep.subr.bf16.mxu0 0
      %1371 = vmatpush1.bf16.xpose.msra.mxu0 %v1359
      %1372 = vmatprep.subr.bf16.mxu0 0
      %1373 = vmatpush1.bf16.xpose.msra.mxu0 %v1362
      %1374 = vmatprep.subr.bf16.mxu0 0
      %1375 = vmatpush1.bf16.xpose.msra.mxu0 %v1365
      %1376 = vmatprep.subr.bf16.mxu0 0
      %1377 = vmatpush1.bf16.xpose.msra.mxu0 %v1368
      %1378 = vmatprep.subr.bf16.mxu0 0
      %1379 = vmatpush1.bf16.xpose.msra.mxu0 0
      %1380 = vmatprep.subr.bf16.mxu0 0
      %1381 = vmatpush1.bf16.xpose.msra.mxu0 0
      %1382 = vmatprep.subr.bf16.mxu0 0
      %1383 = vmatpush1.bf16.xpose.msra.mxu0 0
      %1384 = vmatprep.subr.bf16.mxu0 0
      %1385 = vmatpush1.bf16.xpose.msra.mxu0 0
      %1386 = vmatprep.subr.bf16.mxu0 0
      %1387 = vmatpush1.bf16.xpose.msra.mxu0 0
      %1388 = vmatprep.subr.bf16.mxu0 0
      %1389 = vmatpush1.bf16.xpose.msra.mxu0 0
      %1390 = vmatprep.subr.bf16.mxu0 0
      %1391 = vmatpush1.bf16.xpose.msra.mxu0 0
      %1392 = vmatprep.subr.bf16.mxu0 0
      %1393 = vmatpush1.bf16.xpose.msra.mxu0 0
      %1394 = vmatprep.subr.bf16.mxu0 0
      %1395 = vmatpush1.bf16.xpose.msra.mxu0 0
      %1396 = vmatprep.subr.bf16.mxu0 0
      %1397 = vmatpush1.bf16.xpose.msra.mxu0 0
      %1398 = vmatprep.subr.bf16.mxu0 0
      %1399 = vmatpush1.bf16.xpose.msra.mxu0 0
      %1400 = vmatprep.subr.bf16.mxu0 0
      %1401 = vmatpush1.bf16.xpose.msra.mxu0 0
      %1402 = vmatprep.mubr.bf16.mxu0 0
      %1403 = vmatmul.mubr.bf16.gmra.mrb[0].mxu0 %v1311
      %v1404 = vpop.f32.mrb[0].mxu0
      %v1405 = vadd.f32 0.0, %v1404
      %v1406 = vpop.f32.mrb[0].mxu0
      %v1407 = vpop.f32.mrb[0].mxu0
      %v1408 = vadd.f32 0.0, %v1407
      %v1409 = vpop.f32.mrb[0].mxu0
      %1410 = vmatprep.mubr.bf16.mxu0 0
      %1411 = vmatmul.mubr.bf16.gmra.mrb[0].mxu0 %v1314
      %v1412 = vpop.f32.mrb[0].mxu0
      %v1413 = vadd.f32 0.0, %v1412
      %v1414 = vpop.f32.mrb[0].mxu0
      %v1415 = vpop.f32.mrb[0].mxu0
      %v1416 = vadd.f32 0.0, %v1415
      %v1417 = vpop.f32.mrb[0].mxu0
      %1418 = vmatprep.mubr.bf16.mxu0 0
      %1419 = vmatmul.mubr.bf16.gmra.mrb[0].mxu0 %v1317
      %v1420 = vpop.f32.mrb[0].mxu0
      %v1421 = vadd.f32 0.0, %v1420
      %v1422 = vpop.f32.mrb[0].mxu0
      %v1423 = vpop.f32.mrb[0].mxu0
      %v1424 = vadd.f32 0.0, %v1423
      %v1425 = vpop.f32.mrb[0].mxu0
      %1426 = vmatprep.mubr.bf16.mxu0 0
      %1427 = vmatmul.mubr.bf16.gmra.mrb[0].mxu0 %v1320
      %v1428 = vpop.f32.mrb[0].mxu0
      %v1429 = vadd.f32 0.0, %v1428
      %v1430 = vpop.f32.mrb[0].mxu0
      %v1431 = vpop.f32.mrb[0].mxu0
      %v1432 = vadd.f32 0.0, %v1431
      %v1433 = vpop.f32.mrb[0].mxu0
      %1434 = vmatprep.mubr.bf16.mxu0 0
      %1435 = vmatmul.mubr.bf16.gmra.mrb[0].mxu0 %v1323
      %v1436 = vpop.f32.mrb[0].mxu0
      %v1437 = vadd.f32 0.0, %v1436
      %v1438 = vpop.f32.mrb[0].mxu0
      %v1439 = vpop.f32.mrb[0].mxu0
      %v1440 = vadd.f32 0.0, %v1439
      %v1441 = vpop.f32.mrb[0].mxu0
      %1442 = vmatprep.mubr.bf16.mxu0 0
      %1443 = vmatmul.mubr.bf16.gmra.mrb[0].mxu0 %v1326
      %v1444 = vpop.f32.mrb[0].mxu0
      %v1445 = vadd.f32 0.0, %v1444
      %v1446 = vpop.f32.mrb[0].mxu0
      %v1447 = vpop.f32.mrb[0].mxu0
      %v1448 = vadd.f32 0.0, %v1447
      %v1449 = vpop.f32.mrb[0].mxu0
      %1450 = vmatprep.mubr.bf16.mxu0 0
      %1451 = vmatmul.mubr.bf16.gmra.mrb[0].mxu0 %v1329
      %v1452 = vpop.f32.mrb[0].mxu0
      %v1453 = vadd.f32 0.0, %v1452
      %v1454 = vpop.f32.mrb[0].mxu0
      %v1455 = vpop.f32.mrb[0].mxu0
      %v1456 = vadd.f32 0.0, %v1455
      %v1457 = vpop.f32.mrb[0].mxu0
      %1458 = vmatprep.mubr.bf16.mxu0 0
      %1459 = vmatmul.mubr.bf16.gmra.mrb[0].mxu0 %v1332
      %v1460 = vpop.f32.mrb[0].mxu0
      %v1461 = vadd.f32 0.0, %v1460
      %v1462 = vpop.f32.mrb[0].mxu0
      %v1463 = vpop.f32.mrb[0].mxu0
      %v1464 = vadd.f32 0.0, %v1463
      %v1465 = vpop.f32.mrb[0].mxu0
      %1466 = vmatprep.mubr.bf16.mxu0 0
      %1467 = vmatmul.mubr.bf16.gmra.mrb[0].mxu0 %v1335
      %v1468 = vpop.f32.mrb[0].mxu0
      %v1469 = vadd.f32 0.0, %v1468
      %v1470 = vpop.f32.mrb[0].mxu0
      %v1471 = vpop.f32.mrb[0].mxu0
      %v1472 = vadd.f32 0.0, %v1471
      %v1473 = vpop.f32.mrb[0].mxu0
      %1474 = vmatprep.mubr.bf16.mxu0 0
      %1475 = vmatmul.mubr.bf16.gmra.mrb[0].mxu0 %v1338
      %v1476 = vpop.f32.mrb[0].mxu0
      %v1477 = vadd.f32 0.0, %v1476
      %v1478 = vpop.f32.mrb[0].mxu0
      %v1479 = vpop.f32.mrb[0].mxu0
      %v1480 = vadd.f32 0.0, %v1479
      %v1481 = vpop.f32.mrb[0].mxu0
      %1482 = vmatprep.mubr.bf16.mxu0 0
      %1483 = vmatmul.mubr.bf16.gmra.mrb[0].mxu0 %v1341
      %v1484 = vpop.f32.mrb[0].mxu0
      %v1485 = vadd.f32 0.0, %v1484
      %v1486 = vpop.f32.mrb[0].mxu0
      %v1487 = vpop.f32.mrb[0].mxu0
      %v1488 = vadd.f32 0.0, %v1487
      %v1489 = vpop.f32.mrb[0].mxu0
      %1490 = vmatprep.mubr.bf16.mxu0 0
      %1491 = vmatmul.mubr.bf16.gmra.mrb[0].mxu0 %v1344
      %v1492 = vpop.f32.mrb[0].mxu0
      %v1493 = vadd.f32 0.0, %v1492
      %v1494 = vpop.f32.mrb[0].mxu0
      %v1495 = vpop.f32.mrb[0].mxu0
      %v1496 = vadd.f32 0.0, %v1495
      %v1497 = vpop.f32.mrb[0].mxu0
      %1498 = vmatprep.mubr.bf16.mxu0 0
      %1499 = vmatmul.mubr.bf16.gmra.mrb[0].mxu0 %v1347
      %v1500 = vpop.f32.mrb[0].mxu0
      %v1501 = vadd.f32 0.0, %v1500
      %v1502 = vpop.f32.mrb[0].mxu0
      %v1503 = vpop.f32.mrb[0].mxu0
      %v1504 = vadd.f32 0.0, %v1503
      %v1505 = vpop.f32.mrb[0].mxu0
      %1506 = vmatprep.mubr.bf16.mxu0 0
      %1507 = vmatmul.mubr.bf16.gmra.mrb[0].mxu0 %v1350
      %v1508 = vpop.f32.mrb[0].mxu0
      %v1509 = vadd.f32 0.0, %v1508
      %v1510 = vpop.f32.mrb[0].mxu0
      %v1511 = vpop.f32.mrb[0].mxu0
      %v1512 = vadd.f32 0.0, %v1511
      %v1513 = vpop.f32.mrb[0].mxu0
      %1514 = vmatprep.mubr.bf16.mxu0 0
      %1515 = vmatmul.mubr.bf16.gmra.mrb[0].mxu0 %v1353
      %v1516 = vpop.f32.mrb[0].mxu0
      %v1517 = vadd.f32 0.0, %v1516
      %v1518 = vpop.f32.mrb[0].mxu0
      %v1519 = vpop.f32.mrb[0].mxu0
      %v1520 = vadd.f32 0.0, %v1519
      %v1521 = vpop.f32.mrb[0].mxu0
      %1522 = vmatprep.mubr.bf16.mxu0 0
      %1523 = vmatmul.mubr.bf16.gmra.mrb[0].mxu0 %v1356
      %v1524 = vpop.f32.mrb[0].mxu0
      %v1525 = vadd.f32 0.0, %v1524
      %v1526 = vpop.f32.mrb[0].mxu0
      %v1527 = vpop.f32.mrb[0].mxu0
      %v1528 = vadd.f32 0.0, %v1527
      %v1529 = vpop.f32.mrb[0].mxu0
      %1530 = vdwg.mxu0
      %v1531 = vmul.f32 %v1405, 0.25
      %v1532 = vmul.f32 %v1408, 0.25
      %v1533 = vmul.f32 %v1413, 0.25
      %v1534 = vmul.f32 %v1416, 0.25
      %v1535 = vmul.f32 %v1421, 0.25
      %v1536 = vmul.f32 %v1424, 0.25
      %v1537 = vmul.f32 %v1429, 0.25
      %v1538 = vmul.f32 %v1432, 0.25
      %v1539 = vmul.f32 %v1437, 0.25
      %v1540 = vmul.f32 %v1440, 0.25
      %v1541 = vmul.f32 %v1445, 0.25
      %v1542 = vmul.f32 %v1448, 0.25
      %v1543 = vmul.f32 %v1453, 0.25
      %v1544 = vmul.f32 %v1456, 0.25
      %v1545 = vmul.f32 %v1461, 0.25
      %v1546 = vmul.f32 %v1464, 0.25
      %v1547 = vmul.f32 %v1469, 0.25
      %v1548 = vmul.f32 %v1472, 0.25
      %v1549 = vmul.f32 %v1477, 0.25
      %v1550 = vmul.f32 %v1480, 0.25
      %v1551 = vmul.f32 %v1485, 0.25
      %v1552 = vmul.f32 %v1488, 0.25
      %v1553 = vmul.f32 %v1493, 0.25
      %v1554 = vmul.f32 %v1496, 0.25
      %v1555 = vmul.f32 %v1501, 0.25
      %v1556 = vmul.f32 %v1504, 0.25
      %v1557 = vmul.f32 %v1509, 0.25
      %v1558 = vmul.f32 %v1512, 0.25
      %v1559 = vmul.f32 %v1517, 0.25
      %v1560 = vmul.f32 %v1520, 0.25
      %v1561 = vmul.f32 %v1525, 0.25
      %v1562 = vmul.f32 %v1528, 0.25
      %v1563 = vsel %vm664, %v1531, -inf
      %1564 = vmax.xlane.f32.xlu0 %v1563
      %v1565 = vpop.xlane.xlu0 %1564
      %v1566 = vsel %vm664, %v1532, -inf
      %1567 = vmax.xlane.f32.xlu0 %v1566
      %v1568 = vpop.xlane.xlu0 %1567
      %v1569 = vsel %vm664, %v1533, -inf
      %1570 = vmax.xlane.f32.xlu0 %v1569
      %v1571 = vpop.xlane.xlu0 %1570
      %v1572 = vsel %vm664, %v1534, -inf
      %1573 = vmax.xlane.f32.xlu0 %v1572
      %v1574 = vpop.xlane.xlu0 %1573
      %v1575 = vsel %vm664, %v1535, -inf
      %1576 = vmax.xlane.f32.xlu0 %v1575
      %v1577 = vpop.xlane.xlu0 %1576
      %v1578 = vsel %vm664, %v1536, -inf
      %1579 = vmax.xlane.f32.xlu0 %v1578
      %v1580 = vpop.xlane.xlu0 %1579
      %v1581 = vsel %vm664, %v1537, -inf
      %1582 = vmax.xlane.f32.xlu0 %v1581
      %v1583 = vpop.xlane.xlu0 %1582
      %v1584 = vsel %vm664, %v1538, -inf
      %1585 = vmax.xlane.f32.xlu0 %v1584
      %v1586 = vpop.xlane.xlu0 %1585
      %v1587 = vsel %vm664, %v1539, -inf
      %1588 = vmax.xlane.f32.xlu0 %v1587
      %v1589 = vpop.xlane.xlu0 %1588
      %v1590 = vsel %vm664, %v1540, -inf
      %1591 = vmax.xlane.f32.xlu0 %v1590
      %v1592 = vpop.xlane.xlu0 %1591
      %v1593 = vsel %vm664, %v1541, -inf
      %1594 = vmax.xlane.f32.xlu0 %v1593
      %v1595 = vpop.xlane.xlu0 %1594
      %v1596 = vsel %vm664, %v1542, -inf
      %1597 = vmax.xlane.f32.xlu0 %v1596
      %v1598 = vpop.xlane.xlu0 %1597
      %v1599 = vsel %vm664, %v1543, -inf
      %1600 = vmax.xlane.f32.xlu0 %v1599
      %v1601 = vpop.xlane.xlu0 %1600
      %v1602 = vsel %vm664, %v1544, -inf
      %1603 = vmax.xlane.f32.xlu0 %v1602
      %v1604 = vpop.xlane.xlu0 %1603
      %v1605 = vsel %vm664, %v1545, -inf
      %1606 = vmax.xlane.f32.xlu0 %v1605
      %v1607 = vpop.xlane.xlu0 %1606
      %v1608 = vsel %vm664, %v1546, -inf
      %1609 = vmax.xlane.f32.xlu0 %v1608
      %v1610 = vpop.xlane.xlu0 %1609
      %v1611 = vsel %vm664, %v1547, -inf
      %1612 = vmax.xlane.f32.xlu0 %v1611
      %v1613 = vpop.xlane.xlu0 %1612
      %v1614 = vsel %vm664, %v1548, -inf
      %1615 = vmax.xlane.f32.xlu0 %v1614
      %v1616 = vpop.xlane.xlu0 %1615
      %v1617 = vsel %vm664, %v1549, -inf
      %1618 = vmax.xlane.f32.xlu0 %v1617
      %v1619 = vpop.xlane.xlu0 %1618
      %v1620 = vsel %vm664, %v1550, -inf
      %1621 = vmax.xlane.f32.xlu0 %v1620
      %v1622 = vpop.xlane.xlu0 %1621
      %v1623 = vsel %vm664, %v1551, -inf
      %1624 = vmax.xlane.f32.xlu0 %v1623
      %v1625 = vpop.xlane.xlu0 %1624
      %v1626 = vsel %vm664, %v1552, -inf
      %1627 = vmax.xlane.f32.xlu0 %v1626
      %v1628 = vpop.xlane.xlu0 %1627
      %v1629 = vsel %vm664, %v1553, -inf
      %1630 = vmax.xlane.f32.xlu0 %v1629
      %v1631 = vpop.xlane.xlu0 %1630
      %v1632 = vsel %vm664, %v1554, -inf
      %1633 = vmax.xlane.f32.xlu0 %v1632
      %v1634 = vpop.xlane.xlu0 %1633
      %v1635 = vsel %vm664, %v1555, -inf
      %1636 = vmax.xlane.f32.xlu0 %v1635
      %v1637 = vpop.xlane.xlu0 %1636
      %v1638 = vsel %vm664, %v1556, -inf
      %1639 = vmax.xlane.f32.xlu0 %v1638
      %v1640 = vpop.xlane.xlu0 %1639
      %v1641 = vsel %vm664, %v1557, -inf
      %1642 = vmax.xlane.f32.xlu0 %v1641
      %v1643 = vpop.xlane.xlu0 %1642
      %v1644 = vsel %vm664, %v1558, -inf
      %1645 = vmax.xlane.f32.xlu0 %v1644
      %v1646 = vpop.xlane.xlu0 %1645
      %v1647 = vsel %vm664, %v1559, -inf
      %1648 = vmax.xlane.f32.xlu0 %v1647
      %v1649 = vpop.xlane.xlu0 %1648
      %v1650 = vsel %vm664, %v1560, -inf
      %1651 = vmax.xlane.f32.xlu0 %v1650
      %v1652 = vpop.xlane.xlu0 %1651
      %v1653 = vsel %vm664, %v1561, -inf
      %1654 = vmax.xlane.f32.xlu0 %v1653
      %v1655 = vpop.xlane.xlu0 %1654
      %v1656 = vsel %vm664, %v1562, -inf
      %1657 = vmax.xlane.f32.xlu0 %v1656
      %v1658 = vpop.xlane.xlu0 %1657
      %v1659 = vsub.f32 %v1531, %v1565
      %v1660 = vsub.f32 %v1532, %v1568
      %v1661 = vsub.f32 %v1533, %v1571
      %v1662 = vsub.f32 %v1534, %v1574
      %v1663 = vsub.f32 %v1535, %v1577
      %v1664 = vsub.f32 %v1536, %v1580
      %v1665 = vsub.f32 %v1537, %v1583
      %v1666 = vsub.f32 %v1538, %v1586
      %v1667 = vsub.f32 %v1539, %v1589
      %v1668 = vsub.f32 %v1540, %v1592
      %v1669 = vsub.f32 %v1541, %v1595
      %v1670 = vsub.f32 %v1542, %v1598
      %v1671 = vsub.f32 %v1543, %v1601
      %v1672 = vsub.f32 %v1544, %v1604
      %v1673 = vsub.f32 %v1545, %v1607
      %v1674 = vsub.f32 %v1546, %v1610
      %v1675 = vsub.f32 %v1547, %v1613
      %v1676 = vsub.f32 %v1548, %v1616
      %v1677 = vsub.f32 %v1549, %v1619
      %v1678 = vsub.f32 %v1550, %v1622
      %v1679 = vsub.f32 %v1551, %v1625
      %v1680 = vsub.f32 %v1552, %v1628
      %v1681 = vsub.f32 %v1553, %v1631
      %v1682 = vsub.f32 %v1554, %v1634
      %v1683 = vsub.f32 %v1555, %v1637
      %v1684 = vsub.f32 %v1556, %v1640
      %v1685 = vsub.f32 %v1557, %v1643
      %v1686 = vsub.f32 %v1558, %v1646
      %v1687 = vsub.f32 %v1559, %v1649
      %v1688 = vsub.f32 %v1560, %v1652
      %v1689 = vsub.f32 %v1561, %v1655
      %v1690 = vsub.f32 %v1562, %v1658
      %v1691 = vmul.f32 %v1659, 1.442695
      %v1692 = vpow.pop %v1691
      %v1693 = vmul.f32 %v1660, 1.442695
      %v1694 = vpow.pop %v1693
      %v1695 = vmul.f32 %v1661, 1.442695
      %v1696 = vpow.pop %v1695
      %v1697 = vmul.f32 %v1662, 1.442695
      %v1698 = vpow.pop %v1697
      %v1699 = vmul.f32 %v1663, 1.442695
      %v1700 = vpow.pop %v1699
      %v1701 = vmul.f32 %v1664, 1.442695
      %v1702 = vpow.pop %v1701
      %v1703 = vmul.f32 %v1665, 1.442695
      %v1704 = vpow.pop %v1703
      %v1705 = vmul.f32 %v1666, 1.442695
      %v1706 = vpow.pop %v1705
      %v1707 = vmul.f32 %v1667, 1.442695
      %v1708 = vpow.pop %v1707
      %v1709 = vmul.f32 %v1668, 1.442695
      %v1710 = vpow.pop %v1709
      %v1711 = vmul.f32 %v1669, 1.442695
      %v1712 = vpow.pop %v1711
      %v1713 = vmul.f32 %v1670, 1.442695
      %v1714 = vpow.pop %v1713
      %v1715 = vmul.f32 %v1671, 1.442695
      %v1716 = vpow.pop %v1715
      %v1717 = vmul.f32 %v1672, 1.442695
      %v1718 = vpow.pop %v1717
      %v1719 = vmul.f32 %v1673, 1.442695
      %v1720 = vpow.pop %v1719
      %v1721 = vmul.f32 %v1674, 1.442695
      %v1722 = vpow.pop %v1721
      %v1723 = vmul.f32 %v1675, 1.442695
      %v1724 = vpow.pop %v1723
      %v1725 = vmul.f32 %v1676, 1.442695
      %v1726 = vpow.pop %v1725
      %v1727 = vmul.f32 %v1677, 1.442695
      %v1728 = vpow.pop %v1727
      %v1729 = vmul.f32 %v1678, 1.442695
      %v1730 = vpow.pop %v1729
      %v1731 = vmul.f32 %v1679, 1.442695
      %v1732 = vpow.pop %v1731
      %v1733 = vmul.f32 %v1680, 1.442695
      %v1734 = vpow.pop %v1733
      %v1735 = vmul.f32 %v1681, 1.442695
      %v1736 = vpow.pop %v1735
      %v1737 = vmul.f32 %v1682, 1.442695
      %v1738 = vpow.pop %v1737
      %v1739 = vmul.f32 %v1683, 1.442695
      %v1740 = vpow.pop %v1739
      %v1741 = vmul.f32 %v1684, 1.442695
      %v1742 = vpow.pop %v1741
      %v1743 = vmul.f32 %v1685, 1.442695
      %v1744 = vpow.pop %v1743
      %v1745 = vmul.f32 %v1686, 1.442695
      %v1746 = vpow.pop %v1745
      %v1747 = vmul.f32 %v1687, 1.442695
      %v1748 = vpow.pop %v1747
      %v1749 = vmul.f32 %v1688, 1.442695
      %v1750 = vpow.pop %v1749
      %v1751 = vmul.f32 %v1689, 1.442695
      %v1752 = vpow.pop %v1751
      %v1753 = vmul.f32 %v1690, 1.442695
      %v1754 = vpow.pop %v1753
      %v1755 = vsel %vm664, %v1692, 0.0
      %1756 = vadd.xlane.f32.xlu0 %v1755
      %v1757 = vpop.xlane.xlu0 %1756
      %v1758 = vsel %vm664, %v1694, 0.0
      %1759 = vadd.xlane.f32.xlu0 %v1758
      %v1760 = vpop.xlane.xlu0 %1759
      %v1761 = vsel %vm664, %v1696, 0.0
      %1762 = vadd.xlane.f32.xlu0 %v1761
      %v1763 = vpop.xlane.xlu0 %1762
      %v1764 = vsel %vm664, %v1698, 0.0
      %1765 = vadd.xlane.f32.xlu0 %v1764
      %v1766 = vpop.xlane.xlu0 %1765
      %v1767 = vsel %vm664, %v1700, 0.0
      %1768 = vadd.xlane.f32.xlu0 %v1767
      %v1769 = vpop.xlane.xlu0 %1768
      %v1770 = vsel %vm664, %v1702, 0.0
      %1771 = vadd.xlane.f32.xlu0 %v1770
      %v1772 = vpop.xlane.xlu0 %1771
      %v1773 = vsel %vm664, %v1704, 0.0
      %1774 = vadd.xlane.f32.xlu0 %v1773
      %v1775 = vpop.xlane.xlu0 %1774
      %v1776 = vsel %vm664, %v1706, 0.0
      %1777 = vadd.xlane.f32.xlu0 %v1776
      %v1778 = vpop.xlane.xlu0 %1777
      %v1779 = vsel %vm664, %v1708, 0.0
      %1780 = vadd.xlane.f32.xlu0 %v1779
      %v1781 = vpop.xlane.xlu0 %1780
      %v1782 = vsel %vm664, %v1710, 0.0
      %1783 = vadd.xlane.f32.xlu0 %v1782
      %v1784 = vpop.xlane.xlu0 %1783
      %v1785 = vsel %vm664, %v1712, 0.0
      %1786 = vadd.xlane.f32.xlu0 %v1785
      %v1787 = vpop.xlane.xlu0 %1786
      %v1788 = vsel %vm664, %v1714, 0.0
      %1789 = vadd.xlane.f32.xlu0 %v1788
      %v1790 = vpop.xlane.xlu0 %1789
      %v1791 = vsel %vm664, %v1716, 0.0
      %1792 = vadd.xlane.f32.xlu0 %v1791
      %v1793 = vpop.xlane.xlu0 %1792
      %v1794 = vsel %vm664, %v1718, 0.0
      %1795 = vadd.xlane.f32.xlu0 %v1794
      %v1796 = vpop.xlane.xlu0 %1795
      %v1797 = vsel %vm664, %v1720, 0.0
      %1798 = vadd.xlane.f32.xlu0 %v1797
      %v1799 = vpop.xlane.xlu0 %1798
      %v1800 = vsel %vm664, %v1722, 0.0
      %1801 = vadd.xlane.f32.xlu0 %v1800
      %v1802 = vpop.xlane.xlu0 %1801
      %v1803 = vsel %vm664, %v1724, 0.0
      %1804 = vadd.xlane.f32.xlu0 %v1803
      %v1805 = vpop.xlane.xlu0 %1804
      %v1806 = vsel %vm664, %v1726, 0.0
      %1807 = vadd.xlane.f32.xlu0 %v1806
      %v1808 = vpop.xlane.xlu0 %1807
      %v1809 = vsel %vm664, %v1728, 0.0
      %1810 = vadd.xlane.f32.xlu0 %v1809
      %v1811 = vpop.xlane.xlu0 %1810
      %v1812 = vsel %vm664, %v1730, 0.0
      %1813 = vadd.xlane.f32.xlu0 %v1812
      %v1814 = vpop.xlane.xlu0 %1813
      %v1815 = vsel %vm664, %v1732, 0.0
      %1816 = vadd.xlane.f32.xlu0 %v1815
      %v1817 = vpop.xlane.xlu0 %1816
      %v1818 = vsel %vm664, %v1734, 0.0
      %1819 = vadd.xlane.f32.xlu0 %v1818
      %v1820 = vpop.xlane.xlu0 %1819
      %v1821 = vsel %vm664, %v1736, 0.0
      %1822 = vadd.xlane.f32.xlu0 %v1821
      %v1823 = vpop.xlane.xlu0 %1822
      %v1824 = vsel %vm664, %v1738, 0.0
      %1825 = vadd.xlane.f32.xlu0 %v1824
      %v1826 = vpop.xlane.xlu0 %1825
      %v1827 = vsel %vm664, %v1740, 0.0
      %1828 = vadd.xlane.f32.xlu0 %v1827
      %v1829 = vpop.xlane.xlu0 %1828
      %v1830 = vsel %vm664, %v1742, 0.0
      %1831 = vadd.xlane.f32.xlu0 %v1830
      %v1832 = vpop.xlane.xlu0 %1831
      %v1833 = vsel %vm664, %v1744, 0.0
      %1834 = vadd.xlane.f32.xlu0 %v1833
      %v1835 = vpop.xlane.xlu0 %1834
      %v1836 = vsel %vm664, %v1746, 0.0
      %1837 = vadd.xlane.f32.xlu0 %v1836
      %v1838 = vpop.xlane.xlu0 %1837
      %v1839 = vsel %vm664, %v1748, 0.0
      %1840 = vadd.xlane.f32.xlu0 %v1839
      %v1841 = vpop.xlane.xlu0 %1840
      %v1842 = vsel %vm664, %v1750, 0.0
      %1843 = vadd.xlane.f32.xlu0 %v1842
      %v1844 = vpop.xlane.xlu0 %1843
      %v1845 = vsel %vm664, %v1752, 0.0
      %1846 = vadd.xlane.f32.xlu0 %v1845
      %v1847 = vpop.xlane.xlu0 %1846
      %v1848 = vsel %vm664, %v1754, 0.0
      %1849 = vadd.xlane.f32.xlu0 %v1848
      %v1850 = vpop.xlane.xlu0 %1849
      %v1851 = vpack.c.bf16 %v1694, %v1692
      %v1852 = vpack.c.bf16 %v1698, %v1696
      %v1853 = vpack.c.bf16 %v1702, %v1700
      %v1854 = vpack.c.bf16 %v1706, %v1704
      %v1855 = vpack.c.bf16 %v1710, %v1708
      %v1856 = vpack.c.bf16 %v1714, %v1712
      %v1857 = vpack.c.bf16 %v1718, %v1716
      %v1858 = vpack.c.bf16 %v1722, %v1720
      %v1859 = vpack.c.bf16 %v1726, %v1724
      %v1860 = vpack.c.bf16 %v1730, %v1728
      %v1861 = vpack.c.bf16 %v1734, %v1732
      %v1862 = vpack.c.bf16 %v1738, %v1736
      %v1863 = vpack.c.bf16 %v1742, %v1740
      %v1864 = vpack.c.bf16 %v1746, %v1744
      %v1865 = vpack.c.bf16 %v1750, %v1748
      %v1866 = vpack.c.bf16 %v1754, %v1752
      %1867 = vrot.lane.b32.xlu0 %v406, 48
      %v1868 = vpop.permute.xlu0 %1867
      %1869 = vrot.lane.b32.xlu0 %v407, 48
      %v1870 = vpop.permute.xlu0 %1869
      %1871 = vrot.lane.b32.xlu0 %v408, 48
      %v1872 = vpop.permute.xlu0 %1871
      %1873 = vrot.lane.b32.xlu0 %v409, 48
      %v1874 = vpop.permute.xlu0 %1873
      %v1880 = vsel %vm664, %v1851, 0
      %v1883 = vsel %vm664, %v1852, 0
      %v1886 = vsel %vm664, %v1853, 0
      %v1889 = vsel %vm664, %v1854, 0
      %v1892 = vsel %vm664, %v1855, 0
      %v1895 = vsel %vm664, %v1856, 0
      %v1898 = vsel %vm664, %v1857, 0
      %v1901 = vsel %vm664, %v1858, 0
      %v1904 = vsel %vm664, %v1859, 0
      %v1907 = vsel %vm664, %v1860, 0
      %v1910 = vsel %vm664, %v1861, 0
      %v1913 = vsel %vm664, %v1862, 0
      %v1916 = vsel %vm664, %v1863, 0
      %v1919 = vsel %vm664, %v1864, 0
      %v1922 = vsel %vm664, %v1865, 0
      %v1925 = vsel %vm664, %v1866, 0
      %1927 = vmatprep.subr.bf16.mxu0 0
      %1928 = vmatpush1.bf16.msra.mxu0 %v1868
      %1929 = vmatprep.subr.bf16.mxu0 0
      %1930 = vmatpush1.bf16.msra.mxu0 %v1870
      %1931 = vmatprep.subr.bf16.mxu0 0
      %1932 = vmatpush1.bf16.msra.mxu0 %v1872
      %1933 = vmatprep.subr.bf16.mxu0 0
      %1934 = vmatpush1.bf16.msra.mxu0 %v1874
      %1935 = vmatprep.subr.bf16.mxu0 0
      %1936 = vmatpush1.bf16.msra.mxu0 0
      %1937 = vmatprep.subr.bf16.mxu0 0
      %1938 = vmatpush1.bf16.msra.mxu0 0
      %1939 = vmatprep.subr.bf16.mxu0 0
      %1940 = vmatpush1.bf16.msra.mxu0 0
      %1941 = vmatprep.subr.bf16.mxu0 0
      %1942 = vmatpush1.bf16.msra.mxu0 0
      %1943 = vmatprep.subr.bf16.mxu0 0
      %1944 = vmatpush1.bf16.msra.mxu0 0
      %1945 = vmatprep.subr.bf16.mxu0 0
      %1946 = vmatpush1.bf16.msra.mxu0 0
      %1947 = vmatprep.subr.bf16.mxu0 0
      %1948 = vmatpush1.bf16.msra.mxu0 0
      %1949 = vmatprep.subr.bf16.mxu0 0
      %1950 = vmatpush1.bf16.msra.mxu0 0
      %1951 = vmatprep.subr.bf16.mxu0 0
      %1952 = vmatpush1.bf16.msra.mxu0 0
      %1953 = vmatprep.subr.bf16.mxu0 0
      %1954 = vmatpush1.bf16.msra.mxu0 0
      %1955 = vmatprep.subr.bf16.mxu0 0
      %1956 = vmatpush1.bf16.msra.mxu0 0
      %1957 = vmatprep.subr.bf16.mxu0 0
      %1958 = vmatpush1.bf16.msra.mxu0 0
      %1959 = vmatprep.mubr.bf16.mxu0 0
      %1960 = vmatmul.mubr.bf16.gmra.mrb[0].mxu0 %v1880
      %v1961 = vpop.f32.mrb[0].mxu0
      %v1962 = vadd.f32 0.0, %v1961
      %v1963 = vpop.f32.mrb[0].mxu0
      %v1964 = vpop.f32.mrb[0].mxu0
      %v1965 = vadd.f32 0.0, %v1964
      %v1966 = vpop.f32.mrb[0].mxu0
      %1967 = vmatprep.mubr.bf16.mxu0 0
      %1968 = vmatmul.mubr.bf16.gmra.mrb[0].mxu0 %v1883
      %v1969 = vpop.f32.mrb[0].mxu0
      %v1970 = vadd.f32 0.0, %v1969
      %v1971 = vpop.f32.mrb[0].mxu0
      %v1972 = vpop.f32.mrb[0].mxu0
      %v1973 = vadd.f32 0.0, %v1972
      %v1974 = vpop.f32.mrb[0].mxu0
      %1975 = vmatprep.mubr.bf16.mxu0 0
      %1976 = vmatmul.mubr.bf16.gmra.mrb[0].mxu0 %v1886
      %v1977 = vpop.f32.mrb[0].mxu0
      %v1978 = vadd.f32 0.0, %v1977
      %v1979 = vpop.f32.mrb[0].mxu0
      %v1980 = vpop.f32.mrb[0].mxu0
      %v1981 = vadd.f32 0.0, %v1980
      %v1982 = vpop.f32.mrb[0].mxu0
      %1983 = vmatprep.mubr.bf16.mxu0 0
      %1984 = vmatmul.mubr.bf16.gmra.mrb[0].mxu0 %v1889
      %v1985 = vpop.f32.mrb[0].mxu0
      %v1986 = vadd.f32 0.0, %v1985
      %v1987 = vpop.f32.mrb[0].mxu0
      %v1988 = vpop.f32.mrb[0].mxu0
      %v1989 = vadd.f32 0.0, %v1988
      %v1990 = vpop.f32.mrb[0].mxu0
      %1991 = vmatprep.mubr.bf16.mxu0 0
      %1992 = vmatmul.mubr.bf16.gmra.mrb[0].mxu0 %v1892
      %v1993 = vpop.f32.mrb[0].mxu0
      %v1994 = vadd.f32 0.0, %v1993
      %v1995 = vpop.f32.mrb[0].mxu0
      %v1996 = vpop.f32.mrb[0].mxu0
      %v1997 = vadd.f32 0.0, %v1996
      %v1998 = vpop.f32.mrb[0].mxu0
      %1999 = vmatprep.mubr.bf16.mxu0 0
      %2000 = vmatmul.mubr.bf16.gmra.mrb[0].mxu0 %v1895
      %v2001 = vpop.f32.mrb[0].mxu0
      %v2002 = vadd.f32 0.0, %v2001
      %v2003 = vpop.f32.mrb[0].mxu0
      %v2004 = vpop.f32.mrb[0].mxu0
      %v2005 = vadd.f32 0.0, %v2004
      %v2006 = vpop.f32.mrb[0].mxu0
      %2007 = vmatprep.mubr.bf16.mxu0 0
      %2008 = vmatmul.mubr.bf16.gmra.mrb[0].mxu0 %v1898
      %v2009 = vpop.f32.mrb[0].mxu0
      %v2010 = vadd.f32 0.0, %v2009
      %v2011 = vpop.f32.mrb[0].mxu0
      %v2012 = vpop.f32.mrb[0].mxu0
      %v2013 = vadd.f32 0.0, %v2012
      %v2014 = vpop.f32.mrb[0].mxu0
      %2015 = vmatprep.mubr.bf16.mxu0 0
      %2016 = vmatmul.mubr.bf16.gmra.mrb[0].mxu0 %v1901
      %v2017 = vpop.f32.mrb[0].mxu0
      %v2018 = vadd.f32 0.0, %v2017
      %v2019 = vpop.f32.mrb[0].mxu0
      %v2020 = vpop.f32.mrb[0].mxu0
      %v2021 = vadd.f32 0.0, %v2020
      %v2022 = vpop.f32.mrb[0].mxu0
      %2023 = vmatprep.mubr.bf16.mxu0 0
      %2024 = vmatmul.mubr.bf16.gmra.mrb[0].mxu0 %v1904
      %v2025 = vpop.f32.mrb[0].mxu0
      %v2026 = vadd.f32 0.0, %v2025
      %v2027 = vpop.f32.mrb[0].mxu0
      %v2028 = vpop.f32.mrb[0].mxu0
      %v2029 = vadd.f32 0.0, %v2028
      %v2030 = vpop.f32.mrb[0].mxu0
      %2031 = vmatprep.mubr.bf16.mxu0 0
      %2032 = vmatmul.mubr.bf16.gmra.mrb[0].mxu0 %v1907
      %v2033 = vpop.f32.mrb[0].mxu0
      %v2034 = vadd.f32 0.0, %v2033
      %v2035 = vpop.f32.mrb[0].mxu0
      %v2036 = vpop.f32.mrb[0].mxu0
      %v2037 = vadd.f32 0.0, %v2036
      %v2038 = vpop.f32.mrb[0].mxu0
      %2039 = vmatprep.mubr.bf16.mxu0 0
      %2040 = vmatmul.mubr.bf16.gmra.mrb[0].mxu0 %v1910
      %v2041 = vpop.f32.mrb[0].mxu0
      %v2042 = vadd.f32 0.0, %v2041
      %v2043 = vpop.f32.mrb[0].mxu0
      %v2044 = vpop.f32.mrb[0].mxu0
      %v2045 = vadd.f32 0.0, %v2044
      %v2046 = vpop.f32.mrb[0].mxu0
      %2047 = vmatprep.mubr.bf16.mxu0 0
      %2048 = vmatmul.mubr.bf16.gmra.mrb[0].mxu0 %v1913
      %v2049 = vpop.f32.mrb[0].mxu0
      %v2050 = vadd.f32 0.0, %v2049
      %v2051 = vpop.f32.mrb[0].mxu0
      %v2052 = vpop.f32.mrb[0].mxu0
      %v2053 = vadd.f32 0.0, %v2052
      %v2054 = vpop.f32.mrb[0].mxu0
      %2055 = vmatprep.mubr.bf16.mxu0 0
      %2056 = vmatmul.mubr.bf16.gmra.mrb[0].mxu0 %v1916
      %v2057 = vpop.f32.mrb[0].mxu0
      %v2058 = vadd.f32 0.0, %v2057
      %v2059 = vpop.f32.mrb[0].mxu0
      %v2060 = vpop.f32.mrb[0].mxu0
      %v2061 = vadd.f32 0.0, %v2060
      %v2062 = vpop.f32.mrb[0].mxu0
      %2063 = vmatprep.mubr.bf16.mxu0 0
      %2064 = vmatmul.mubr.bf16.gmra.mrb[0].mxu0 %v1919
      %v2065 = vpop.f32.mrb[0].mxu0
      %v2066 = vadd.f32 0.0, %v2065
      %v2067 = vpop.f32.mrb[0].mxu0
      %v2068 = vpop.f32.mrb[0].mxu0
      %v2069 = vadd.f32 0.0, %v2068
      %v2070 = vpop.f32.mrb[0].mxu0
      %2071 = vmatprep.mubr.bf16.mxu0 0
      %2072 = vmatmul.mubr.bf16.gmra.mrb[0].mxu0 %v1922
      %v2073 = vpop.f32.mrb[0].mxu0
      %v2074 = vadd.f32 0.0, %v2073
      %v2075 = vpop.f32.mrb[0].mxu0
      %v2076 = vpop.f32.mrb[0].mxu0
      %v2077 = vadd.f32 0.0, %v2076
      %v2078 = vpop.f32.mrb[0].mxu0
      %2079 = vmatprep.mubr.bf16.mxu0 0
      %2080 = vmatmul.mubr.bf16.gmra.mrb[0].mxu0 %v1925
      %v2081 = vpop.f32.mrb[0].mxu0
      %v2082 = vadd.f32 0.0, %v2081
      %v2083 = vpop.f32.mrb[0].mxu0
      %v2084 = vpop.f32.mrb[0].mxu0
      %v2085 = vadd.f32 0.0, %v2084
      %v2086 = vpop.f32.mrb[0].mxu0
      %2087 = vdwg.mxu0
      %v2088 = vrcp.pop %v1757
      %v2089 = vrcp.pop %v1760
      %v2090 = vrcp.pop %v1763
      %v2091 = vrcp.pop %v1766
      %v2092 = vrcp.pop %v1769
      %v2093 = vrcp.pop %v1772
      %v2094 = vrcp.pop %v1775
      %v2095 = vrcp.pop %v1778
      %v2096 = vrcp.pop %v1781
      %v2097 = vrcp.pop %v1784
      %v2098 = vrcp.pop %v1787
      %v2099 = vrcp.pop %v1790
      %v2100 = vrcp.pop %v1793
      %v2101 = vrcp.pop %v1796
      %v2102 = vrcp.pop %v1799
      %v2103 = vrcp.pop %v1802
      %v2104 = vrcp.pop %v1805
      %v2105 = vrcp.pop %v1808
      %v2106 = vrcp.pop %v1811
      %v2107 = vrcp.pop %v1814
      %v2108 = vrcp.pop %v1817
      %v2109 = vrcp.pop %v1820
      %v2110 = vrcp.pop %v1823
      %v2111 = vrcp.pop %v1826
      %v2112 = vrcp.pop %v1829
      %v2113 = vrcp.pop %v1832
      %v2114 = vrcp.pop %v1835
      %v2115 = vrcp.pop %v1838
      %v2116 = vrcp.pop %v1841
      %v2117 = vrcp.pop %v1844
      %v2118 = vrcp.pop %v1847
      %v2119 = vrcp.pop %v1850
      %v2120 = vmul.f32 %v1962, %v2088
      %v2121 = vmul.f32 %v1965, %v2089
      %v2122 = vmul.f32 %v1970, %v2090
      %v2123 = vmul.f32 %v1973, %v2091
      %v2124 = vmul.f32 %v1978, %v2092
      %v2125 = vmul.f32 %v1981, %v2093
      %v2126 = vmul.f32 %v1986, %v2094
      %v2127 = vmul.f32 %v1989, %v2095
      %v2128 = vmul.f32 %v1994, %v2096
      %v2129 = vmul.f32 %v1997, %v2097
      %v2130 = vmul.f32 %v2002, %v2098
      %v2131 = vmul.f32 %v2005, %v2099
      %v2132 = vmul.f32 %v2010, %v2100
      %v2133 = vmul.f32 %v2013, %v2101
      %v2134 = vmul.f32 %v2018, %v2102
      %v2135 = vmul.f32 %v2021, %v2103
      %v2136 = vmul.f32 %v2026, %v2104
      %v2137 = vmul.f32 %v2029, %v2105
      %v2138 = vmul.f32 %v2034, %v2106
      %v2139 = vmul.f32 %v2037, %v2107
      %v2140 = vmul.f32 %v2042, %v2108
      %v2141 = vmul.f32 %v2045, %v2109
      %v2142 = vmul.f32 %v2050, %v2110
      %v2143 = vmul.f32 %v2053, %v2111
      %v2144 = vmul.f32 %v2058, %v2112
      %v2145 = vmul.f32 %v2061, %v2113
      %v2146 = vmul.f32 %v2066, %v2114
      %v2147 = vmul.f32 %v2069, %v2115
      %v2148 = vmul.f32 %v2074, %v2116
      %v2149 = vmul.f32 %v2077, %v2117
      %v2150 = vmul.f32 %v2082, %v2118
      %v2151 = vmul.f32 %v2085, %v2119
      %v2152 = vpack.c.bf16 %v2121, %v2120
      %v2153 = vpack.c.bf16 %v2123, %v2122
      %v2154 = vpack.c.bf16 %v2125, %v2124
      %v2155 = vpack.c.bf16 %v2127, %v2126
      %v2156 = vpack.c.bf16 %v2129, %v2128
      %v2157 = vpack.c.bf16 %v2131, %v2130
      %v2158 = vpack.c.bf16 %v2133, %v2132
      %v2159 = vpack.c.bf16 %v2135, %v2134
      %v2160 = vpack.c.bf16 %v2137, %v2136
      %v2161 = vpack.c.bf16 %v2139, %v2138
      %v2162 = vpack.c.bf16 %v2141, %v2140
      %v2163 = vpack.c.bf16 %v2143, %v2142
      %v2164 = vpack.c.bf16 %v2145, %v2144
      %v2165 = vpack.c.bf16 %v2147, %v2146
      %v2166 = vpack.c.bf16 %v2149, %v2148
      %v2167 = vpack.c.bf16 %v2151, %v2150
      %v2169 = vsel %vm410, %v2152, 0
      %v2172 = vsel %vm410, %v2153, 0
      %v2175 = vsel %vm410, %v2154, 0
      %v2178 = vsel %vm410, %v2155, 0
      %v2181 = vsel %vm410, %v2156, 0
      %v2184 = vsel %vm410, %v2157, 0
      %v2187 = vsel %vm410, %v2158, 0
      %v2190 = vsel %vm410, %v2159, 0
      %v2193 = vsel %vm410, %v2160, 0
      %v2196 = vsel %vm410, %v2161, 0
      %v2199 = vsel %vm410, %v2162, 0
      %v2202 = vsel %vm410, %v2163, 0
      %v2205 = vsel %vm410, %v2164, 0
      %v2208 = vsel %vm410, %v2165, 0
      %v2211 = vsel %vm410, %v2166, 0
      %v2214 = vsel %vm410, %v2167, 0
      %2216 = vmatprep.subr.bf16.mxu0 0
      %2217 = vmatpush1.bf16.msra.mxu0 %v307
      %2218 = vmatprep.subr.bf16.mxu0 0
      %2219 = vmatpush1.bf16.msra.mxu0 0
      %2220 = vmatprep.subr.bf16.mxu0 0
      %2221 = vmatpush1.bf16.msra.mxu0 0
      %2222 = vmatprep.subr.bf16.mxu0 0
      %2223 = vmatpush1.bf16.msra.mxu0 0
      %2224 = vmatprep.subr.bf16.mxu0 0
      %2225 = vmatpush1.bf16.msra.mxu0 0
      %2226 = vmatprep.subr.bf16.mxu0 0
      %2227 = vmatpush1.bf16.msra.mxu0 0
      %2228 = vmatprep.subr.bf16.mxu0 0
      %2229 = vmatpush1.bf16.msra.mxu0 0
      %2230 = vmatprep.subr.bf16.mxu0 0
      %2231 = vmatpush1.bf16.msra.mxu0 0
      %2232 = vmatprep.subr.bf16.mxu0 0
      %2233 = vmatpush1.bf16.msra.mxu0 0
      %2234 = vmatprep.subr.bf16.mxu0 0
      %2235 = vmatpush1.bf16.msra.mxu0 0
      %2236 = vmatprep.subr.bf16.mxu0 0
      %2237 = vmatpush1.bf16.msra.mxu0 0
      %2238 = vmatprep.subr.bf16.mxu0 0
      %2239 = vmatpush1.bf16.msra.mxu0 0
      %2240 = vmatprep.subr.bf16.mxu0 0
      %2241 = vmatpush1.bf16.msra.mxu0 0
      %2242 = vmatprep.subr.bf16.mxu0 0
      %2243 = vmatpush1.bf16.msra.mxu0 0
      %2244 = vmatprep.subr.bf16.mxu0 0
      %2245 = vmatpush1.bf16.msra.mxu0 0
      %2246 = vmatprep.subr.bf16.mxu0 0
      %2247 = vmatpush1.bf16.msra.mxu0 0
      %2248 = vmatprep.mubr.bf16.mxu0 0
      %2249 = vmatmul.mubr.bf16.gmra.mrb[0].mxu0 %v2169
      %v2250 = vpop.f32.mrb[0].mxu0
      %v2251 = vadd.f32 0.0, %v2250
      %v2252 = vpop.f32.mrb[0].mxu0
      %v2253 = vpop.f32.mrb[0].mxu0
      %v2254 = vadd.f32 0.0, %v2253
      %v2255 = vpop.f32.mrb[0].mxu0
      %2256 = vmatprep.mubr.bf16.mxu0 0
      %2257 = vmatmul.mubr.bf16.gmra.mrb[0].mxu0 %v2172
      %v2258 = vpop.f32.mrb[0].mxu0
      %v2259 = vadd.f32 0.0, %v2258
      %v2260 = vpop.f32.mrb[0].mxu0
      %v2261 = vpop.f32.mrb[0].mxu0
      %v2262 = vadd.f32 0.0, %v2261
      %v2263 = vpop.f32.mrb[0].mxu0
      %2264 = vmatprep.mubr.bf16.mxu0 0
      %2265 = vmatmul.mubr.bf16.gmra.mrb[0].mxu0 %v2175
      %v2266 = vpop.f32.mrb[0].mxu0
      %v2267 = vadd.f32 0.0, %v2266
      %v2268 = vpop.f32.mrb[0].mxu0
      %v2269 = vpop.f32.mrb[0].mxu0
      %v2270 = vadd.f32 0.0, %v2269
      %v2271 = vpop.f32.mrb[0].mxu0
      %2272 = vmatprep.mubr.bf16.mxu0 0
      %2273 = vmatmul.mubr.bf16.gmra.mrb[0].mxu0 %v2178
      %v2274 = vpop.f32.mrb[0].mxu0
      %v2275 = vadd.f32 0.0, %v2274
      %v2276 = vpop.f32.mrb[0].mxu0
      %v2277 = vpop.f32.mrb[0].mxu0
      %v2278 = vadd.f32 0.0, %v2277
      %v2279 = vpop.f32.mrb[0].mxu0
      %2280 = vmatprep.mubr.bf16.mxu0 0
      %2281 = vmatmul.mubr.bf16.gmra.mrb[0].mxu0 %v2181
      %v2282 = vpop.f32.mrb[0].mxu0
      %v2283 = vadd.f32 0.0, %v2282
      %v2284 = vpop.f32.mrb[0].mxu0
      %v2285 = vpop.f32.mrb[0].mxu0
      %v2286 = vadd.f32 0.0, %v2285
      %v2287 = vpop.f32.mrb[0].mxu0
      %2288 = vmatprep.mubr.bf16.mxu0 0
      %2289 = vmatmul.mubr.bf16.gmra.mrb[0].mxu0 %v2184
      %v2290 = vpop.f32.mrb[0].mxu0
      %v2291 = vadd.f32 0.0, %v2290
      %v2292 = vpop.f32.mrb[0].mxu0
      %v2293 = vpop.f32.mrb[0].mxu0
      %v2294 = vadd.f32 0.0, %v2293
      %v2295 = vpop.f32.mrb[0].mxu0
      %2296 = vmatprep.mubr.bf16.mxu0 0
      %2297 = vmatmul.mubr.bf16.gmra.mrb[0].mxu0 %v2187
      %v2298 = vpop.f32.mrb[0].mxu0
      %v2299 = vadd.f32 0.0, %v2298
      %v2300 = vpop.f32.mrb[0].mxu0
      %v2301 = vpop.f32.mrb[0].mxu0
      %v2302 = vadd.f32 0.0, %v2301
      %v2303 = vpop.f32.mrb[0].mxu0
      %2304 = vmatprep.mubr.bf16.mxu0 0
      %2305 = vmatmul.mubr.bf16.gmra.mrb[0].mxu0 %v2190
      %v2306 = vpop.f32.mrb[0].mxu0
      %v2307 = vadd.f32 0.0, %v2306
      %v2308 = vpop.f32.mrb[0].mxu0
      %v2309 = vpop.f32.mrb[0].mxu0
      %v2310 = vadd.f32 0.0, %v2309
      %v2311 = vpop.f32.mrb[0].mxu0
      %2312 = vmatprep.mubr.bf16.mxu0 0
      %2313 = vmatmul.mubr.bf16.gmra.mrb[0].mxu0 %v2193
      %v2314 = vpop.f32.mrb[0].mxu0
      %v2315 = vadd.f32 0.0, %v2314
      %v2316 = vpop.f32.mrb[0].mxu0
      %v2317 = vpop.f32.mrb[0].mxu0
      %v2318 = vadd.f32 0.0, %v2317
      %v2319 = vpop.f32.mrb[0].mxu0
      %2320 = vmatprep.mubr.bf16.mxu0 0
      %2321 = vmatmul.mubr.bf16.gmra.mrb[0].mxu0 %v2196
      %v2322 = vpop.f32.mrb[0].mxu0
      %v2323 = vadd.f32 0.0, %v2322
      %v2324 = vpop.f32.mrb[0].mxu0
      %v2325 = vpop.f32.mrb[0].mxu0
      %v2326 = vadd.f32 0.0, %v2325
      %v2327 = vpop.f32.mrb[0].mxu0
      %2328 = vmatprep.mubr.bf16.mxu0 0
      %2329 = vmatmul.mubr.bf16.gmra.mrb[0].mxu0 %v2199
      %v2330 = vpop.f32.mrb[0].mxu0
      %v2331 = vadd.f32 0.0, %v2330
      %v2332 = vpop.f32.mrb[0].mxu0
      %v2333 = vpop.f32.mrb[0].mxu0
      %v2334 = vadd.f32 0.0, %v2333
      %v2335 = vpop.f32.mrb[0].mxu0
      %2336 = vmatprep.mubr.bf16.mxu0 0
      %2337 = vmatmul.mubr.bf16.gmra.mrb[0].mxu0 %v2202
      %v2338 = vpop.f32.mrb[0].mxu0
      %v2339 = vadd.f32 0.0, %v2338
      %v2340 = vpop.f32.mrb[0].mxu0
      %v2341 = vpop.f32.mrb[0].mxu0
      %v2342 = vadd.f32 0.0, %v2341
      %v2343 = vpop.f32.mrb[0].mxu0
      %2344 = vmatprep.mubr.bf16.mxu0 0
      %2345 = vmatmul.mubr.bf16.gmra.mrb[0].mxu0 %v2205
      %v2346 = vpop.f32.mrb[0].mxu0
      %v2347 = vadd.f32 0.0, %v2346
      %v2348 = vpop.f32.mrb[0].mxu0
      %v2349 = vpop.f32.mrb[0].mxu0
      %v2350 = vadd.f32 0.0, %v2349
      %v2351 = vpop.f32.mrb[0].mxu0
      %2352 = vmatprep.mubr.bf16.mxu0 0
      %2353 = vmatmul.mubr.bf16.gmra.mrb[0].mxu0 %v2208
      %v2354 = vpop.f32.mrb[0].mxu0
      %v2355 = vadd.f32 0.0, %v2354
      %v2356 = vpop.f32.mrb[0].mxu0
      %v2357 = vpop.f32.mrb[0].mxu0
      %v2358 = vadd.f32 0.0, %v2357
      %v2359 = vpop.f32.mrb[0].mxu0
      %2360 = vmatprep.mubr.bf16.mxu0 0
      %2361 = vmatmul.mubr.bf16.gmra.mrb[0].mxu0 %v2211
      %v2362 = vpop.f32.mrb[0].mxu0
      %v2363 = vadd.f32 0.0, %v2362
      %v2364 = vpop.f32.mrb[0].mxu0
      %v2365 = vpop.f32.mrb[0].mxu0
      %v2366 = vadd.f32 0.0, %v2365
      %v2367 = vpop.f32.mrb[0].mxu0
      %2368 = vmatprep.mubr.bf16.mxu0 0
      %2369 = vmatmul.mubr.bf16.gmra.mrb[0].mxu0 %v2214
      %v2370 = vpop.f32.mrb[0].mxu0
      %v2371 = vadd.f32 0.0, %v2370
      %v2372 = vpop.f32.mrb[0].mxu0
      %v2373 = vpop.f32.mrb[0].mxu0
      %v2374 = vadd.f32 0.0, %v2373
      %v2375 = vpop.f32.mrb[0].mxu0
      %2376 = vdwg.mxu0
      %v2378 = vsel %vm410, %v1254, 0
      %v2381 = vsel %vm410, %v1255, 0
      %v2384 = vsel %vm410, %v1256, 0
      %v2387 = vsel %vm410, %v1257, 0
      %v2390 = vsel %vm410, %v1258, 0
      %v2393 = vsel %vm410, %v1259, 0
      %v2396 = vsel %vm410, %v1260, 0
      %v2399 = vsel %vm410, %v1261, 0
      %v2402 = vsel %vm410, %v1262, 0
      %v2405 = vsel %vm410, %v1263, 0
      %v2408 = vsel %vm410, %v1264, 0
      %v2411 = vsel %vm410, %v1265, 0
      %v2414 = vsel %vm410, %v1266, 0
      %v2417 = vsel %vm410, %v1267, 0
      %v2420 = vsel %vm410, %v1268, 0
      %v2423 = vsel %vm410, %v1269, 0
      %2425 = vmatprep.subr.bf16.mxu0 0
      %2426 = vmatpush1.bf16.msra.mxu0 %v306
      %2427 = vmatprep.subr.bf16.mxu0 0
      %2428 = vmatpush1.bf16.msra.mxu0 0
      %2429 = vmatprep.subr.bf16.mxu0 0
      %2430 = vmatpush1.bf16.msra.mxu0 0
      %2431 = vmatprep.subr.bf16.mxu0 0
      %2432 = vmatpush1.bf16.msra.mxu0 0
      %2433 = vmatprep.subr.bf16.mxu0 0
      %2434 = vmatpush1.bf16.msra.mxu0 0
      %2435 = vmatprep.subr.bf16.mxu0 0
      %2436 = vmatpush1.bf16.msra.mxu0 0
      %2437 = vmatprep.subr.bf16.mxu0 0
      %2438 = vmatpush1.bf16.msra.mxu0 0
      %2439 = vmatprep.subr.bf16.mxu0 0
      %2440 = vmatpush1.bf16.msra.mxu0 0
      %2441 = vmatprep.subr.bf16.mxu0 0
      %2442 = vmatpush1.bf16.msra.mxu0 0
      %2443 = vmatprep.subr.bf16.mxu0 0
      %2444 = vmatpush1.bf16.msra.mxu0 0
      %2445 = vmatprep.subr.bf16.mxu0 0
      %2446 = vmatpush1.bf16.msra.mxu0 0
      %2447 = vmatprep.subr.bf16.mxu0 0
      %2448 = vmatpush1.bf16.msra.mxu0 0
      %2449 = vmatprep.subr.bf16.mxu0 0
      %2450 = vmatpush1.bf16.msra.mxu0 0
      %2451 = vmatprep.subr.bf16.mxu0 0
      %2452 = vmatpush1.bf16.msra.mxu0 0
      %2453 = vmatprep.subr.bf16.mxu0 0
      %2454 = vmatpush1.bf16.msra.mxu0 0
      %2455 = vmatprep.subr.bf16.mxu0 0
      %2456 = vmatpush1.bf16.msra.mxu0 0
      %2457 = vmatprep.mubr.bf16.mxu0 0
      %2458 = vmatmul.mubr.bf16.gmra.mrb[0].mxu0 %v2378
      %v2459 = vpop.f32.mrb[0].mxu0
      %v2460 = vadd.f32 %v2251, %v2459
      %v2461 = vpop.f32.mrb[0].mxu0
      %v2462 = vpop.f32.mrb[0].mxu0
      %v2463 = vadd.f32 %v2254, %v2462
      %v2464 = vpop.f32.mrb[0].mxu0
      %2465 = vmatprep.mubr.bf16.mxu0 0
      %2466 = vmatmul.mubr.bf16.gmra.mrb[0].mxu0 %v2381
      %v2467 = vpop.f32.mrb[0].mxu0
      %v2468 = vadd.f32 %v2259, %v2467
      %v2469 = vpop.f32.mrb[0].mxu0
      %v2470 = vpop.f32.mrb[0].mxu0
      %v2471 = vadd.f32 %v2262, %v2470
      %v2472 = vpop.f32.mrb[0].mxu0
      %2473 = vmatprep.mubr.bf16.mxu0 0
      %2474 = vmatmul.mubr.bf16.gmra.mrb[0].mxu0 %v2384
      %v2475 = vpop.f32.mrb[0].mxu0
      %v2476 = vadd.f32 %v2267, %v2475
      %v2477 = vpop.f32.mrb[0].mxu0
      %v2478 = vpop.f32.mrb[0].mxu0
      %v2479 = vadd.f32 %v2270, %v2478
      %v2480 = vpop.f32.mrb[0].mxu0
      %2481 = vmatprep.mubr.bf16.mxu0 0
      %2482 = vmatmul.mubr.bf16.gmra.mrb[0].mxu0 %v2387
      %v2483 = vpop.f32.mrb[0].mxu0
      %v2484 = vadd.f32 %v2275, %v2483
      %v2485 = vpop.f32.mrb[0].mxu0
      %v2486 = vpop.f32.mrb[0].mxu0
      %v2487 = vadd.f32 %v2278, %v2486
      %v2488 = vpop.f32.mrb[0].mxu0
      %2489 = vmatprep.mubr.bf16.mxu0 0
      %2490 = vmatmul.mubr.bf16.gmra.mrb[0].mxu0 %v2390
      %v2491 = vpop.f32.mrb[0].mxu0
      %v2492 = vadd.f32 %v2283, %v2491
      %v2493 = vpop.f32.mrb[0].mxu0
      %v2494 = vpop.f32.mrb[0].mxu0
      %v2495 = vadd.f32 %v2286, %v2494
      %v2496 = vpop.f32.mrb[0].mxu0
      %2497 = vmatprep.mubr.bf16.mxu0 0
      %2498 = vmatmul.mubr.bf16.gmra.mrb[0].mxu0 %v2393
      %v2499 = vpop.f32.mrb[0].mxu0
      %v2500 = vadd.f32 %v2291, %v2499
      %v2501 = vpop.f32.mrb[0].mxu0
      %v2502 = vpop.f32.mrb[0].mxu0
      %v2503 = vadd.f32 %v2294, %v2502
      %v2504 = vpop.f32.mrb[0].mxu0
      %2505 = vmatprep.mubr.bf16.mxu0 0
      %2506 = vmatmul.mubr.bf16.gmra.mrb[0].mxu0 %v2396
      %v2507 = vpop.f32.mrb[0].mxu0
      %v2508 = vadd.f32 %v2299, %v2507
      %v2509 = vpop.f32.mrb[0].mxu0
      %v2510 = vpop.f32.mrb[0].mxu0
      %v2511 = vadd.f32 %v2302, %v2510
      %v2512 = vpop.f32.mrb[0].mxu0
      %2513 = vmatprep.mubr.bf16.mxu0 0
      %2514 = vmatmul.mubr.bf16.gmra.mrb[0].mxu0 %v2399
      %v2515 = vpop.f32.mrb[0].mxu0
      %v2516 = vadd.f32 %v2307, %v2515
      %v2517 = vpop.f32.mrb[0].mxu0
      %v2518 = vpop.f32.mrb[0].mxu0
      %v2519 = vadd.f32 %v2310, %v2518
      %v2520 = vpop.f32.mrb[0].mxu0
      %2521 = vmatprep.mubr.bf16.mxu0 0
      %2522 = vmatmul.mubr.bf16.gmra.mrb[0].mxu0 %v2402
      %v2523 = vpop.f32.mrb[0].mxu0
      %v2524 = vadd.f32 %v2315, %v2523
      %v2525 = vpop.f32.mrb[0].mxu0
      %v2526 = vpop.f32.mrb[0].mxu0
      %v2527 = vadd.f32 %v2318, %v2526
      %v2528 = vpop.f32.mrb[0].mxu0
      %2529 = vmatprep.mubr.bf16.mxu0 0
      %2530 = vmatmul.mubr.bf16.gmra.mrb[0].mxu0 %v2405
      %v2531 = vpop.f32.mrb[0].mxu0
      %v2532 = vadd.f32 %v2323, %v2531
      %v2533 = vpop.f32.mrb[0].mxu0
      %v2534 = vpop.f32.mrb[0].mxu0
      %v2535 = vadd.f32 %v2326, %v2534
      %v2536 = vpop.f32.mrb[0].mxu0
      %2537 = vmatprep.mubr.bf16.mxu0 0
      %2538 = vmatmul.mubr.bf16.gmra.mrb[0].mxu0 %v2408
      %v2539 = vpop.f32.mrb[0].mxu0
      %v2540 = vadd.f32 %v2331, %v2539
      %v2541 = vpop.f32.mrb[0].mxu0
      %v2542 = vpop.f32.mrb[0].mxu0
      %v2543 = vadd.f32 %v2334, %v2542
      %v2544 = vpop.f32.mrb[0].mxu0
      %2545 = vmatprep.mubr.bf16.mxu0 0
      %2546 = vmatmul.mubr.bf16.gmra.mrb[0].mxu0 %v2411
      %v2547 = vpop.f32.mrb[0].mxu0
      %v2548 = vadd.f32 %v2339, %v2547
      %v2549 = vpop.f32.mrb[0].mxu0
      %v2550 = vpop.f32.mrb[0].mxu0
      %v2551 = vadd.f32 %v2342, %v2550
      %v2552 = vpop.f32.mrb[0].mxu0
      %2553 = vmatprep.mubr.bf16.mxu0 0
      %2554 = vmatmul.mubr.bf16.gmra.mrb[0].mxu0 %v2414
      %v2555 = vpop.f32.mrb[0].mxu0
      %v2556 = vadd.f32 %v2347, %v2555
      %v2557 = vpop.f32.mrb[0].mxu0
      %v2558 = vpop.f32.mrb[0].mxu0
      %v2559 = vadd.f32 %v2350, %v2558
      %v2560 = vpop.f32.mrb[0].mxu0
      %2561 = vmatprep.mubr.bf16.mxu0 0
      %2562 = vmatmul.mubr.bf16.gmra.mrb[0].mxu0 %v2417
      %v2563 = vpop.f32.mrb[0].mxu0
      %v2564 = vadd.f32 %v2355, %v2563
      %v2565 = vpop.f32.mrb[0].mxu0
      %v2566 = vpop.f32.mrb[0].mxu0
      %v2567 = vadd.f32 %v2358, %v2566
      %v2568 = vpop.f32.mrb[0].mxu0
      %2569 = vmatprep.mubr.bf16.mxu0 0
      %2570 = vmatmul.mubr.bf16.gmra.mrb[0].mxu0 %v2420
      %v2571 = vpop.f32.mrb[0].mxu0
      %v2572 = vadd.f32 %v2363, %v2571
      %v2573 = vpop.f32.mrb[0].mxu0
      %v2574 = vpop.f32.mrb[0].mxu0
      %v2575 = vadd.f32 %v2366, %v2574
      %v2576 = vpop.f32.mrb[0].mxu0
      %2577 = vmatprep.mubr.bf16.mxu0 0
      %2578 = vmatmul.mubr.bf16.gmra.mrb[0].mxu0 %v2423
      %v2579 = vpop.f32.mrb[0].mxu0
      %v2580 = vadd.f32 %v2371, %v2579
      %v2581 = vpop.f32.mrb[0].mxu0
      %v2582 = vpop.f32.mrb[0].mxu0
      %v2583 = vadd.f32 %v2374, %v2582
      %v2584 = vpop.f32.mrb[0].mxu0
      %2585 = vdwg.mxu0
      %2586 = vrot.lane.b32.xlu0 %v374, 96
      %v2587 = vpop.permute.xlu0 %2586
      %2588 = vrot.lane.b32.xlu0 %v375, 96
      %v2589 = vpop.permute.xlu0 %2588
      %2590 = vrot.lane.b32.xlu0 %v376, 96
      %v2591 = vpop.permute.xlu0 %2590
      %2592 = vrot.lane.b32.xlu0 %v377, 96
      %v2593 = vpop.permute.xlu0 %2592
      %2594 = vrot.lane.b32.xlu0 %v378, 96
      %v2595 = vpop.permute.xlu0 %2594
      %2596 = vrot.lane.b32.xlu0 %v379, 96
      %v2597 = vpop.permute.xlu0 %2596
      %2598 = vrot.lane.b32.xlu0 %v380, 96
      %v2599 = vpop.permute.xlu0 %2598
      %2600 = vrot.lane.b32.xlu0 %v381, 96
      %v2601 = vpop.permute.xlu0 %2600
      %2602 = vrot.lane.b32.xlu0 %v382, 96
      %v2603 = vpop.permute.xlu0 %2602
      %2604 = vrot.lane.b32.xlu0 %v383, 96
      %v2605 = vpop.permute.xlu0 %2604
      %2606 = vrot.lane.b32.xlu0 %v384, 96
      %v2607 = vpop.permute.xlu0 %2606
      %2608 = vrot.lane.b32.xlu0 %v385, 96
      %v2609 = vpop.permute.xlu0 %2608
      %2610 = vrot.lane.b32.xlu0 %v386, 96
      %v2611 = vpop.permute.xlu0 %2610
      %2612 = vrot.lane.b32.xlu0 %v387, 96
      %v2613 = vpop.permute.xlu0 %2612
      %2614 = vrot.lane.b32.xlu0 %v388, 96
      %v2615 = vpop.permute.xlu0 %2614
      %2616 = vrot.lane.b32.xlu0 %v389, 96
      %v2617 = vpop.permute.xlu0 %2616
      %2618 = vrot.lane.b32.xlu0 %v406, 96
      %v2619 = vpop.permute.xlu0 %2618
      %2620 = vrot.lane.b32.xlu0 %v407, 96
      %v2621 = vpop.permute.xlu0 %2620
      %2622 = vrot.lane.b32.xlu0 %v408, 96
      %v2623 = vpop.permute.xlu0 %2622
      %2624 = vrot.lane.b32.xlu0 %v409, 96
      %v2625 = vpop.permute.xlu0 %2624
      %v2627 = vsel %vm410, %v2587, 0
      %v2630 = vsel %vm410, %v2589, 0
      %v2633 = vsel %vm410, %v2591, 0
      %v2636 = vsel %vm410, %v2593, 0
      %v2639 = vsel %vm410, %v2595, 0
      %v2642 = vsel %vm410, %v2597, 0
      %v2645 = vsel %vm410, %v2599, 0
      %v2648 = vsel %vm410, %v2601, 0
      %v2651 = vsel %vm410, %v2603, 0
      %v2654 = vsel %vm410, %v2605, 0
      %v2657 = vsel %vm410, %v2607, 0
      %v2660 = vsel %vm410, %v2609, 0
      %v2663 = vsel %vm410, %v2611, 0
      %v2666 = vsel %vm410, %v2613, 0
      %v2669 = vsel %vm410, %v2615, 0
      %v2672 = vsel %vm410, %v2617, 0
      %v2675 = vsel %vm410, %v2619, 0
      %v2678 = vsel %vm410, %v2621, 0
      %v2681 = vsel %vm410, %v2623, 0
      %v2684 = vsel %vm410, %v2625, 0
      %2686 = vmatprep.subr.bf16.mxu0 0
      %2687 = vmatpush1.bf16.xpose.msra.mxu0 %v2675
      %2688 = vmatprep.subr.bf16.mxu0 0
      %2689 = vmatpush1.bf16.xpose.msra.mxu0 %v2678
      %2690 = vmatprep.subr.bf16.mxu0 0
      %2691 = vmatpush1.bf16.xpose.msra.mxu0 %v2681
      %2692 = vmatprep.subr.bf16.mxu0 0
      %2693 = vmatpush1.bf16.xpose.msra.mxu0 %v2684
      %2694 = vmatprep.subr.bf16.mxu0 0
      %2695 = vmatpush1.bf16.xpose.msra.mxu0 0
      %2696 = vmatprep.subr.bf16.mxu0 0
      %2697 = vmatpush1.bf16.xpose.msra.mxu0 0
      %2698 = vmatprep.subr.bf16.mxu0 0
      %2699 = vmatpush1.bf16.xpose.msra.mxu0 0
      %2700 = vmatprep.subr.bf16.mxu0 0
      %2701 = vmatpush1.bf16.xpose.msra.mxu0 0
      %2702 = vmatprep.subr.bf16.mxu0 0
      %2703 = vmatpush1.bf16.xpose.msra.mxu0 0
      %2704 = vmatprep.subr.bf16.mxu0 0
      %2705 = vmatpush1.bf16.xpose.msra.mxu0 0
      %2706 = vmatprep.subr.bf16.mxu0 0
      %2707 = vmatpush1.bf16.xpose.msra.mxu0 0
      %2708 = vmatprep.subr.bf16.mxu0 0
      %2709 = vmatpush1.bf16.xpose.msra.mxu0 0
      %2710 = vmatprep.subr.bf16.mxu0 0
      %2711 = vmatpush1.bf16.xpose.msra.mxu0 0
      %2712 = vmatprep.subr.bf16.mxu0 0
      %2713 = vmatpush1.bf16.xpose.msra.mxu0 0
      %2714 = vmatprep.subr.bf16.mxu0 0
      %2715 = vmatpush1.bf16.xpose.msra.mxu0 0
      %2716 = vmatprep.subr.bf16.mxu0 0
      %2717 = vmatpush1.bf16.xpose.msra.mxu0 0
      %2718 = vmatprep.mubr.bf16.mxu0 0
      %2719 = vmatmul.mubr.bf16.gmra.mrb[0].mxu0 %v2627
      %v2720 = vpop.f32.mrb[0].mxu0
      %v2721 = vadd.f32 0.0, %v2720
      %v2722 = vpop.f32.mrb[0].mxu0
      %v2723 = vpop.f32.mrb[0].mxu0
      %v2724 = vadd.f32 0.0, %v2723
      %v2725 = vpop.f32.mrb[0].mxu0
      %2726 = vmatprep.mubr.bf16.mxu0 0
      %2727 = vmatmul.mubr.bf16.gmra.mrb[0].mxu0 %v2630
      %v2728 = vpop.f32.mrb[0].mxu0
      %v2729 = vadd.f32 0.0, %v2728
      %v2730 = vpop.f32.mrb[0].mxu0
      %v2731 = vpop.f32.mrb[0].mxu0
      %v2732 = vadd.f32 0.0, %v2731
      %v2733 = vpop.f32.mrb[0].mxu0
      %2734 = vmatprep.mubr.bf16.mxu0 0
      %2735 = vmatmul.mubr.bf16.gmra.mrb[0].mxu0 %v2633
      %v2736 = vpop.f32.mrb[0].mxu0
      %v2737 = vadd.f32 0.0, %v2736
      %v2738 = vpop.f32.mrb[0].mxu0
      %v2739 = vpop.f32.mrb[0].mxu0
      %v2740 = vadd.f32 0.0, %v2739
      %v2741 = vpop.f32.mrb[0].mxu0
      %2742 = vmatprep.mubr.bf16.mxu0 0
      %2743 = vmatmul.mubr.bf16.gmra.mrb[0].mxu0 %v2636
      %v2744 = vpop.f32.mrb[0].mxu0
      %v2745 = vadd.f32 0.0, %v2744
      %v2746 = vpop.f32.mrb[0].mxu0
      %v2747 = vpop.f32.mrb[0].mxu0
      %v2748 = vadd.f32 0.0, %v2747
      %v2749 = vpop.f32.mrb[0].mxu0
      %2750 = vmatprep.mubr.bf16.mxu0 0
      %2751 = vmatmul.mubr.bf16.gmra.mrb[0].mxu0 %v2639
      %v2752 = vpop.f32.mrb[0].mxu0
      %v2753 = vadd.f32 0.0, %v2752
      %v2754 = vpop.f32.mrb[0].mxu0
      %v2755 = vpop.f32.mrb[0].mxu0
      %v2756 = vadd.f32 0.0, %v2755
      %v2757 = vpop.f32.mrb[0].mxu0
      %2758 = vmatprep.mubr.bf16.mxu0 0
      %2759 = vmatmul.mubr.bf16.gmra.mrb[0].mxu0 %v2642
      %v2760 = vpop.f32.mrb[0].mxu0
      %v2761 = vadd.f32 0.0, %v2760
      %v2762 = vpop.f32.mrb[0].mxu0
      %v2763 = vpop.f32.mrb[0].mxu0
      %v2764 = vadd.f32 0.0, %v2763
      %v2765 = vpop.f32.mrb[0].mxu0
      %2766 = vmatprep.mubr.bf16.mxu0 0
      %2767 = vmatmul.mubr.bf16.gmra.mrb[0].mxu0 %v2645
      %v2768 = vpop.f32.mrb[0].mxu0
      %v2769 = vadd.f32 0.0, %v2768
      %v2770 = vpop.f32.mrb[0].mxu0
      %v2771 = vpop.f32.mrb[0].mxu0
      %v2772 = vadd.f32 0.0, %v2771
      %v2773 = vpop.f32.mrb[0].mxu0
      %2774 = vmatprep.mubr.bf16.mxu0 0
      %2775 = vmatmul.mubr.bf16.gmra.mrb[0].mxu0 %v2648
      %v2776 = vpop.f32.mrb[0].mxu0
      %v2777 = vadd.f32 0.0, %v2776
      %v2778 = vpop.f32.mrb[0].mxu0
      %v2779 = vpop.f32.mrb[0].mxu0
      %v2780 = vadd.f32 0.0, %v2779
      %v2781 = vpop.f32.mrb[0].mxu0
      %2782 = vmatprep.mubr.bf16.mxu0 0
      %2783 = vmatmul.mubr.bf16.gmra.mrb[0].mxu0 %v2651
      %v2784 = vpop.f32.mrb[0].mxu0
      %v2785 = vadd.f32 0.0, %v2784
      %v2786 = vpop.f32.mrb[0].mxu0
      %v2787 = vpop.f32.mrb[0].mxu0
      %v2788 = vadd.f32 0.0, %v2787
      %v2789 = vpop.f32.mrb[0].mxu0
      %2790 = vmatprep.mubr.bf16.mxu0 0
      %2791 = vmatmul.mubr.bf16.gmra.mrb[0].mxu0 %v2654
      %v2792 = vpop.f32.mrb[0].mxu0
      %v2793 = vadd.f32 0.0, %v2792
      %v2794 = vpop.f32.mrb[0].mxu0
      %v2795 = vpop.f32.mrb[0].mxu0
      %v2796 = vadd.f32 0.0, %v2795
      %v2797 = vpop.f32.mrb[0].mxu0
      %2798 = vmatprep.mubr.bf16.mxu0 0
      %2799 = vmatmul.mubr.bf16.gmra.mrb[0].mxu0 %v2657
      %v2800 = vpop.f32.mrb[0].mxu0
      %v2801 = vadd.f32 0.0, %v2800
      %v2802 = vpop.f32.mrb[0].mxu0
      %v2803 = vpop.f32.mrb[0].mxu0
      %v2804 = vadd.f32 0.0, %v2803
      %v2805 = vpop.f32.mrb[0].mxu0
      %2806 = vmatprep.mubr.bf16.mxu0 0
      %2807 = vmatmul.mubr.bf16.gmra.mrb[0].mxu0 %v2660
      %v2808 = vpop.f32.mrb[0].mxu0
      %v2809 = vadd.f32 0.0, %v2808
      %v2810 = vpop.f32.mrb[0].mxu0
      %v2811 = vpop.f32.mrb[0].mxu0
      %v2812 = vadd.f32 0.0, %v2811
      %v2813 = vpop.f32.mrb[0].mxu0
      %2814 = vmatprep.mubr.bf16.mxu0 0
      %2815 = vmatmul.mubr.bf16.gmra.mrb[0].mxu0 %v2663
      %v2816 = vpop.f32.mrb[0].mxu0
      %v2817 = vadd.f32 0.0, %v2816
      %v2818 = vpop.f32.mrb[0].mxu0
      %v2819 = vpop.f32.mrb[0].mxu0
      %v2820 = vadd.f32 0.0, %v2819
      %v2821 = vpop.f32.mrb[0].mxu0
      %2822 = vmatprep.mubr.bf16.mxu0 0
      %2823 = vmatmul.mubr.bf16.gmra.mrb[0].mxu0 %v2666
      %v2824 = vpop.f32.mrb[0].mxu0
      %v2825 = vadd.f32 0.0, %v2824
      %v2826 = vpop.f32.mrb[0].mxu0
      %v2827 = vpop.f32.mrb[0].mxu0
      %v2828 = vadd.f32 0.0, %v2827
      %v2829 = vpop.f32.mrb[0].mxu0
      %2830 = vmatprep.mubr.bf16.mxu0 0
      %2831 = vmatmul.mubr.bf16.gmra.mrb[0].mxu0 %v2669
      %v2832 = vpop.f32.mrb[0].mxu0
      %v2833 = vadd.f32 0.0, %v2832
      %v2834 = vpop.f32.mrb[0].mxu0
      %v2835 = vpop.f32.mrb[0].mxu0
      %v2836 = vadd.f32 0.0, %v2835
      %v2837 = vpop.f32.mrb[0].mxu0
      %2838 = vmatprep.mubr.bf16.mxu0 0
      %2839 = vmatmul.mubr.bf16.gmra.mrb[0].mxu0 %v2672
      %v2840 = vpop.f32.mrb[0].mxu0
      %v2841 = vadd.f32 0.0, %v2840
      %v2842 = vpop.f32.mrb[0].mxu0
      %v2843 = vpop.f32.mrb[0].mxu0
      %v2844 = vadd.f32 0.0, %v2843
      %v2845 = vpop.f32.mrb[0].mxu0
      %2846 = vdwg.mxu0
      %v2847 = vmul.f32 %v2721, 0.25
      %v2848 = vmul.f32 %v2724, 0.25
      %v2849 = vmul.f32 %v2729, 0.25
      %v2850 = vmul.f32 %v2732, 0.25
      %v2851 = vmul.f32 %v2737, 0.25
      %v2852 = vmul.f32 %v2740, 0.25
      %v2853 = vmul.f32 %v2745, 0.25
      %v2854 = vmul.f32 %v2748, 0.25
      %v2855 = vmul.f32 %v2753, 0.25
      %v2856 = vmul.f32 %v2756, 0.25
      %v2857 = vmul.f32 %v2761, 0.25
      %v2858 = vmul.f32 %v2764, 0.25
      %v2859 = vmul.f32 %v2769, 0.25
      %v2860 = vmul.f32 %v2772, 0.25
      %v2861 = vmul.f32 %v2777, 0.25
      %v2862 = vmul.f32 %v2780, 0.25
      %v2863 = vmul.f32 %v2785, 0.25
      %v2864 = vmul.f32 %v2788, 0.25
      %v2865 = vmul.f32 %v2793, 0.25
      %v2866 = vmul.f32 %v2796, 0.25
      %v2867 = vmul.f32 %v2801, 0.25
      %v2868 = vmul.f32 %v2804, 0.25
      %v2869 = vmul.f32 %v2809, 0.25
      %v2870 = vmul.f32 %v2812, 0.25
      %v2871 = vmul.f32 %v2817, 0.25
      %v2872 = vmul.f32 %v2820, 0.25
      %v2873 = vmul.f32 %v2825, 0.25
      %v2874 = vmul.f32 %v2828, 0.25
      %v2875 = vmul.f32 %v2833, 0.25
      %v2876 = vmul.f32 %v2836, 0.25
      %v2877 = vmul.f32 %v2841, 0.25
      %v2878 = vmul.f32 %v2844, 0.25
      %v2879 = vsel %vm664, %v2847, -inf
      %2880 = vmax.xlane.f32.xlu0 %v2879
      %v2881 = vpop.xlane.xlu0 %2880
      %v2882 = vsel %vm664, %v2848, -inf
      %2883 = vmax.xlane.f32.xlu0 %v2882
      %v2884 = vpop.xlane.xlu0 %2883
      %v2885 = vsel %vm664, %v2849, -inf
      %2886 = vmax.xlane.f32.xlu0 %v2885
      %v2887 = vpop.xlane.xlu0 %2886
      %v2888 = vsel %vm664, %v2850, -inf
      %2889 = vmax.xlane.f32.xlu0 %v2888
      %v2890 = vpop.xlane.xlu0 %2889
      %v2891 = vsel %vm664, %v2851, -inf
      %2892 = vmax.xlane.f32.xlu0 %v2891
      %v2893 = vpop.xlane.xlu0 %2892
      %v2894 = vsel %vm664, %v2852, -inf
      %2895 = vmax.xlane.f32.xlu0 %v2894
      %v2896 = vpop.xlane.xlu0 %2895
      %v2897 = vsel %vm664, %v2853, -inf
      %2898 = vmax.xlane.f32.xlu0 %v2897
      %v2899 = vpop.xlane.xlu0 %2898
      %v2900 = vsel %vm664, %v2854, -inf
      %2901 = vmax.xlane.f32.xlu0 %v2900
      %v2902 = vpop.xlane.xlu0 %2901
      %v2903 = vsel %vm664, %v2855, -inf
      %2904 = vmax.xlane.f32.xlu0 %v2903
      %v2905 = vpop.xlane.xlu0 %2904
      %v2906 = vsel %vm664, %v2856, -inf
      %2907 = vmax.xlane.f32.xlu0 %v2906
      %v2908 = vpop.xlane.xlu0 %2907
      %v2909 = vsel %vm664, %v2857, -inf
      %2910 = vmax.xlane.f32.xlu0 %v2909
      %v2911 = vpop.xlane.xlu0 %2910
      %v2912 = vsel %vm664, %v2858, -inf
      %2913 = vmax.xlane.f32.xlu0 %v2912
      %v2914 = vpop.xlane.xlu0 %2913
      %v2915 = vsel %vm664, %v2859, -inf
      %2916 = vmax.xlane.f32.xlu0 %v2915
      %v2917 = vpop.xlane.xlu0 %2916
      %v2918 = vsel %vm664, %v2860, -inf
      %2919 = vmax.xlane.f32.xlu0 %v2918
      %v2920 = vpop.xlane.xlu0 %2919
      %v2921 = vsel %vm664, %v2861, -inf
      %2922 = vmax.xlane.f32.xlu0 %v2921
      %v2923 = vpop.xlane.xlu0 %2922
      %v2924 = vsel %vm664, %v2862, -inf
      %2925 = vmax.xlane.f32.xlu0 %v2924
      %v2926 = vpop.xlane.xlu0 %2925
      %v2927 = vsel %vm664, %v2863, -inf
      %2928 = vmax.xlane.f32.xlu0 %v2927
      %v2929 = vpop.xlane.xlu0 %2928
      %v2930 = vsel %vm664, %v2864, -inf
      %2931 = vmax.xlane.f32.xlu0 %v2930
      %v2932 = vpop.xlane.xlu0 %2931
      %v2933 = vsel %vm664, %v2865, -inf
      %2934 = vmax.xlane.f32.xlu0 %v2933
      %v2935 = vpop.xlane.xlu0 %2934
      %v2936 = vsel %vm664, %v2866, -inf
      %2937 = vmax.xlane.f32.xlu0 %v2936
      %v2938 = vpop.xlane.xlu0 %2937
      %v2939 = vsel %vm664, %v2867, -inf
      %2940 = vmax.xlane.f32.xlu0 %v2939
      %v2941 = vpop.xlane.xlu0 %2940
      %v2942 = vsel %vm664, %v2868, -inf
      %2943 = vmax.xlane.f32.xlu0 %v2942
      %v2944 = vpop.xlane.xlu0 %2943
      %v2945 = vsel %vm664, %v2869, -inf
      %2946 = vmax.xlane.f32.xlu0 %v2945
      %v2947 = vpop.xlane.xlu0 %2946
      %v2948 = vsel %vm664, %v2870, -inf
      %2949 = vmax.xlane.f32.xlu0 %v2948
      %v2950 = vpop.xlane.xlu0 %2949
      %v2951 = vsel %vm664, %v2871, -inf
      %2952 = vmax.xlane.f32.xlu0 %v2951
      %v2953 = vpop.xlane.xlu0 %2952
      %v2954 = vsel %vm664, %v2872, -inf
      %2955 = vmax.xlane.f32.xlu0 %v2954
      %v2956 = vpop.xlane.xlu0 %2955
      %v2957 = vsel %vm664, %v2873, -inf
      %2958 = vmax.xlane.f32.xlu0 %v2957
      %v2959 = vpop.xlane.xlu0 %2958
      %v2960 = vsel %vm664, %v2874, -inf
      %2961 = vmax.xlane.f32.xlu0 %v2960
      %v2962 = vpop.xlane.xlu0 %2961
      %v2963 = vsel %vm664, %v2875, -inf
      %2964 = vmax.xlane.f32.xlu0 %v2963
      %v2965 = vpop.xlane.xlu0 %2964
      %v2966 = vsel %vm664, %v2876, -inf
      %2967 = vmax.xlane.f32.xlu0 %v2966
      %v2968 = vpop.xlane.xlu0 %2967
      %v2969 = vsel %vm664, %v2877, -inf
      %2970 = vmax.xlane.f32.xlu0 %v2969
      %v2971 = vpop.xlane.xlu0 %2970
      %v2972 = vsel %vm664, %v2878, -inf
      %2973 = vmax.xlane.f32.xlu0 %v2972
      %v2974 = vpop.xlane.xlu0 %2973
      %v2975 = vsub.f32 %v2847, %v2881
      %v2976 = vsub.f32 %v2848, %v2884
      %v2977 = vsub.f32 %v2849, %v2887
      %v2978 = vsub.f32 %v2850, %v2890
      %v2979 = vsub.f32 %v2851, %v2893
      %v2980 = vsub.f32 %v2852, %v2896
      %v2981 = vsub.f32 %v2853, %v2899
      %v2982 = vsub.f32 %v2854, %v2902
      %v2983 = vsub.f32 %v2855, %v2905
      %v2984 = vsub.f32 %v2856, %v2908
      %v2985 = vsub.f32 %v2857, %v2911
      %v2986 = vsub.f32 %v2858, %v2914
      %v2987 = vsub.f32 %v2859, %v2917
      %v2988 = vsub.f32 %v2860, %v2920
      %v2989 = vsub.f32 %v2861, %v2923
      %v2990 = vsub.f32 %v2862, %v2926
      %v2991 = vsub.f32 %v2863, %v2929
      %v2992 = vsub.f32 %v2864, %v2932
      %v2993 = vsub.f32 %v2865, %v2935
      %v2994 = vsub.f32 %v2866, %v2938
      %v2995 = vsub.f32 %v2867, %v2941
      %v2996 = vsub.f32 %v2868, %v2944
      %v2997 = vsub.f32 %v2869, %v2947
      %v2998 = vsub.f32 %v2870, %v2950
      %v2999 = vsub.f32 %v2871, %v2953
      %v3000 = vsub.f32 %v2872, %v2956
      %v3001 = vsub.f32 %v2873, %v2959
      %v3002 = vsub.f32 %v2874, %v2962
      %v3003 = vsub.f32 %v2875, %v2965
      %v3004 = vsub.f32 %v2876, %v2968
      %v3005 = vsub.f32 %v2877, %v2971
      %v3006 = vsub.f32 %v2878, %v2974
      %v3007 = vmul.f32 %v2975, 1.442695
      %v3008 = vpow.pop %v3007
      %v3009 = vmul.f32 %v2976, 1.442695
      %v3010 = vpow.pop %v3009
      %v3011 = vmul.f32 %v2977, 1.442695
      %v3012 = vpow.pop %v3011
      %v3013 = vmul.f32 %v2978, 1.442695
      %v3014 = vpow.pop %v3013
      %v3015 = vmul.f32 %v2979, 1.442695
      %v3016 = vpow.pop %v3015
      %v3017 = vmul.f32 %v2980, 1.442695
      %v3018 = vpow.pop %v3017
      %v3019 = vmul.f32 %v2981, 1.442695
      %v3020 = vpow.pop %v3019
      %v3021 = vmul.f32 %v2982, 1.442695
      %v3022 = vpow.pop %v3021
      %v3023 = vmul.f32 %v2983, 1.442695
      %v3024 = vpow.pop %v3023
      %v3025 = vmul.f32 %v2984, 1.442695
      %v3026 = vpow.pop %v3025
      %v3027 = vmul.f32 %v2985, 1.442695
      %v3028 = vpow.pop %v3027
      %v3029 = vmul.f32 %v2986, 1.442695
      %v3030 = vpow.pop %v3029
      %v3031 = vmul.f32 %v2987, 1.442695
      %v3032 = vpow.pop %v3031
      %v3033 = vmul.f32 %v2988, 1.442695
      %v3034 = vpow.pop %v3033
      %v3035 = vmul.f32 %v2989, 1.442695
      %v3036 = vpow.pop %v3035
      %v3037 = vmul.f32 %v2990, 1.442695
      %v3038 = vpow.pop %v3037
      %v3039 = vmul.f32 %v2991, 1.442695
      %v3040 = vpow.pop %v3039
      %v3041 = vmul.f32 %v2992, 1.442695
      %v3042 = vpow.pop %v3041
      %v3043 = vmul.f32 %v2993, 1.442695
      %v3044 = vpow.pop %v3043
      %v3045 = vmul.f32 %v2994, 1.442695
      %v3046 = vpow.pop %v3045
      %v3047 = vmul.f32 %v2995, 1.442695
      %v3048 = vpow.pop %v3047
      %v3049 = vmul.f32 %v2996, 1.442695
      %v3050 = vpow.pop %v3049
      %v3051 = vmul.f32 %v2997, 1.442695
      %v3052 = vpow.pop %v3051
      %v3053 = vmul.f32 %v2998, 1.442695
      %v3054 = vpow.pop %v3053
      %v3055 = vmul.f32 %v2999, 1.442695
      %v3056 = vpow.pop %v3055
      %v3057 = vmul.f32 %v3000, 1.442695
      %v3058 = vpow.pop %v3057
      %v3059 = vmul.f32 %v3001, 1.442695
      %v3060 = vpow.pop %v3059
      %v3061 = vmul.f32 %v3002, 1.442695
      %v3062 = vpow.pop %v3061
      %v3063 = vmul.f32 %v3003, 1.442695
      %v3064 = vpow.pop %v3063
      %v3065 = vmul.f32 %v3004, 1.442695
      %v3066 = vpow.pop %v3065
      %v3067 = vmul.f32 %v3005, 1.442695
      %v3068 = vpow.pop %v3067
      %v3069 = vmul.f32 %v3006, 1.442695
      %v3070 = vpow.pop %v3069
      %v3071 = vsel %vm664, %v3008, 0.0
      %3072 = vadd.xlane.f32.xlu0 %v3071
      %v3073 = vpop.xlane.xlu0 %3072
      %v3074 = vsel %vm664, %v3010, 0.0
      %3075 = vadd.xlane.f32.xlu0 %v3074
      %v3076 = vpop.xlane.xlu0 %3075
      %v3077 = vsel %vm664, %v3012, 0.0
      %3078 = vadd.xlane.f32.xlu0 %v3077
      %v3079 = vpop.xlane.xlu0 %3078
      %v3080 = vsel %vm664, %v3014, 0.0
      %3081 = vadd.xlane.f32.xlu0 %v3080
      %v3082 = vpop.xlane.xlu0 %3081
      %v3083 = vsel %vm664, %v3016, 0.0
      %3084 = vadd.xlane.f32.xlu0 %v3083
      %v3085 = vpop.xlane.xlu0 %3084
      %v3086 = vsel %vm664, %v3018, 0.0
      %3087 = vadd.xlane.f32.xlu0 %v3086
      %v3088 = vpop.xlane.xlu0 %3087
      %v3089 = vsel %vm664, %v3020, 0.0
      %3090 = vadd.xlane.f32.xlu0 %v3089
      %v3091 = vpop.xlane.xlu0 %3090
      %v3092 = vsel %vm664, %v3022, 0.0
      %3093 = vadd.xlane.f32.xlu0 %v3092
      %v3094 = vpop.xlane.xlu0 %3093
      %v3095 = vsel %vm664, %v3024, 0.0
      %3096 = vadd.xlane.f32.xlu0 %v3095
      %v3097 = vpop.xlane.xlu0 %3096
      %v3098 = vsel %vm664, %v3026, 0.0
      %3099 = vadd.xlane.f32.xlu0 %v3098
      %v3100 = vpop.xlane.xlu0 %3099
      %v3101 = vsel %vm664, %v3028, 0.0
      %3102 = vadd.xlane.f32.xlu0 %v3101
      %v3103 = vpop.xlane.xlu0 %3102
      %v3104 = vsel %vm664, %v3030, 0.0
      %3105 = vadd.xlane.f32.xlu0 %v3104
      %v3106 = vpop.xlane.xlu0 %3105
      %v3107 = vsel %vm664, %v3032, 0.0
      %3108 = vadd.xlane.f32.xlu0 %v3107
      %v3109 = vpop.xlane.xlu0 %3108
      %v3110 = vsel %vm664, %v3034, 0.0
      %3111 = vadd.xlane.f32.xlu0 %v3110
      %v3112 = vpop.xlane.xlu0 %3111
      %v3113 = vsel %vm664, %v3036, 0.0
      %3114 = vadd.xlane.f32.xlu0 %v3113
      %v3115 = vpop.xlane.xlu0 %3114
      %v3116 = vsel %vm664, %v3038, 0.0
      %3117 = vadd.xlane.f32.xlu0 %v3116
      %v3118 = vpop.xlane.xlu0 %3117
      %v3119 = vsel %vm664, %v3040, 0.0
      %3120 = vadd.xlane.f32.xlu0 %v3119
      %v3121 = vpop.xlane.xlu0 %3120
      %v3122 = vsel %vm664, %v3042, 0.0
      %3123 = vadd.xlane.f32.xlu0 %v3122
      %v3124 = vpop.xlane.xlu0 %3123
      %v3125 = vsel %vm664, %v3044, 0.0
      %3126 = vadd.xlane.f32.xlu0 %v3125
      %v3127 = vpop.xlane.xlu0 %3126
      %v3128 = vsel %vm664, %v3046, 0.0
      %3129 = vadd.xlane.f32.xlu0 %v3128
      %v3130 = vpop.xlane.xlu0 %3129
      %v3131 = vsel %vm664, %v3048, 0.0
      %3132 = vadd.xlane.f32.xlu0 %v3131
      %v3133 = vpop.xlane.xlu0 %3132
      %v3134 = vsel %vm664, %v3050, 0.0
      %3135 = vadd.xlane.f32.xlu0 %v3134
      %v3136 = vpop.xlane.xlu0 %3135
      %v3137 = vsel %vm664, %v3052, 0.0
      %3138 = vadd.xlane.f32.xlu0 %v3137
      %v3139 = vpop.xlane.xlu0 %3138
      %v3140 = vsel %vm664, %v3054, 0.0
      %3141 = vadd.xlane.f32.xlu0 %v3140
      %v3142 = vpop.xlane.xlu0 %3141
      %v3143 = vsel %vm664, %v3056, 0.0
      %3144 = vadd.xlane.f32.xlu0 %v3143
      %v3145 = vpop.xlane.xlu0 %3144
      %v3146 = vsel %vm664, %v3058, 0.0
      %3147 = vadd.xlane.f32.xlu0 %v3146
      %v3148 = vpop.xlane.xlu0 %3147
      %v3149 = vsel %vm664, %v3060, 0.0
      %3150 = vadd.xlane.f32.xlu0 %v3149
      %v3151 = vpop.xlane.xlu0 %3150
      %v3152 = vsel %vm664, %v3062, 0.0
      %3153 = vadd.xlane.f32.xlu0 %v3152
      %v3154 = vpop.xlane.xlu0 %3153
      %v3155 = vsel %vm664, %v3064, 0.0
      %3156 = vadd.xlane.f32.xlu0 %v3155
      %v3157 = vpop.xlane.xlu0 %3156
      %v3158 = vsel %vm664, %v3066, 0.0
      %3159 = vadd.xlane.f32.xlu0 %v3158
      %v3160 = vpop.xlane.xlu0 %3159
      %v3161 = vsel %vm664, %v3068, 0.0
      %3162 = vadd.xlane.f32.xlu0 %v3161
      %v3163 = vpop.xlane.xlu0 %3162
      %v3164 = vsel %vm664, %v3070, 0.0
      %3165 = vadd.xlane.f32.xlu0 %v3164
      %v3166 = vpop.xlane.xlu0 %3165
      %v3167 = vpack.c.bf16 %v3010, %v3008
      %v3168 = vpack.c.bf16 %v3014, %v3012
      %v3169 = vpack.c.bf16 %v3018, %v3016
      %v3170 = vpack.c.bf16 %v3022, %v3020
      %v3171 = vpack.c.bf16 %v3026, %v3024
      %v3172 = vpack.c.bf16 %v3030, %v3028
      %v3173 = vpack.c.bf16 %v3034, %v3032
      %v3174 = vpack.c.bf16 %v3038, %v3036
      %v3175 = vpack.c.bf16 %v3042, %v3040
      %v3176 = vpack.c.bf16 %v3046, %v3044
      %v3177 = vpack.c.bf16 %v3050, %v3048
      %v3178 = vpack.c.bf16 %v3054, %v3052
      %v3179 = vpack.c.bf16 %v3058, %v3056
      %v3180 = vpack.c.bf16 %v3062, %v3060
      %v3181 = vpack.c.bf16 %v3066, %v3064
      %v3182 = vpack.c.bf16 %v3070, %v3068
      %3183 = vrot.lane.b32.xlu0 %v406, 32
      %v3184 = vpop.permute.xlu0 %3183
      %3185 = vrot.lane.b32.xlu0 %v407, 32
      %v3186 = vpop.permute.xlu0 %3185
      %3187 = vrot.lane.b32.xlu0 %v408, 32
      %v3188 = vpop.permute.xlu0 %3187
      %3189 = vrot.lane.b32.xlu0 %v409, 32
      %v3190 = vpop.permute.xlu0 %3189
      %v3196 = vsel %vm664, %v3167, 0
      %v3199 = vsel %vm664, %v3168, 0
      %v3202 = vsel %vm664, %v3169, 0
      %v3205 = vsel %vm664, %v3170, 0
      %v3208 = vsel %vm664, %v3171, 0
      %v3211 = vsel %vm664, %v3172, 0
      %v3214 = vsel %vm664, %v3173, 0
      %v3217 = vsel %vm664, %v3174, 0
      %v3220 = vsel %vm664, %v3175, 0
      %v3223 = vsel %vm664, %v3176, 0
      %v3226 = vsel %vm664, %v3177, 0
      %v3229 = vsel %vm664, %v3178, 0
      %v3232 = vsel %vm664, %v3179, 0
      %v3235 = vsel %vm664, %v3180, 0
      %v3238 = vsel %vm664, %v3181, 0
      %v3241 = vsel %vm664, %v3182, 0
      %3243 = vmatprep.subr.bf16.mxu0 0
      %3244 = vmatpush1.bf16.msra.mxu0 %v3184
      %3245 = vmatprep.subr.bf16.mxu0 0
      %3246 = vmatpush1.bf16.msra.mxu0 %v3186
      %3247 = vmatprep.subr.bf16.mxu0 0
      %3248 = vmatpush1.bf16.msra.mxu0 %v3188
      %3249 = vmatprep.subr.bf16.mxu0 0
      %3250 = vmatpush1.bf16.msra.mxu0 %v3190
      %3251 = vmatprep.subr.bf16.mxu0 0
      %3252 = vmatpush1.bf16.msra.mxu0 0
      %3253 = vmatprep.subr.bf16.mxu0 0
      %3254 = vmatpush1.bf16.msra.mxu0 0
      %3255 = vmatprep.subr.bf16.mxu0 0
      %3256 = vmatpush1.bf16.msra.mxu0 0
      %3257 = vmatprep.subr.bf16.mxu0 0
      %3258 = vmatpush1.bf16.msra.mxu0 0
      %3259 = vmatprep.subr.bf16.mxu0 0
      %3260 = vmatpush1.bf16.msra.mxu0 0
      %3261 = vmatprep.subr.bf16.mxu0 0
      %3262 = vmatpush1.bf16.msra.mxu0 0
      %3263 = vmatprep.subr.bf16.mxu0 0
      %3264 = vmatpush1.bf16.msra.mxu0 0
      %3265 = vmatprep.subr.bf16.mxu0 0
      %3266 = vmatpush1.bf16.msra.mxu0 0
      %3267 = vmatprep.subr.bf16.mxu0 0
      %3268 = vmatpush1.bf16.msra.mxu0 0
      %3269 = vmatprep.subr.bf16.mxu0 0
      %3270 = vmatpush1.bf16.msra.mxu0 0
      %3271 = vmatprep.subr.bf16.mxu0 0
      %3272 = vmatpush1.bf16.msra.mxu0 0
      %3273 = vmatprep.subr.bf16.mxu0 0
      %3274 = vmatpush1.bf16.msra.mxu0 0
      %3275 = vmatprep.mubr.bf16.mxu0 0
      %3276 = vmatmul.mubr.bf16.gmra.mrb[0].mxu0 %v3196
      %v3277 = vpop.f32.mrb[0].mxu0
      %v3278 = vadd.f32 0.0, %v3277
      %v3279 = vpop.f32.mrb[0].mxu0
      %v3280 = vpop.f32.mrb[0].mxu0
      %v3281 = vadd.f32 0.0, %v3280
      %v3282 = vpop.f32.mrb[0].mxu0
      %3283 = vmatprep.mubr.bf16.mxu0 0
      %3284 = vmatmul.mubr.bf16.gmra.mrb[0].mxu0 %v3199
      %v3285 = vpop.f32.mrb[0].mxu0
      %v3286 = vadd.f32 0.0, %v3285
      %v3287 = vpop.f32.mrb[0].mxu0
      %v3288 = vpop.f32.mrb[0].mxu0
      %v3289 = vadd.f32 0.0, %v3288
      %v3290 = vpop.f32.mrb[0].mxu0
      %3291 = vmatprep.mubr.bf16.mxu0 0
      %3292 = vmatmul.mubr.bf16.gmra.mrb[0].mxu0 %v3202
      %v3293 = vpop.f32.mrb[0].mxu0
      %v3294 = vadd.f32 0.0, %v3293
      %v3295 = vpop.f32.mrb[0].mxu0
      %v3296 = vpop.f32.mrb[0].mxu0
      %v3297 = vadd.f32 0.0, %v3296
      %v3298 = vpop.f32.mrb[0].mxu0
      %3299 = vmatprep.mubr.bf16.mxu0 0
      %3300 = vmatmul.mubr.bf16.gmra.mrb[0].mxu0 %v3205
      %v3301 = vpop.f32.mrb[0].mxu0
      %v3302 = vadd.f32 0.0, %v3301
      %v3303 = vpop.f32.mrb[0].mxu0
      %v3304 = vpop.f32.mrb[0].mxu0
      %v3305 = vadd.f32 0.0, %v3304
      %v3306 = vpop.f32.mrb[0].mxu0
      %3307 = vmatprep.mubr.bf16.mxu0 0
      %3308 = vmatmul.mubr.bf16.gmra.mrb[0].mxu0 %v3208
      %v3309 = vpop.f32.mrb[0].mxu0
      %v3310 = vadd.f32 0.0, %v3309
      %v3311 = vpop.f32.mrb[0].mxu0
      %v3312 = vpop.f32.mrb[0].mxu0
      %v3313 = vadd.f32 0.0, %v3312
      %v3314 = vpop.f32.mrb[0].mxu0
      %3315 = vmatprep.mubr.bf16.mxu0 0
      %3316 = vmatmul.mubr.bf16.gmra.mrb[0].mxu0 %v3211
      %v3317 = vpop.f32.mrb[0].mxu0
      %v3318 = vadd.f32 0.0, %v3317
      %v3319 = vpop.f32.mrb[0].mxu0
      %v3320 = vpop.f32.mrb[0].mxu0
      %v3321 = vadd.f32 0.0, %v3320
      %v3322 = vpop.f32.mrb[0].mxu0
      %3323 = vmatprep.mubr.bf16.mxu0 0
      %3324 = vmatmul.mubr.bf16.gmra.mrb[0].mxu0 %v3214
      %v3325 = vpop.f32.mrb[0].mxu0
      %v3326 = vadd.f32 0.0, %v3325
      %v3327 = vpop.f32.mrb[0].mxu0
      %v3328 = vpop.f32.mrb[0].mxu0
      %v3329 = vadd.f32 0.0, %v3328
      %v3330 = vpop.f32.mrb[0].mxu0
      %3331 = vmatprep.mubr.bf16.mxu0 0
      %3332 = vmatmul.mubr.bf16.gmra.mrb[0].mxu0 %v3217
      %v3333 = vpop.f32.mrb[0].mxu0
      %v3334 = vadd.f32 0.0, %v3333
      %v3335 = vpop.f32.mrb[0].mxu0
      %v3336 = vpop.f32.mrb[0].mxu0
      %v3337 = vadd.f32 0.0, %v3336
      %v3338 = vpop.f32.mrb[0].mxu0
      %3339 = vmatprep.mubr.bf16.mxu0 0
      %3340 = vmatmul.mubr.bf16.gmra.mrb[0].mxu0 %v3220
      %v3341 = vpop.f32.mrb[0].mxu0
      %v3342 = vadd.f32 0.0, %v3341
      %v3343 = vpop.f32.mrb[0].mxu0
      %v3344 = vpop.f32.mrb[0].mxu0
      %v3345 = vadd.f32 0.0, %v3344
      %v3346 = vpop.f32.mrb[0].mxu0
      %3347 = vmatprep.mubr.bf16.mxu0 0
      %3348 = vmatmul.mubr.bf16.gmra.mrb[0].mxu0 %v3223
      %v3349 = vpop.f32.mrb[0].mxu0
      %v3350 = vadd.f32 0.0, %v3349
      %v3351 = vpop.f32.mrb[0].mxu0
      %v3352 = vpop.f32.mrb[0].mxu0
      %v3353 = vadd.f32 0.0, %v3352
      %v3354 = vpop.f32.mrb[0].mxu0
      %3355 = vmatprep.mubr.bf16.mxu0 0
      %3356 = vmatmul.mubr.bf16.gmra.mrb[0].mxu0 %v3226
      %v3357 = vpop.f32.mrb[0].mxu0
      %v3358 = vadd.f32 0.0, %v3357
      %v3359 = vpop.f32.mrb[0].mxu0
      %v3360 = vpop.f32.mrb[0].mxu0
      %v3361 = vadd.f32 0.0, %v3360
      %v3362 = vpop.f32.mrb[0].mxu0
      %3363 = vmatprep.mubr.bf16.mxu0 0
      %3364 = vmatmul.mubr.bf16.gmra.mrb[0].mxu0 %v3229
      %v3365 = vpop.f32.mrb[0].mxu0
      %v3366 = vadd.f32 0.0, %v3365
      %v3367 = vpop.f32.mrb[0].mxu0
      %v3368 = vpop.f32.mrb[0].mxu0
      %v3369 = vadd.f32 0.0, %v3368
      %v3370 = vpop.f32.mrb[0].mxu0
      %3371 = vmatprep.mubr.bf16.mxu0 0
      %3372 = vmatmul.mubr.bf16.gmra.mrb[0].mxu0 %v3232
      %v3373 = vpop.f32.mrb[0].mxu0
      %v3374 = vadd.f32 0.0, %v3373
      %v3375 = vpop.f32.mrb[0].mxu0
      %v3376 = vpop.f32.mrb[0].mxu0
      %v3377 = vadd.f32 0.0, %v3376
      %v3378 = vpop.f32.mrb[0].mxu0
      %3379 = vmatprep.mubr.bf16.mxu0 0
      %3380 = vmatmul.mubr.bf16.gmra.mrb[0].mxu0 %v3235
      %v3381 = vpop.f32.mrb[0].mxu0
      %v3382 = vadd.f32 0.0, %v3381
      %v3383 = vpop.f32.mrb[0].mxu0
      %v3384 = vpop.f32.mrb[0].mxu0
      %v3385 = vadd.f32 0.0, %v3384
      %v3386 = vpop.f32.mrb[0].mxu0
      %3387 = vmatprep.mubr.bf16.mxu0 0
      %3388 = vmatmul.mubr.bf16.gmra.mrb[0].mxu0 %v3238
      %v3389 = vpop.f32.mrb[0].mxu0
      %v3390 = vadd.f32 0.0, %v3389
      %v3391 = vpop.f32.mrb[0].mxu0
      %v3392 = vpop.f32.mrb[0].mxu0
      %v3393 = vadd.f32 0.0, %v3392
      %v3394 = vpop.f32.mrb[0].mxu0
      %3395 = vmatprep.mubr.bf16.mxu0 0
      %3396 = vmatmul.mubr.bf16.gmra.mrb[0].mxu0 %v3241
      %v3397 = vpop.f32.mrb[0].mxu0
      %v3398 = vadd.f32 0.0, %v3397
      %v3399 = vpop.f32.mrb[0].mxu0
      %v3400 = vpop.f32.mrb[0].mxu0
      %v3401 = vadd.f32 0.0, %v3400
      %v3402 = vpop.f32.mrb[0].mxu0
      %3403 = vdwg.mxu0
      %v3404 = vrcp.pop %v3073
      %v3405 = vrcp.pop %v3076
      %v3406 = vrcp.pop %v3079
      %v3407 = vrcp.pop %v3082
      %v3408 = vrcp.pop %v3085
      %v3409 = vrcp.pop %v3088
      %v3410 = vrcp.pop %v3091
      %v3411 = vrcp.pop %v3094
      %v3412 = vrcp.pop %v3097
      %v3413 = vrcp.pop %v3100
      %v3414 = vrcp.pop %v3103
      %v3415 = vrcp.pop %v3106
      %v3416 = vrcp.pop %v3109
      %v3417 = vrcp.pop %v3112
      %v3418 = vrcp.pop %v3115
      %v3419 = vrcp.pop %v3118
      %v3420 = vrcp.pop %v3121
      %v3421 = vrcp.pop %v3124
      %v3422 = vrcp.pop %v3127
      %v3423 = vrcp.pop %v3130
      %v3424 = vrcp.pop %v3133
      %v3425 = vrcp.pop %v3136
      %v3426 = vrcp.pop %v3139
      %v3427 = vrcp.pop %v3142
      %v3428 = vrcp.pop %v3145
      %v3429 = vrcp.pop %v3148
      %v3430 = vrcp.pop %v3151
      %v3431 = vrcp.pop %v3154
      %v3432 = vrcp.pop %v3157
      %v3433 = vrcp.pop %v3160
      %v3434 = vrcp.pop %v3163
      %v3435 = vrcp.pop %v3166
      %v3436 = vmul.f32 %v3278, %v3404
      %v3437 = vmul.f32 %v3281, %v3405
      %v3438 = vmul.f32 %v3286, %v3406
      %v3439 = vmul.f32 %v3289, %v3407
      %v3440 = vmul.f32 %v3294, %v3408
      %v3441 = vmul.f32 %v3297, %v3409
      %v3442 = vmul.f32 %v3302, %v3410
      %v3443 = vmul.f32 %v3305, %v3411
      %v3444 = vmul.f32 %v3310, %v3412
      %v3445 = vmul.f32 %v3313, %v3413
      %v3446 = vmul.f32 %v3318, %v3414
      %v3447 = vmul.f32 %v3321, %v3415
      %v3448 = vmul.f32 %v3326, %v3416
      %v3449 = vmul.f32 %v3329, %v3417
      %v3450 = vmul.f32 %v3334, %v3418
      %v3451 = vmul.f32 %v3337, %v3419
      %v3452 = vmul.f32 %v3342, %v3420
      %v3453 = vmul.f32 %v3345, %v3421
      %v3454 = vmul.f32 %v3350, %v3422
      %v3455 = vmul.f32 %v3353, %v3423
      %v3456 = vmul.f32 %v3358, %v3424
      %v3457 = vmul.f32 %v3361, %v3425
      %v3458 = vmul.f32 %v3366, %v3426
      %v3459 = vmul.f32 %v3369, %v3427
      %v3460 = vmul.f32 %v3374, %v3428
      %v3461 = vmul.f32 %v3377, %v3429
      %v3462 = vmul.f32 %v3382, %v3430
      %v3463 = vmul.f32 %v3385, %v3431
      %v3464 = vmul.f32 %v3390, %v3432
      %v3465 = vmul.f32 %v3393, %v3433
      %v3466 = vmul.f32 %v3398, %v3434
      %v3467 = vmul.f32 %v3401, %v3435
      %v3468 = vpack.c.bf16 %v3437, %v3436
      %v3469 = vpack.c.bf16 %v3439, %v3438
      %v3470 = vpack.c.bf16 %v3441, %v3440
      %v3471 = vpack.c.bf16 %v3443, %v3442
      %v3472 = vpack.c.bf16 %v3445, %v3444
      %v3473 = vpack.c.bf16 %v3447, %v3446
      %v3474 = vpack.c.bf16 %v3449, %v3448
      %v3475 = vpack.c.bf16 %v3451, %v3450
      %v3476 = vpack.c.bf16 %v3453, %v3452
      %v3477 = vpack.c.bf16 %v3455, %v3454
      %v3478 = vpack.c.bf16 %v3457, %v3456
      %v3479 = vpack.c.bf16 %v3459, %v3458
      %v3480 = vpack.c.bf16 %v3461, %v3460
      %v3481 = vpack.c.bf16 %v3463, %v3462
      %v3482 = vpack.c.bf16 %v3465, %v3464
      %v3483 = vpack.c.bf16 %v3467, %v3466
      %v3485 = vsel %vm410, %v3468, 0
      %v3488 = vsel %vm410, %v3469, 0
      %v3491 = vsel %vm410, %v3470, 0
      %v3494 = vsel %vm410, %v3471, 0
      %v3497 = vsel %vm410, %v3472, 0
      %v3500 = vsel %vm410, %v3473, 0
      %v3503 = vsel %vm410, %v3474, 0
      %v3506 = vsel %vm410, %v3475, 0
      %v3509 = vsel %vm410, %v3476, 0
      %v3512 = vsel %vm410, %v3477, 0
      %v3515 = vsel %vm410, %v3478, 0
      %v3518 = vsel %vm410, %v3479, 0
      %v3521 = vsel %vm410, %v3480, 0
      %v3524 = vsel %vm410, %v3481, 0
      %v3527 = vsel %vm410, %v3482, 0
      %v3530 = vsel %vm410, %v3483, 0
      %3532 = vmatprep.subr.bf16.mxu0 0
      %3533 = vmatpush1.bf16.msra.mxu0 %v308
      %3534 = vmatprep.subr.bf16.mxu0 0
      %3535 = vmatpush1.bf16.msra.mxu0 0
      %3536 = vmatprep.subr.bf16.mxu0 0
      %3537 = vmatpush1.bf16.msra.mxu0 0
      %3538 = vmatprep.subr.bf16.mxu0 0
      %3539 = vmatpush1.bf16.msra.mxu0 0
      %3540 = vmatprep.subr.bf16.mxu0 0
      %3541 = vmatpush1.bf16.msra.mxu0 0
      %3542 = vmatprep.subr.bf16.mxu0 0
      %3543 = vmatpush1.bf16.msra.mxu0 0
      %3544 = vmatprep.subr.bf16.mxu0 0
      %3545 = vmatpush1.bf16.msra.mxu0 0
      %3546 = vmatprep.subr.bf16.mxu0 0
      %3547 = vmatpush1.bf16.msra.mxu0 0
      %3548 = vmatprep.subr.bf16.mxu0 0
      %3549 = vmatpush1.bf16.msra.mxu0 0
      %3550 = vmatprep.subr.bf16.mxu0 0
      %3551 = vmatpush1.bf16.msra.mxu0 0
      %3552 = vmatprep.subr.bf16.mxu0 0
      %3553 = vmatpush1.bf16.msra.mxu0 0
      %3554 = vmatprep.subr.bf16.mxu0 0
      %3555 = vmatpush1.bf16.msra.mxu0 0
      %3556 = vmatprep.subr.bf16.mxu0 0
      %3557 = vmatpush1.bf16.msra.mxu0 0
      %3558 = vmatprep.subr.bf16.mxu0 0
      %3559 = vmatpush1.bf16.msra.mxu0 0
      %3560 = vmatprep.subr.bf16.mxu0 0
      %3561 = vmatpush1.bf16.msra.mxu0 0
      %3562 = vmatprep.subr.bf16.mxu0 0
      %3563 = vmatpush1.bf16.msra.mxu0 0
      %3564 = vmatprep.mubr.bf16.mxu0 0
      %3565 = vmatmul.mubr.bf16.gmra.mrb[0].mxu0 %v3485
      %v3566 = vpop.f32.mrb[0].mxu0
      %v3567 = vadd.f32 0.0, %v3566
      %v3568 = vpop.f32.mrb[0].mxu0
      %v3569 = vpop.f32.mrb[0].mxu0
      %v3570 = vadd.f32 0.0, %v3569
      %v3571 = vpop.f32.mrb[0].mxu0
      %3572 = vmatprep.mubr.bf16.mxu0 0
      %3573 = vmatmul.mubr.bf16.gmra.mrb[0].mxu0 %v3488
      %v3574 = vpop.f32.mrb[0].mxu0
      %v3575 = vadd.f32 0.0, %v3574
      %v3576 = vpop.f32.mrb[0].mxu0
      %v3577 = vpop.f32.mrb[0].mxu0
      %v3578 = vadd.f32 0.0, %v3577
      %v3579 = vpop.f32.mrb[0].mxu0
      %3580 = vmatprep.mubr.bf16.mxu0 0
      %3581 = vmatmul.mubr.bf16.gmra.mrb[0].mxu0 %v3491
      %v3582 = vpop.f32.mrb[0].mxu0
      %v3583 = vadd.f32 0.0, %v3582
      %v3584 = vpop.f32.mrb[0].mxu0
      %v3585 = vpop.f32.mrb[0].mxu0
      %v3586 = vadd.f32 0.0, %v3585
      %v3587 = vpop.f32.mrb[0].mxu0
      %3588 = vmatprep.mubr.bf16.mxu0 0
      %3589 = vmatmul.mubr.bf16.gmra.mrb[0].mxu0 %v3494
      %v3590 = vpop.f32.mrb[0].mxu0
      %v3591 = vadd.f32 0.0, %v3590
      %v3592 = vpop.f32.mrb[0].mxu0
      %v3593 = vpop.f32.mrb[0].mxu0
      %v3594 = vadd.f32 0.0, %v3593
      %v3595 = vpop.f32.mrb[0].mxu0
      %3596 = vmatprep.mubr.bf16.mxu0 0
      %3597 = vmatmul.mubr.bf16.gmra.mrb[0].mxu0 %v3497
      %v3598 = vpop.f32.mrb[0].mxu0
      %v3599 = vadd.f32 0.0, %v3598
      %v3600 = vpop.f32.mrb[0].mxu0
      %v3601 = vpop.f32.mrb[0].mxu0
      %v3602 = vadd.f32 0.0, %v3601
      %v3603 = vpop.f32.mrb[0].mxu0
      %3604 = vmatprep.mubr.bf16.mxu0 0
      %3605 = vmatmul.mubr.bf16.gmra.mrb[0].mxu0 %v3500
      %v3606 = vpop.f32.mrb[0].mxu0
      %v3607 = vadd.f32 0.0, %v3606
      %v3608 = vpop.f32.mrb[0].mxu0
      %v3609 = vpop.f32.mrb[0].mxu0
      %v3610 = vadd.f32 0.0, %v3609
      %v3611 = vpop.f32.mrb[0].mxu0
      %3612 = vmatprep.mubr.bf16.mxu0 0
      %3613 = vmatmul.mubr.bf16.gmra.mrb[0].mxu0 %v3503
      %v3614 = vpop.f32.mrb[0].mxu0
      %v3615 = vadd.f32 0.0, %v3614
      %v3616 = vpop.f32.mrb[0].mxu0
      %v3617 = vpop.f32.mrb[0].mxu0
      %v3618 = vadd.f32 0.0, %v3617
      %v3619 = vpop.f32.mrb[0].mxu0
      %3620 = vmatprep.mubr.bf16.mxu0 0
      %3621 = vmatmul.mubr.bf16.gmra.mrb[0].mxu0 %v3506
      %v3622 = vpop.f32.mrb[0].mxu0
      %v3623 = vadd.f32 0.0, %v3622
      %v3624 = vpop.f32.mrb[0].mxu0
      %v3625 = vpop.f32.mrb[0].mxu0
      %v3626 = vadd.f32 0.0, %v3625
      %v3627 = vpop.f32.mrb[0].mxu0
      %3628 = vmatprep.mubr.bf16.mxu0 0
      %3629 = vmatmul.mubr.bf16.gmra.mrb[0].mxu0 %v3509
      %v3630 = vpop.f32.mrb[0].mxu0
      %v3631 = vadd.f32 0.0, %v3630
      %v3632 = vpop.f32.mrb[0].mxu0
      %v3633 = vpop.f32.mrb[0].mxu0
      %v3634 = vadd.f32 0.0, %v3633
      %v3635 = vpop.f32.mrb[0].mxu0
      %3636 = vmatprep.mubr.bf16.mxu0 0
      %3637 = vmatmul.mubr.bf16.gmra.mrb[0].mxu0 %v3512
      %v3638 = vpop.f32.mrb[0].mxu0
      %v3639 = vadd.f32 0.0, %v3638
      %v3640 = vpop.f32.mrb[0].mxu0
      %v3641 = vpop.f32.mrb[0].mxu0
      %v3642 = vadd.f32 0.0, %v3641
      %v3643 = vpop.f32.mrb[0].mxu0
      %3644 = vmatprep.mubr.bf16.mxu0 0
      %3645 = vmatmul.mubr.bf16.gmra.mrb[0].mxu0 %v3515
      %v3646 = vpop.f32.mrb[0].mxu0
      %v3647 = vadd.f32 0.0, %v3646
      %v3648 = vpop.f32.mrb[0].mxu0
      %v3649 = vpop.f32.mrb[0].mxu0
      %v3650 = vadd.f32 0.0, %v3649
      %v3651 = vpop.f32.mrb[0].mxu0
      %3652 = vmatprep.mubr.bf16.mxu0 0
      %3653 = vmatmul.mubr.bf16.gmra.mrb[0].mxu0 %v3518
      %v3654 = vpop.f32.mrb[0].mxu0
      %v3655 = vadd.f32 0.0, %v3654
      %v3656 = vpop.f32.mrb[0].mxu0
      %v3657 = vpop.f32.mrb[0].mxu0
      %v3658 = vadd.f32 0.0, %v3657
      %v3659 = vpop.f32.mrb[0].mxu0
      %3660 = vmatprep.mubr.bf16.mxu0 0
      %3661 = vmatmul.mubr.bf16.gmra.mrb[0].mxu0 %v3521
      %v3662 = vpop.f32.mrb[0].mxu0
      %v3663 = vadd.f32 0.0, %v3662
      %v3664 = vpop.f32.mrb[0].mxu0
      %v3665 = vpop.f32.mrb[0].mxu0
      %v3666 = vadd.f32 0.0, %v3665
      %v3667 = vpop.f32.mrb[0].mxu0
      %3668 = vmatprep.mubr.bf16.mxu0 0
      %3669 = vmatmul.mubr.bf16.gmra.mrb[0].mxu0 %v3524
      %v3670 = vpop.f32.mrb[0].mxu0
      %v3671 = vadd.f32 0.0, %v3670
      %v3672 = vpop.f32.mrb[0].mxu0
      %v3673 = vpop.f32.mrb[0].mxu0
      %v3674 = vadd.f32 0.0, %v3673
      %v3675 = vpop.f32.mrb[0].mxu0
      %3676 = vmatprep.mubr.bf16.mxu0 0
      %3677 = vmatmul.mubr.bf16.gmra.mrb[0].mxu0 %v3527
      %v3678 = vpop.f32.mrb[0].mxu0
      %v3679 = vadd.f32 0.0, %v3678
      %v3680 = vpop.f32.mrb[0].mxu0
      %v3681 = vpop.f32.mrb[0].mxu0
      %v3682 = vadd.f32 0.0, %v3681
      %v3683 = vpop.f32.mrb[0].mxu0
      %3684 = vmatprep.mubr.bf16.mxu0 0
      %3685 = vmatmul.mubr.bf16.gmra.mrb[0].mxu0 %v3530
      %v3686 = vpop.f32.mrb[0].mxu0
      %v3687 = vadd.f32 0.0, %v3686
      %v3688 = vpop.f32.mrb[0].mxu0
      %v3689 = vpop.f32.mrb[0].mxu0
      %v3690 = vadd.f32 0.0, %v3689
      %v3691 = vpop.f32.mrb[0].mxu0
      %3692 = vdwg.mxu0
      %v3693 = vadd.f32 %v2460, %v3567
      %v3694 = vadd.f32 %v2463, %v3570
      %v3695 = vadd.f32 %v2468, %v3575
      %v3696 = vadd.f32 %v2471, %v3578
      %v3697 = vadd.f32 %v2476, %v3583
      %v3698 = vadd.f32 %v2479, %v3586
      %v3699 = vadd.f32 %v2484, %v3591
      %v3700 = vadd.f32 %v2487, %v3594
      %v3701 = vadd.f32 %v2492, %v3599
      %v3702 = vadd.f32 %v2495, %v3602
      %v3703 = vadd.f32 %v2500, %v3607
      %v3704 = vadd.f32 %v2503, %v3610
      %v3705 = vadd.f32 %v2508, %v3615
      %v3706 = vadd.f32 %v2511, %v3618
      %v3707 = vadd.f32 %v2516, %v3623
      %v3708 = vadd.f32 %v2519, %v3626
      %v3709 = vadd.f32 %v2524, %v3631
      %v3710 = vadd.f32 %v2527, %v3634
      %v3711 = vadd.f32 %v2532, %v3639
      %v3712 = vadd.f32 %v2535, %v3642
      %v3713 = vadd.f32 %v2540, %v3647
      %v3714 = vadd.f32 %v2543, %v3650
      %v3715 = vadd.f32 %v2548, %v3655
      %v3716 = vadd.f32 %v2551, %v3658
      %v3717 = vadd.f32 %v2556, %v3663
      %v3718 = vadd.f32 %v2559, %v3666
      %v3719 = vadd.f32 %v2564, %v3671
      %v3720 = vadd.f32 %v2567, %v3674
      %v3721 = vadd.f32 %v2572, %v3679
      %v3722 = vadd.f32 %v2575, %v3682
      %v3723 = vadd.f32 %v2580, %v3687
      %v3724 = vadd.f32 %v2583, %v3690
      %3725 = vrot.lane.b32.xlu0 %v374, 80
      %v3726 = vpop.permute.xlu0 %3725
      %3727 = vrot.lane.b32.xlu0 %v375, 80
      %v3728 = vpop.permute.xlu0 %3727
      %3729 = vrot.lane.b32.xlu0 %v376, 80
      %v3730 = vpop.permute.xlu0 %3729
      %3731 = vrot.lane.b32.xlu0 %v377, 80
      %v3732 = vpop.permute.xlu0 %3731
      %3733 = vrot.lane.b32.xlu0 %v378, 80
      %v3734 = vpop.permute.xlu0 %3733
      %3735 = vrot.lane.b32.xlu0 %v379, 80
      %v3736 = vpop.permute.xlu0 %3735
      %3737 = vrot.lane.b32.xlu0 %v380, 80
      %v3738 = vpop.permute.xlu0 %3737
      %3739 = vrot.lane.b32.xlu0 %v381, 80
      %v3740 = vpop.permute.xlu0 %3739
      %3741 = vrot.lane.b32.xlu0 %v382, 80
      %v3742 = vpop.permute.xlu0 %3741
      %3743 = vrot.lane.b32.xlu0 %v383, 80
      %v3744 = vpop.permute.xlu0 %3743
      %3745 = vrot.lane.b32.xlu0 %v384, 80
      %v3746 = vpop.permute.xlu0 %3745
      %3747 = vrot.lane.b32.xlu0 %v385, 80
      %v3748 = vpop.permute.xlu0 %3747
      %3749 = vrot.lane.b32.xlu0 %v386, 80
      %v3750 = vpop.permute.xlu0 %3749
      %3751 = vrot.lane.b32.xlu0 %v387, 80
      %v3752 = vpop.permute.xlu0 %3751
      %3753 = vrot.lane.b32.xlu0 %v388, 80
      %v3754 = vpop.permute.xlu0 %3753
      %3755 = vrot.lane.b32.xlu0 %v389, 80
      %v3756 = vpop.permute.xlu0 %3755
      %3757 = vrot.lane.b32.xlu0 %v406, 80
      %v3758 = vpop.permute.xlu0 %3757
      %3759 = vrot.lane.b32.xlu0 %v407, 80
      %v3760 = vpop.permute.xlu0 %3759
      %3761 = vrot.lane.b32.xlu0 %v408, 80
      %v3762 = vpop.permute.xlu0 %3761
      %3763 = vrot.lane.b32.xlu0 %v409, 80
      %v3764 = vpop.permute.xlu0 %3763
      %v3766 = vsel %vm410, %v3726, 0
      %v3769 = vsel %vm410, %v3728, 0
      %v3772 = vsel %vm410, %v3730, 0
      %v3775 = vsel %vm410, %v3732, 0
      %v3778 = vsel %vm410, %v3734, 0
      %v3781 = vsel %vm410, %v3736, 0
      %v3784 = vsel %vm410, %v3738, 0
      %v3787 = vsel %vm410, %v3740, 0
      %v3790 = vsel %vm410, %v3742, 0
      %v3793 = vsel %vm410, %v3744, 0
      %v3796 = vsel %vm410, %v3746, 0
      %v3799 = vsel %vm410, %v3748, 0
      %v3802 = vsel %vm410, %v3750, 0
      %v3805 = vsel %vm410, %v3752, 0
      %v3808 = vsel %vm410, %v3754, 0
      %v3811 = vsel %vm410, %v3756, 0
      %v3814 = vsel %vm410, %v3758, 0
      %v3817 = vsel %vm410, %v3760, 0
      %v3820 = vsel %vm410, %v3762, 0
      %v3823 = vsel %vm410, %v3764, 0
      %3825 = vmatprep.subr.bf16.mxu0 0
      %3826 = vmatpush1.bf16.xpose.msra.mxu0 %v3814
      %3827 = vmatprep.subr.bf16.mxu0 0
      %3828 = vmatpush1.bf16.xpose.msra.mxu0 %v3817
      %3829 = vmatprep.subr.bf16.mxu0 0
      %3830 = vmatpush1.bf16.xpose.msra.mxu0 %v3820
      %3831 = vmatprep.subr.bf16.mxu0 0
      %3832 = vmatpush1.bf16.xpose.msra.mxu0 %v3823
      %3833 = vmatprep.subr.bf16.mxu0 0
      %3834 = vmatpush1.bf16.xpose.msra.mxu0 0
      %3835 = vmatprep.subr.bf16.mxu0 0
      %3836 = vmatpush1.bf16.xpose.msra.mxu0 0
      %3837 = vmatprep.subr.bf16.mxu0 0
      %3838 = vmatpush1.bf16.xpose.msra.mxu0 0
      %3839 = vmatprep.subr.bf16.mxu0 0
      %3840 = vmatpush1.bf16.xpose.msra.mxu0 0
      %3841 = vmatprep.subr.bf16.mxu0 0
      %3842 = vmatpush1.bf16.xpose.msra.mxu0 0
      %3843 = vmatprep.subr.bf16.mxu0 0
      %3844 = vmatpush1.bf16.xpose.msra.mxu0 0
      %3845 = vmatprep.subr.bf16.mxu0 0
      %3846 = vmatpush1.bf16.xpose.msra.mxu0 0
      %3847 = vmatprep.subr.bf16.mxu0 0
      %3848 = vmatpush1.bf16.xpose.msra.mxu0 0
      %3849 = vmatprep.subr.bf16.mxu0 0
      %3850 = vmatpush1.bf16.xpose.msra.mxu0 0
      %3851 = vmatprep.subr.bf16.mxu0 0
      %3852 = vmatpush1.bf16.xpose.msra.mxu0 0
      %3853 = vmatprep.subr.bf16.mxu0 0
      %3854 = vmatpush1.bf16.xpose.msra.mxu0 0
      %3855 = vmatprep.subr.bf16.mxu0 0
      %3856 = vmatpush1.bf16.xpose.msra.mxu0 0
      %3857 = vmatprep.mubr.bf16.mxu0 0
      %3858 = vmatmul.mubr.bf16.gmra.mrb[0].mxu0 %v3766
      %v3859 = vpop.f32.mrb[0].mxu0
      %v3860 = vadd.f32 0.0, %v3859
      %v3861 = vpop.f32.mrb[0].mxu0
      %v3862 = vpop.f32.mrb[0].mxu0
      %v3863 = vadd.f32 0.0, %v3862
      %v3864 = vpop.f32.mrb[0].mxu0
      %3865 = vmatprep.mubr.bf16.mxu0 0
      %3866 = vmatmul.mubr.bf16.gmra.mrb[0].mxu0 %v3769
      %v3867 = vpop.f32.mrb[0].mxu0
      %v3868 = vadd.f32 0.0, %v3867
      %v3869 = vpop.f32.mrb[0].mxu0
      %v3870 = vpop.f32.mrb[0].mxu0
      %v3871 = vadd.f32 0.0, %v3870
      %v3872 = vpop.f32.mrb[0].mxu0
      %3873 = vmatprep.mubr.bf16.mxu0 0
      %3874 = vmatmul.mubr.bf16.gmra.mrb[0].mxu0 %v3772
      %v3875 = vpop.f32.mrb[0].mxu0
      %v3876 = vadd.f32 0.0, %v3875
      %v3877 = vpop.f32.mrb[0].mxu0
      %v3878 = vpop.f32.mrb[0].mxu0
      %v3879 = vadd.f32 0.0, %v3878
      %v3880 = vpop.f32.mrb[0].mxu0
      %3881 = vmatprep.mubr.bf16.mxu0 0
      %3882 = vmatmul.mubr.bf16.gmra.mrb[0].mxu0 %v3775
      %v3883 = vpop.f32.mrb[0].mxu0
      %v3884 = vadd.f32 0.0, %v3883
      %v3885 = vpop.f32.mrb[0].mxu0
      %v3886 = vpop.f32.mrb[0].mxu0
      %v3887 = vadd.f32 0.0, %v3886
      %v3888 = vpop.f32.mrb[0].mxu0
      %3889 = vmatprep.mubr.bf16.mxu0 0
      %3890 = vmatmul.mubr.bf16.gmra.mrb[0].mxu0 %v3778
      %v3891 = vpop.f32.mrb[0].mxu0
      %v3892 = vadd.f32 0.0, %v3891
      %v3893 = vpop.f32.mrb[0].mxu0
      %v3894 = vpop.f32.mrb[0].mxu0
      %v3895 = vadd.f32 0.0, %v3894
      %v3896 = vpop.f32.mrb[0].mxu0
      %3897 = vmatprep.mubr.bf16.mxu0 0
      %3898 = vmatmul.mubr.bf16.gmra.mrb[0].mxu0 %v3781
      %v3899 = vpop.f32.mrb[0].mxu0
      %v3900 = vadd.f32 0.0, %v3899
      %v3901 = vpop.f32.mrb[0].mxu0
      %v3902 = vpop.f32.mrb[0].mxu0
      %v3903 = vadd.f32 0.0, %v3902
      %v3904 = vpop.f32.mrb[0].mxu0
      %3905 = vmatprep.mubr.bf16.mxu0 0
      %3906 = vmatmul.mubr.bf16.gmra.mrb[0].mxu0 %v3784
      %v3907 = vpop.f32.mrb[0].mxu0
      %v3908 = vadd.f32 0.0, %v3907
      %v3909 = vpop.f32.mrb[0].mxu0
      %v3910 = vpop.f32.mrb[0].mxu0
      %v3911 = vadd.f32 0.0, %v3910
      %v3912 = vpop.f32.mrb[0].mxu0
      %3913 = vmatprep.mubr.bf16.mxu0 0
      %3914 = vmatmul.mubr.bf16.gmra.mrb[0].mxu0 %v3787
      %v3915 = vpop.f32.mrb[0].mxu0
      %v3916 = vadd.f32 0.0, %v3915
      %v3917 = vpop.f32.mrb[0].mxu0
      %v3918 = vpop.f32.mrb[0].mxu0
      %v3919 = vadd.f32 0.0, %v3918
      %v3920 = vpop.f32.mrb[0].mxu0
      %3921 = vmatprep.mubr.bf16.mxu0 0
      %3922 = vmatmul.mubr.bf16.gmra.mrb[0].mxu0 %v3790
      %v3923 = vpop.f32.mrb[0].mxu0
      %v3924 = vadd.f32 0.0, %v3923
      %v3925 = vpop.f32.mrb[0].mxu0
      %v3926 = vpop.f32.mrb[0].mxu0
      %v3927 = vadd.f32 0.0, %v3926
      %v3928 = vpop.f32.mrb[0].mxu0
      %3929 = vmatprep.mubr.bf16.mxu0 0
      %3930 = vmatmul.mubr.bf16.gmra.mrb[0].mxu0 %v3793
      %v3931 = vpop.f32.mrb[0].mxu0
      %v3932 = vadd.f32 0.0, %v3931
      %v3933 = vpop.f32.mrb[0].mxu0
      %v3934 = vpop.f32.mrb[0].mxu0
      %v3935 = vadd.f32 0.0, %v3934
      %v3936 = vpop.f32.mrb[0].mxu0
      %3937 = vmatprep.mubr.bf16.mxu0 0
      %3938 = vmatmul.mubr.bf16.gmra.mrb[0].mxu0 %v3796
      %v3939 = vpop.f32.mrb[0].mxu0
      %v3940 = vadd.f32 0.0, %v3939
      %v3941 = vpop.f32.mrb[0].mxu0
      %v3942 = vpop.f32.mrb[0].mxu0
      %v3943 = vadd.f32 0.0, %v3942
      %v3944 = vpop.f32.mrb[0].mxu0
      %3945 = vmatprep.mubr.bf16.mxu0 0
      %3946 = vmatmul.mubr.bf16.gmra.mrb[0].mxu0 %v3799
      %v3947 = vpop.f32.mrb[0].mxu0
      %v3948 = vadd.f32 0.0, %v3947
      %v3949 = vpop.f32.mrb[0].mxu0
      %v3950 = vpop.f32.mrb[0].mxu0
      %v3951 = vadd.f32 0.0, %v3950
      %v3952 = vpop.f32.mrb[0].mxu0
      %3953 = vmatprep.mubr.bf16.mxu0 0
      %3954 = vmatmul.mubr.bf16.gmra.mrb[0].mxu0 %v3802
      %v3955 = vpop.f32.mrb[0].mxu0
      %v3956 = vadd.f32 0.0, %v3955
      %v3957 = vpop.f32.mrb[0].mxu0
      %v3958 = vpop.f32.mrb[0].mxu0
      %v3959 = vadd.f32 0.0, %v3958
      %v3960 = vpop.f32.mrb[0].mxu0
      %3961 = vmatprep.mubr.bf16.mxu0 0
      %3962 = vmatmul.mubr.bf16.gmra.mrb[0].mxu0 %v3805
      %v3963 = vpop.f32.mrb[0].mxu0
      %v3964 = vadd.f32 0.0, %v3963
      %v3965 = vpop.f32.mrb[0].mxu0
      %v3966 = vpop.f32.mrb[0].mxu0
      %v3967 = vadd.f32 0.0, %v3966
      %v3968 = vpop.f32.mrb[0].mxu0
      %3969 = vmatprep.mubr.bf16.mxu0 0
      %3970 = vmatmul.mubr.bf16.gmra.mrb[0].mxu0 %v3808
      %v3971 = vpop.f32.mrb[0].mxu0
      %v3972 = vadd.f32 0.0, %v3971
      %v3973 = vpop.f32.mrb[0].mxu0
      %v3974 = vpop.f32.mrb[0].mxu0
      %v3975 = vadd.f32 0.0, %v3974
      %v3976 = vpop.f32.mrb[0].mxu0
      %3977 = vmatprep.mubr.bf16.mxu0 0
      %3978 = vmatmul.mubr.bf16.gmra.mrb[0].mxu0 %v3811
      %v3979 = vpop.f32.mrb[0].mxu0
      %v3980 = vadd.f32 0.0, %v3979
      %v3981 = vpop.f32.mrb[0].mxu0
      %v3982 = vpop.f32.mrb[0].mxu0
      %v3983 = vadd.f32 0.0, %v3982
      %v3984 = vpop.f32.mrb[0].mxu0
      %3985 = vdwg.mxu0
      %v3986 = vmul.f32 %v3860, 0.25
      %v3987 = vmul.f32 %v3863, 0.25
      %v3988 = vmul.f32 %v3868, 0.25
      %v3989 = vmul.f32 %v3871, 0.25
      %v3990 = vmul.f32 %v3876, 0.25
      %v3991 = vmul.f32 %v3879, 0.25
      %v3992 = vmul.f32 %v3884, 0.25
      %v3993 = vmul.f32 %v3887, 0.25
      %v3994 = vmul.f32 %v3892, 0.25
      %v3995 = vmul.f32 %v3895, 0.25
      %v3996 = vmul.f32 %v3900, 0.25
      %v3997 = vmul.f32 %v3903, 0.25
      %v3998 = vmul.f32 %v3908, 0.25
      %v3999 = vmul.f32 %v3911, 0.25
      %v4000 = vmul.f32 %v3916, 0.25
      %v4001 = vmul.f32 %v3919, 0.25
      %v4002 = vmul.f32 %v3924, 0.25
      %v4003 = vmul.f32 %v3927, 0.25
      %v4004 = vmul.f32 %v3932, 0.25
      %v4005 = vmul.f32 %v3935, 0.25
      %v4006 = vmul.f32 %v3940, 0.25
      %v4007 = vmul.f32 %v3943, 0.25
      %v4008 = vmul.f32 %v3948, 0.25
      %v4009 = vmul.f32 %v3951, 0.25
      %v4010 = vmul.f32 %v3956, 0.25
      %v4011 = vmul.f32 %v3959, 0.25
      %v4012 = vmul.f32 %v3964, 0.25
      %v4013 = vmul.f32 %v3967, 0.25
      %v4014 = vmul.f32 %v3972, 0.25
      %v4015 = vmul.f32 %v3975, 0.25
      %v4016 = vmul.f32 %v3980, 0.25
      %v4017 = vmul.f32 %v3983, 0.25
      %v4018 = vsel %vm664, %v3986, -inf
      %4019 = vmax.xlane.f32.xlu0 %v4018
      %v4020 = vpop.xlane.xlu0 %4019
      %v4021 = vsel %vm664, %v3987, -inf
      %4022 = vmax.xlane.f32.xlu0 %v4021
      %v4023 = vpop.xlane.xlu0 %4022
      %v4024 = vsel %vm664, %v3988, -inf
      %4025 = vmax.xlane.f32.xlu0 %v4024
      %v4026 = vpop.xlane.xlu0 %4025
      %v4027 = vsel %vm664, %v3989, -inf
      %4028 = vmax.xlane.f32.xlu0 %v4027
      %v4029 = vpop.xlane.xlu0 %4028
      %v4030 = vsel %vm664, %v3990, -inf
      %4031 = vmax.xlane.f32.xlu0 %v4030
      %v4032 = vpop.xlane.xlu0 %4031
      %v4033 = vsel %vm664, %v3991, -inf
      %4034 = vmax.xlane.f32.xlu0 %v4033
      %v4035 = vpop.xlane.xlu0 %4034
      %v4036 = vsel %vm664, %v3992, -inf
      %4037 = vmax.xlane.f32.xlu0 %v4036
      %v4038 = vpop.xlane.xlu0 %4037
      %v4039 = vsel %vm664, %v3993, -inf
      %4040 = vmax.xlane.f32.xlu0 %v4039
      %v4041 = vpop.xlane.xlu0 %4040
      %v4042 = vsel %vm664, %v3994, -inf
      %4043 = vmax.xlane.f32.xlu0 %v4042
      %v4044 = vpop.xlane.xlu0 %4043
      %v4045 = vsel %vm664, %v3995, -inf
      %4046 = vmax.xlane.f32.xlu0 %v4045
      %v4047 = vpop.xlane.xlu0 %4046
      %v4048 = vsel %vm664, %v3996, -inf
      %4049 = vmax.xlane.f32.xlu0 %v4048
      %v4050 = vpop.xlane.xlu0 %4049
      %v4051 = vsel %vm664, %v3997, -inf
      %4052 = vmax.xlane.f32.xlu0 %v4051
      %v4053 = vpop.xlane.xlu0 %4052
      %v4054 = vsel %vm664, %v3998, -inf
      %4055 = vmax.xlane.f32.xlu0 %v4054
      %v4056 = vpop.xlane.xlu0 %4055
      %v4057 = vsel %vm664, %v3999, -inf
      %4058 = vmax.xlane.f32.xlu0 %v4057
      %v4059 = vpop.xlane.xlu0 %4058
      %v4060 = vsel %vm664, %v4000, -inf
      %4061 = vmax.xlane.f32.xlu0 %v4060
      %v4062 = vpop.xlane.xlu0 %4061
      %v4063 = vsel %vm664, %v4001, -inf
      %4064 = vmax.xlane.f32.xlu0 %v4063
      %v4065 = vpop.xlane.xlu0 %4064
      %v4066 = vsel %vm664, %v4002, -inf
      %4067 = vmax.xlane.f32.xlu0 %v4066
      %v4068 = vpop.xlane.xlu0 %4067
      %v4069 = vsel %vm664, %v4003, -inf
      %4070 = vmax.xlane.f32.xlu0 %v4069
      %v4071 = vpop.xlane.xlu0 %4070
      %v4072 = vsel %vm664, %v4004, -inf
      %4073 = vmax.xlane.f32.xlu0 %v4072
      %v4074 = vpop.xlane.xlu0 %4073
      %v4075 = vsel %vm664, %v4005, -inf
      %4076 = vmax.xlane.f32.xlu0 %v4075
      %v4077 = vpop.xlane.xlu0 %4076
      %v4078 = vsel %vm664, %v4006, -inf
      %4079 = vmax.xlane.f32.xlu0 %v4078
      %v4080 = vpop.xlane.xlu0 %4079
      %v4081 = vsel %vm664, %v4007, -inf
      %4082 = vmax.xlane.f32.xlu0 %v4081
      %v4083 = vpop.xlane.xlu0 %4082
      %v4084 = vsel %vm664, %v4008, -inf
      %4085 = vmax.xlane.f32.xlu0 %v4084
      %v4086 = vpop.xlane.xlu0 %4085
      %v4087 = vsel %vm664, %v4009, -inf
      %4088 = vmax.xlane.f32.xlu0 %v4087
      %v4089 = vpop.xlane.xlu0 %4088
      %v4090 = vsel %vm664, %v4010, -inf
      %4091 = vmax.xlane.f32.xlu0 %v4090
      %v4092 = vpop.xlane.xlu0 %4091
      %v4093 = vsel %vm664, %v4011, -inf
      %4094 = vmax.xlane.f32.xlu0 %v4093
      %v4095 = vpop.xlane.xlu0 %4094
      %v4096 = vsel %vm664, %v4012, -inf
      %4097 = vmax.xlane.f32.xlu0 %v4096
      %v4098 = vpop.xlane.xlu0 %4097
      %v4099 = vsel %vm664, %v4013, -inf
      %4100 = vmax.xlane.f32.xlu0 %v4099
      %v4101 = vpop.xlane.xlu0 %4100
      %v4102 = vsel %vm664, %v4014, -inf
      %4103 = vmax.xlane.f32.xlu0 %v4102
      %v4104 = vpop.xlane.xlu0 %4103
      %v4105 = vsel %vm664, %v4015, -inf
      %4106 = vmax.xlane.f32.xlu0 %v4105
      %v4107 = vpop.xlane.xlu0 %4106
      %v4108 = vsel %vm664, %v4016, -inf
      %4109 = vmax.xlane.f32.xlu0 %v4108
      %v4110 = vpop.xlane.xlu0 %4109
      %v4111 = vsel %vm664, %v4017, -inf
      %4112 = vmax.xlane.f32.xlu0 %v4111
      %v4113 = vpop.xlane.xlu0 %4112
      %v4114 = vsub.f32 %v3986, %v4020
      %v4115 = vsub.f32 %v3987, %v4023
      %v4116 = vsub.f32 %v3988, %v4026
      %v4117 = vsub.f32 %v3989, %v4029
      %v4118 = vsub.f32 %v3990, %v4032
      %v4119 = vsub.f32 %v3991, %v4035
      %v4120 = vsub.f32 %v3992, %v4038
      %v4121 = vsub.f32 %v3993, %v4041
      %v4122 = vsub.f32 %v3994, %v4044
      %v4123 = vsub.f32 %v3995, %v4047
      %v4124 = vsub.f32 %v3996, %v4050
      %v4125 = vsub.f32 %v3997, %v4053
      %v4126 = vsub.f32 %v3998, %v4056
      %v4127 = vsub.f32 %v3999, %v4059
      %v4128 = vsub.f32 %v4000, %v4062
      %v4129 = vsub.f32 %v4001, %v4065
      %v4130 = vsub.f32 %v4002, %v4068
      %v4131 = vsub.f32 %v4003, %v4071
      %v4132 = vsub.f32 %v4004, %v4074
      %v4133 = vsub.f32 %v4005, %v4077
      %v4134 = vsub.f32 %v4006, %v4080
      %v4135 = vsub.f32 %v4007, %v4083
      %v4136 = vsub.f32 %v4008, %v4086
      %v4137 = vsub.f32 %v4009, %v4089
      %v4138 = vsub.f32 %v4010, %v4092
      %v4139 = vsub.f32 %v4011, %v4095
      %v4140 = vsub.f32 %v4012, %v4098
      %v4141 = vsub.f32 %v4013, %v4101
      %v4142 = vsub.f32 %v4014, %v4104
      %v4143 = vsub.f32 %v4015, %v4107
      %v4144 = vsub.f32 %v4016, %v4110
      %v4145 = vsub.f32 %v4017, %v4113
      %v4146 = vmul.f32 %v4114, 1.442695
      %v4147 = vpow.pop %v4146
      %v4148 = vmul.f32 %v4115, 1.442695
      %v4149 = vpow.pop %v4148
      %v4150 = vmul.f32 %v4116, 1.442695
      %v4151 = vpow.pop %v4150
      %v4152 = vmul.f32 %v4117, 1.442695
      %v4153 = vpow.pop %v4152
      %v4154 = vmul.f32 %v4118, 1.442695
      %v4155 = vpow.pop %v4154
      %v4156 = vmul.f32 %v4119, 1.442695
      %v4157 = vpow.pop %v4156
      %v4158 = vmul.f32 %v4120, 1.442695
      %v4159 = vpow.pop %v4158
      %v4160 = vmul.f32 %v4121, 1.442695
      %v4161 = vpow.pop %v4160
      %v4162 = vmul.f32 %v4122, 1.442695
      %v4163 = vpow.pop %v4162
      %v4164 = vmul.f32 %v4123, 1.442695
      %v4165 = vpow.pop %v4164
      %v4166 = vmul.f32 %v4124, 1.442695
      %v4167 = vpow.pop %v4166
      %v4168 = vmul.f32 %v4125, 1.442695
      %v4169 = vpow.pop %v4168
      %v4170 = vmul.f32 %v4126, 1.442695
      %v4171 = vpow.pop %v4170
      %v4172 = vmul.f32 %v4127, 1.442695
      %v4173 = vpow.pop %v4172
      %v4174 = vmul.f32 %v4128, 1.442695
      %v4175 = vpow.pop %v4174
      %v4176 = vmul.f32 %v4129, 1.442695
      %v4177 = vpow.pop %v4176
      %v4178 = vmul.f32 %v4130, 1.442695
      %v4179 = vpow.pop %v4178
      %v4180 = vmul.f32 %v4131, 1.442695
      %v4181 = vpow.pop %v4180
      %v4182 = vmul.f32 %v4132, 1.442695
      %v4183 = vpow.pop %v4182
      %v4184 = vmul.f32 %v4133, 1.442695
      %v4185 = vpow.pop %v4184
      %v4186 = vmul.f32 %v4134, 1.442695
      %v4187 = vpow.pop %v4186
      %v4188 = vmul.f32 %v4135, 1.442695
      %v4189 = vpow.pop %v4188
      %v4190 = vmul.f32 %v4136, 1.442695
      %v4191 = vpow.pop %v4190
      %v4192 = vmul.f32 %v4137, 1.442695
      %v4193 = vpow.pop %v4192
      %v4194 = vmul.f32 %v4138, 1.442695
      %v4195 = vpow.pop %v4194
      %v4196 = vmul.f32 %v4139, 1.442695
      %v4197 = vpow.pop %v4196
      %v4198 = vmul.f32 %v4140, 1.442695
      %v4199 = vpow.pop %v4198
      %v4200 = vmul.f32 %v4141, 1.442695
      %v4201 = vpow.pop %v4200
      %v4202 = vmul.f32 %v4142, 1.442695
      %v4203 = vpow.pop %v4202
      %v4204 = vmul.f32 %v4143, 1.442695
      %v4205 = vpow.pop %v4204
      %v4206 = vmul.f32 %v4144, 1.442695
      %v4207 = vpow.pop %v4206
      %v4208 = vmul.f32 %v4145, 1.442695
      %v4209 = vpow.pop %v4208
      %v4210 = vsel %vm664, %v4147, 0.0
      %4211 = vadd.xlane.f32.xlu0 %v4210
      %v4212 = vpop.xlane.xlu0 %4211
      %v4213 = vsel %vm664, %v4149, 0.0
      %4214 = vadd.xlane.f32.xlu0 %v4213
      %v4215 = vpop.xlane.xlu0 %4214
      %v4216 = vsel %vm664, %v4151, 0.0
      %4217 = vadd.xlane.f32.xlu0 %v4216
      %v4218 = vpop.xlane.xlu0 %4217
      %v4219 = vsel %vm664, %v4153, 0.0
      %4220 = vadd.xlane.f32.xlu0 %v4219
      %v4221 = vpop.xlane.xlu0 %4220
      %v4222 = vsel %vm664, %v4155, 0.0
      %4223 = vadd.xlane.f32.xlu0 %v4222
      %v4224 = vpop.xlane.xlu0 %4223
      %v4225 = vsel %vm664, %v4157, 0.0
      %4226 = vadd.xlane.f32.xlu0 %v4225
      %v4227 = vpop.xlane.xlu0 %4226
      %v4228 = vsel %vm664, %v4159, 0.0
      %4229 = vadd.xlane.f32.xlu0 %v4228
      %v4230 = vpop.xlane.xlu0 %4229
      %v4231 = vsel %vm664, %v4161, 0.0
      %4232 = vadd.xlane.f32.xlu0 %v4231
      %v4233 = vpop.xlane.xlu0 %4232
      %v4234 = vsel %vm664, %v4163, 0.0
      %4235 = vadd.xlane.f32.xlu0 %v4234
      %v4236 = vpop.xlane.xlu0 %4235
      %v4237 = vsel %vm664, %v4165, 0.0
      %4238 = vadd.xlane.f32.xlu0 %v4237
      %v4239 = vpop.xlane.xlu0 %4238
      %v4240 = vsel %vm664, %v4167, 0.0
      %4241 = vadd.xlane.f32.xlu0 %v4240
      %v4242 = vpop.xlane.xlu0 %4241
      %v4243 = vsel %vm664, %v4169, 0.0
      %4244 = vadd.xlane.f32.xlu0 %v4243
      %v4245 = vpop.xlane.xlu0 %4244
      %v4246 = vsel %vm664, %v4171, 0.0
      %4247 = vadd.xlane.f32.xlu0 %v4246
      %v4248 = vpop.xlane.xlu0 %4247
      %v4249 = vsel %vm664, %v4173, 0.0
      %4250 = vadd.xlane.f32.xlu0 %v4249
      %v4251 = vpop.xlane.xlu0 %4250
      %v4252 = vsel %vm664, %v4175, 0.0
      %4253 = vadd.xlane.f32.xlu0 %v4252
      %v4254 = vpop.xlane.xlu0 %4253
      %v4255 = vsel %vm664, %v4177, 0.0
      %4256 = vadd.xlane.f32.xlu0 %v4255
      %v4257 = vpop.xlane.xlu0 %4256
      %v4258 = vsel %vm664, %v4179, 0.0
      %4259 = vadd.xlane.f32.xlu0 %v4258
      %v4260 = vpop.xlane.xlu0 %4259
      %v4261 = vsel %vm664, %v4181, 0.0
      %4262 = vadd.xlane.f32.xlu0 %v4261
      %v4263 = vpop.xlane.xlu0 %4262
      %v4264 = vsel %vm664, %v4183, 0.0
      %4265 = vadd.xlane.f32.xlu0 %v4264
      %v4266 = vpop.xlane.xlu0 %4265
      %v4267 = vsel %vm664, %v4185, 0.0
      %4268 = vadd.xlane.f32.xlu0 %v4267
      %v4269 = vpop.xlane.xlu0 %4268
      %v4270 = vsel %vm664, %v4187, 0.0
      %4271 = vadd.xlane.f32.xlu0 %v4270
      %v4272 = vpop.xlane.xlu0 %4271
      %v4273 = vsel %vm664, %v4189, 0.0
      %4274 = vadd.xlane.f32.xlu0 %v4273
      %v4275 = vpop.xlane.xlu0 %4274
      %v4276 = vsel %vm664, %v4191, 0.0
      %4277 = vadd.xlane.f32.xlu0 %v4276
      %v4278 = vpop.xlane.xlu0 %4277
      %v4279 = vsel %vm664, %v4193, 0.0
      %4280 = vadd.xlane.f32.xlu0 %v4279
      %v4281 = vpop.xlane.xlu0 %4280
      %v4282 = vsel %vm664, %v4195, 0.0
      %4283 = vadd.xlane.f32.xlu0 %v4282
      %v4284 = vpop.xlane.xlu0 %4283
      %v4285 = vsel %vm664, %v4197, 0.0
      %4286 = vadd.xlane.f32.xlu0 %v4285
      %v4287 = vpop.xlane.xlu0 %4286
      %v4288 = vsel %vm664, %v4199, 0.0
      %4289 = vadd.xlane.f32.xlu0 %v4288
      %v4290 = vpop.xlane.xlu0 %4289
      %v4291 = vsel %vm664, %v4201, 0.0
      %4292 = vadd.xlane.f32.xlu0 %v4291
      %v4293 = vpop.xlane.xlu0 %4292
      %v4294 = vsel %vm664, %v4203, 0.0
      %4295 = vadd.xlane.f32.xlu0 %v4294
      %v4296 = vpop.xlane.xlu0 %4295
      %v4297 = vsel %vm664, %v4205, 0.0
      %4298 = vadd.xlane.f32.xlu0 %v4297
      %v4299 = vpop.xlane.xlu0 %4298
      %v4300 = vsel %vm664, %v4207, 0.0
      %4301 = vadd.xlane.f32.xlu0 %v4300
      %v4302 = vpop.xlane.xlu0 %4301
      %v4303 = vsel %vm664, %v4209, 0.0
      %4304 = vadd.xlane.f32.xlu0 %v4303
      %v4305 = vpop.xlane.xlu0 %4304
      %v4306 = vpack.c.bf16 %v4149, %v4147
      %v4307 = vpack.c.bf16 %v4153, %v4151
      %v4308 = vpack.c.bf16 %v4157, %v4155
      %v4309 = vpack.c.bf16 %v4161, %v4159
      %v4310 = vpack.c.bf16 %v4165, %v4163
      %v4311 = vpack.c.bf16 %v4169, %v4167
      %v4312 = vpack.c.bf16 %v4173, %v4171
      %v4313 = vpack.c.bf16 %v4177, %v4175
      %v4314 = vpack.c.bf16 %v4181, %v4179
      %v4315 = vpack.c.bf16 %v4185, %v4183
      %v4316 = vpack.c.bf16 %v4189, %v4187
      %v4317 = vpack.c.bf16 %v4193, %v4191
      %v4318 = vpack.c.bf16 %v4197, %v4195
      %v4319 = vpack.c.bf16 %v4201, %v4199
      %v4320 = vpack.c.bf16 %v4205, %v4203
      %v4321 = vpack.c.bf16 %v4209, %v4207
      %4322 = vrot.lane.b32.xlu0 %v406, 16
      %v4323 = vpop.permute.xlu0 %4322
      %4324 = vrot.lane.b32.xlu0 %v407, 16
      %v4325 = vpop.permute.xlu0 %4324
      %4326 = vrot.lane.b32.xlu0 %v408, 16
      %v4327 = vpop.permute.xlu0 %4326
      %4328 = vrot.lane.b32.xlu0 %v409, 16
      %v4329 = vpop.permute.xlu0 %4328
      %v4335 = vsel %vm664, %v4306, 0
      %v4338 = vsel %vm664, %v4307, 0
      %v4341 = vsel %vm664, %v4308, 0
      %v4344 = vsel %vm664, %v4309, 0
      %v4347 = vsel %vm664, %v4310, 0
      %v4350 = vsel %vm664, %v4311, 0
      %v4353 = vsel %vm664, %v4312, 0
      %v4356 = vsel %vm664, %v4313, 0
      %v4359 = vsel %vm664, %v4314, 0
      %v4362 = vsel %vm664, %v4315, 0
      %v4365 = vsel %vm664, %v4316, 0
      %v4368 = vsel %vm664, %v4317, 0
      %v4371 = vsel %vm664, %v4318, 0
      %v4374 = vsel %vm664, %v4319, 0
      %v4377 = vsel %vm664, %v4320, 0
      %v4380 = vsel %vm664, %v4321, 0
      %4382 = vmatprep.subr.bf16.mxu0 0
      %4383 = vmatpush1.bf16.msra.mxu0 %v4323
      %4384 = vmatprep.subr.bf16.mxu0 0
      %4385 = vmatpush1.bf16.msra.mxu0 %v4325
      %4386 = vmatprep.subr.bf16.mxu0 0
      %4387 = vmatpush1.bf16.msra.mxu0 %v4327
      %4388 = vmatprep.subr.bf16.mxu0 0
      %4389 = vmatpush1.bf16.msra.mxu0 %v4329
      %4390 = vmatprep.subr.bf16.mxu0 0
      %4391 = vmatpush1.bf16.msra.mxu0 0
      %4392 = vmatprep.subr.bf16.mxu0 0
      %4393 = vmatpush1.bf16.msra.mxu0 0
      %4394 = vmatprep.subr.bf16.mxu0 0
      %4395 = vmatpush1.bf16.msra.mxu0 0
      %4396 = vmatprep.subr.bf16.mxu0 0
      %4397 = vmatpush1.bf16.msra.mxu0 0
      %4398 = vmatprep.subr.bf16.mxu0 0
      %4399 = vmatpush1.bf16.msra.mxu0 0
      %4400 = vmatprep.subr.bf16.mxu0 0
      %4401 = vmatpush1.bf16.msra.mxu0 0
      %4402 = vmatprep.subr.bf16.mxu0 0
      %4403 = vmatpush1.bf16.msra.mxu0 0
      %4404 = vmatprep.subr.bf16.mxu0 0
      %4405 = vmatpush1.bf16.msra.mxu0 0
      %4406 = vmatprep.subr.bf16.mxu0 0
      %4407 = vmatpush1.bf16.msra.mxu0 0
      %4408 = vmatprep.subr.bf16.mxu0 0
      %4409 = vmatpush1.bf16.msra.mxu0 0
      %4410 = vmatprep.subr.bf16.mxu0 0
      %4411 = vmatpush1.bf16.msra.mxu0 0
      %4412 = vmatprep.subr.bf16.mxu0 0
      %4413 = vmatpush1.bf16.msra.mxu0 0
      %4414 = vmatprep.mubr.bf16.mxu0 0
      %4415 = vmatmul.mubr.bf16.gmra.mrb[0].mxu0 %v4335
      %v4416 = vpop.f32.mrb[0].mxu0
      %v4417 = vadd.f32 0.0, %v4416
      %v4418 = vpop.f32.mrb[0].mxu0
      %v4419 = vpop.f32.mrb[0].mxu0
      %v4420 = vadd.f32 0.0, %v4419
      %v4421 = vpop.f32.mrb[0].mxu0
      %4422 = vmatprep.mubr.bf16.mxu0 0
      %4423 = vmatmul.mubr.bf16.gmra.mrb[0].mxu0 %v4338
      %v4424 = vpop.f32.mrb[0].mxu0
      %v4425 = vadd.f32 0.0, %v4424
      %v4426 = vpop.f32.mrb[0].mxu0
      %v4427 = vpop.f32.mrb[0].mxu0
      %v4428 = vadd.f32 0.0, %v4427
      %v4429 = vpop.f32.mrb[0].mxu0
      %4430 = vmatprep.mubr.bf16.mxu0 0
      %4431 = vmatmul.mubr.bf16.gmra.mrb[0].mxu0 %v4341
      %v4432 = vpop.f32.mrb[0].mxu0
      %v4433 = vadd.f32 0.0, %v4432
      %v4434 = vpop.f32.mrb[0].mxu0
      %v4435 = vpop.f32.mrb[0].mxu0
      %v4436 = vadd.f32 0.0, %v4435
      %v4437 = vpop.f32.mrb[0].mxu0
      %4438 = vmatprep.mubr.bf16.mxu0 0
      %4439 = vmatmul.mubr.bf16.gmra.mrb[0].mxu0 %v4344
      %v4440 = vpop.f32.mrb[0].mxu0
      %v4441 = vadd.f32 0.0, %v4440
      %v4442 = vpop.f32.mrb[0].mxu0
      %v4443 = vpop.f32.mrb[0].mxu0
      %v4444 = vadd.f32 0.0, %v4443
      %v4445 = vpop.f32.mrb[0].mxu0
      %4446 = vmatprep.mubr.bf16.mxu0 0
      %4447 = vmatmul.mubr.bf16.gmra.mrb[0].mxu0 %v4347
      %v4448 = vpop.f32.mrb[0].mxu0
      %v4449 = vadd.f32 0.0, %v4448
      %v4450 = vpop.f32.mrb[0].mxu0
      %v4451 = vpop.f32.mrb[0].mxu0
      %v4452 = vadd.f32 0.0, %v4451
      %v4453 = vpop.f32.mrb[0].mxu0
      %4454 = vmatprep.mubr.bf16.mxu0 0
      %4455 = vmatmul.mubr.bf16.gmra.mrb[0].mxu0 %v4350
      %v4456 = vpop.f32.mrb[0].mxu0
      %v4457 = vadd.f32 0.0, %v4456
      %v4458 = vpop.f32.mrb[0].mxu0
      %v4459 = vpop.f32.mrb[0].mxu0
      %v4460 = vadd.f32 0.0, %v4459
      %v4461 = vpop.f32.mrb[0].mxu0
      %4462 = vmatprep.mubr.bf16.mxu0 0
      %4463 = vmatmul.mubr.bf16.gmra.mrb[0].mxu0 %v4353
      %v4464 = vpop.f32.mrb[0].mxu0
      %v4465 = vadd.f32 0.0, %v4464
      %v4466 = vpop.f32.mrb[0].mxu0
      %v4467 = vpop.f32.mrb[0].mxu0
      %v4468 = vadd.f32 0.0, %v4467
      %v4469 = vpop.f32.mrb[0].mxu0
      %4470 = vmatprep.mubr.bf16.mxu0 0
      %4471 = vmatmul.mubr.bf16.gmra.mrb[0].mxu0 %v4356
      %v4472 = vpop.f32.mrb[0].mxu0
      %v4473 = vadd.f32 0.0, %v4472
      %v4474 = vpop.f32.mrb[0].mxu0
      %v4475 = vpop.f32.mrb[0].mxu0
      %v4476 = vadd.f32 0.0, %v4475
      %v4477 = vpop.f32.mrb[0].mxu0
      %4478 = vmatprep.mubr.bf16.mxu0 0
      %4479 = vmatmul.mubr.bf16.gmra.mrb[0].mxu0 %v4359
      %v4480 = vpop.f32.mrb[0].mxu0
      %v4481 = vadd.f32 0.0, %v4480
      %v4482 = vpop.f32.mrb[0].mxu0
      %v4483 = vpop.f32.mrb[0].mxu0
      %v4484 = vadd.f32 0.0, %v4483
      %v4485 = vpop.f32.mrb[0].mxu0
      %4486 = vmatprep.mubr.bf16.mxu0 0
      %4487 = vmatmul.mubr.bf16.gmra.mrb[0].mxu0 %v4362
      %v4488 = vpop.f32.mrb[0].mxu0
      %v4489 = vadd.f32 0.0, %v4488
      %v4490 = vpop.f32.mrb[0].mxu0
      %v4491 = vpop.f32.mrb[0].mxu0
      %v4492 = vadd.f32 0.0, %v4491
      %v4493 = vpop.f32.mrb[0].mxu0
      %4494 = vmatprep.mubr.bf16.mxu0 0
      %4495 = vmatmul.mubr.bf16.gmra.mrb[0].mxu0 %v4365
      %v4496 = vpop.f32.mrb[0].mxu0
      %v4497 = vadd.f32 0.0, %v4496
      %v4498 = vpop.f32.mrb[0].mxu0
      %v4499 = vpop.f32.mrb[0].mxu0
      %v4500 = vadd.f32 0.0, %v4499
      %v4501 = vpop.f32.mrb[0].mxu0
      %4502 = vmatprep.mubr.bf16.mxu0 0
      %4503 = vmatmul.mubr.bf16.gmra.mrb[0].mxu0 %v4368
      %v4504 = vpop.f32.mrb[0].mxu0
      %v4505 = vadd.f32 0.0, %v4504
      %v4506 = vpop.f32.mrb[0].mxu0
      %v4507 = vpop.f32.mrb[0].mxu0
      %v4508 = vadd.f32 0.0, %v4507
      %v4509 = vpop.f32.mrb[0].mxu0
      %4510 = vmatprep.mubr.bf16.mxu0 0
      %4511 = vmatmul.mubr.bf16.gmra.mrb[0].mxu0 %v4371
      %v4512 = vpop.f32.mrb[0].mxu0
      %v4513 = vadd.f32 0.0, %v4512
      %v4514 = vpop.f32.mrb[0].mxu0
      %v4515 = vpop.f32.mrb[0].mxu0
      %v4516 = vadd.f32 0.0, %v4515
      %v4517 = vpop.f32.mrb[0].mxu0
      %4518 = vmatprep.mubr.bf16.mxu0 0
      %4519 = vmatmul.mubr.bf16.gmra.mrb[0].mxu0 %v4374
      %v4520 = vpop.f32.mrb[0].mxu0
      %v4521 = vadd.f32 0.0, %v4520
      %v4522 = vpop.f32.mrb[0].mxu0
      %v4523 = vpop.f32.mrb[0].mxu0
      %v4524 = vadd.f32 0.0, %v4523
      %v4525 = vpop.f32.mrb[0].mxu0
      %4526 = vmatprep.mubr.bf16.mxu0 0
      %4527 = vmatmul.mubr.bf16.gmra.mrb[0].mxu0 %v4377
      %v4528 = vpop.f32.mrb[0].mxu0
      %v4529 = vadd.f32 0.0, %v4528
      %v4530 = vpop.f32.mrb[0].mxu0
      %v4531 = vpop.f32.mrb[0].mxu0
      %v4532 = vadd.f32 0.0, %v4531
      %v4533 = vpop.f32.mrb[0].mxu0
      %4534 = vmatprep.mubr.bf16.mxu0 0
      %4535 = vmatmul.mubr.bf16.gmra.mrb[0].mxu0 %v4380
      %v4536 = vpop.f32.mrb[0].mxu0
      %v4537 = vadd.f32 0.0, %v4536
      %v4538 = vpop.f32.mrb[0].mxu0
      %v4539 = vpop.f32.mrb[0].mxu0
      %v4540 = vadd.f32 0.0, %v4539
      %v4541 = vpop.f32.mrb[0].mxu0
      %4542 = vdwg.mxu0
      %v4543 = vrcp.pop %v4212
      %v4544 = vrcp.pop %v4215
      %v4545 = vrcp.pop %v4218
      %v4546 = vrcp.pop %v4221
      %v4547 = vrcp.pop %v4224
      %v4548 = vrcp.pop %v4227
      %v4549 = vrcp.pop %v4230
      %v4550 = vrcp.pop %v4233
      %v4551 = vrcp.pop %v4236
      %v4552 = vrcp.pop %v4239
      %v4553 = vrcp.pop %v4242
      %v4554 = vrcp.pop %v4245
      %v4555 = vrcp.pop %v4248
      %v4556 = vrcp.pop %v4251
      %v4557 = vrcp.pop %v4254
      %v4558 = vrcp.pop %v4257
      %v4559 = vrcp.pop %v4260
      %v4560 = vrcp.pop %v4263
      %v4561 = vrcp.pop %v4266
      %v4562 = vrcp.pop %v4269
      %v4563 = vrcp.pop %v4272
      %v4564 = vrcp.pop %v4275
      %v4565 = vrcp.pop %v4278
      %v4566 = vrcp.pop %v4281
      %v4567 = vrcp.pop %v4284
      %v4568 = vrcp.pop %v4287
      %v4569 = vrcp.pop %v4290
      %v4570 = vrcp.pop %v4293
      %v4571 = vrcp.pop %v4296
      %v4572 = vrcp.pop %v4299
      %v4573 = vrcp.pop %v4302
      %v4574 = vrcp.pop %v4305
      %v4575 = vmul.f32 %v4417, %v4543
      %v4576 = vmul.f32 %v4420, %v4544
      %v4577 = vmul.f32 %v4425, %v4545
      %v4578 = vmul.f32 %v4428, %v4546
      %v4579 = vmul.f32 %v4433, %v4547
      %v4580 = vmul.f32 %v4436, %v4548
      %v4581 = vmul.f32 %v4441, %v4549
      %v4582 = vmul.f32 %v4444, %v4550
      %v4583 = vmul.f32 %v4449, %v4551
      %v4584 = vmul.f32 %v4452, %v4552
      %v4585 = vmul.f32 %v4457, %v4553
      %v4586 = vmul.f32 %v4460, %v4554
      %v4587 = vmul.f32 %v4465, %v4555
      %v4588 = vmul.f32 %v4468, %v4556
      %v4589 = vmul.f32 %v4473, %v4557
      %v4590 = vmul.f32 %v4476, %v4558
      %v4591 = vmul.f32 %v4481, %v4559
      %v4592 = vmul.f32 %v4484, %v4560
      %v4593 = vmul.f32 %v4489, %v4561
      %v4594 = vmul.f32 %v4492, %v4562
      %v4595 = vmul.f32 %v4497, %v4563
      %v4596 = vmul.f32 %v4500, %v4564
      %v4597 = vmul.f32 %v4505, %v4565
      %v4598 = vmul.f32 %v4508, %v4566
      %v4599 = vmul.f32 %v4513, %v4567
      %v4600 = vmul.f32 %v4516, %v4568
      %v4601 = vmul.f32 %v4521, %v4569
      %v4602 = vmul.f32 %v4524, %v4570
      %v4603 = vmul.f32 %v4529, %v4571
      %v4604 = vmul.f32 %v4532, %v4572
      %v4605 = vmul.f32 %v4537, %v4573
      %v4606 = vmul.f32 %v4540, %v4574
      %v4607 = vpack.c.bf16 %v4576, %v4575
      %v4608 = vpack.c.bf16 %v4578, %v4577
      %v4609 = vpack.c.bf16 %v4580, %v4579
      %v4610 = vpack.c.bf16 %v4582, %v4581
      %v4611 = vpack.c.bf16 %v4584, %v4583
      %v4612 = vpack.c.bf16 %v4586, %v4585
      %v4613 = vpack.c.bf16 %v4588, %v4587
      %v4614 = vpack.c.bf16 %v4590, %v4589
      %v4615 = vpack.c.bf16 %v4592, %v4591
      %v4616 = vpack.c.bf16 %v4594, %v4593
      %v4617 = vpack.c.bf16 %v4596, %v4595
      %v4618 = vpack.c.bf16 %v4598, %v4597
      %v4619 = vpack.c.bf16 %v4600, %v4599
      %v4620 = vpack.c.bf16 %v4602, %v4601
      %v4621 = vpack.c.bf16 %v4604, %v4603
      %v4622 = vpack.c.bf16 %v4606, %v4605
      %v4624 = vsel %vm410, %v4607, 0
      %v4627 = vsel %vm410, %v4608, 0
      %v4630 = vsel %vm410, %v4609, 0
      %v4633 = vsel %vm410, %v4610, 0
      %v4636 = vsel %vm410, %v4611, 0
      %v4639 = vsel %vm410, %v4612, 0
      %v4642 = vsel %vm410, %v4613, 0
      %v4645 = vsel %vm410, %v4614, 0
      %v4648 = vsel %vm410, %v4615, 0
      %v4651 = vsel %vm410, %v4616, 0
      %v4654 = vsel %vm410, %v4617, 0
      %v4657 = vsel %vm410, %v4618, 0
      %v4660 = vsel %vm410, %v4619, 0
      %v4663 = vsel %vm410, %v4620, 0
      %v4666 = vsel %vm410, %v4621, 0
      %v4669 = vsel %vm410, %v4622, 0
      %4671 = vmatprep.subr.bf16.mxu0 0
      %4672 = vmatpush1.bf16.msra.mxu0 %v309
      %4673 = vmatprep.subr.bf16.mxu0 0
      %4674 = vmatpush1.bf16.msra.mxu0 0
      %4675 = vmatprep.subr.bf16.mxu0 0
      %4676 = vmatpush1.bf16.msra.mxu0 0
      %4677 = vmatprep.subr.bf16.mxu0 0
      %4678 = vmatpush1.bf16.msra.mxu0 0
      %4679 = vmatprep.subr.bf16.mxu0 0
      %4680 = vmatpush1.bf16.msra.mxu0 0
      %4681 = vmatprep.subr.bf16.mxu0 0
      %4682 = vmatpush1.bf16.msra.mxu0 0
      %4683 = vmatprep.subr.bf16.mxu0 0
      %4684 = vmatpush1.bf16.msra.mxu0 0
      %4685 = vmatprep.subr.bf16.mxu0 0
      %4686 = vmatpush1.bf16.msra.mxu0 0
      %4687 = vmatprep.subr.bf16.mxu0 0
      %4688 = vmatpush1.bf16.msra.mxu0 0
      %4689 = vmatprep.subr.bf16.mxu0 0
      %4690 = vmatpush1.bf16.msra.mxu0 0
      %4691 = vmatprep.subr.bf16.mxu0 0
      %4692 = vmatpush1.bf16.msra.mxu0 0
      %4693 = vmatprep.subr.bf16.mxu0 0
      %4694 = vmatpush1.bf16.msra.mxu0 0
      %4695 = vmatprep.subr.bf16.mxu0 0
      %4696 = vmatpush1.bf16.msra.mxu0 0
      %4697 = vmatprep.subr.bf16.mxu0 0
      %4698 = vmatpush1.bf16.msra.mxu0 0
      %4699 = vmatprep.subr.bf16.mxu0 0
      %4700 = vmatpush1.bf16.msra.mxu0 0
      %4701 = vmatprep.subr.bf16.mxu0 0
      %4702 = vmatpush1.bf16.msra.mxu0 0
      %4703 = vmatprep.mubr.bf16.mxu0 0
      %4704 = vmatmul.mubr.bf16.gmra.mrb[0].mxu0 %v4624
      %v4705 = vpop.f32.mrb[0].mxu0
      %v4706 = vadd.f32 0.0, %v4705
      %v4707 = vpop.f32.mrb[0].mxu0
      %v4708 = vpop.f32.mrb[0].mxu0
      %v4709 = vadd.f32 0.0, %v4708
      %v4710 = vpop.f32.mrb[0].mxu0
      %4711 = vmatprep.mubr.bf16.mxu0 0
      %4712 = vmatmul.mubr.bf16.gmra.mrb[0].mxu0 %v4627
      %v4713 = vpop.f32.mrb[0].mxu0
      %v4714 = vadd.f32 0.0, %v4713
      %v4715 = vpop.f32.mrb[0].mxu0
      %v4716 = vpop.f32.mrb[0].mxu0
      %v4717 = vadd.f32 0.0, %v4716
      %v4718 = vpop.f32.mrb[0].mxu0
      %4719 = vmatprep.mubr.bf16.mxu0 0
      %4720 = vmatmul.mubr.bf16.gmra.mrb[0].mxu0 %v4630
      %v4721 = vpop.f32.mrb[0].mxu0
      %v4722 = vadd.f32 0.0, %v4721
      %v4723 = vpop.f32.mrb[0].mxu0
      %v4724 = vpop.f32.mrb[0].mxu0
      %v4725 = vadd.f32 0.0, %v4724
      %v4726 = vpop.f32.mrb[0].mxu0
      %4727 = vmatprep.mubr.bf16.mxu0 0
      %4728 = vmatmul.mubr.bf16.gmra.mrb[0].mxu0 %v4633
      %v4729 = vpop.f32.mrb[0].mxu0
      %v4730 = vadd.f32 0.0, %v4729
      %v4731 = vpop.f32.mrb[0].mxu0
      %v4732 = vpop.f32.mrb[0].mxu0
      %v4733 = vadd.f32 0.0, %v4732
      %v4734 = vpop.f32.mrb[0].mxu0
      %4735 = vmatprep.mubr.bf16.mxu0 0
      %4736 = vmatmul.mubr.bf16.gmra.mrb[0].mxu0 %v4636
      %v4737 = vpop.f32.mrb[0].mxu0
      %v4738 = vadd.f32 0.0, %v4737
      %v4739 = vpop.f32.mrb[0].mxu0
      %v4740 = vpop.f32.mrb[0].mxu0
      %v4741 = vadd.f32 0.0, %v4740
      %v4742 = vpop.f32.mrb[0].mxu0
      %4743 = vmatprep.mubr.bf16.mxu0 0
      %4744 = vmatmul.mubr.bf16.gmra.mrb[0].mxu0 %v4639
      %v4745 = vpop.f32.mrb[0].mxu0
      %v4746 = vadd.f32 0.0, %v4745
      %v4747 = vpop.f32.mrb[0].mxu0
      %v4748 = vpop.f32.mrb[0].mxu0
      %v4749 = vadd.f32 0.0, %v4748
      %v4750 = vpop.f32.mrb[0].mxu0
      %4751 = vmatprep.mubr.bf16.mxu0 0
      %4752 = vmatmul.mubr.bf16.gmra.mrb[0].mxu0 %v4642
      %v4753 = vpop.f32.mrb[0].mxu0
      %v4754 = vadd.f32 0.0, %v4753
      %v4755 = vpop.f32.mrb[0].mxu0
      %v4756 = vpop.f32.mrb[0].mxu0
      %v4757 = vadd.f32 0.0, %v4756
      %v4758 = vpop.f32.mrb[0].mxu0
      %4759 = vmatprep.mubr.bf16.mxu0 0
      %4760 = vmatmul.mubr.bf16.gmra.mrb[0].mxu0 %v4645
      %v4761 = vpop.f32.mrb[0].mxu0
      %v4762 = vadd.f32 0.0, %v4761
      %v4763 = vpop.f32.mrb[0].mxu0
      %v4764 = vpop.f32.mrb[0].mxu0
      %v4765 = vadd.f32 0.0, %v4764
      %v4766 = vpop.f32.mrb[0].mxu0
      %4767 = vmatprep.mubr.bf16.mxu0 0
      %4768 = vmatmul.mubr.bf16.gmra.mrb[0].mxu0 %v4648
      %v4769 = vpop.f32.mrb[0].mxu0
      %v4770 = vadd.f32 0.0, %v4769
      %v4771 = vpop.f32.mrb[0].mxu0
      %v4772 = vpop.f32.mrb[0].mxu0
      %v4773 = vadd.f32 0.0, %v4772
      %v4774 = vpop.f32.mrb[0].mxu0
      %4775 = vmatprep.mubr.bf16.mxu0 0
      %4776 = vmatmul.mubr.bf16.gmra.mrb[0].mxu0 %v4651
      %v4777 = vpop.f32.mrb[0].mxu0
      %v4778 = vadd.f32 0.0, %v4777
      %v4779 = vpop.f32.mrb[0].mxu0
      %v4780 = vpop.f32.mrb[0].mxu0
      %v4781 = vadd.f32 0.0, %v4780
      %v4782 = vpop.f32.mrb[0].mxu0
      %4783 = vmatprep.mubr.bf16.mxu0 0
      %4784 = vmatmul.mubr.bf16.gmra.mrb[0].mxu0 %v4654
      %v4785 = vpop.f32.mrb[0].mxu0
      %v4786 = vadd.f32 0.0, %v4785
      %v4787 = vpop.f32.mrb[0].mxu0
      %v4788 = vpop.f32.mrb[0].mxu0
      %v4789 = vadd.f32 0.0, %v4788
      %v4790 = vpop.f32.mrb[0].mxu0
      %4791 = vmatprep.mubr.bf16.mxu0 0
      %4792 = vmatmul.mubr.bf16.gmra.mrb[0].mxu0 %v4657
      %v4793 = vpop.f32.mrb[0].mxu0
      %v4794 = vadd.f32 0.0, %v4793
      %v4795 = vpop.f32.mrb[0].mxu0
      %v4796 = vpop.f32.mrb[0].mxu0
      %v4797 = vadd.f32 0.0, %v4796
      %v4798 = vpop.f32.mrb[0].mxu0
      %4799 = vmatprep.mubr.bf16.mxu0 0
      %4800 = vmatmul.mubr.bf16.gmra.mrb[0].mxu0 %v4660
      %v4801 = vpop.f32.mrb[0].mxu0
      %v4802 = vadd.f32 0.0, %v4801
      %v4803 = vpop.f32.mrb[0].mxu0
      %v4804 = vpop.f32.mrb[0].mxu0
      %v4805 = vadd.f32 0.0, %v4804
      %v4806 = vpop.f32.mrb[0].mxu0
      %4807 = vmatprep.mubr.bf16.mxu0 0
      %4808 = vmatmul.mubr.bf16.gmra.mrb[0].mxu0 %v4663
      %v4809 = vpop.f32.mrb[0].mxu0
      %v4810 = vadd.f32 0.0, %v4809
      %v4811 = vpop.f32.mrb[0].mxu0
      %v4812 = vpop.f32.mrb[0].mxu0
      %v4813 = vadd.f32 0.0, %v4812
      %v4814 = vpop.f32.mrb[0].mxu0
      %4815 = vmatprep.mubr.bf16.mxu0 0
      %4816 = vmatmul.mubr.bf16.gmra.mrb[0].mxu0 %v4666
      %v4817 = vpop.f32.mrb[0].mxu0
      %v4818 = vadd.f32 0.0, %v4817
      %v4819 = vpop.f32.mrb[0].mxu0
      %v4820 = vpop.f32.mrb[0].mxu0
      %v4821 = vadd.f32 0.0, %v4820
      %v4822 = vpop.f32.mrb[0].mxu0
      %4823 = vmatprep.mubr.bf16.mxu0 0
      %4824 = vmatmul.mubr.bf16.gmra.mrb[0].mxu0 %v4669
      %v4825 = vpop.f32.mrb[0].mxu0
      %v4826 = vadd.f32 0.0, %v4825
      %v4827 = vpop.f32.mrb[0].mxu0
      %v4828 = vpop.f32.mrb[0].mxu0
      %v4829 = vadd.f32 0.0, %v4828
      %v4830 = vpop.f32.mrb[0].mxu0
      %4831 = vdwg.mxu0
      %v4832 = vadd.f32 %v3693, %v4706
      %v4833 = vadd.f32 %v3694, %v4709
      %v4834 = vadd.f32 %v3695, %v4714
      %v4835 = vadd.f32 %v3696, %v4717
      %v4836 = vadd.f32 %v3697, %v4722
      %v4837 = vadd.f32 %v3698, %v4725
      %v4838 = vadd.f32 %v3699, %v4730
      %v4839 = vadd.f32 %v3700, %v4733
      %v4840 = vadd.f32 %v3701, %v4738
      %v4841 = vadd.f32 %v3702, %v4741
      %v4842 = vadd.f32 %v3703, %v4746
      %v4843 = vadd.f32 %v3704, %v4749
      %v4844 = vadd.f32 %v3705, %v4754
      %v4845 = vadd.f32 %v3706, %v4757
      %v4846 = vadd.f32 %v3707, %v4762
      %v4847 = vadd.f32 %v3708, %v4765
      %v4848 = vadd.f32 %v3709, %v4770
      %v4849 = vadd.f32 %v3710, %v4773
      %v4850 = vadd.f32 %v3711, %v4778
      %v4851 = vadd.f32 %v3712, %v4781
      %v4852 = vadd.f32 %v3713, %v4786
      %v4853 = vadd.f32 %v3714, %v4789
      %v4854 = vadd.f32 %v3715, %v4794
      %v4855 = vadd.f32 %v3716, %v4797
      %v4856 = vadd.f32 %v3717, %v4802
      %v4857 = vadd.f32 %v3718, %v4805
      %v4858 = vadd.f32 %v3719, %v4810
      %v4859 = vadd.f32 %v3720, %v4813
      %v4860 = vadd.f32 %v3721, %v4818
      %v4861 = vadd.f32 %v3722, %v4821
      %v4862 = vadd.f32 %v3723, %v4826
      %v4863 = vadd.f32 %v3724, %v4829
      %v4864 = vld [vmem:[%s3] sm:$0x1]
      %v4866 = vlaneseq
      %v4867 = vshrl.u32 %v4866, 7
      %v4868 = vsub.s32 0, %v4867
      %v4869 = vrot.slane %v4864, %v4868
      %v4871 = vadd.f32 %v4832, %v4869
      %v4872 = vadd.f32 %v4833, %v4869
      %v4873 = vadd.f32 %v4834, %v4869
      %v4874 = vadd.f32 %v4835, %v4869
      %v4875 = vadd.f32 %v4836, %v4869
      %v4876 = vadd.f32 %v4837, %v4869
      %v4877 = vadd.f32 %v4838, %v4869
      %v4878 = vadd.f32 %v4839, %v4869
      %v4879 = vadd.f32 %v4840, %v4869
      %v4880 = vadd.f32 %v4841, %v4869
      %v4881 = vadd.f32 %v4842, %v4869
      %v4882 = vadd.f32 %v4843, %v4869
      %v4883 = vadd.f32 %v4844, %v4869
      %v4884 = vadd.f32 %v4845, %v4869
      %v4885 = vadd.f32 %v4846, %v4869
      %v4886 = vadd.f32 %v4847, %v4869
      %v4887 = vadd.f32 %v4848, %v4869
      %v4888 = vadd.f32 %v4849, %v4869
      %v4889 = vadd.f32 %v4850, %v4869
      %v4890 = vadd.f32 %v4851, %v4869
      %v4891 = vadd.f32 %v4852, %v4869
      %v4892 = vadd.f32 %v4853, %v4869
      %v4893 = vadd.f32 %v4854, %v4869
      %v4894 = vadd.f32 %v4855, %v4869
      %v4895 = vadd.f32 %v4856, %v4869
      %v4896 = vadd.f32 %v4857, %v4869
      %v4897 = vadd.f32 %v4858, %v4869
      %v4898 = vadd.f32 %v4859, %v4869
      %v4899 = vadd.f32 %v4860, %v4869
      %v4900 = vadd.f32 %v4861, %v4869
      %v4901 = vadd.f32 %v4862, %v4869
      %v4902 = vadd.f32 %v4863, %v4869
      %4903 = vst.msk [vmem:[%s255] sm:$0xff] %vm664, %v4871
      %4904 = vst.msk [vmem:[%s255 + $0x8] sm:$0xff] %vm664, %v4872
      %4905 = vst.msk [vmem:[%s255 + $0x10] sm:$0xff] %vm664, %v4873
      %4906 = vst.msk [vmem:[%s255 + $0x18] sm:$0xff] %vm664, %v4874
      %4907 = vst.msk [vmem:[%s255 + $0x20] sm:$0xff] %vm664, %v4875
      %4908 = vst.msk [vmem:[%s255 + $0x28] sm:$0xff] %vm664, %v4876
      %4909 = vst.msk [vmem:[%s255 + $0x30] sm:$0xff] %vm664, %v4877
      %4910 = vst.msk [vmem:[%s255 + $0x38] sm:$0xff] %vm664, %v4878
      %4911 = vst.msk [vmem:[%s255 + $0x40] sm:$0xff] %vm664, %v4879
      %4912 = vst.msk [vmem:[%s255 + $0x48] sm:$0xff] %vm664, %v4880
      %4913 = vst.msk [vmem:[%s255 + $0x50] sm:$0xff] %vm664, %v4881
      %4914 = vst.msk [vmem:[%s255 + $0x58] sm:$0xff] %vm664, %v4882
      %4915 = vst.msk [vmem:[%s255 + $0x60] sm:$0xff] %vm664, %v4883
      %4916 = vst.msk [vmem:[%s255 + $0x68] sm:$0xff] %vm664, %v4884
      %4917 = vst.msk [vmem:[%s255 + $0x70] sm:$0xff] %vm664, %v4885
      %4918 = vst.msk [vmem:[%s255 + $0x78] sm:$0xff] %vm664, %v4886
      %4919 = vst.msk [vmem:[%s255 + $0x80] sm:$0xff] %vm664, %v4887
      %4920 = vst.msk [vmem:[%s255 + $0x88] sm:$0xff] %vm664, %v4888
      %4921 = vst.msk [vmem:[%s255 + $0x90] sm:$0xff] %vm664, %v4889
      %4922 = vst.msk [vmem:[%s255 + $0x98] sm:$0xff] %vm664, %v4890
      %4923 = vst.msk [vmem:[%s255 + $0xa0] sm:$0xff] %vm664, %v4891
      %4924 = vst.msk [vmem:[%s255 + $0xa8] sm:$0xff] %vm664, %v4892
      %4925 = vst.msk [vmem:[%s255 + $0xb0] sm:$0xff] %vm664, %v4893
      %4926 = vst.msk [vmem:[%s255 + $0xb8] sm:$0xff] %vm664, %v4894
      %4927 = vst.msk [vmem:[%s255 + $0xc0] sm:$0xff] %vm664, %v4895
      %4928 = vst.msk [vmem:[%s255 + $0xc8] sm:$0xff] %vm664, %v4896
      %4929 = vst.msk [vmem:[%s255 + $0xd0] sm:$0xff] %vm664, %v4897
      %4930 = vst.msk [vmem:[%s255 + $0xd8] sm:$0xff] %vm664, %v4898
      %4931 = vst.msk [vmem:[%s255 + $0xe0] sm:$0xff] %vm664, %v4899
      %4932 = vst.msk [vmem:[%s255 + $0xe8] sm:$0xff] %vm664, %v4900
      %4933 = vst.msk [vmem:[%s255 + $0xf0] sm:$0xff] %vm664, %v4901
      %4934 = vst.msk [vmem:[%s255 + $0xf8] sm:$0xff] %vm664, %v4902
      %s4935 = smul.u32 32, %s20
      %p4936 = scmp.lt.s32.totalorder %s19, 1
      %s4937 = scalar_select %p4936, %s19, 1
      %p4938 = scmp.lt.s32.totalorder %s4935, 63
      %s4939 = scalar_select %p4938, %s4935, 63
      %s4940 = smul.addr %s4937, 64
      %s4941 = sadd.s32 %s4939, %s4940
      %s4942 = smul.addr %s4941, 8
      %s4943 = scalar_lea.vmem %s4, %s4942
      // Predicated region
      $region37: #{run.7} parent=35 // pred_check
        %p4944 = pneg %p143
      $region38: #{run.7} parent=35 // pred_check_branch
        %4946 = sbr.rel (%p4944) target = $region40
      $region39: #{run.7} parent=35 // pred_region
        %s4947 = smul.u32 32, %s20
      $region40: #{run.7} parent=35 // pred_fallthru
        _
    $region36: #{run.7} parent=5 // pred_fallthru
      _
    %p4948 = scmp.le.s32.totalorder 2, %s10
    // Predicated region
    $region41: #{run.7} parent=5 // pred_check
      %p4949 = pneg %p4948
    $region42: #{run.7} parent=5 // pred_check_branch
      %4951 = sbr.rel (%p4949) target = $region44
    $region43: #{run.7} parent=5 // pred_region
      %s4952 = ssub.s32 %s10, 2
      // Predicated region
      $region45: #{run.7} parent=43 // pred_check
        %p4953 = pneg %p149
      $region46: #{run.7} parent=43 // pred_check_branch
        %4955 = sbr.rel (%p4953) target = $region48
      $region47: #{run.7} parent=43 // pred_region
        %s4956 = smul.u32 32, %s22
        %p4957 = scmp.lt.s32.totalorder %s21, 1
        %s4958 = scalar_select %p4957, %s21, 1
        %p4959 = scmp.lt.s32.totalorder %s4956, 63
        %s4960 = scalar_select %p4959, %s4956, 63
        %s4961 = smul.addr %s4958, 64
        %s4962 = sadd.s32 %s4960, %s4961
        %s4963 = smul.addr %s4962, 8
        %s4964 = scalar_lea.vmem %s4, %s4963
      $region48: #{run.7} parent=43 // pred_fallthru
        _
    $region44: #{run.7} parent=5 // pred_fallthru
      _
  $region6: #{run.7} parent=0 // loop_footer
    %s14 = sadd.s32 1, %s10
  $region7: #{run.7} parent=0 // loop_footer_branch
    %9 = sbr.rel target = $region3
  $region8: #{run.7} parent=0 // loop_exit
    _

</llo_original>
